<compile_context>
chip_gen: v7x
topology: tpu7x:2x2x1
jax: 0.10.0
libtpu: 0.0.40
codegen_flags: <defaults>
</compile_context>

<pallas_src>
import math

import jax
import jax.numpy as jnp
from jax.experimental import pallas as pl
from jax.experimental.pallas import tpu as pltpu


# ----------------------------- Pallas kernels -----------------------------


def make_block_kernel(batch, seq_len, num_heads, head_dim, ln_eps, rms_eps):
    D = num_heads * head_dim
    M = batch * seq_len
    # Per-head RetNet decay rates (synthesized; see TODO above).
    log_gammas = [math.log(1.0 - 2.0 ** (-5.0 - h)) for h in range(num_heads)]

    def kernel(
        x_ref, cos_ref, sin_ref,
        ln1w_ref, ln1b_ref,
        wq_ref, bq_ref, wk_ref, bk_ref, wv_ref, bv_ref, wg_ref, bg_ref,
        wp_ref, bp_ref, rmsw_ref,
        ln2w_ref, ln2b_ref, w1_ref, w3_ref, w2_ref,
        out_ref,
    ):
        x = x_ref[...]                                  # (M, D) f32, M = B*S

        def layernorm(z, w, b):
            mu = jnp.mean(z, axis=-1, keepdims=True)
            var = jnp.mean(jnp.square(z - mu), axis=-1, keepdims=True)
            return (z - mu) * jax.lax.rsqrt(var + ln_eps) * w + b

        def linear(z_bf16, w_ref, b_ref):
            # bf16 operands feed the MXU; accumulate in f32.
            return jnp.dot(z_bf16, w_ref[...],
                           preferred_element_type=jnp.float32) + b_ref[...]

        # --- attention (Retention) branch ---
        xn = layernorm(x, ln1w_ref[...], ln1b_ref[...])
        xn_b = xn.astype(jnp.bfloat16)
        q = linear(xn_b, wq_ref, bq_ref)                # (M, D) f32
        k = linear(xn_b, wk_ref, bk_ref)                # scaling pre-folded into wk/bk
        v = linear(xn_b, wv_ref, bv_ref)
        g = linear(xn_b, wg_ref, bg_ref)

        # RoPE over interleaved (real, imag) pairs within each head.
        # cos/sin are pre-expanded to (M, D) on the host (sin carries the
        # per-pair [-s, +s] sign pattern; sin table := cos table as in reference).
        cos = cos_ref[...]
        sin = sin_ref[...]
        lane = jax.lax.broadcasted_iota(jnp.int32, (M, D), 1)
        even = (lane % 2) == 0

        def rotate_pairs(z):
            # out[2i] = z[2i+1], out[2i+1] = z[2i].  pltpu.roll matches jnp.roll
            # semantics but requires non-negative shift, so shift=D-1 stands in
            # for shift=-1 (circularly identical).
            return jnp.where(even,
                             pltpu.roll(z, D - 1, 1),
                             pltpu.roll(z, 1, 1))

        q = q * cos + rotate_pairs(q) * sin
        k = k * cos + rotate_pairs(k) * sin

        # Leading-dim split (lane dim untouched) so retention matmuls are
        # batched over B rather than gridded over batch.
        q3 = q.astype(jnp.bfloat16).reshape(batch, seq_len, D)
        k3 = k.astype(jnp.bfloat16).reshape(batch, seq_len, D)
        v3 = v.astype(jnp.bfloat16).reshape(batch, seq_len, D)

        # Causal decay mask generated in-kernel (no (H, S, S) HBM table).
        ii = jax.lax.broadcasted_iota(jnp.int32, (seq_len, seq_len), 0)
        jj = jax.lax.broadcasted_iota(jnp.int32, (seq_len, seq_len), 1)
        diff = (ii - jj).astype(jnp.float32)
        causal = ii >= jj

        rmsw = rmsw_ref[...]                            # (1, head_dim), hoisted

        head_outs = []
        for h in range(num_heads):                      # static unroll (H small)
            lo, hi = h * head_dim, (h + 1) * head_dim
            qh, kh, vh = q3[:, :, lo:hi], k3[:, :, lo:hi], v3[:, :, lo:hi]
            scores = jnp.einsum('bqd,bkd->bqk', qh, kh,
                                preferred_element_type=jnp.float32)   # (B, S, S)
            denom = jnp.clip(
                jnp.sum(jnp.abs(scores), axis=-1, keepdims=True), 1.0, 5e4)
            decay = jnp.where(causal, jnp.exp(diff * log_gammas[h]), 0.0)
            # Reference adds the decay mask AFTER the abs-sum normalization.
            scores = scores / denom + decay[None]
            oh = jnp.einsum('bqk,bkd->bqd', scores.astype(jnp.bfloat16), vh,
                            preferred_element_type=jnp.float32)       # (B, S, hd)
            rms = jax.lax.rsqrt(
                jnp.mean(jnp.square(oh), axis=-1, keepdims=True) + rms_eps)
            head_outs.append(oh * rms * rmsw)
        attn = jnp.concatenate(head_outs, axis=-1).reshape(M, D)       # (M, D)

        attn = attn * g
        attn = jnp.dot(attn.astype(jnp.bfloat16), wp_ref[...],
                       preferred_element_type=jnp.float32) + bp_ref[...]
        x1 = x + attn

        # --- feed-forward branch (SwiGLU; hidden zero-padded to a lane multiple,
        # dropout = identity in eval) ---
        xn2 = layernorm(x1, ln2w_ref[...], ln2b_ref[...]).astype(jnp.bfloat16)
        h1 = jnp.dot(xn2, w1_ref[...], preferred_element_type=jnp.float32)
        h3 = jnp.dot(xn2, w3_ref[...], preferred_element_type=jnp.float32)
        mid = (jax.nn.silu(h1) * h3).astype(jnp.bfloat16)
        ff = jnp.dot(mid, w2_ref[...], preferred_element_type=jnp.float32)

        out_ref[...] = (x1 + ff).astype(out_ref.dtype)

    return kernel


def make_head_kernel(ln_eps):
    def kernel(x_ref, lnw_ref, lnb_ref, wv_ref, out_ref):
        x = x_ref[...]                                  # (M, D)
        mu = jnp.mean(x, axis=-1, keepdims=True)
        var = jnp.mean(jnp.square(x - mu), axis=-1, keepdims=True)
        xn = (x - mu) * jax.lax.rsqrt(var + ln_eps) * lnw_ref[...] + lnb_ref[...]
        out_ref[...] = jnp.dot(
            xn.astype(jnp.bfloat16), wv_ref[...],
            preferred_element_type=jnp.float32).astype(out_ref.dtype)

    return kernel


# ----------------------------- wrappers -----------------------------


def _full(shape):
    n = len(shape)
    return pl.BlockSpec(shape, lambda i, _n=n: (0,) * _n)


def block_forward(x2d, cos2d, sin2d, p, *, batch, seq_len, num_heads, head_dim,
                  ln_eps, rms_eps):
    M, D = x2d.shape
    Hpad = p["w1"].shape[1]
    kernel = make_block_kernel(batch, seq_len, num_heads, head_dim, ln_eps, rms_eps)
    operands = (x2d, cos2d, sin2d,
                p["ln1w"], p["ln1b"],
                p["wq"], p["bq"], p["wk"], p["bk"], p["wv"], p["bv"],
                p["wg"], p["bg"], p["wp"], p["bp"], p["rmsw"],
                p["ln2w"], p["ln2b"], p["w1"], p["w3"], p["w2"])
    in_specs = [_full(a.shape) for a in operands]
    flops = (2 * M * D * D * 5                       # q/k/v/gate/proj linears
             + 2 * M * D * Hpad * 2 + 2 * M * Hpad * D   # SwiGLU
             + 2 * batch * num_heads * 2 * seq_len * seq_len * head_dim)  # retention
    bytes_accessed = int(sum(a.size * a.dtype.itemsize for a in operands)
                         + M * D * 4)
    return pl.pallas_call(
        kernel,
        out_shape=jax.ShapeDtypeStruct((M, D), jnp.float32),
        grid=(1,),
        in_specs=in_specs,
        out_specs=_full((M, D)),
        compiler_params=pltpu.CompilerParams(dimension_semantics=("arbitrary",)),
        cost_estimate=pl.CostEstimate(
            flops=int(flops),
            transcendentals=int(M * Hpad + num_heads * seq_len * seq_len),
            bytes_accessed=bytes_accessed),
    )(*operands)


def head_forward(x2d, lnw, lnb, wvocab_pad, *, ln_eps):
    M, D = x2d.shape
    Vp = wvocab_pad.shape[1]
    return pl.pallas_call(
        make_head_kernel(ln_eps),
        out_shape=jax.ShapeDtypeStruct((M, Vp), jnp.float32),
        grid=(1,),
        in_specs=[_full((M, D)), _full((1, D)), _full((1, D)), _full((D, Vp))],
        out_specs=_full((M, Vp)),
        compiler_params=pltpu.CompilerParams(dimension_semantics=("arbitrary",)),
    )(x2d, lnw, lnb, wvocab_pad)


# ----------------------------- parameter / buffer setup -----------------------------


def swiglu_hidden(d_model, multiple_of):
    h = 4 * d_model
    h = int(2 * h / 3)
    return multiple_of * ((h + multiple_of - 1) // multiple_of)


def _round_up(n, m):
    return ((n + m - 1) // m) * m


def init_layer_params(key, d_model, head_dim, hidden):
    """f32 'PyTorch-equivalent' parameters; weights stored (D_in, D_out)."""
    ks = jax.random.split(key, 13)

    def lin(k, din, dout):
        return jax.random.normal(k, (din, dout), jnp.float32) * 0.02

    def bias(k, dout):
        return jax.random.normal(k, (1, dout), jnp.float32) * 0.02

    return dict(
        ln1w=jnp.ones((1, d_model), jnp.float32),
        ln1b=jnp.zeros((1, d_model), jnp.float32),
        wq=lin(ks[0], d_model, d_model), bq=bias(ks[1], d_model),
        wk=lin(ks[2], d_model, d_model), bk=bias(ks[3], d_model),
        wv=lin(ks[4], d_model, d_model), bv=bias(ks[5], d_model),
        wg=lin(ks[6], d_model, d_model), bg=bias(ks[7], d_model),
        wp=lin(ks[8], d_model, d_model), bp=bias(ks[9], d_model),
        rmsw=jnp.ones((1, head_dim), jnp.float32),
        ln2w=jnp.ones((1, d_model), jnp.float32),
        ln2b=jnp.zeros((1, d_model), jnp.float32),
        w1=lin(ks[10], d_model, hidden),
        w3=lin(ks[11], d_model, hidden),
        w2=lin(ks[12], hidden, d_model),
    )


def prepare_layer_params(p, *, scaling, hidden, hidden_pad):
    """Kernel-ready params: fold retention scaling into wk/bk, zero-pad the SwiGLU
    hidden dim to a lane multiple (exact: silu(0)*0 = 0 and padded w2 rows are 0),
    and cast matmul weights to bf16 (halves weight DMA; f32 accumulation in-kernel)."""
    q = dict(p)
    q["wk"] = p["wk"] * scaling
    q["bk"] = p["bk"] * scaling
    pad = hidden_pad - hidden
    if pad:
        q["w1"] = jnp.pad(p["w1"], ((0, 0), (0, pad)))
        q["w3"] = jnp.pad(p["w3"], ((0, 0), (0, pad)))
        q["w2"] = jnp.pad(p["w2"], ((0, pad), (0, 0)))
    for name in ("wq", "wk", "wv", "wg", "wp", "w1", "w3", "w2"):
        q[name] = q[name].astype(jnp.bfloat16)
    return q


def build_rope_tables(batch, seq_len, num_heads, head_dim):
    half = head_dim // 2
    inv_freq = 1.0 / (10000.0 ** (jnp.arange(half, dtype=jnp.float32) / half))
    angles = jnp.arange(seq_len, dtype=jnp.float32)[:, None] * inv_freq[None, :]
    cos = jnp.cos(angles)
    # NOTE: reference apply_rope binds freqs_sin := freqs_cos (upstream bug) — reproduced.
    sin_eff = cos
    # Expand to (S, D): cos duplicated per pair; sin with [-s, +s] sign pattern per pair.
    cos_full = jnp.tile(jnp.repeat(cos, 2, axis=-1), (1, num_heads))
    sin_pairs = jnp.stack([-sin_eff, sin_eff], axis=-1).reshape(seq_len, head_dim)
    sin_full = jnp.tile(sin_pairs, (1, num_heads))
    # Pre-expand over batch to match the flattened (B*S, D) activation rows.
    return jnp.tile(cos_full, (batch, 1)), jnp.tile(sin_full, (batch, 1))


# ----------------------------- full model forward -----------------------------


def roformer_forward(token_ids, params, cos2d, sin2d, cfg):
    B, T = token_ids.shape
    D = cfg["d_model"]
    x = jnp.take(params["word_emb"], token_ids, axis=0)          # (B, T, D)
    # (pos_emb exists in the reference __init__ but is unused in forward.)
    x2d = x.reshape(B * T, D)                                    # fold batch into M
    for lp in params["layers"]:
        x2d = block_forward(
            x2d, cos2d, sin2d, lp,
            batch=B, seq_len=T, num_heads=cfg["num_heads"],
            head_dim=cfg["head_dim"], ln_eps=1e-5, rms_eps=cfg["eps"])
    logits_pad = head_forward(x2d, params["lnw"], params["lnb"],
                              params["wvocab_pad"], ln_eps=1e-5)  # (M, 128)
    return logits_pad[:, :cfg["vocab_size"]].reshape(B, T, cfg["vocab_size"])


if __name__ == "__main__":
    cfg = dict(vocab_size=65, seq_len=64, d_model=128, num_heads=4,
               num_layers=2, multiple_of=4, eps=1e-5)
    cfg["head_dim"] = cfg["d_model"] // cfg["num_heads"]
    hidden = swiglu_hidden(cfg["d_model"], cfg["multiple_of"])    # 344 (as in spec)
    hidden_pad = _round_up(hidden, 128)                           # 384 (lane-dense)
    vocab_pad = _round_up(cfg["vocab_size"], 128)                 # 128 (lane-dense)
    scaling = cfg["head_dim"] ** -0.5

    key = jax.random.PRNGKey(0)
    k_emb, k_vocab, k_tok, *k_layers = jax.random.split(key, 3 + cfg["num_layers"])

    layers = [
        prepare_layer_params(
            init_layer_params(k, cfg["d_model"], cfg["head_dim"], hidden),
            scaling=scaling, hidden=hidden, hidden_pad=hidden_pad)
        for k in k_layers
    ]
    wvocab = jax.random.normal(k_vocab, (cfg["d_model"], cfg["vocab_size"]),
                               jnp.float32) * 0.02
    params = dict(
        word_emb=jax.random.normal(k_emb, (cfg["vocab_size"], cfg["d_model"]),
                                   jnp.float32) * 0.02,
        layers=layers,
        lnw=jnp.ones((1, cfg["d_model"]), jnp.float32),
        lnb=jnp.zeros((1, cfg["d_model"]), jnp.float32),
        # zero-padded vocab projection -> lane-dense (D, 128) kernel output
        wvocab_pad=jnp.pad(
            wvocab, ((0, 0), (0, vocab_pad - cfg["vocab_size"]))
        ).astype(jnp.bfloat16),
    )

    batch = 2
    token_ids = jax.random.randint(k_tok, (batch, cfg["seq_len"]), 0,
                                   cfg["vocab_size"], dtype=jnp.int32)

    cos2d, sin2d = build_rope_tables(batch, cfg["seq_len"], cfg["num_heads"],
                                     cfg["head_dim"])

    logits = roformer_forward(token_ids, params, cos2d, sin2d, cfg)
    logits = jax.block_until_ready(logits)
    assert logits.shape == (batch, cfg["seq_len"], cfg["vocab_size"])
    assert bool(jnp.all(jnp.isfinite(logits)))
    print("KERNEL_OK")
</pallas_src>

<mosaic_0001>
module attributes {stable_mosaic.version = 11 : i64} {
  func.func @kernel(%arg0: i32, %arg1: memref<128x128xf32, #tpu.memory_space<vmem>>, %arg2: memref<128x128xf32, #tpu.memory_space<vmem>>, %arg3: memref<128x128xf32, #tpu.memory_space<vmem>>, %arg4: memref<1x128xf32, #tpu.memory_space<vmem>>, %arg5: memref<1x128xf32, #tpu.memory_space<vmem>>, %arg6: memref<128x128xbf16, #tpu.memory_space<vmem>>, %arg7: memref<1x128xf32, #tpu.memory_space<vmem>>, %arg8: memref<128x128xbf16, #tpu.memory_space<vmem>>, %arg9: memref<1x128xf32, #tpu.memory_space<vmem>>, %arg10: memref<128x128xbf16, #tpu.memory_space<vmem>>, %arg11: memref<1x128xf32, #tpu.memory_space<vmem>>, %arg12: memref<128x128xbf16, #tpu.memory_space<vmem>>, %arg13: memref<1x128xf32, #tpu.memory_space<vmem>>, %arg14: memref<128x128xbf16, #tpu.memory_space<vmem>>, %arg15: memref<1x128xf32, #tpu.memory_space<vmem>>, %arg16: memref<1x32xf32, #tpu.memory_space<vmem>>, %arg17: memref<1x128xf32, #tpu.memory_space<vmem>>, %arg18: memref<1x128xf32, #tpu.memory_space<vmem>>, %arg19: memref<128x384xbf16, #tpu.memory_space<vmem>>, %arg20: memref<128x384xbf16, #tpu.memory_space<vmem>>, %arg21: memref<384x128xbf16, #tpu.memory_space<vmem>>, %arg22: memref<128x128xf32, #tpu.memory_space<vmem>>) attributes {dimension_semantics = [#tpu.dimension_semantics<arbitrary>], iteration_bounds = array<i64: 1>, scalar_prefetch = 0 : i64, scratch_operands = 0 : i64, tpu.core_type = #tpu.core_type<tc>, window_params = [{pipeline_mode = #tpu.pipeline_mode<synchronous>, transform_indices = @transform_0, window_bounds = array<i64: 128, 128>}, {pipeline_mode = #tpu.pipeline_mode<synchronous>, transform_indices = @transform_1, window_bounds = array<i64: 128, 128>}, {pipeline_mode = #tpu.pipeline_mode<synchronous>, transform_indices = @transform_2, window_bounds = array<i64: 128, 128>}, {pipeline_mode = #tpu.pipeline_mode<synchronous>, transform_indices = @transform_3, window_bounds = array<i64: 1, 128>}, {pipeline_mode = #tpu.pipeline_mode<synchronous>, transform_indices = @transform_4, window_bounds = array<i64: 1, 128>}, {pipeline_mode = #tpu.pipeline_mode<synchronous>, transform_indices = @transform_5, window_bounds = array<i64: 128, 128>}, {pipeline_mode = #tpu.pipeline_mode<synchronous>, transform_indices = @transform_6, window_bounds = array<i64: 1, 128>}, {pipeline_mode = #tpu.pipeline_mode<synchronous>, transform_indices = @transform_7, window_bounds = array<i64: 128, 128>}, {pipeline_mode = #tpu.pipeline_mode<synchronous>, transform_indices = @transform_8, window_bounds = array<i64: 1, 128>}, {pipeline_mode = #tpu.pipeline_mode<synchronous>, transform_indices = @transform_9, window_bounds = array<i64: 128, 128>}, {pipeline_mode = #tpu.pipeline_mode<synchronous>, transform_indices = @transform_10, window_bounds = array<i64: 1, 128>}, {pipeline_mode = #tpu.pipeline_mode<synchronous>, transform_indices = @transform_11, window_bounds = array<i64: 128, 128>}, {pipeline_mode = #tpu.pipeline_mode<synchronous>, transform_indices = @transform_12, window_bounds = array<i64: 1, 128>}, {pipeline_mode = #tpu.pipeline_mode<synchronous>, transform_indices = @transform_13, window_bounds = array<i64: 128, 128>}, {pipeline_mode = #tpu.pipeline_mode<synchronous>, transform_indices = @transform_14, window_bounds = array<i64: 1, 128>}, {pipeline_mode = #tpu.pipeline_mode<synchronous>, transform_indices = @transform_15, window_bounds = array<i64: 1, 32>}, {pipeline_mode = #tpu.pipeline_mode<synchronous>, transform_indices = @transform_16, window_bounds = array<i64: 1, 128>}, {pipeline_mode = #tpu.pipeline_mode<synchronous>, transform_indices = @transform_17, window_bounds = array<i64: 1, 128>}, {pipeline_mode = #tpu.pipeline_mode<synchronous>, transform_indices = @transform_18, window_bounds = array<i64: 128, 384>}, {pipeline_mode = #tpu.pipeline_mode<synchronous>, transform_indices = @transform_19, window_bounds = array<i64: 128, 384>}, {pipeline_mode = #tpu.pipeline_mode<synchronous>, transform_indices = @transform_20, window_bounds = array<i64: 384, 128>}, {pipeline_mode = #tpu.pipeline_mode<synchronous>, transform_indices = @transform_21, window_bounds = array<i64: 128, 128>}]} {
    %c0 = arith.constant 0 : index
    %c0_0 = arith.constant 0 : index
    %0 = vector.load %arg1[%c0, %c0_0] : memref<128x128xf32, #tpu.memory_space<vmem>>, vector<128x128xf32>
    %c0_1 = arith.constant 0 : index
    %c0_2 = arith.constant 0 : index
    %1 = vector.load %arg4[%c0_1, %c0_2] : memref<1x128xf32, #tpu.memory_space<vmem>>, vector<1x128xf32>
    %c0_3 = arith.constant 0 : index
    %c0_4 = arith.constant 0 : index
    %2 = vector.load %arg5[%c0_3, %c0_4] : memref<1x128xf32, #tpu.memory_space<vmem>>, vector<1x128xf32>
    %cst = arith.constant dense<0.000000e+00> : vector<128xf32>
    %3 = vector.multi_reduction <add>, %0, %cst [1] : vector<128x128xf32> to vector<128xf32>
    %4 = vector.shape_cast %3 : vector<128xf32> to vector<128x1xf32>
    %cst_5 = arith.constant 1.280000e+02 : f32
    %5 = vector.broadcast %cst_5 : f32 to vector<128x1xf32>
    %6 = arith.divf %4, %5 : vector<128x1xf32>
    %7 = vector.broadcast %6 : vector<128x1xf32> to vector<128x128xf32>
    %8 = arith.subf %0, %7 : vector<128x128xf32>
    %9 = arith.mulf %8, %8 : vector<128x128xf32>
    %cst_6 = arith.constant dense<0.000000e+00> : vector<128xf32>
    %10 = vector.multi_reduction <add>, %9, %cst_6 [1] : vector<128x128xf32> to vector<128xf32>
    %11 = vector.shape_cast %10 : vector<128xf32> to vector<128x1xf32>
    %cst_7 = arith.constant 1.280000e+02 : f32
    %12 = vector.broadcast %cst_7 : f32 to vector<128x1xf32>
    %13 = arith.divf %11, %12 : vector<128x1xf32>
    %14 = vector.broadcast %6 : vector<128x1xf32> to vector<128x128xf32>
    %15 = arith.subf %0, %14 : vector<128x128xf32>
    %cst_8 = arith.constant 9.99999974E-6 : f32
    %16 = vector.broadcast %cst_8 : f32 to vector<128x1xf32>
    %17 = arith.addf %13, %16 : vector<128x1xf32>
    %18 = math.rsqrt %17 : vector<128x1xf32>
    %19 = vector.broadcast %18 : vector<128x1xf32> to vector<128x128xf32>
    %20 = arith.mulf %15, %19 : vector<128x128xf32>
    %21 = vector.broadcast %1 : vector<1x128xf32> to vector<128x128xf32>
    %22 = arith.mulf %20, %21 : vector<128x128xf32>
    %23 = vector.broadcast %2 : vector<1x128xf32> to vector<128x128xf32>
    %24 = arith.addf %22, %23 : vector<128x128xf32>
    %25 = arith.truncf %24 : vector<128x128xf32> to vector<128x128xbf16>
    %c0_9 = arith.constant 0 : index
    %c0_10 = arith.constant 0 : index
    %26 = vector.load %arg6[%c0_9, %c0_10] : memref<128x128xbf16, #tpu.memory_space<vmem>>, vector<128x128xbf16>
    %cst_11 = arith.constant dense<0.000000e+00> : vector<128x128xf32>
    %27 = tpu.matmul %25, %26, %cst_11 {dimension_numbers = #tpu.dot_dimension_numbers<[1], [0], [0], [1], [0, 0, 1, 1], [], []>} : vector<128x128xbf16>, vector<128x128xbf16>, vector<128x128xf32> -> vector<128x128xf32>
    %c0_12 = arith.constant 0 : index
    %c0_13 = arith.constant 0 : index
    %28 = vector.load %arg7[%c0_12, %c0_13] : memref<1x128xf32, #tpu.memory_space<vmem>>, vector<1x128xf32>
    %29 = vector.broadcast %28 : vector<1x128xf32> to vector<128x128xf32>
    %30 = arith.addf %27, %29 : vector<128x128xf32>
    %c0_14 = arith.constant 0 : index
    %c0_15 = arith.constant 0 : index
    %31 = vector.load %arg8[%c0_14, %c0_15] : memref<128x128xbf16, #tpu.memory_space<vmem>>, vector<128x128xbf16>
    %cst_16 = arith.constant dense<0.000000e+00> : vector<128x128xf32>
    %32 = tpu.matmul %25, %31, %cst_16 {dimension_numbers = #tpu.dot_dimension_numbers<[1], [0], [0], [1], [0, 0, 1, 1], [], []>} : vector<128x128xbf16>, vector<128x128xbf16>, vector<128x128xf32> -> vector<128x128xf32>
    %c0_17 = arith.constant 0 : index
    %c0_18 = arith.constant 0 : index
    %33 = vector.load %arg9[%c0_17, %c0_18] : memref<1x128xf32, #tpu.memory_space<vmem>>, vector<1x128xf32>
    %34 = vector.broadcast %33 : vector<1x128xf32> to vector<128x128xf32>
    %35 = arith.addf %32, %34 : vector<128x128xf32>
    %c0_19 = arith.constant 0 : index
    %c0_20 = arith.constant 0 : index
    %36 = vector.load %arg10[%c0_19, %c0_20] : memref<128x128xbf16, #tpu.memory_space<vmem>>, vector<128x128xbf16>
    %cst_21 = arith.constant dense<0.000000e+00> : vector<128x128xf32>
    %37 = tpu.matmul %25, %36, %cst_21 {dimension_numbers = #tpu.dot_dimension_numbers<[1], [0], [0], [1], [0, 0, 1, 1], [], []>} : vector<128x128xbf16>, vector<128x128xbf16>, vector<128x128xf32> -> vector<128x128xf32>
    %c0_22 = arith.constant 0 : index
    %c0_23 = arith.constant 0 : index
    %38 = vector.load %arg11[%c0_22, %c0_23] : memref<1x128xf32, #tpu.memory_space<vmem>>, vector<1x128xf32>
    %39 = vector.broadcast %38 : vector<1x128xf32> to vector<128x128xf32>
    %40 = arith.addf %37, %39 : vector<128x128xf32>
    %c0_24 = arith.constant 0 : index
    %c0_25 = arith.constant 0 : index
    %41 = vector.load %arg12[%c0_24, %c0_25] : memref<128x128xbf16, #tpu.memory_space<vmem>>, vector<128x128xbf16>
    %cst_26 = arith.constant dense<0.000000e+00> : vector<128x128xf32>
    %42 = tpu.matmul %25, %41, %cst_26 {dimension_numbers = #tpu.dot_dimension_numbers<[1], [0], [0], [1], [0, 0, 1, 1], [], []>} : vector<128x128xbf16>, vector<128x128xbf16>, vector<128x128xf32> -> vector<128x128xf32>
    %c0_27 = arith.constant 0 : index
    %c0_28 = arith.constant 0 : index
    %43 = vector.load %arg13[%c0_27, %c0_28] : memref<1x128xf32, #tpu.memory_space<vmem>>, vector<1x128xf32>
    %44 = vector.broadcast %43 : vector<1x128xf32> to vector<128x128xf32>
    %45 = arith.addf %42, %44 : vector<128x128xf32>
    %c0_29 = arith.constant 0 : index
    %c0_30 = arith.constant 0 : index
    %46 = vector.load %arg2[%c0_29, %c0_30] : memref<128x128xf32, #tpu.memory_space<vmem>>, vector<128x128xf32>
    %c0_31 = arith.constant 0 : index
    %c0_32 = arith.constant 0 : index
    %47 = vector.load %arg3[%c0_31, %c0_32] : memref<128x128xf32, #tpu.memory_space<vmem>>, vector<128x128xf32>
    %48 = tpu.iota {dimensions = array<i32: 1>} : vector<128x128xi32>
    %c2_i32 = arith.constant 2 : i32
    %c0_i32 = arith.constant 0 : i32
    %49 = arith.cmpi eq, %c2_i32, %c0_i32 : i32
    %c1_i32 = arith.constant 1 : i32
    %50 = arith.select %49, %c1_i32, %c2_i32 : i32
    %51 = vector.broadcast %50 : i32 to vector<128x128xi32>
    %52 = arith.remsi %48, %51 : vector<128x128xi32>
    %c0_i32_33 = arith.constant 0 : i32
    %53 = vector.broadcast %c0_i32_33 : i32 to vector<128x128xi32>
    %54 = arith.cmpi ne, %52, %53 : vector<128x128xi32>
    %c0_i32_34 = arith.constant 0 : i32
    %55 = vector.broadcast %c0_i32_34 : i32 to vector<128x128xi32>
    %56 = arith.cmpi slt, %52, %55 : vector<128x128xi32>
    %c0_i32_35 = arith.constant 0 : i32
    %57 = arith.cmpi slt, %50, %c0_i32_35 : i32
    %58 = vector.broadcast %57 : i1 to vector<128x128xi1>
    %59 = vector.broadcast %58 : vector<128x128xi1> to vector<128x128xi1>
    %60 = arith.xori %56, %59 : vector<128x128xi1>
    %61 = arith.andi %60, %54 : vector<128x128xi1>
    %62 = vector.broadcast %50 : i32 to vector<128x128xi32>
    %63 = arith.addi %52, %62 : vector<128x128xi32>
    %64 = arith.select %61, %63, %52 : vector<128x128xi1>, vector<128x128xi32>
    %c0_i32_36 = arith.constant 0 : i32
    %65 = vector.broadcast %c0_i32_36 : i32 to vector<128x128xi32>
    %66 = arith.cmpi eq, %64, %65 : vector<128x128xi32>
    %67 = arith.mulf %30, %46 : vector<128x128xf32>
    %c127_i32 = arith.constant 127 : i32
    %68 = tpu.dynamic_rotate %30 by %c127_i32 dim 1 : vector<128x128xf32>, i32 -> vector<128x128xf32>
    %c1_i32_37 = arith.constant 1 : i32
    %69 = tpu.dynamic_rotate %30 by %c1_i32_37 dim 1 : vector<128x128xf32>, i32 -> vector<128x128xf32>
    %70 = arith.select %66, %68, %69 : vector<128x128xi1>, vector<128x128xf32>
    %71 = arith.mulf %70, %47 : vector<128x128xf32>
    %72 = arith.addf %67, %71 : vector<128x128xf32>
    %73 = arith.mulf %35, %46 : vector<128x128xf32>
    %c127_i32_38 = arith.constant 127 : i32
    %74 = tpu.dynamic_rotate %35 by %c127_i32_38 dim 1 : vector<128x128xf32>, i32 -> vector<128x128xf32>
    %c1_i32_39 = arith.constant 1 : i32
    %75 = tpu.dynamic_rotate %35 by %c1_i32_39 dim 1 : vector<128x128xf32>, i32 -> vector<128x128xf32>
    %76 = arith.select %66, %74, %75 : vector<128x128xi1>, vector<128x128xf32>
    %77 = arith.mulf %76, %47 : vector<128x128xf32>
    %78 = arith.addf %73, %77 : vector<128x128xf32>
    %79 = arith.truncf %72 : vector<128x128xf32> to vector<128x128xbf16>
    %80 = vector.shape_cast %79 : vector<128x128xbf16> to vector<2x64x128xbf16>
    %81 = arith.truncf %78 : vector<128x128xf32> to vector<128x128xbf16>
    %82 = vector.shape_cast %81 : vector<128x128xbf16> to vector<2x64x128xbf16>
    %83 = arith.truncf %40 : vector<128x128xf32> to vector<128x128xbf16>
    %84 = vector.shape_cast %83 : vector<128x128xbf16> to vector<2x64x128xbf16>
    %85 = tpu.iota {dimensions = array<i32: 0>} : vector<64x64xi32>
    %86 = tpu.iota {dimensions = array<i32: 1>} : vector<64x64xi32>
    %87 = arith.subi %85, %86 : vector<64x64xi32>
    %88 = arith.sitofp %87 : vector<64x64xi32> to vector<64x64xf32>
    %89 = arith.cmpi sge, %85, %86 : vector<64x64xi32>
    %c0_40 = arith.constant 0 : index
    %c0_41 = arith.constant 0 : index
    %90 = vector.load %arg16[%c0_40, %c0_41] : memref<1x32xf32, #tpu.memory_space<vmem>>, vector<1x32xf32>
    %91 = vector.extract_strided_slice %80 {offsets = [0, 0, 0], sizes = [2, 64, 32], strides = [1, 1, 1]} : vector<2x64x128xbf16> to vector<2x64x32xbf16>
    %92 = vector.extract_strided_slice %82 {offsets = [0, 0, 0], sizes = [2, 64, 32], strides = [1, 1, 1]} : vector<2x64x128xbf16> to vector<2x64x32xbf16>
    %93 = vector.extract_strided_slice %84 {offsets = [0, 0, 0], sizes = [2, 64, 32], strides = [1, 1, 1]} : vector<2x64x128xbf16> to vector<2x64x32xbf16>
    "tpu.trace_start"() <{level = 10 : i32, message = "bqd,bkd->bqk"}> : () -> ()
    %cst_42 = arith.constant dense<0.000000e+00> : vector<2x64x64xf32>
    %94 = tpu.matmul %91, %92, %cst_42 {dimension_numbers = #tpu.dot_dimension_numbers<[2], [2], [1], [1], [0, 0, 0, 1, 1, 1], [0], [0]>} : vector<2x64x32xbf16>, vector<2x64x32xbf16>, vector<2x64x64xf32> -> vector<2x64x64xf32>
    "tpu.trace_stop"() : () -> ()
    %95 = math.absf %94 : vector<2x64x64xf32>
    %cst_43 = arith.constant dense<0.000000e+00> : vector<2x64xf32>
    %96 = vector.multi_reduction <add>, %95, %cst_43 [2] : vector<2x64x64xf32> to vector<2x64xf32>
    %97 = vector.shape_cast %96 : vector<2x64xf32> to vector<2x64x1xf32>
    %cst_44 = arith.constant 1.000000e+00 : f32
    %cst_45 = arith.constant 5.000000e+04 : f32
    %98 = vector.broadcast %cst_44 : f32 to vector<2x64x1xf32>
    %99 = arith.maximumf %98, %97 : vector<2x64x1xf32>
    %100 = vector.broadcast %cst_45 : f32 to vector<2x64x1xf32>
    %101 = arith.minimumf %100, %99 : vector<2x64x1xf32>
    %cst_46 = arith.constant -0.0317486972 : f32
    %102 = vector.broadcast %cst_46 : f32 to vector<64x64xf32>
    %103 = arith.mulf %88, %102 : vector<64x64xf32>
    %104 = math.exp %103 : vector<64x64xf32>
    %cst_47 = arith.constant 0.000000e+00 : f32
    %105 = vector.broadcast %cst_47 : f32 to vector<64x64xf32>
    %106 = arith.select %89, %104, %105 : vector<64x64xi1>, vector<64x64xf32>
    %107 = vector.broadcast %101 : vector<2x64x1xf32> to vector<2x64x64xf32>
    %108 = arith.divf %94, %107 : vector<2x64x64xf32>
    %109 = vector.shape_cast %106 : vector<64x64xf32> to vector<1x64x64xf32>
    %110 = vector.broadcast %109 : vector<1x64x64xf32> to vector<2x64x64xf32>
    %111 = arith.addf %108, %110 : vector<2x64x64xf32>
    %112 = arith.truncf %111 : vector<2x64x64xf32> to vector<2x64x64xbf16>
    "tpu.trace_start"() <{level = 10 : i32, message = "bqk,bkd->bqd"}> : () -> ()
    %cst_48 = arith.constant dense<0.000000e+00> : vector<2x64x32xf32>
    %113 = tpu.matmul %112, %93, %cst_48 {dimension_numbers = #tpu.dot_dimension_numbers<[2], [1], [1], [2], [0, 0, 0, 1, 1, 2], [0], [0]>} : vector<2x64x64xbf16>, vector<2x64x32xbf16>, vector<2x64x32xf32> -> vector<2x64x32xf32>
    "tpu.trace_stop"() : () -> ()
    %114 = arith.mulf %113, %113 : vector<2x64x32xf32>
    %cst_49 = arith.constant dense<0.000000e+00> : vector<2x64xf32>
    %115 = vector.multi_reduction <add>, %114, %cst_49 [2] : vector<2x64x32xf32> to vector<2x64xf32>
    %116 = vector.shape_cast %115 : vector<2x64xf32> to vector<2x64x1xf32>
    %cst_50 = arith.constant 3.200000e+01 : f32
    %117 = vector.broadcast %cst_50 : f32 to vector<2x64x1xf32>
    %118 = arith.divf %116, %117 : vector<2x64x1xf32>
    %cst_51 = arith.constant 9.99999974E-6 : f32
    %119 = vector.broadcast %cst_51 : f32 to vector<2x64x1xf32>
    %120 = arith.addf %118, %119 : vector<2x64x1xf32>
    %121 = math.rsqrt %120 : vector<2x64x1xf32>
    %122 = vector.broadcast %121 : vector<2x64x1xf32> to vector<2x64x32xf32>
    %123 = arith.mulf %113, %122 : vector<2x64x32xf32>
    %124 = vector.shape_cast %90 : vector<1x32xf32> to vector<1x1x32xf32>
    %125 = vector.broadcast %124 : vector<1x1x32xf32> to vector<2x64x32xf32>
    %126 = arith.mulf %123, %125 : vector<2x64x32xf32>
    %127 = vector.extract_strided_slice %80 {offsets = [0, 0, 32], sizes = [2, 64, 32], strides = [1, 1, 1]} : vector<2x64x128xbf16> to vector<2x64x32xbf16>
    %128 = vector.extract_strided_slice %82 {offsets = [0, 0, 32], sizes = [2, 64, 32], strides = [1, 1, 1]} : vector<2x64x128xbf16> to vector<2x64x32xbf16>
    %129 = vector.extract_strided_slice %84 {offsets = [0, 0, 32], sizes = [2, 64, 32], strides = [1, 1, 1]} : vector<2x64x128xbf16> to vector<2x64x32xbf16>
    "tpu.trace_start"() <{level = 10 : i32, message = "bqd,bkd->bqk"}> : () -> ()
    %cst_52 = arith.constant dense<0.000000e+00> : vector<2x64x64xf32>
    %130 = tpu.matmul %127, %128, %cst_52 {dimension_numbers = #tpu.dot_dimension_numbers<[2], [2], [1], [1], [0, 0, 0, 1, 1, 1], [0], [0]>} : vector<2x64x32xbf16>, vector<2x64x32xbf16>, vector<2x64x64xf32> -> vector<2x64x64xf32>
    "tpu.trace_stop"() : () -> ()
    %131 = math.absf %130 : vector<2x64x64xf32>
    %cst_53 = arith.constant dense<0.000000e+00> : vector<2x64xf32>
    %132 = vector.multi_reduction <add>, %131, %cst_53 [2] : vector<2x64x64xf32> to vector<2x64xf32>
    %133 = vector.shape_cast %132 : vector<2x64xf32> to vector<2x64x1xf32>
    %cst_54 = arith.constant 1.000000e+00 : f32
    %cst_55 = arith.constant 5.000000e+04 : f32
    %134 = vector.broadcast %cst_54 : f32 to vector<2x64x1xf32>
    %135 = arith.maximumf %134, %133 : vector<2x64x1xf32>
    %136 = vector.broadcast %cst_55 : f32 to vector<2x64x1xf32>
    %137 = arith.minimumf %136, %135 : vector<2x64x1xf32>
    %cst_56 = arith.constant -0.0157483574 : f32
    %138 = vector.broadcast %cst_56 : f32 to vector<64x64xf32>
    %139 = arith.mulf %88, %138 : vector<64x64xf32>
    %140 = math.exp %139 : vector<64x64xf32>
    %cst_57 = arith.constant 0.000000e+00 : f32
    %141 = vector.broadcast %cst_57 : f32 to vector<64x64xf32>
    %142 = arith.select %89, %140, %141 : vector<64x64xi1>, vector<64x64xf32>
    %143 = vector.broadcast %137 : vector<2x64x1xf32> to vector<2x64x64xf32>
    %144 = arith.divf %130, %143 : vector<2x64x64xf32>
    %145 = vector.shape_cast %142 : vector<64x64xf32> to vector<1x64x64xf32>
    %146 = vector.broadcast %145 : vector<1x64x64xf32> to vector<2x64x64xf32>
    %147 = arith.addf %144, %146 : vector<2x64x64xf32>
    %148 = arith.truncf %147 : vector<2x64x64xf32> to vector<2x64x64xbf16>
    "tpu.trace_start"() <{level = 10 : i32, message = "bqk,bkd->bqd"}> : () -> ()
    %cst_58 = arith.constant dense<0.000000e+00> : vector<2x64x32xf32>
    %149 = tpu.matmul %148, %129, %cst_58 {dimension_numbers = #tpu.dot_dimension_numbers<[2], [1], [1], [2], [0, 0, 0, 1, 1, 2], [0], [0]>} : vector<2x64x64xbf16>, vector<2x64x32xbf16>, vector<2x64x32xf32> -> vector<2x64x32xf32>
    "tpu.trace_stop"() : () -> ()
    %150 = arith.mulf %149, %149 : vector<2x64x32xf32>
    %cst_59 = arith.constant dense<0.000000e+00> : vector<2x64xf32>
    %151 = vector.multi_reduction <add>, %150, %cst_59 [2] : vector<2x64x32xf32> to vector<2x64xf32>
    %152 = vector.shape_cast %151 : vector<2x64xf32> to vector<2x64x1xf32>
    %cst_60 = arith.constant 3.200000e+01 : f32
    %153 = vector.broadcast %cst_60 : f32 to vector<2x64x1xf32>
    %154 = arith.divf %152, %153 : vector<2x64x1xf32>
    %cst_61 = arith.constant 9.99999974E-6 : f32
    %155 = vector.broadcast %cst_61 : f32 to vector<2x64x1xf32>
    %156 = arith.addf %154, %155 : vector<2x64x1xf32>
    %157 = math.rsqrt %156 : vector<2x64x1xf32>
    %158 = vector.broadcast %157 : vector<2x64x1xf32> to vector<2x64x32xf32>
    %159 = arith.mulf %149, %158 : vector<2x64x32xf32>
    %160 = vector.shape_cast %90 : vector<1x32xf32> to vector<1x1x32xf32>
    %161 = vector.broadcast %160 : vector<1x1x32xf32> to vector<2x64x32xf32>
    %162 = arith.mulf %159, %161 : vector<2x64x32xf32>
    %163 = vector.extract_strided_slice %80 {offsets = [0, 0, 64], sizes = [2, 64, 32], strides = [1, 1, 1]} : vector<2x64x128xbf16> to vector<2x64x32xbf16>
    %164 = vector.extract_strided_slice %82 {offsets = [0, 0, 64], sizes = [2, 64, 32], strides = [1, 1, 1]} : vector<2x64x128xbf16> to vector<2x64x32xbf16>
    %165 = vector.extract_strided_slice %84 {offsets = [0, 0, 64], sizes = [2, 64, 32], strides = [1, 1, 1]} : vector<2x64x128xbf16> to vector<2x64x32xbf16>
    "tpu.trace_start"() <{level = 10 : i32, message = "bqd,bkd->bqk"}> : () -> ()
    %cst_62 = arith.constant dense<0.000000e+00> : vector<2x64x64xf32>
    %166 = tpu.matmul %163, %164, %cst_62 {dimension_numbers = #tpu.dot_dimension_numbers<[2], [2], [1], [1], [0, 0, 0, 1, 1, 1], [0], [0]>} : vector<2x64x32xbf16>, vector<2x64x32xbf16>, vector<2x64x64xf32> -> vector<2x64x64xf32>
    "tpu.trace_stop"() : () -> ()
    %167 = math.absf %166 : vector<2x64x64xf32>
    %cst_63 = arith.constant dense<0.000000e+00> : vector<2x64xf32>
    %168 = vector.multi_reduction <add>, %167, %cst_63 [2] : vector<2x64x64xf32> to vector<2x64xf32>
    %169 = vector.shape_cast %168 : vector<2x64xf32> to vector<2x64x1xf32>
    %cst_64 = arith.constant 1.000000e+00 : f32
    %cst_65 = arith.constant 5.000000e+04 : f32
    %170 = vector.broadcast %cst_64 : f32 to vector<2x64x1xf32>
    %171 = arith.maximumf %170, %169 : vector<2x64x1xf32>
    %172 = vector.broadcast %cst_65 : f32 to vector<2x64x1xf32>
    %173 = arith.minimumf %172, %171 : vector<2x64x1xf32>
    %cst_66 = arith.constant -0.00784317776 : f32
    %174 = vector.broadcast %cst_66 : f32 to vector<64x64xf32>
    %175 = arith.mulf %88, %174 : vector<64x64xf32>
    %176 = math.exp %175 : vector<64x64xf32>
    %cst_67 = arith.constant 0.000000e+00 : f32
    %177 = vector.broadcast %cst_67 : f32 to vector<64x64xf32>
    %178 = arith.select %89, %176, %177 : vector<64x64xi1>, vector<64x64xf32>
    %179 = vector.broadcast %173 : vector<2x64x1xf32> to vector<2x64x64xf32>
    %180 = arith.divf %166, %179 : vector<2x64x64xf32>
    %181 = vector.shape_cast %178 : vector<64x64xf32> to vector<1x64x64xf32>
    %182 = vector.broadcast %181 : vector<1x64x64xf32> to vector<2x64x64xf32>
    %183 = arith.addf %180, %182 : vector<2x64x64xf32>
    %184 = arith.truncf %183 : vector<2x64x64xf32> to vector<2x64x64xbf16>
    "tpu.trace_start"() <{level = 10 : i32, message = "bqk,bkd->bqd"}> : () -> ()
    %cst_68 = arith.constant dense<0.000000e+00> : vector<2x64x32xf32>
    %185 = tpu.matmul %184, %165, %cst_68 {dimension_numbers = #tpu.dot_dimension_numbers<[2], [1], [1], [2], [0, 0, 0, 1, 1, 2], [0], [0]>} : vector<2x64x64xbf16>, vector<2x64x32xbf16>, vector<2x64x32xf32> -> vector<2x64x32xf32>
    "tpu.trace_stop"() : () -> ()
    %186 = arith.mulf %185, %185 : vector<2x64x32xf32>
    %cst_69 = arith.constant dense<0.000000e+00> : vector<2x64xf32>
    %187 = vector.multi_reduction <add>, %186, %cst_69 [2] : vector<2x64x32xf32> to vector<2x64xf32>
    %188 = vector.shape_cast %187 : vector<2x64xf32> to vector<2x64x1xf32>
    %cst_70 = arith.constant 3.200000e+01 : f32
    %189 = vector.broadcast %cst_70 : f32 to vector<2x64x1xf32>
    %190 = arith.divf %188, %189 : vector<2x64x1xf32>
    %cst_71 = arith.constant 9.99999974E-6 : f32
    %191 = vector.broadcast %cst_71 : f32 to vector<2x64x1xf32>
    %192 = arith.addf %190, %191 : vector<2x64x1xf32>
    %193 = math.rsqrt %192 : vector<2x64x1xf32>
    %194 = vector.broadcast %193 : vector<2x64x1xf32> to vector<2x64x32xf32>
    %195 = arith.mulf %185, %194 : vector<2x64x32xf32>
    %196 = vector.shape_cast %90 : vector<1x32xf32> to vector<1x1x32xf32>
    %197 = vector.broadcast %196 : vector<1x1x32xf32> to vector<2x64x32xf32>
    %198 = arith.mulf %195, %197 : vector<2x64x32xf32>
    %199 = vector.extract_strided_slice %80 {offsets = [0, 0, 96], sizes = [2, 64, 32], strides = [1, 1, 1]} : vector<2x64x128xbf16> to vector<2x64x32xbf16>
    %200 = vector.extract_strided_slice %82 {offsets = [0, 0, 96], sizes = [2, 64, 32], strides = [1, 1, 1]} : vector<2x64x128xbf16> to vector<2x64x32xbf16>
    %201 = vector.extract_strided_slice %84 {offsets = [0, 0, 96], sizes = [2, 64, 32], strides = [1, 1, 1]} : vector<2x64x128xbf16> to vector<2x64x32xbf16>
    "tpu.trace_start"() <{level = 10 : i32, message = "bqd,bkd->bqk"}> : () -> ()
    %cst_72 = arith.constant dense<0.000000e+00> : vector<2x64x64xf32>
    %202 = tpu.matmul %199, %200, %cst_72 {dimension_numbers = #tpu.dot_dimension_numbers<[2], [2], [1], [1], [0, 0, 0, 1, 1, 1], [0], [0]>} : vector<2x64x32xbf16>, vector<2x64x32xbf16>, vector<2x64x64xf32> -> vector<2x64x64xf32>
    "tpu.trace_stop"() : () -> ()
    %203 = math.absf %202 : vector<2x64x64xf32>
    %cst_73 = arith.constant dense<0.000000e+00> : vector<2x64xf32>
    %204 = vector.multi_reduction <add>, %203, %cst_73 [2] : vector<2x64x64xf32> to vector<2x64xf32>
    %205 = vector.shape_cast %204 : vector<2x64xf32> to vector<2x64x1xf32>
    %cst_74 = arith.constant 1.000000e+00 : f32
    %cst_75 = arith.constant 5.000000e+04 : f32
    %206 = vector.broadcast %cst_74 : f32 to vector<2x64x1xf32>
    %207 = arith.maximumf %206, %205 : vector<2x64x1xf32>
    %208 = vector.broadcast %cst_75 : f32 to vector<2x64x1xf32>
    %209 = arith.minimumf %208, %207 : vector<2x64x1xf32>
    %cst_76 = arith.constant -0.00391389942 : f32
    %210 = vector.broadcast %cst_76 : f32 to vector<64x64xf32>
    %211 = arith.mulf %88, %210 : vector<64x64xf32>
    %212 = math.exp %211 : vector<64x64xf32>
    %cst_77 = arith.constant 0.000000e+00 : f32
    %213 = vector.broadcast %cst_77 : f32 to vector<64x64xf32>
    %214 = arith.select %89, %212, %213 : vector<64x64xi1>, vector<64x64xf32>
    %215 = vector.broadcast %209 : vector<2x64x1xf32> to vector<2x64x64xf32>
    %216 = arith.divf %202, %215 : vector<2x64x64xf32>
    %217 = vector.shape_cast %214 : vector<64x64xf32> to vector<1x64x64xf32>
    %218 = vector.broadcast %217 : vector<1x64x64xf32> to vector<2x64x64xf32>
    %219 = arith.addf %216, %218 : vector<2x64x64xf32>
    %220 = arith.truncf %219 : vector<2x64x64xf32> to vector<2x64x64xbf16>
    "tpu.trace_start"() <{level = 10 : i32, message = "bqk,bkd->bqd"}> : () -> ()
    %cst_78 = arith.constant dense<0.000000e+00> : vector<2x64x32xf32>
    %221 = tpu.matmul %220, %201, %cst_78 {dimension_numbers = #tpu.dot_dimension_numbers<[2], [1], [1], [2], [0, 0, 0, 1, 1, 2], [0], [0]>} : vector<2x64x64xbf16>, vector<2x64x32xbf16>, vector<2x64x32xf32> -> vector<2x64x32xf32>
    "tpu.trace_stop"() : () -> ()
    %222 = arith.mulf %221, %221 : vector<2x64x32xf32>
    %cst_79 = arith.constant dense<0.000000e+00> : vector<2x64xf32>
    %223 = vector.multi_reduction <add>, %222, %cst_79 [2] : vector<2x64x32xf32> to vector<2x64xf32>
    %224 = vector.shape_cast %223 : vector<2x64xf32> to vector<2x64x1xf32>
    %cst_80 = arith.constant 3.200000e+01 : f32
    %225 = vector.broadcast %cst_80 : f32 to vector<2x64x1xf32>
    %226 = arith.divf %224, %225 : vector<2x64x1xf32>
    %cst_81 = arith.constant 9.99999974E-6 : f32
    %227 = vector.broadcast %cst_81 : f32 to vector<2x64x1xf32>
    %228 = arith.addf %226, %227 : vector<2x64x1xf32>
    %229 = math.rsqrt %228 : vector<2x64x1xf32>
    %230 = vector.broadcast %229 : vector<2x64x1xf32> to vector<2x64x32xf32>
    %231 = arith.mulf %221, %230 : vector<2x64x32xf32>
    %232 = vector.shape_cast %90 : vector<1x32xf32> to vector<1x1x32xf32>
    %233 = vector.broadcast %232 : vector<1x1x32xf32> to vector<2x64x32xf32>
    %234 = arith.mulf %231, %233 : vector<2x64x32xf32>
    %235 = tpu.concatenate %126, %162, %198, %234 in 2 : vector<2x64x32xf32>, vector<2x64x32xf32>, vector<2x64x32xf32>, vector<2x64x32xf32> -> vector<2x64x128xf32>
    %236 = vector.shape_cast %235 : vector<2x64x128xf32> to vector<128x128xf32>
    %237 = arith.mulf %236, %45 : vector<128x128xf32>
    %238 = arith.truncf %237 : vector<128x128xf32> to vector<128x128xbf16>
    %c0_82 = arith.constant 0 : index
    %c0_83 = arith.constant 0 : index
    %239 = vector.load %arg14[%c0_82, %c0_83] : memref<128x128xbf16, #tpu.memory_space<vmem>>, vector<128x128xbf16>
    %cst_84 = arith.constant dense<0.000000e+00> : vector<128x128xf32>
    %240 = tpu.matmul %238, %239, %cst_84 {dimension_numbers = #tpu.dot_dimension_numbers<[1], [0], [0], [1], [0, 0, 1, 1], [], []>} : vector<128x128xbf16>, vector<128x128xbf16>, vector<128x128xf32> -> vector<128x128xf32>
    %c0_85 = arith.constant 0 : index
    %c0_86 = arith.constant 0 : index
    %241 = vector.load %arg15[%c0_85, %c0_86] : memref<1x128xf32, #tpu.memory_space<vmem>>, vector<1x128xf32>
    %242 = vector.broadcast %241 : vector<1x128xf32> to vector<128x128xf32>
    %243 = arith.addf %240, %242 : vector<128x128xf32>
    %244 = arith.addf %0, %243 : vector<128x128xf32>
    %c0_87 = arith.constant 0 : index
    %c0_88 = arith.constant 0 : index
    %245 = vector.load %arg17[%c0_87, %c0_88] : memref<1x128xf32, #tpu.memory_space<vmem>>, vector<1x128xf32>
    %c0_89 = arith.constant 0 : index
    %c0_90 = arith.constant 0 : index
    %246 = vector.load %arg18[%c0_89, %c0_90] : memref<1x128xf32, #tpu.memory_space<vmem>>, vector<1x128xf32>
    %cst_91 = arith.constant dense<0.000000e+00> : vector<128xf32>
    %247 = vector.multi_reduction <add>, %244, %cst_91 [1] : vector<128x128xf32> to vector<128xf32>
    %248 = vector.shape_cast %247 : vector<128xf32> to vector<128x1xf32>
    %cst_92 = arith.constant 1.280000e+02 : f32
    %249 = vector.broadcast %cst_92 : f32 to vector<128x1xf32>
    %250 = arith.divf %248, %249 : vector<128x1xf32>
    %251 = vector.broadcast %250 : vector<128x1xf32> to vector<128x128xf32>
    %252 = arith.subf %244, %251 : vector<128x128xf32>
    %253 = arith.mulf %252, %252 : vector<128x128xf32>
    %cst_93 = arith.constant dense<0.000000e+00> : vector<128xf32>
    %254 = vector.multi_reduction <add>, %253, %cst_93 [1] : vector<128x128xf32> to vector<128xf32>
    %255 = vector.shape_cast %254 : vector<128xf32> to vector<128x1xf32>
    %cst_94 = arith.constant 1.280000e+02 : f32
    %256 = vector.broadcast %cst_94 : f32 to vector<128x1xf32>
    %257 = arith.divf %255, %256 : vector<128x1xf32>
    %258 = vector.broadcast %250 : vector<128x1xf32> to vector<128x128xf32>
    %259 = arith.subf %244, %258 : vector<128x128xf32>
    %cst_95 = arith.constant 9.99999974E-6 : f32
    %260 = vector.broadcast %cst_95 : f32 to vector<128x1xf32>
    %261 = arith.addf %257, %260 : vector<128x1xf32>
    %262 = math.rsqrt %261 : vector<128x1xf32>
    %263 = vector.broadcast %262 : vector<128x1xf32> to vector<128x128xf32>
    %264 = arith.mulf %259, %263 : vector<128x128xf32>
    %265 = vector.broadcast %245 : vector<1x128xf32> to vector<128x128xf32>
    %266 = arith.mulf %264, %265 : vector<128x128xf32>
    %267 = vector.broadcast %246 : vector<1x128xf32> to vector<128x128xf32>
    %268 = arith.addf %266, %267 : vector<128x128xf32>
    %269 = arith.truncf %268 : vector<128x128xf32> to vector<128x128xbf16>
    %c0_96 = arith.constant 0 : index
    %c0_97 = arith.constant 0 : index
    %270 = vector.load %arg19[%c0_96, %c0_97] : memref<128x384xbf16, #tpu.memory_space<vmem>>, vector<128x384xbf16>
    %cst_98 = arith.constant dense<0.000000e+00> : vector<128x384xf32>
    %271 = tpu.matmul %269, %270, %cst_98 {dimension_numbers = #tpu.dot_dimension_numbers<[1], [0], [0], [1], [0, 0, 1, 1], [], []>} : vector<128x128xbf16>, vector<128x384xbf16>, vector<128x384xf32> -> vector<128x384xf32>
    %c0_99 = arith.constant 0 : index
    %c0_100 = arith.constant 0 : index
    %272 = vector.load %arg20[%c0_99, %c0_100] : memref<128x384xbf16, #tpu.memory_space<vmem>>, vector<128x384xbf16>
    %cst_101 = arith.constant dense<0.000000e+00> : vector<128x384xf32>
    %273 = tpu.matmul %269, %272, %cst_101 {dimension_numbers = #tpu.dot_dimension_numbers<[1], [0], [0], [1], [0, 0, 1, 1], [], []>} : vector<128x128xbf16>, vector<128x384xbf16>, vector<128x384xf32> -> vector<128x384xf32>
    %274 = arith.negf %271 : vector<128x384xf32>
    %275 = math.exp %274 : vector<128x384xf32>
    %cst_102 = arith.constant 1.000000e+00 : f32
    %276 = vector.broadcast %cst_102 : f32 to vector<128x384xf32>
    %277 = arith.addf %276, %275 : vector<128x384xf32>
    %278 = arith.divf %276, %277 : vector<128x384xf32>
    %279 = arith.mulf %271, %278 : vector<128x384xf32>
    %280 = arith.mulf %279, %273 : vector<128x384xf32>
    %281 = arith.truncf %280 : vector<128x384xf32> to vector<128x384xbf16>
    %c0_103 = arith.constant 0 : index
    %c0_104 = arith.constant 0 : index
    %282 = vector.load %arg21[%c0_103, %c0_104] : memref<384x128xbf16, #tpu.memory_space<vmem>>, vector<384x128xbf16>
    %cst_105 = arith.constant dense<0.000000e+00> : vector<128x128xf32>
    %283 = tpu.matmul %281, %282, %cst_105 {dimension_numbers = #tpu.dot_dimension_numbers<[1], [0], [0], [1], [0, 0, 1, 1], [], []>} : vector<128x384xbf16>, vector<384x128xbf16>, vector<128x128xf32> -> vector<128x128xf32>
    %284 = arith.addf %244, %283 : vector<128x128xf32>
    %c0_106 = arith.constant 0 : index
    %c0_107 = arith.constant 0 : index
    %285 = vector.load %arg22[%c0_106, %c0_107] : memref<128x128xf32, #tpu.memory_space<vmem>>, vector<128x128xf32>
    tpu.vector_store %arg22[%c0_106, %c0_107], %284 {strides = array<i32>} : memref<128x128xf32, #tpu.memory_space<vmem>>, vector<128x128xf32>,
    return
  }
  func.func @transform_0(%arg0: i32) -> (i32, i32) {
    %c0_i32 = arith.constant 0 : i32
    %c0_i32_0 = arith.constant 0 : i32
    %c0_i32_1 = arith.constant 0 : i32
    return %c0_i32, %c0_i32_0 : i32, i32
  }
  func.func @transform_1(%arg0: i32) -> (i32, i32) {
    %c0_i32 = arith.constant 0 : i32
    %c0_i32_0 = arith.constant 0 : i32
    %c0_i32_1 = arith.constant 0 : i32
    return %c0_i32, %c0_i32_0 : i32, i32
  }
  func.func @transform_2(%arg0: i32) -> (i32, i32) {
    %c0_i32 = arith.constant 0 : i32
    %c0_i32_0 = arith.constant 0 : i32
    %c0_i32_1 = arith.constant 0 : i32
    return %c0_i32, %c0_i32_0 : i32, i32
  }
  func.func @transform_3(%arg0: i32) -> (i32, i32) {
    %c0_i32 = arith.constant 0 : i32
    %c0_i32_0 = arith.constant 0 : i32
    %c0_i32_1 = arith.constant 0 : i32
    return %c0_i32, %c0_i32_0 : i32, i32
  }
  func.func @transform_4(%arg0: i32) -> (i32, i32) {
    %c0_i32 = arith.constant 0 : i32
    %c0_i32_0 = arith.constant 0 : i32
    %c0_i32_1 = arith.constant 0 : i32
    return %c0_i32, %c0_i32_0 : i32, i32
  }
  func.func @transform_5(%arg0: i32) -> (i32, i32) {
    %c0_i32 = arith.constant 0 : i32
    %c0_i32_0 = arith.constant 0 : i32
    %c0_i32_1 = arith.constant 0 : i32
    return %c0_i32, %c0_i32_0 : i32, i32
  }
  func.func @transform_6(%arg0: i32) -> (i32, i32) {
    %c0_i32 = arith.constant 0 : i32
    %c0_i32_0 = arith.constant 0 : i32
    %c0_i32_1 = arith.constant 0 : i32
    return %c0_i32, %c0_i32_0 : i32, i32
  }
  func.func @transform_7(%arg0: i32) -> (i32, i32) {
    %c0_i32 = arith.constant 0 : i32
    %c0_i32_0 = arith.constant 0 : i32
    %c0_i32_1 = arith.constant 0 : i32
    return %c0_i32, %c0_i32_0 : i32, i32
  }
  func.func @transform_8(%arg0: i32) -> (i32, i32) {
    %c0_i32 = arith.constant 0 : i32
    %c0_i32_0 = arith.constant 0 : i32
    %c0_i32_1 = arith.constant 0 : i32
    return %c0_i32, %c0_i32_0 : i32, i32
  }
  func.func @transform_9(%arg0: i32) -> (i32, i32) {
    %c0_i32 = arith.constant 0 : i32
    %c0_i32_0 = arith.constant 0 : i32
    %c0_i32_1 = arith.constant 0 : i32
    return %c0_i32, %c0_i32_0 : i32, i32
  }
  func.func @transform_10(%arg0: i32) -> (i32, i32) {
    %c0_i32 = arith.constant 0 : i32
    %c0_i32_0 = arith.constant 0 : i32
    %c0_i32_1 = arith.constant 0 : i32
    return %c0_i32, %c0_i32_0 : i32, i32
  }
  func.func @transform_11(%arg0: i32) -> (i32, i32) {
    %c0_i32 = arith.constant 0 : i32
    %c0_i32_0 = arith.constant 0 : i32
    %c0_i32_1 = arith.constant 0 : i32
    return %c0_i32, %c0_i32_0 : i32, i32
  }
  func.func @transform_12(%arg0: i32) -> (i32, i32) {
    %c0_i32 = arith.constant 0 : i32
    %c0_i32_0 = arith.constant 0 : i32
    %c0_i32_1 = arith.constant 0 : i32
    return %c0_i32, %c0_i32_0 : i32, i32
  }
  func.func @transform_13(%arg0: i32) -> (i32, i32) {
    %c0_i32 = arith.constant 0 : i32
    %c0_i32_0 = arith.constant 0 : i32
    %c0_i32_1 = arith.constant 0 : i32
    return %c0_i32, %c0_i32_0 : i32, i32
  }
  func.func @transform_14(%arg0: i32) -> (i32, i32) {
    %c0_i32 = arith.constant 0 : i32
    %c0_i32_0 = arith.constant 0 : i32
    %c0_i32_1 = arith.constant 0 : i32
    return %c0_i32, %c0_i32_0 : i32, i32
  }
  func.func @transform_15(%arg0: i32) -> (i32, i32) {
    %c0_i32 = arith.constant 0 : i32
    %c0_i32_0 = arith.constant 0 : i32
    %c0_i32_1 = arith.constant 0 : i32
    return %c0_i32, %c0_i32_0 : i32, i32
  }
  func.func @transform_16(%arg0: i32) -> (i32, i32) {
    %c0_i32 = arith.constant 0 : i32
    %c0_i32_0 = arith.constant 0 : i32
    %c0_i32_1 = arith.constant 0 : i32
    return %c0_i32, %c0_i32_0 : i32, i32
  }
  func.func @transform_17(%arg0: i32) -> (i32, i32) {
    %c0_i32 = arith.constant 0 : i32
    %c0_i32_0 = arith.constant 0 : i32
    %c0_i32_1 = arith.constant 0 : i32
    return %c0_i32, %c0_i32_0 : i32, i32
  }
  func.func @transform_18(%arg0: i32) -> (i32, i32) {
    %c0_i32 = arith.constant 0 : i32
    %c0_i32_0 = arith.constant 0 : i32
    %c0_i32_1 = arith.constant 0 : i32
    return %c0_i32, %c0_i32_0 : i32, i32
  }
  func.func @transform_19(%arg0: i32) -> (i32, i32) {
    %c0_i32 = arith.constant 0 : i32
    %c0_i32_0 = arith.constant 0 : i32
    %c0_i32_1 = arith.constant 0 : i32
    return %c0_i32, %c0_i32_0 : i32, i32
  }
  func.func @transform_20(%arg0: i32) -> (i32, i32) {
    %c0_i32 = arith.constant 0 : i32
    %c0_i32_0 = arith.constant 0 : i32
    %c0_i32_1 = arith.constant 0 : i32
    return %c0_i32, %c0_i32_0 : i32, i32
  }
  func.func @transform_21(%arg0: i32) -> (i32, i32) {
    %c0_i32 = arith.constant 0 : i32
    %c0_i32_0 = arith.constant 0 : i32
    %c0_i32_1 = arith.constant 0 : i32
    return %c0_i32, %c0_i32_0 : i32, i32
  }
}

</mosaic_0001>

<llo_original>
// kernel: tpu_custom_call.1
$region0: #{tpu_custom_call.1}
  #allocation0 [shape = 'u32[]', space=smem, size = 0x4, offset = 0x4, fixed_abs, tag = 'smem constant byte address 0x4 - core index']
  #allocation1 [shape = 'u32[144,128]{1,0:T(1,128)}', space=vmem, size = 0x12000, scoped, tag = 'internal scratch']
  %s0 = inlined_call_operand.hbm [shape: f32[128,128], index: 0, kind: input, shape index: {}]
  %s1 = inlined_call_operand.hbm [shape: f32[128,128], index: 1, kind: input, shape index: {}]
  %s2 = inlined_call_operand.hbm [shape: f32[128,128], index: 2, kind: input, shape index: {}]
  %s3 = inlined_call_operand.vmem [shape: f32[1,128], index: 3, kind: input, shape index: {}]
  %s4 = inlined_call_operand.vmem [shape: f32[1,128], index: 4, kind: input, shape index: {}]
  %s5 = inlined_call_operand.hbm [shape: bf16[128,128], index: 5, kind: input, shape index: {}]
  %s6 = inlined_call_operand.vmem [shape: f32[1,128], index: 6, kind: input, shape index: {}]
  %s7 = inlined_call_operand.hbm [shape: bf16[128,128], index: 7, kind: input, shape index: {}]
  %s8 = inlined_call_operand.vmem [shape: f32[1,128], index: 8, kind: input, shape index: {}]
  %s9 = inlined_call_operand.hbm [shape: bf16[128,128], index: 9, kind: input, shape index: {}]
  %s10 = inlined_call_operand.vmem [shape: f32[1,128], index: 10, kind: input, shape index: {}]
  %s11 = inlined_call_operand.hbm [shape: bf16[128,128], index: 11, kind: input, shape index: {}]
  %s12 = inlined_call_operand.vmem [shape: f32[1,128], index: 12, kind: input, shape index: {}]
  %s13 = inlined_call_operand.hbm [shape: bf16[128,128], index: 13, kind: input, shape index: {}]
  %s14 = inlined_call_operand.vmem [shape: f32[1,128], index: 14, kind: input, shape index: {}]
  %s15 = inlined_call_operand.vmem [shape: f32[1,32], index: 15, kind: input, shape index: {}]
  %s16 = inlined_call_operand.vmem [shape: f32[1,128], index: 16, kind: input, shape index: {}]
  %s17 = inlined_call_operand.vmem [shape: f32[1,128], index: 17, kind: input, shape index: {}]
  %s18 = inlined_call_operand.hbm [shape: bf16[128,384], index: 18, kind: input, shape index: {}]
  %s19 = inlined_call_operand.hbm [shape: bf16[128,384], index: 19, kind: input, shape index: {}]
  %s20 = inlined_call_operand.hbm [shape: bf16[384,128], index: 20, kind: input, shape index: {}]
  %s21 = inlined_call_operand.hbm [shape: f32[128,128], index: 21, kind: output, shape index: {}]
  %s22 = sld [smem:[#allocation0]]
  $region138: #{tpu_custom_call.1} parent=0
    _
  %s24 = ssub.s32 1, %s22
  %s25 = scalar_select 0, %s24, %s22
  $region1: #{tpu_custom_call.1} parent=0
    #allocation2 [shape = 'u8[65536]{0}', space=vmem, size = 0x10000, scoped, tag = 'input window, operand 0, single buffered']
    #allocation3 [shape = 's32[1]{0}', space=sflag, size = 0x4, scoped, tag = 'scoped memory for tpu_custom_call.1']
    #allocation4 [shape = 's32[1]{0}', space=sflag, size = 0x4, scoped, tag = 'scoped memory for tpu_custom_call.1']
    #allocation5 [shape = 'u8[65536]{0}', space=vmem, size = 0x10000, scoped, tag = 'input window, operand 1, single buffered']
    #allocation6 [shape = 's32[1]{0}', space=sflag, size = 0x4, scoped, tag = 'scoped memory for tpu_custom_call.1']
    #allocation7 [shape = 'u8[65536]{0}', space=vmem, size = 0x10000, scoped, tag = 'input window, operand 2, single buffered']
    #allocation8 [shape = 'u8[32768]{0}', space=vmem, size = 0x8000, scoped, tag = 'input window, operand 5, single buffered']
    #allocation9 [shape = 's32[1]{0}', space=sflag, size = 0x4, scoped, tag = 'scoped memory for tpu_custom_call.1']
    #allocation10 [shape = 'u8[32768]{0}', space=vmem, size = 0x8000, scoped, tag = 'input window, operand 7, single buffered']
    #allocation11 [shape = 'u8[32768]{0}', space=vmem, size = 0x8000, scoped, tag = 'input window, operand 9, single buffered']
    #allocation12 [shape = 's32[1]{0}', space=sflag, size = 0x4, scoped, tag = 'scoped memory for tpu_custom_call.1']
    #allocation13 [shape = 'u8[32768]{0}', space=vmem, size = 0x8000, scoped, tag = 'input window, operand 11, single buffered']
    #allocation14 [shape = 'u8[32768]{0}', space=vmem, size = 0x8000, scoped, tag = 'input window, operand 13, single buffered']
    #allocation15 [shape = 's32[1]{0}', space=sflag, size = 0x4, scoped, tag = 'scoped memory for tpu_custom_call.1']
    #allocation16 [shape = 'u8[98304]{0}', space=vmem, size = 0x18000, scoped, tag = 'input window, operand 18, single buffered']
    #allocation17 [shape = 'u8[98304]{0}', space=vmem, size = 0x18000, scoped, tag = 'input window, operand 19, single buffered']
    #allocation18 [shape = 's32[1]{0}', space=sflag, size = 0x4, scoped, tag = 'scoped memory for tpu_custom_call.1']
    #allocation19 [shape = 'u8[98304]{0}', space=vmem, size = 0x18000, scoped, tag = 'input window, operand 20, single buffered']
    #allocation20 [shape = 'u8[65536]{0}', space=vmem, size = 0x10000, scoped, tag = 'output window, operand 0, single buffered']
    %26 = vsyncpa [#allocation3], 0
    %27 = vsyncpa [#allocation6], 0
    %28 = vsyncpa [#allocation9], 0
    %29 = vsyncpa [#allocation12], 0
    %30 = vsyncpa [#allocation15], 0
    %31 = vsyncpa [#allocation18], 0
    %32 = vsyncpa [#allocation4], 0
    // Predicated region
    $region2: #{tpu_custom_call.1} parent=1 // pred_check
      _
    $region3: #{tpu_custom_call.1} parent=1 // pred_check_branch
      %34 = sbr.rel (0) target = $region5
    $region4: #{tpu_custom_call.1} parent=1 // pred_region
      %s36 = ssub.s32 2048, 2048
      %37 = vsyncadd [#allocation3], %s36
      %s38 = sshll.u32 [#allocation2], 4
      %s39 = int_to_ptr.vmem [resolvable:$true] %s38
      %44 = dma.hbm_to_vmem [thread:$0]  %s0, 2048, %s39, [#allocation3], 128, 128, 8
    $region5: #{tpu_custom_call.1} parent=1 // pred_fallthru
      _
    // Predicated region
    $region6: #{tpu_custom_call.1} parent=1 // pred_check
      _
    $region7: #{tpu_custom_call.1} parent=1 // pred_check_branch
      %46 = sbr.rel (0) target = $region9
    $region8: #{tpu_custom_call.1} parent=1 // pred_region
      %s48 = ssub.s32 2048, 2048
      %49 = vsyncadd [#allocation6], %s48
      %s50 = sshll.u32 [#allocation5], 4
      %s51 = int_to_ptr.vmem [resolvable:$true] %s50
      %56 = dma.hbm_to_vmem [thread:$0]  %s1, 2048, %s51, [#allocation6], 128, 128, 8
    $region9: #{tpu_custom_call.1} parent=1 // pred_fallthru
      _
    // Predicated region
    $region10: #{tpu_custom_call.1} parent=1 // pred_check
      _
    $region11: #{tpu_custom_call.1} parent=1 // pred_check_branch
      %58 = sbr.rel (0) target = $region13
    $region12: #{tpu_custom_call.1} parent=1 // pred_region
      %s60 = ssub.s32 2048, 2048
      %61 = vsyncadd [#allocation6], %s60
      %s62 = sshll.u32 [#allocation7], 4
      %s63 = int_to_ptr.vmem [resolvable:$true] %s62
      %68 = dma.hbm_to_vmem [thread:$0]  %s2, 2048, %s63, [#allocation6], 128, 128, 8
    $region13: #{tpu_custom_call.1} parent=1 // pred_fallthru
      _
    // Predicated region
    $region14: #{tpu_custom_call.1} parent=1 // pred_check
      _
    $region15: #{tpu_custom_call.1} parent=1 // pred_check_branch
      %70 = sbr.rel (0) target = $region17
    $region16: #{tpu_custom_call.1} parent=1 // pred_region
      _
    $region17: #{tpu_custom_call.1} parent=1 // pred_fallthru
      _
    // Predicated region
    $region18: #{tpu_custom_call.1} parent=1 // pred_check
      _
    $region19: #{tpu_custom_call.1} parent=1 // pred_check_branch
      %72 = sbr.rel (0) target = $region21
    $region20: #{tpu_custom_call.1} parent=1 // pred_region
      _
    $region21: #{tpu_custom_call.1} parent=1 // pred_fallthru
      _
    // Predicated region
    $region22: #{tpu_custom_call.1} parent=1 // pred_check
      _
    $region23: #{tpu_custom_call.1} parent=1 // pred_check_branch
      %74 = sbr.rel (0) target = $region25
    $region24: #{tpu_custom_call.1} parent=1 // pred_region
      %s76 = ssub.s32 1024, 1024
      %77 = vsyncadd [#allocation9], %s76
      %s78 = sshll.u32 [#allocation8], 4
      %s79 = int_to_ptr.vmem [resolvable:$true] %s78
      %84 = dma.hbm_to_vmem [thread:$0]  %s5, 1024, %s79, [#allocation9], 64, 64, 4
    $region25: #{tpu_custom_call.1} parent=1 // pred_fallthru
      _
    // Predicated region
    $region26: #{tpu_custom_call.1} parent=1 // pred_check
      _
    $region27: #{tpu_custom_call.1} parent=1 // pred_check_branch
      %86 = sbr.rel (0) target = $region29
    $region28: #{tpu_custom_call.1} parent=1 // pred_region
      _
    $region29: #{tpu_custom_call.1} parent=1 // pred_fallthru
      _
    // Predicated region
    $region30: #{tpu_custom_call.1} parent=1 // pred_check
      _
    $region31: #{tpu_custom_call.1} parent=1 // pred_check_branch
      %88 = sbr.rel (0) target = $region33
    $region32: #{tpu_custom_call.1} parent=1 // pred_region
      %s90 = ssub.s32 1024, 1024
      %91 = vsyncadd [#allocation9], %s90
      %s92 = sshll.u32 [#allocation10], 4
      %s93 = int_to_ptr.vmem [resolvable:$true] %s92
      %98 = dma.hbm_to_vmem [thread:$0]  %s7, 1024, %s93, [#allocation9], 64, 64, 4
    $region33: #{tpu_custom_call.1} parent=1 // pred_fallthru
      _
    // Predicated region
    $region34: #{tpu_custom_call.1} parent=1 // pred_check
      _
    $region35: #{tpu_custom_call.1} parent=1 // pred_check_branch
      %100 = sbr.rel (0) target = $region37
    $region36: #{tpu_custom_call.1} parent=1 // pred_region
      _
    $region37: #{tpu_custom_call.1} parent=1 // pred_fallthru
      _
    // Predicated region
    $region38: #{tpu_custom_call.1} parent=1 // pred_check
      _
    $region39: #{tpu_custom_call.1} parent=1 // pred_check_branch
      %102 = sbr.rel (0) target = $region41
    $region40: #{tpu_custom_call.1} parent=1 // pred_region
      %s104 = ssub.s32 1024, 1024
      %105 = vsyncadd [#allocation12], %s104
      %s106 = sshll.u32 [#allocation11], 4
      %s107 = int_to_ptr.vmem [resolvable:$true] %s106
      %112 = dma.hbm_to_vmem [thread:$0]  %s9, 1024, %s107, [#allocation12], 64, 64, 4
    $region41: #{tpu_custom_call.1} parent=1 // pred_fallthru
      _
    // Predicated region
    $region42: #{tpu_custom_call.1} parent=1 // pred_check
      _
    $region43: #{tpu_custom_call.1} parent=1 // pred_check_branch
      %114 = sbr.rel (0) target = $region45
    $region44: #{tpu_custom_call.1} parent=1 // pred_region
      _
    $region45: #{tpu_custom_call.1} parent=1 // pred_fallthru
      _
    // Predicated region
    $region46: #{tpu_custom_call.1} parent=1 // pred_check
      _
    $region47: #{tpu_custom_call.1} parent=1 // pred_check_branch
      %116 = sbr.rel (0) target = $region49
    $region48: #{tpu_custom_call.1} parent=1 // pred_region
      %s118 = ssub.s32 1024, 1024
      %119 = vsyncadd [#allocation12], %s118
      %s120 = sshll.u32 [#allocation13], 4
      %s121 = int_to_ptr.vmem [resolvable:$true] %s120
      %126 = dma.hbm_to_vmem [thread:$0]  %s11, 1024, %s121, [#allocation12], 64, 64, 4
    $region49: #{tpu_custom_call.1} parent=1 // pred_fallthru
      _
    // Predicated region
    $region50: #{tpu_custom_call.1} parent=1 // pred_check
      _
    $region51: #{tpu_custom_call.1} parent=1 // pred_check_branch
      %128 = sbr.rel (0) target = $region53
    $region52: #{tpu_custom_call.1} parent=1 // pred_region
      _
    $region53: #{tpu_custom_call.1} parent=1 // pred_fallthru
      _
    // Predicated region
    $region54: #{tpu_custom_call.1} parent=1 // pred_check
      _
    $region55: #{tpu_custom_call.1} parent=1 // pred_check_branch
      %130 = sbr.rel (0) target = $region57
    $region56: #{tpu_custom_call.1} parent=1 // pred_region
      %s132 = ssub.s32 1024, 1024
      %133 = vsyncadd [#allocation15], %s132
      %s134 = sshll.u32 [#allocation14], 4
      %s135 = int_to_ptr.vmem [resolvable:$true] %s134
      %140 = dma.hbm_to_vmem [thread:$0]  %s13, 1024, %s135, [#allocation15], 64, 64, 4
    $region57: #{tpu_custom_call.1} parent=1 // pred_fallthru
      _
    // Predicated region
    $region58: #{tpu_custom_call.1} parent=1 // pred_check
      _
    $region59: #{tpu_custom_call.1} parent=1 // pred_check_branch
      %142 = sbr.rel (0) target = $region61
    $region60: #{tpu_custom_call.1} parent=1 // pred_region
      _
    $region61: #{tpu_custom_call.1} parent=1 // pred_fallthru
      _
    // Predicated region
    $region62: #{tpu_custom_call.1} parent=1 // pred_check
      _
    $region63: #{tpu_custom_call.1} parent=1 // pred_check_branch
      %144 = sbr.rel (0) target = $region65
    $region64: #{tpu_custom_call.1} parent=1 // pred_region
      _
    $region65: #{tpu_custom_call.1} parent=1 // pred_fallthru
      _
    // Predicated region
    $region66: #{tpu_custom_call.1} parent=1 // pred_check
      _
    $region67: #{tpu_custom_call.1} parent=1 // pred_check_branch
      %146 = sbr.rel (0) target = $region69
    $region68: #{tpu_custom_call.1} parent=1 // pred_region
      _
    $region69: #{tpu_custom_call.1} parent=1 // pred_fallthru
      _
    // Predicated region
    $region70: #{tpu_custom_call.1} parent=1 // pred_check
      _
    $region71: #{tpu_custom_call.1} parent=1 // pred_check_branch
      %148 = sbr.rel (0) target = $region73
    $region72: #{tpu_custom_call.1} parent=1 // pred_region
      _
    $region73: #{tpu_custom_call.1} parent=1 // pred_fallthru
      _
    // Predicated region
    $region74: #{tpu_custom_call.1} parent=1 // pred_check
      _
    $region75: #{tpu_custom_call.1} parent=1 // pred_check_branch
      %150 = sbr.rel (0) target = $region77
    $region76: #{tpu_custom_call.1} parent=1 // pred_region
      %s152 = ssub.s32 3072, 3072
      %153 = vsyncadd [#allocation15], %s152
      %s154 = sshll.u32 [#allocation16], 4
      %s155 = int_to_ptr.vmem [resolvable:$true] %s154
      %160 = dma.hbm_to_vmem [thread:$0]  %s18, 3072, %s155, [#allocation15], 192, 192, 12
    $region77: #{tpu_custom_call.1} parent=1 // pred_fallthru
      _
    // Predicated region
    $region78: #{tpu_custom_call.1} parent=1 // pred_check
      _
    $region79: #{tpu_custom_call.1} parent=1 // pred_check_branch
      %162 = sbr.rel (0) target = $region81
    $region80: #{tpu_custom_call.1} parent=1 // pred_region
      %s164 = ssub.s32 3072, 3072
      %165 = vsyncadd [#allocation18], %s164
      %s166 = sshll.u32 [#allocation17], 4
      %s167 = int_to_ptr.vmem [resolvable:$true] %s166
      %172 = dma.hbm_to_vmem [thread:$0]  %s19, 3072, %s167, [#allocation18], 192, 192, 12
    $region81: #{tpu_custom_call.1} parent=1 // pred_fallthru
      _
    // Predicated region
    $region82: #{tpu_custom_call.1} parent=1 // pred_check
      _
    $region83: #{tpu_custom_call.1} parent=1 // pred_check_branch
      %174 = sbr.rel (0) target = $region85
    $region84: #{tpu_custom_call.1} parent=1 // pred_region
      %s176 = ssub.s32 3072, 3072
      %177 = vsyncadd [#allocation18], %s176
      %s178 = sshll.u32 [#allocation19], 4
      %s179 = int_to_ptr.vmem [resolvable:$true] %s178
      %184 = dma.hbm_to_vmem [thread:$0]  %s20, 3072, %s179, [#allocation18], 64, 64, 4
    $region85: #{tpu_custom_call.1} parent=1 // pred_fallthru
      _
    // Predicated region
    $region86: #{tpu_custom_call.1} parent=1 // pred_check
      _
    $region87: #{tpu_custom_call.1} parent=1 // pred_check_branch
      %186 = sbr.rel (0) target = $region89
    $region88: #{tpu_custom_call.1} parent=1 // pred_region
      %187 = dma.done [#allocation3], 2048
    $region89: #{tpu_custom_call.1} parent=1 // pred_fallthru
      _
    // Predicated region
    $region90: #{tpu_custom_call.1} parent=1 // pred_check
      _
    $region91: #{tpu_custom_call.1} parent=1 // pred_check_branch
      %189 = sbr.rel (0) target = $region93
    $region92: #{tpu_custom_call.1} parent=1 // pred_region
      %190 = dma.done [#allocation6], 2048
    $region93: #{tpu_custom_call.1} parent=1 // pred_fallthru
      _
    // Predicated region
    $region94: #{tpu_custom_call.1} parent=1 // pred_check
      _
    $region95: #{tpu_custom_call.1} parent=1 // pred_check_branch
      %192 = sbr.rel (0) target = $region97
    $region96: #{tpu_custom_call.1} parent=1 // pred_region
      %193 = dma.done [#allocation6], 2048
    $region97: #{tpu_custom_call.1} parent=1 // pred_fallthru
      _
    // Predicated region
    $region98: #{tpu_custom_call.1} parent=1 // pred_check
      _
    $region99: #{tpu_custom_call.1} parent=1 // pred_check_branch
      %195 = sbr.rel (0) target = $region101
    $region100: #{tpu_custom_call.1} parent=1 // pred_region
      %196 = dma.done [#allocation9], 1024
    $region101: #{tpu_custom_call.1} parent=1 // pred_fallthru
      _
    // Predicated region
    $region102: #{tpu_custom_call.1} parent=1 // pred_check
      _
    $region103: #{tpu_custom_call.1} parent=1 // pred_check_branch
      %198 = sbr.rel (0) target = $region105
    $region104: #{tpu_custom_call.1} parent=1 // pred_region
      %199 = dma.done [#allocation9], 1024
    $region105: #{tpu_custom_call.1} parent=1 // pred_fallthru
      _
    // Predicated region
    $region106: #{tpu_custom_call.1} parent=1 // pred_check
      _
    $region107: #{tpu_custom_call.1} parent=1 // pred_check_branch
      %201 = sbr.rel (0) target = $region109
    $region108: #{tpu_custom_call.1} parent=1 // pred_region
      %202 = dma.done [#allocation12], 1024
    $region109: #{tpu_custom_call.1} parent=1 // pred_fallthru
      _
    // Predicated region
    $region110: #{tpu_custom_call.1} parent=1 // pred_check
      _
    $region111: #{tpu_custom_call.1} parent=1 // pred_check_branch
      %204 = sbr.rel (0) target = $region113
    $region112: #{tpu_custom_call.1} parent=1 // pred_region
      %205 = dma.done [#allocation12], 1024
    $region113: #{tpu_custom_call.1} parent=1 // pred_fallthru
      _
    // Predicated region
    $region114: #{tpu_custom_call.1} parent=1 // pred_check
      _
    $region115: #{tpu_custom_call.1} parent=1 // pred_check_branch
      %207 = sbr.rel (0) target = $region117
    $region116: #{tpu_custom_call.1} parent=1 // pred_region
      %208 = dma.done [#allocation15], 1024
    $region117: #{tpu_custom_call.1} parent=1 // pred_fallthru
      _
    // Predicated region
    $region118: #{tpu_custom_call.1} parent=1 // pred_check
      _
    $region119: #{tpu_custom_call.1} parent=1 // pred_check_branch
      %210 = sbr.rel (0) target = $region121
    $region120: #{tpu_custom_call.1} parent=1 // pred_region
      %211 = dma.done [#allocation15], 3072
    $region121: #{tpu_custom_call.1} parent=1 // pred_fallthru
      _
    // Predicated region
    $region122: #{tpu_custom_call.1} parent=1 // pred_check
      _
    $region123: #{tpu_custom_call.1} parent=1 // pred_check_branch
      %213 = sbr.rel (0) target = $region125
    $region124: #{tpu_custom_call.1} parent=1 // pred_region
      %214 = dma.done [#allocation18], 3072
    $region125: #{tpu_custom_call.1} parent=1 // pred_fallthru
      _
    // Predicated region
    $region126: #{tpu_custom_call.1} parent=1 // pred_check
      _
    $region127: #{tpu_custom_call.1} parent=1 // pred_check_branch
      %216 = sbr.rel (0) target = $region129
    $region128: #{tpu_custom_call.1} parent=1 // pred_region
      %217 = dma.done [#allocation18], 3072
    $region129: #{tpu_custom_call.1} parent=1 // pred_fallthru
      _
    %v219 = vld [vmem:[#allocation2] sm:$0xff]
    %v220 = vld [vmem:[#allocation2 + $0x8] sm:$0xff]
    %v221 = vld [vmem:[#allocation2 + $0x10] sm:$0xff]
    %v222 = vld [vmem:[#allocation2 + $0x18] sm:$0xff]
    %v223 = vld [vmem:[#allocation2 + $0x20] sm:$0xff]
    %v224 = vld [vmem:[#allocation2 + $0x28] sm:$0xff]
    %v225 = vld [vmem:[#allocation2 + $0x30] sm:$0xff]
    %v226 = vld [vmem:[#allocation2 + $0x38] sm:$0xff]
    %v227 = vld [vmem:[#allocation2 + $0x40] sm:$0xff]
    %v228 = vld [vmem:[#allocation2 + $0x48] sm:$0xff]
    %v229 = vld [vmem:[#allocation2 + $0x50] sm:$0xff]
    %v230 = vld [vmem:[#allocation2 + $0x58] sm:$0xff]
    %v231 = vld [vmem:[#allocation2 + $0x60] sm:$0xff]
    %v232 = vld [vmem:[#allocation2 + $0x68] sm:$0xff]
    %v233 = vld [vmem:[#allocation2 + $0x70] sm:$0xff]
    %v234 = vld [vmem:[#allocation2 + $0x78] sm:$0xff]
    %v235 = vld [vmem:[%s3] sm:$0x1]
    %v236 = vld [vmem:[%s4] sm:$0x1]
    %237 = vadd.xlane.f32.xlu0 %v219
    %v238 = vpop.xlane.xlu0 %237
    %239 = vadd.xlane.f32.xlu0 %v220
    %v240 = vpop.xlane.xlu0 %239
    %241 = vadd.xlane.f32.xlu0 %v221
    %v242 = vpop.xlane.xlu0 %241
    %243 = vadd.xlane.f32.xlu0 %v222
    %v244 = vpop.xlane.xlu0 %243
    %245 = vadd.xlane.f32.xlu0 %v223
    %v246 = vpop.xlane.xlu0 %245
    %247 = vadd.xlane.f32.xlu0 %v224
    %v248 = vpop.xlane.xlu0 %247
    %249 = vadd.xlane.f32.xlu0 %v225
    %v250 = vpop.xlane.xlu0 %249
    %251 = vadd.xlane.f32.xlu0 %v226
    %v252 = vpop.xlane.xlu0 %251
    %253 = vadd.xlane.f32.xlu0 %v227
    %v254 = vpop.xlane.xlu0 %253
    %255 = vadd.xlane.f32.xlu0 %v228
    %v256 = vpop.xlane.xlu0 %255
    %257 = vadd.xlane.f32.xlu0 %v229
    %v258 = vpop.xlane.xlu0 %257
    %259 = vadd.xlane.f32.xlu0 %v230
    %v260 = vpop.xlane.xlu0 %259
    %261 = vadd.xlane.f32.xlu0 %v231
    %v262 = vpop.xlane.xlu0 %261
    %263 = vadd.xlane.f32.xlu0 %v232
    %v264 = vpop.xlane.xlu0 %263
    %265 = vadd.xlane.f32.xlu0 %v233
    %v266 = vpop.xlane.xlu0 %265
    %267 = vadd.xlane.f32.xlu0 %v234
    %v268 = vpop.xlane.xlu0 %267
    %v269 = vrcp.pop 128.0
    %v270 = vmul.f32 %v238, %v269
    %v271 = vmul.f32 %v240, %v269
    %v272 = vmul.f32 %v242, %v269
    %v273 = vmul.f32 %v244, %v269
    %v274 = vmul.f32 %v246, %v269
    %v275 = vmul.f32 %v248, %v269
    %v276 = vmul.f32 %v250, %v269
    %v277 = vmul.f32 %v252, %v269
    %v278 = vmul.f32 %v254, %v269
    %v279 = vmul.f32 %v256, %v269
    %v280 = vmul.f32 %v258, %v269
    %v281 = vmul.f32 %v260, %v269
    %v282 = vmul.f32 %v262, %v269
    %v283 = vmul.f32 %v264, %v269
    %v284 = vmul.f32 %v266, %v269
    %v285 = vmul.f32 %v268, %v269
    %v286 = vsub.f32 %v219, %v270
    %v287 = vsub.f32 %v220, %v271
    %v288 = vsub.f32 %v221, %v272
    %v289 = vsub.f32 %v222, %v273
    %v290 = vsub.f32 %v223, %v274
    %v291 = vsub.f32 %v224, %v275
    %v292 = vsub.f32 %v225, %v276
    %v293 = vsub.f32 %v226, %v277
    %v294 = vsub.f32 %v227, %v278
    %v295 = vsub.f32 %v228, %v279
    %v296 = vsub.f32 %v229, %v280
    %v297 = vsub.f32 %v230, %v281
    %v298 = vsub.f32 %v231, %v282
    %v299 = vsub.f32 %v232, %v283
    %v300 = vsub.f32 %v233, %v284
    %v301 = vsub.f32 %v234, %v285
    %v302 = vmul.f32 %v286, %v286
    %v303 = vmul.f32 %v287, %v287
    %v304 = vmul.f32 %v288, %v288
    %v305 = vmul.f32 %v289, %v289
    %v306 = vmul.f32 %v290, %v290
    %v307 = vmul.f32 %v291, %v291
    %v308 = vmul.f32 %v292, %v292
    %v309 = vmul.f32 %v293, %v293
    %v310 = vmul.f32 %v294, %v294
    %v311 = vmul.f32 %v295, %v295
    %v312 = vmul.f32 %v296, %v296
    %v313 = vmul.f32 %v297, %v297
    %v314 = vmul.f32 %v298, %v298
    %v315 = vmul.f32 %v299, %v299
    %v316 = vmul.f32 %v300, %v300
    %v317 = vmul.f32 %v301, %v301
    %318 = vadd.xlane.f32.xlu0 %v302
    %v319 = vpop.xlane.xlu0 %318
    %320 = vadd.xlane.f32.xlu0 %v303
    %v321 = vpop.xlane.xlu0 %320
    %322 = vadd.xlane.f32.xlu0 %v304
    %v323 = vpop.xlane.xlu0 %322
    %324 = vadd.xlane.f32.xlu0 %v305
    %v325 = vpop.xlane.xlu0 %324
    %326 = vadd.xlane.f32.xlu0 %v306
    %v327 = vpop.xlane.xlu0 %326
    %328 = vadd.xlane.f32.xlu0 %v307
    %v329 = vpop.xlane.xlu0 %328
    %330 = vadd.xlane.f32.xlu0 %v308
    %v331 = vpop.xlane.xlu0 %330
    %332 = vadd.xlane.f32.xlu0 %v309
    %v333 = vpop.xlane.xlu0 %332
    %334 = vadd.xlane.f32.xlu0 %v310
    %v335 = vpop.xlane.xlu0 %334
    %336 = vadd.xlane.f32.xlu0 %v311
    %v337 = vpop.xlane.xlu0 %336
    %338 = vadd.xlane.f32.xlu0 %v312
    %v339 = vpop.xlane.xlu0 %338
    %340 = vadd.xlane.f32.xlu0 %v313
    %v341 = vpop.xlane.xlu0 %340
    %342 = vadd.xlane.f32.xlu0 %v314
    %v343 = vpop.xlane.xlu0 %342
    %344 = vadd.xlane.f32.xlu0 %v315
    %v345 = vpop.xlane.xlu0 %344
    %346 = vadd.xlane.f32.xlu0 %v316
    %v347 = vpop.xlane.xlu0 %346
    %348 = vadd.xlane.f32.xlu0 %v317
    %v349 = vpop.xlane.xlu0 %348
    %v350 = vmul.f32 %v319, %v269
    %v351 = vmul.f32 %v321, %v269
    %v352 = vmul.f32 %v323, %v269
    %v353 = vmul.f32 %v325, %v269
    %v354 = vmul.f32 %v327, %v269
    %v355 = vmul.f32 %v329, %v269
    %v356 = vmul.f32 %v331, %v269
    %v357 = vmul.f32 %v333, %v269
    %v358 = vmul.f32 %v335, %v269
    %v359 = vmul.f32 %v337, %v269
    %v360 = vmul.f32 %v339, %v269
    %v361 = vmul.f32 %v341, %v269
    %v362 = vmul.f32 %v343, %v269
    %v363 = vmul.f32 %v345, %v269
    %v364 = vmul.f32 %v347, %v269
    %v365 = vmul.f32 %v349, %v269
    %v366 = vadd.f32 %v350, 1e-05
    %v367 = vadd.f32 %v351, 1e-05
    %v368 = vadd.f32 %v352, 1e-05
    %v369 = vadd.f32 %v353, 1e-05
    %v370 = vadd.f32 %v354, 1e-05
    %v371 = vadd.f32 %v355, 1e-05
    %v372 = vadd.f32 %v356, 1e-05
    %v373 = vadd.f32 %v357, 1e-05
    %v374 = vadd.f32 %v358, 1e-05
    %v375 = vadd.f32 %v359, 1e-05
    %v376 = vadd.f32 %v360, 1e-05
    %v377 = vadd.f32 %v361, 1e-05
    %v378 = vadd.f32 %v362, 1e-05
    %v379 = vadd.f32 %v363, 1e-05
    %v380 = vadd.f32 %v364, 1e-05
    %v381 = vadd.f32 %v365, 1e-05
    %v382 = vrsqrt.pop %v366
    %v383 = vrsqrt.pop %v367
    %v384 = vrsqrt.pop %v368
    %v385 = vrsqrt.pop %v369
    %v386 = vrsqrt.pop %v370
    %v387 = vrsqrt.pop %v371
    %v388 = vrsqrt.pop %v372
    %v389 = vrsqrt.pop %v373
    %v390 = vrsqrt.pop %v374
    %v391 = vrsqrt.pop %v375
    %v392 = vrsqrt.pop %v376
    %v393 = vrsqrt.pop %v377
    %v394 = vrsqrt.pop %v378
    %v395 = vrsqrt.pop %v379
    %v396 = vrsqrt.pop %v380
    %v397 = vrsqrt.pop %v381
    %v398 = vmul.f32 %v286, %v382
    %v399 = vmul.f32 %v287, %v383
    %v400 = vmul.f32 %v288, %v384
    %v401 = vmul.f32 %v289, %v385
    %v402 = vmul.f32 %v290, %v386
    %v403 = vmul.f32 %v291, %v387
    %v404 = vmul.f32 %v292, %v388
    %v405 = vmul.f32 %v293, %v389
    %v406 = vmul.f32 %v294, %v390
    %v407 = vmul.f32 %v295, %v391
    %v408 = vmul.f32 %v296, %v392
    %v409 = vmul.f32 %v297, %v393
    %v410 = vmul.f32 %v298, %v394
    %v411 = vmul.f32 %v299, %v395
    %v412 = vmul.f32 %v300, %v396
    %v413 = vmul.f32 %v301, %v397
    %v415 = vlaneseq
    %v416 = vshrl.u32 %v415, 7
    %v417 = vsub.s32 0, %v416
    %v418 = vrot.slane %v235, %v417
    %v420 = vmul.f32 %v398, %v418
    %v421 = vmul.f32 %v399, %v418
    %v422 = vmul.f32 %v400, %v418
    %v423 = vmul.f32 %v401, %v418
    %v424 = vmul.f32 %v402, %v418
    %v425 = vmul.f32 %v403, %v418
    %v426 = vmul.f32 %v404, %v418
    %v427 = vmul.f32 %v405, %v418
    %v428 = vmul.f32 %v406, %v418
    %v429 = vmul.f32 %v407, %v418
    %v430 = vmul.f32 %v408, %v418
    %v431 = vmul.f32 %v409, %v418
    %v432 = vmul.f32 %v410, %v418
    %v433 = vmul.f32 %v411, %v418
    %v434 = vmul.f32 %v412, %v418
    %v435 = vmul.f32 %v413, %v418
    %v437 = vlaneseq
    %v438 = vshrl.u32 %v437, 7
    %v439 = vsub.s32 0, %v438
    %v440 = vrot.slane %v236, %v439
    %v442 = vadd.f32 %v420, %v440
    %v443 = vadd.f32 %v421, %v440
    %v444 = vadd.f32 %v422, %v440
    %v445 = vadd.f32 %v423, %v440
    %v446 = vadd.f32 %v424, %v440
    %v447 = vadd.f32 %v425, %v440
    %v448 = vadd.f32 %v426, %v440
    %v449 = vadd.f32 %v427, %v440
    %v450 = vadd.f32 %v428, %v440
    %v451 = vadd.f32 %v429, %v440
    %v452 = vadd.f32 %v430, %v440
    %v453 = vadd.f32 %v431, %v440
    %v454 = vadd.f32 %v432, %v440
    %v455 = vadd.f32 %v433, %v440
    %v456 = vadd.f32 %v434, %v440
    %v457 = vadd.f32 %v435, %v440
    %v458 = vpack.c.bf16 %v443, %v442
    %v459 = vpack.c.bf16 %v445, %v444
    %v460 = vpack.c.bf16 %v447, %v446
    %v461 = vpack.c.bf16 %v449, %v448
    %v462 = vpack.c.bf16 %v451, %v450
    %v463 = vpack.c.bf16 %v453, %v452
    %v464 = vpack.c.bf16 %v455, %v454
    %v465 = vpack.c.bf16 %v457, %v456
    %v466 = vld [vmem:[#allocation8] sm:$0xf]
    %v467 = vld [vmem:[#allocation8 + $0x4] sm:$0xf]
    %v468 = vld [vmem:[#allocation8 + $0x8] sm:$0xf]
    %v469 = vld [vmem:[#allocation8 + $0xc] sm:$0xf]
    %v470 = vld [vmem:[#allocation8 + $0x10] sm:$0xf]
    %v471 = vld [vmem:[#allocation8 + $0x14] sm:$0xf]
    %v472 = vld [vmem:[#allocation8 + $0x18] sm:$0xf]
    %v473 = vld [vmem:[#allocation8 + $0x1c] sm:$0xf]
    %v474 = vld [vmem:[#allocation8 + $0x20] sm:$0xf]
    %v475 = vld [vmem:[#allocation8 + $0x24] sm:$0xf]
    %v476 = vld [vmem:[#allocation8 + $0x28] sm:$0xf]
    %v477 = vld [vmem:[#allocation8 + $0x2c] sm:$0xf]
    %v478 = vld [vmem:[#allocation8 + $0x30] sm:$0xf]
    %v479 = vld [vmem:[#allocation8 + $0x34] sm:$0xf]
    %v480 = vld [vmem:[#allocation8 + $0x38] sm:$0xf]
    %v481 = vld [vmem:[#allocation8 + $0x3c] sm:$0xf]
    %v482 = vld [vmem:[%s6] sm:$0x1]
    %v484 = vlaneseq
    %v485 = vshrl.u32 %v484, 7
    %v486 = vsub.s32 0, %v485
    %v487 = vrot.slane %v482, %v486
    %v505 = vunpack.c.l.b16 %v466
    %v506 = vunpack.c.l.b16 %v467
    %v507 = vunpack.c.l.b16 %v468
    %v508 = vunpack.c.l.b16 %v469
    %v509 = vunpack.c.l.b16 %v470
    %v510 = vunpack.c.l.b16 %v471
    %v511 = vunpack.c.l.b16 %v472
    %v512 = vunpack.c.l.b16 %v473
    %v513 = vunpack.c.l.b16 %v474
    %v514 = vunpack.c.l.b16 %v475
    %v515 = vunpack.c.l.b16 %v476
    %v516 = vunpack.c.l.b16 %v477
    %v517 = vunpack.c.l.b16 %v478
    %v518 = vunpack.c.l.b16 %v479
    %v519 = vunpack.c.l.b16 %v480
    %v520 = vunpack.c.l.b16 %v481
    %v521 = vpack.c.b16 %v506, %v505
    %v522 = vpack.c.b16 %v508, %v507
    %v523 = vpack.c.b16 %v510, %v509
    %v524 = vpack.c.b16 %v512, %v511
    %v525 = vpack.c.b16 %v514, %v513
    %v526 = vpack.c.b16 %v516, %v515
    %v527 = vpack.c.b16 %v518, %v517
    %v528 = vpack.c.b16 %v520, %v519
    %537 = vmatprep.subr.bf16.mxu0 0
    %538 = vmatpush1.bf16.msra.mxu0 %v521
    %539 = vmatprep.subr.bf16.mxu0 0
    %540 = vmatpush1.bf16.msra.mxu0 %v522
    %541 = vmatprep.subr.bf16.mxu0 0
    %542 = vmatpush1.bf16.msra.mxu0 %v523
    %543 = vmatprep.subr.bf16.mxu0 0
    %544 = vmatpush1.bf16.msra.mxu0 %v524
    %545 = vmatprep.subr.bf16.mxu0 0
    %546 = vmatpush1.bf16.msra.mxu0 %v525
    %547 = vmatprep.subr.bf16.mxu0 0
    %548 = vmatpush1.bf16.msra.mxu0 %v526
    %549 = vmatprep.subr.bf16.mxu0 0
    %550 = vmatpush1.bf16.msra.mxu0 %v527
    %551 = vmatprep.subr.bf16.mxu0 0
    %552 = vmatpush1.bf16.msra.mxu0 %v528
    %553 = vmatprep.subr.bf16.mxu0 0
    %554 = vmatpush1.bf16.msra.mxu0 0
    %555 = vmatprep.subr.bf16.mxu0 0
    %556 = vmatpush1.bf16.msra.mxu0 0
    %557 = vmatprep.subr.bf16.mxu0 0
    %558 = vmatpush1.bf16.msra.mxu0 0
    %559 = vmatprep.subr.bf16.mxu0 0
    %560 = vmatpush1.bf16.msra.mxu0 0
    %561 = vmatprep.subr.bf16.mxu0 0
    %562 = vmatpush1.bf16.msra.mxu0 0
    %563 = vmatprep.subr.bf16.mxu0 0
    %564 = vmatpush1.bf16.msra.mxu0 0
    %565 = vmatprep.subr.bf16.mxu0 0
    %566 = vmatpush1.bf16.msra.mxu0 0
    %567 = vmatprep.subr.bf16.mxu0 0
    %568 = vmatpush1.bf16.msra.mxu0 0
    %569 = vmatprep.mubr.bf16.mxu0 0
    %570 = vmatmul.mubr.bf16.gmra.mrb[0].mxu0 %v458
    %v571 = vpop.f32.mrb[0].mxu0
    %v572 = vadd.f32 %v487, %v571
    %v573 = vpop.f32.mrb[0].mxu0
    %v574 = vpop.f32.mrb[0].mxu0
    %v575 = vadd.f32 %v487, %v574
    %v576 = vpop.f32.mrb[0].mxu0
    %577 = vmatprep.mubr.bf16.mxu0 0
    %578 = vmatmul.mubr.bf16.gmra.mrb[0].mxu0 %v459
    %v579 = vpop.f32.mrb[0].mxu0
    %v580 = vadd.f32 %v487, %v579
    %v581 = vpop.f32.mrb[0].mxu0
    %v582 = vpop.f32.mrb[0].mxu0
    %v583 = vadd.f32 %v487, %v582
    %v584 = vpop.f32.mrb[0].mxu0
    %585 = vmatprep.mubr.bf16.mxu0 0
    %586 = vmatmul.mubr.bf16.gmra.mrb[0].mxu0 %v460
    %v587 = vpop.f32.mrb[0].mxu0
    %v588 = vadd.f32 %v487, %v587
    %v589 = vpop.f32.mrb[0].mxu0
    %v590 = vpop.f32.mrb[0].mxu0
    %v591 = vadd.f32 %v487, %v590
    %v592 = vpop.f32.mrb[0].mxu0
    %593 = vmatprep.mubr.bf16.mxu0 0
    %594 = vmatmul.mubr.bf16.gmra.mrb[0].mxu0 %v461
    %v595 = vpop.f32.mrb[0].mxu0
    %v596 = vadd.f32 %v487, %v595
    %v597 = vpop.f32.mrb[0].mxu0
    %v598 = vpop.f32.mrb[0].mxu0
    %v599 = vadd.f32 %v487, %v598
    %v600 = vpop.f32.mrb[0].mxu0
    %601 = vmatprep.mubr.bf16.mxu0 0
    %602 = vmatmul.mubr.bf16.gmra.mrb[0].mxu0 %v462
    %v603 = vpop.f32.mrb[0].mxu0
    %v604 = vadd.f32 %v487, %v603
    %v605 = vpop.f32.mrb[0].mxu0
    %v606 = vpop.f32.mrb[0].mxu0
    %v607 = vadd.f32 %v487, %v606
    %v608 = vpop.f32.mrb[0].mxu0
    %609 = vmatprep.mubr.bf16.mxu0 0
    %610 = vmatmul.mubr.bf16.gmra.mrb[0].mxu0 %v463
    %v611 = vpop.f32.mrb[0].mxu0
    %v612 = vadd.f32 %v487, %v611
    %v613 = vpop.f32.mrb[0].mxu0
    %v614 = vpop.f32.mrb[0].mxu0
    %v615 = vadd.f32 %v487, %v614
    %v616 = vpop.f32.mrb[0].mxu0
    %617 = vmatprep.mubr.bf16.mxu0 0
    %618 = vmatmul.mubr.bf16.gmra.mrb[0].mxu0 %v464
    %v619 = vpop.f32.mrb[0].mxu0
    %v620 = vadd.f32 %v487, %v619
    %v621 = vpop.f32.mrb[0].mxu0
    %v622 = vpop.f32.mrb[0].mxu0
    %v623 = vadd.f32 %v487, %v622
    %v624 = vpop.f32.mrb[0].mxu0
    %625 = vmatprep.mubr.bf16.mxu0 0
    %626 = vmatmul.mubr.bf16.gmra.mrb[0].mxu0 %v465
    %v627 = vpop.f32.mrb[0].mxu0
    %v628 = vadd.f32 %v487, %v627
    %v629 = vpop.f32.mrb[0].mxu0
    %v630 = vpop.f32.mrb[0].mxu0
    %v631 = vadd.f32 %v487, %v630
    %v632 = vpop.f32.mrb[0].mxu0
    %633 = vdwg.mxu0
    %v634 = vld [vmem:[#allocation10] sm:$0xf]
    %v635 = vld [vmem:[#allocation10 + $0x4] sm:$0xf]
    %v636 = vld [vmem:[#allocation10 + $0x8] sm:$0xf]
    %v637 = vld [vmem:[#allocation10 + $0xc] sm:$0xf]
    %v638 = vld [vmem:[#allocation10 + $0x10] sm:$0xf]
    %v639 = vld [vmem:[#allocation10 + $0x14] sm:$0xf]
    %v640 = vld [vmem:[#allocation10 + $0x18] sm:$0xf]
    %v641 = vld [vmem:[#allocation10 + $0x1c] sm:$0xf]
    %v642 = vld [vmem:[#allocation10 + $0x20] sm:$0xf]
    %v643 = vld [vmem:[#allocation10 + $0x24] sm:$0xf]
    %v644 = vld [vmem:[#allocation10 + $0x28] sm:$0xf]
    %v645 = vld [vmem:[#allocation10 + $0x2c] sm:$0xf]
    %v646 = vld [vmem:[#allocation10 + $0x30] sm:$0xf]
    %v647 = vld [vmem:[#allocation10 + $0x34] sm:$0xf]
    %v648 = vld [vmem:[#allocation10 + $0x38] sm:$0xf]
    %v649 = vld [vmem:[#allocation10 + $0x3c] sm:$0xf]
    %v650 = vld [vmem:[%s8] sm:$0x1]
    %v652 = vlaneseq
    %v653 = vshrl.u32 %v652, 7
    %v654 = vsub.s32 0, %v653
    %v655 = vrot.slane %v650, %v654
    %v673 = vunpack.c.l.b16 %v634
    %v674 = vunpack.c.l.b16 %v635
    %v675 = vunpack.c.l.b16 %v636
    %v676 = vunpack.c.l.b16 %v637
    %v677 = vunpack.c.l.b16 %v638
    %v678 = vunpack.c.l.b16 %v639
    %v679 = vunpack.c.l.b16 %v640
    %v680 = vunpack.c.l.b16 %v641
    %v681 = vunpack.c.l.b16 %v642
    %v682 = vunpack.c.l.b16 %v643
    %v683 = vunpack.c.l.b16 %v644
    %v684 = vunpack.c.l.b16 %v645
    %v685 = vunpack.c.l.b16 %v646
    %v686 = vunpack.c.l.b16 %v647
    %v687 = vunpack.c.l.b16 %v648
    %v688 = vunpack.c.l.b16 %v649
    %v689 = vpack.c.b16 %v674, %v673
    %v690 = vpack.c.b16 %v676, %v675
    %v691 = vpack.c.b16 %v678, %v677
    %v692 = vpack.c.b16 %v680, %v679
    %v693 = vpack.c.b16 %v682, %v681
    %v694 = vpack.c.b16 %v684, %v683
    %v695 = vpack.c.b16 %v686, %v685
    %v696 = vpack.c.b16 %v688, %v687
    %705 = vmatprep.subr.bf16.mxu0 0
    %706 = vmatpush1.bf16.msra.mxu0 %v689
    %707 = vmatprep.subr.bf16.mxu0 0
    %708 = vmatpush1.bf16.msra.mxu0 %v690
    %709 = vmatprep.subr.bf16.mxu0 0
    %710 = vmatpush1.bf16.msra.mxu0 %v691
    %711 = vmatprep.subr.bf16.mxu0 0
    %712 = vmatpush1.bf16.msra.mxu0 %v692
    %713 = vmatprep.subr.bf16.mxu0 0
    %714 = vmatpush1.bf16.msra.mxu0 %v693
    %715 = vmatprep.subr.bf16.mxu0 0
    %716 = vmatpush1.bf16.msra.mxu0 %v694
    %717 = vmatprep.subr.bf16.mxu0 0
    %718 = vmatpush1.bf16.msra.mxu0 %v695
    %719 = vmatprep.subr.bf16.mxu0 0
    %720 = vmatpush1.bf16.msra.mxu0 %v696
    %721 = vmatprep.subr.bf16.mxu0 0
    %722 = vmatpush1.bf16.msra.mxu0 0
    %723 = vmatprep.subr.bf16.mxu0 0
    %724 = vmatpush1.bf16.msra.mxu0 0
    %725 = vmatprep.subr.bf16.mxu0 0
    %726 = vmatpush1.bf16.msra.mxu0 0
    %727 = vmatprep.subr.bf16.mxu0 0
    %728 = vmatpush1.bf16.msra.mxu0 0
    %729 = vmatprep.subr.bf16.mxu0 0
    %730 = vmatpush1.bf16.msra.mxu0 0
    %731 = vmatprep.subr.bf16.mxu0 0
    %732 = vmatpush1.bf16.msra.mxu0 0
    %733 = vmatprep.subr.bf16.mxu0 0
    %734 = vmatpush1.bf16.msra.mxu0 0
    %735 = vmatprep.subr.bf16.mxu0 0
    %736 = vmatpush1.bf16.msra.mxu0 0
    %737 = vmatprep.mubr.bf16.mxu0 0
    %738 = vmatmul.mubr.bf16.gmra.mrb[0].mxu0 %v458
    %v739 = vpop.f32.mrb[0].mxu0
    %v740 = vadd.f32 %v655, %v739
    %v741 = vpop.f32.mrb[0].mxu0
    %v742 = vpop.f32.mrb[0].mxu0
    %v743 = vadd.f32 %v655, %v742
    %v744 = vpop.f32.mrb[0].mxu0
    %745 = vmatprep.mubr.bf16.mxu0 0
    %746 = vmatmul.mubr.bf16.gmra.mrb[0].mxu0 %v459
    %v747 = vpop.f32.mrb[0].mxu0
    %v748 = vadd.f32 %v655, %v747
    %v749 = vpop.f32.mrb[0].mxu0
    %v750 = vpop.f32.mrb[0].mxu0
    %v751 = vadd.f32 %v655, %v750
    %v752 = vpop.f32.mrb[0].mxu0
    %753 = vmatprep.mubr.bf16.mxu0 0
    %754 = vmatmul.mubr.bf16.gmra.mrb[0].mxu0 %v460
    %v755 = vpop.f32.mrb[0].mxu0
    %v756 = vadd.f32 %v655, %v755
    %v757 = vpop.f32.mrb[0].mxu0
    %v758 = vpop.f32.mrb[0].mxu0
    %v759 = vadd.f32 %v655, %v758
    %v760 = vpop.f32.mrb[0].mxu0
    %761 = vmatprep.mubr.bf16.mxu0 0
    %762 = vmatmul.mubr.bf16.gmra.mrb[0].mxu0 %v461
    %v763 = vpop.f32.mrb[0].mxu0
    %v764 = vadd.f32 %v655, %v763
    %v765 = vpop.f32.mrb[0].mxu0
    %v766 = vpop.f32.mrb[0].mxu0
    %v767 = vadd.f32 %v655, %v766
    %v768 = vpop.f32.mrb[0].mxu0
    %769 = vmatprep.mubr.bf16.mxu0 0
    %770 = vmatmul.mubr.bf16.gmra.mrb[0].mxu0 %v462
    %v771 = vpop.f32.mrb[0].mxu0
    %v772 = vadd.f32 %v655, %v771
    %v773 = vpop.f32.mrb[0].mxu0
    %v774 = vpop.f32.mrb[0].mxu0
    %v775 = vadd.f32 %v655, %v774
    %v776 = vpop.f32.mrb[0].mxu0
    %777 = vmatprep.mubr.bf16.mxu0 0
    %778 = vmatmul.mubr.bf16.gmra.mrb[0].mxu0 %v463
    %v779 = vpop.f32.mrb[0].mxu0
    %v780 = vadd.f32 %v655, %v779
    %v781 = vpop.f32.mrb[0].mxu0
    %v782 = vpop.f32.mrb[0].mxu0
    %v783 = vadd.f32 %v655, %v782
    %v784 = vpop.f32.mrb[0].mxu0
    %785 = vmatprep.mubr.bf16.mxu0 0
    %786 = vmatmul.mubr.bf16.gmra.mrb[0].mxu0 %v464
    %v787 = vpop.f32.mrb[0].mxu0
    %v788 = vadd.f32 %v655, %v787
    %v789 = vpop.f32.mrb[0].mxu0
    %v790 = vpop.f32.mrb[0].mxu0
    %v791 = vadd.f32 %v655, %v790
    %v792 = vpop.f32.mrb[0].mxu0
    %793 = vmatprep.mubr.bf16.mxu0 0
    %794 = vmatmul.mubr.bf16.gmra.mrb[0].mxu0 %v465
    %v795 = vpop.f32.mrb[0].mxu0
    %v796 = vadd.f32 %v655, %v795
    %v797 = vpop.f32.mrb[0].mxu0
    %v798 = vpop.f32.mrb[0].mxu0
    %v799 = vadd.f32 %v655, %v798
    %v800 = vpop.f32.mrb[0].mxu0
    %801 = vdwg.mxu0
    %v802 = vld [vmem:[#allocation11] sm:$0xf]
    %v803 = vld [vmem:[#allocation11 + $0x4] sm:$0xf]
    %v804 = vld [vmem:[#allocation11 + $0x8] sm:$0xf]
    %v805 = vld [vmem:[#allocation11 + $0xc] sm:$0xf]
    %v806 = vld [vmem:[#allocation11 + $0x10] sm:$0xf]
    %v807 = vld [vmem:[#allocation11 + $0x14] sm:$0xf]
    %v808 = vld [vmem:[#allocation11 + $0x18] sm:$0xf]
    %v809 = vld [vmem:[#allocation11 + $0x1c] sm:$0xf]
    %v810 = vld [vmem:[#allocation11 + $0x20] sm:$0xf]
    %v811 = vld [vmem:[#allocation11 + $0x24] sm:$0xf]
    %v812 = vld [vmem:[#allocation11 + $0x28] sm:$0xf]
    %v813 = vld [vmem:[#allocation11 + $0x2c] sm:$0xf]
    %v814 = vld [vmem:[#allocation11 + $0x30] sm:$0xf]
    %v815 = vld [vmem:[#allocation11 + $0x34] sm:$0xf]
    %v816 = vld [vmem:[#allocation11 + $0x38] sm:$0xf]
    %v817 = vld [vmem:[#allocation11 + $0x3c] sm:$0xf]
    %v818 = vld [vmem:[%s10] sm:$0x1]
    %v820 = vlaneseq
    %v821 = vshrl.u32 %v820, 7
    %v822 = vsub.s32 0, %v821
    %v823 = vrot.slane %v818, %v822
    %v841 = vunpack.c.l.b16 %v802
    %v842 = vunpack.c.l.b16 %v803
    %v843 = vunpack.c.l.b16 %v804
    %v844 = vunpack.c.l.b16 %v805
    %v845 = vunpack.c.l.b16 %v806
    %v846 = vunpack.c.l.b16 %v807
    %v847 = vunpack.c.l.b16 %v808
    %v848 = vunpack.c.l.b16 %v809
    %v849 = vunpack.c.l.b16 %v810
    %v850 = vunpack.c.l.b16 %v811
    %v851 = vunpack.c.l.b16 %v812
    %v852 = vunpack.c.l.b16 %v813
    %v853 = vunpack.c.l.b16 %v814
    %v854 = vunpack.c.l.b16 %v815
    %v855 = vunpack.c.l.b16 %v816
    %v856 = vunpack.c.l.b16 %v817
    %v857 = vpack.c.b16 %v842, %v841
    %v858 = vpack.c.b16 %v844, %v843
    %v859 = vpack.c.b16 %v846, %v845
    %v860 = vpack.c.b16 %v848, %v847
    %v861 = vpack.c.b16 %v850, %v849
    %v862 = vpack.c.b16 %v852, %v851
    %v863 = vpack.c.b16 %v854, %v853
    %v864 = vpack.c.b16 %v856, %v855
    %873 = vmatprep.subr.bf16.mxu0 0
    %874 = vmatpush1.bf16.msra.mxu0 %v857
    %875 = vmatprep.subr.bf16.mxu0 0
    %876 = vmatpush1.bf16.msra.mxu0 %v858
    %877 = vmatprep.subr.bf16.mxu0 0
    %878 = vmatpush1.bf16.msra.mxu0 %v859
    %879 = vmatprep.subr.bf16.mxu0 0
    %880 = vmatpush1.bf16.msra.mxu0 %v860
    %881 = vmatprep.subr.bf16.mxu0 0
    %882 = vmatpush1.bf16.msra.mxu0 %v861
    %883 = vmatprep.subr.bf16.mxu0 0
    %884 = vmatpush1.bf16.msra.mxu0 %v862
    %885 = vmatprep.subr.bf16.mxu0 0
    %886 = vmatpush1.bf16.msra.mxu0 %v863
    %887 = vmatprep.subr.bf16.mxu0 0
    %888 = vmatpush1.bf16.msra.mxu0 %v864
    %889 = vmatprep.subr.bf16.mxu0 0
    %890 = vmatpush1.bf16.msra.mxu0 0
    %891 = vmatprep.subr.bf16.mxu0 0
    %892 = vmatpush1.bf16.msra.mxu0 0
    %893 = vmatprep.subr.bf16.mxu0 0
    %894 = vmatpush1.bf16.msra.mxu0 0
    %895 = vmatprep.subr.bf16.mxu0 0
    %896 = vmatpush1.bf16.msra.mxu0 0
    %897 = vmatprep.subr.bf16.mxu0 0
    %898 = vmatpush1.bf16.msra.mxu0 0
    %899 = vmatprep.subr.bf16.mxu0 0
    %900 = vmatpush1.bf16.msra.mxu0 0
    %901 = vmatprep.subr.bf16.mxu0 0
    %902 = vmatpush1.bf16.msra.mxu0 0
    %903 = vmatprep.subr.bf16.mxu0 0
    %904 = vmatpush1.bf16.msra.mxu0 0
    %905 = vmatprep.mubr.bf16.mxu0 0
    %906 = vmatmul.mubr.bf16.gmra.mrb[0].mxu0 %v458
    %v907 = vpop.f32.mrb[0].mxu0
    %v908 = vadd.f32 %v823, %v907
    %v909 = vpop.f32.mrb[0].mxu0
    %v910 = vpop.f32.mrb[0].mxu0
    %v911 = vadd.f32 %v823, %v910
    %v912 = vpop.f32.mrb[0].mxu0
    %913 = vmatprep.mubr.bf16.mxu0 0
    %914 = vmatmul.mubr.bf16.gmra.mrb[0].mxu0 %v459
    %v915 = vpop.f32.mrb[0].mxu0
    %v916 = vadd.f32 %v823, %v915
    %v917 = vpop.f32.mrb[0].mxu0
    %v918 = vpop.f32.mrb[0].mxu0
    %v919 = vadd.f32 %v823, %v918
    %v920 = vpop.f32.mrb[0].mxu0
    %921 = vmatprep.mubr.bf16.mxu0 0
    %922 = vmatmul.mubr.bf16.gmra.mrb[0].mxu0 %v460
    %v923 = vpop.f32.mrb[0].mxu0
    %v924 = vadd.f32 %v823, %v923
    %v925 = vpop.f32.mrb[0].mxu0
    %v926 = vpop.f32.mrb[0].mxu0
    %v927 = vadd.f32 %v823, %v926
    %v928 = vpop.f32.mrb[0].mxu0
    %929 = vmatprep.mubr.bf16.mxu0 0
    %930 = vmatmul.mubr.bf16.gmra.mrb[0].mxu0 %v461
    %v931 = vpop.f32.mrb[0].mxu0
    %v932 = vadd.f32 %v823, %v931
    %v933 = vpop.f32.mrb[0].mxu0
    %v934 = vpop.f32.mrb[0].mxu0
    %v935 = vadd.f32 %v823, %v934
    %v936 = vpop.f32.mrb[0].mxu0
    %937 = vmatprep.mubr.bf16.mxu0 0
    %938 = vmatmul.mubr.bf16.gmra.mrb[0].mxu0 %v462
    %v939 = vpop.f32.mrb[0].mxu0
    %v940 = vadd.f32 %v823, %v939
    %v941 = vpop.f32.mrb[0].mxu0
    %v942 = vpop.f32.mrb[0].mxu0
    %v943 = vadd.f32 %v823, %v942
    %v944 = vpop.f32.mrb[0].mxu0
    %945 = vmatprep.mubr.bf16.mxu0 0
    %946 = vmatmul.mubr.bf16.gmra.mrb[0].mxu0 %v463
    %v947 = vpop.f32.mrb[0].mxu0
    %v948 = vadd.f32 %v823, %v947
    %v949 = vpop.f32.mrb[0].mxu0
    %v950 = vpop.f32.mrb[0].mxu0
    %v951 = vadd.f32 %v823, %v950
    %v952 = vpop.f32.mrb[0].mxu0
    %953 = vmatprep.mubr.bf16.mxu0 0
    %954 = vmatmul.mubr.bf16.gmra.mrb[0].mxu0 %v464
    %v955 = vpop.f32.mrb[0].mxu0
    %v956 = vadd.f32 %v823, %v955
    %v957 = vpop.f32.mrb[0].mxu0
    %v958 = vpop.f32.mrb[0].mxu0
    %v959 = vadd.f32 %v823, %v958
    %v960 = vpop.f32.mrb[0].mxu0
    %961 = vmatprep.mubr.bf16.mxu0 0
    %962 = vmatmul.mubr.bf16.gmra.mrb[0].mxu0 %v465
    %v963 = vpop.f32.mrb[0].mxu0
    %v964 = vadd.f32 %v823, %v963
    %v965 = vpop.f32.mrb[0].mxu0
    %v966 = vpop.f32.mrb[0].mxu0
    %v967 = vadd.f32 %v823, %v966
    %v968 = vpop.f32.mrb[0].mxu0
    %969 = vdwg.mxu0
    %v970 = vld [vmem:[#allocation13] sm:$0xf]
    %v971 = vld [vmem:[#allocation13 + $0x4] sm:$0xf]
    %v972 = vld [vmem:[#allocation13 + $0x8] sm:$0xf]
    %v973 = vld [vmem:[#allocation13 + $0xc] sm:$0xf]
    %v974 = vld [vmem:[#allocation13 + $0x10] sm:$0xf]
    %v975 = vld [vmem:[#allocation13 + $0x14] sm:$0xf]
    %v976 = vld [vmem:[#allocation13 + $0x18] sm:$0xf]
    %v977 = vld [vmem:[#allocation13 + $0x1c] sm:$0xf]
    %v978 = vld [vmem:[#allocation13 + $0x20] sm:$0xf]
    %v979 = vld [vmem:[#allocation13 + $0x24] sm:$0xf]
    %v980 = vld [vmem:[#allocation13 + $0x28] sm:$0xf]
    %v981 = vld [vmem:[#allocation13 + $0x2c] sm:$0xf]
    %v982 = vld [vmem:[#allocation13 + $0x30] sm:$0xf]
    %v983 = vld [vmem:[#allocation13 + $0x34] sm:$0xf]
    %v984 = vld [vmem:[#allocation13 + $0x38] sm:$0xf]
    %v985 = vld [vmem:[#allocation13 + $0x3c] sm:$0xf]
    %v986 = vld [vmem:[%s12] sm:$0x1]
    %v988 = vlaneseq
    %v989 = vshrl.u32 %v988, 7
    %v990 = vsub.s32 0, %v989
    %v991 = vrot.slane %v986, %v990
    %v1009 = vunpack.c.l.b16 %v970
    %v1010 = vunpack.c.l.b16 %v971
    %v1011 = vunpack.c.l.b16 %v972
    %v1012 = vunpack.c.l.b16 %v973
    %v1013 = vunpack.c.l.b16 %v974
    %v1014 = vunpack.c.l.b16 %v975
    %v1015 = vunpack.c.l.b16 %v976
    %v1016 = vunpack.c.l.b16 %v977
    %v1017 = vunpack.c.l.b16 %v978
    %v1018 = vunpack.c.l.b16 %v979
    %v1019 = vunpack.c.l.b16 %v980
    %v1020 = vunpack.c.l.b16 %v981
    %v1021 = vunpack.c.l.b16 %v982
    %v1022 = vunpack.c.l.b16 %v983
    %v1023 = vunpack.c.l.b16 %v984
    %v1024 = vunpack.c.l.b16 %v985
    %v1025 = vpack.c.b16 %v1010, %v1009
    %v1026 = vpack.c.b16 %v1012, %v1011
    %v1027 = vpack.c.b16 %v1014, %v1013
    %v1028 = vpack.c.b16 %v1016, %v1015
    %v1029 = vpack.c.b16 %v1018, %v1017
    %v1030 = vpack.c.b16 %v1020, %v1019
    %v1031 = vpack.c.b16 %v1022, %v1021
    %v1032 = vpack.c.b16 %v1024, %v1023
    %1041 = vmatprep.subr.bf16.mxu0 0
    %1042 = vmatpush1.bf16.msra.mxu0 %v1025
    %1043 = vmatprep.subr.bf16.mxu0 0
    %1044 = vmatpush1.bf16.msra.mxu0 %v1026
    %1045 = vmatprep.subr.bf16.mxu0 0
    %1046 = vmatpush1.bf16.msra.mxu0 %v1027
    %1047 = vmatprep.subr.bf16.mxu0 0
    %1048 = vmatpush1.bf16.msra.mxu0 %v1028
    %1049 = vmatprep.subr.bf16.mxu0 0
    %1050 = vmatpush1.bf16.msra.mxu0 %v1029
    %1051 = vmatprep.subr.bf16.mxu0 0
    %1052 = vmatpush1.bf16.msra.mxu0 %v1030
    %1053 = vmatprep.subr.bf16.mxu0 0
    %1054 = vmatpush1.bf16.msra.mxu0 %v1031
    %1055 = vmatprep.subr.bf16.mxu0 0
    %1056 = vmatpush1.bf16.msra.mxu0 %v1032
    %1057 = vmatprep.subr.bf16.mxu0 0
    %1058 = vmatpush1.bf16.msra.mxu0 0
    %1059 = vmatprep.subr.bf16.mxu0 0
    %1060 = vmatpush1.bf16.msra.mxu0 0
    %1061 = vmatprep.subr.bf16.mxu0 0
    %1062 = vmatpush1.bf16.msra.mxu0 0
    %1063 = vmatprep.subr.bf16.mxu0 0
    %1064 = vmatpush1.bf16.msra.mxu0 0
    %1065 = vmatprep.subr.bf16.mxu0 0
    %1066 = vmatpush1.bf16.msra.mxu0 0
    %1067 = vmatprep.subr.bf16.mxu0 0
    %1068 = vmatpush1.bf16.msra.mxu0 0
    %1069 = vmatprep.subr.bf16.mxu0 0
    %1070 = vmatpush1.bf16.msra.mxu0 0
    %1071 = vmatprep.subr.bf16.mxu0 0
    %1072 = vmatpush1.bf16.msra.mxu0 0
    %1073 = vmatprep.mubr.bf16.mxu0 0
    %1074 = vmatmul.mubr.bf16.gmra.mrb[0].mxu0 %v458
    %v1075 = vpop.f32.mrb[0].mxu0
    %v1076 = vadd.f32 %v991, %v1075
    %v1077 = vpop.f32.mrb[0].mxu0
    %v1078 = vpop.f32.mrb[0].mxu0
    %v1079 = vadd.f32 %v991, %v1078
    %v1080 = vpop.f32.mrb[0].mxu0
    %1081 = vmatprep.mubr.bf16.mxu0 0
    %1082 = vmatmul.mubr.bf16.gmra.mrb[0].mxu0 %v459
    %v1083 = vpop.f32.mrb[0].mxu0
    %v1084 = vadd.f32 %v991, %v1083
    %v1085 = vpop.f32.mrb[0].mxu0
    %v1086 = vpop.f32.mrb[0].mxu0
    %v1087 = vadd.f32 %v991, %v1086
    %v1088 = vpop.f32.mrb[0].mxu0
    %1089 = vmatprep.mubr.bf16.mxu0 0
    %1090 = vmatmul.mubr.bf16.gmra.mrb[0].mxu0 %v460
    %v1091 = vpop.f32.mrb[0].mxu0
    %v1092 = vadd.f32 %v991, %v1091
    %v1093 = vpop.f32.mrb[0].mxu0
    %v1094 = vpop.f32.mrb[0].mxu0
    %v1095 = vadd.f32 %v991, %v1094
    %v1096 = vpop.f32.mrb[0].mxu0
    %1097 = vmatprep.mubr.bf16.mxu0 0
    %1098 = vmatmul.mubr.bf16.gmra.mrb[0].mxu0 %v461
    %v1099 = vpop.f32.mrb[0].mxu0
    %v1100 = vadd.f32 %v991, %v1099
    %v1101 = vpop.f32.mrb[0].mxu0
    %v1102 = vpop.f32.mrb[0].mxu0
    %v1103 = vadd.f32 %v991, %v1102
    %v1104 = vpop.f32.mrb[0].mxu0
    %1105 = vmatprep.mubr.bf16.mxu0 0
    %1106 = vmatmul.mubr.bf16.gmra.mrb[0].mxu0 %v462
    %v1107 = vpop.f32.mrb[0].mxu0
    %v1108 = vadd.f32 %v991, %v1107
    %v1109 = vpop.f32.mrb[0].mxu0
    %v1110 = vpop.f32.mrb[0].mxu0
    %v1111 = vadd.f32 %v991, %v1110
    %v1112 = vpop.f32.mrb[0].mxu0
    %1113 = vmatprep.mubr.bf16.mxu0 0
    %1114 = vmatmul.mubr.bf16.gmra.mrb[0].mxu0 %v463
    %v1115 = vpop.f32.mrb[0].mxu0
    %v1116 = vadd.f32 %v991, %v1115
    %v1117 = vpop.f32.mrb[0].mxu0
    %v1118 = vpop.f32.mrb[0].mxu0
    %v1119 = vadd.f32 %v991, %v1118
    %v1120 = vpop.f32.mrb[0].mxu0
    %1121 = vmatprep.mubr.bf16.mxu0 0
    %1122 = vmatmul.mubr.bf16.gmra.mrb[0].mxu0 %v464
    %v1123 = vpop.f32.mrb[0].mxu0
    %v1124 = vadd.f32 %v991, %v1123
    %v1125 = vpop.f32.mrb[0].mxu0
    %v1126 = vpop.f32.mrb[0].mxu0
    %v1127 = vadd.f32 %v991, %v1126
    %v1128 = vpop.f32.mrb[0].mxu0
    %1129 = vmatprep.mubr.bf16.mxu0 0
    %1130 = vmatmul.mubr.bf16.gmra.mrb[0].mxu0 %v465
    %v1131 = vpop.f32.mrb[0].mxu0
    %v1132 = vadd.f32 %v991, %v1131
    %v1133 = vpop.f32.mrb[0].mxu0
    %v1134 = vpop.f32.mrb[0].mxu0
    %v1135 = vadd.f32 %v991, %v1134
    %v1136 = vpop.f32.mrb[0].mxu0
    %1137 = vdwg.mxu0
    %v1138 = vld [vmem:[#allocation5] sm:$0xff]
    %v1139 = vld [vmem:[#allocation5 + $0x8] sm:$0xff]
    %v1140 = vld [vmem:[#allocation5 + $0x10] sm:$0xff]
    %v1141 = vld [vmem:[#allocation5 + $0x18] sm:$0xff]
    %v1142 = vld [vmem:[#allocation5 + $0x20] sm:$0xff]
    %v1143 = vld [vmem:[#allocation5 + $0x28] sm:$0xff]
    %v1144 = vld [vmem:[#allocation5 + $0x30] sm:$0xff]
    %v1145 = vld [vmem:[#allocation5 + $0x38] sm:$0xff]
    %v1146 = vld [vmem:[#allocation5 + $0x40] sm:$0xff]
    %v1147 = vld [vmem:[#allocation5 + $0x48] sm:$0xff]
    %v1148 = vld [vmem:[#allocation5 + $0x50] sm:$0xff]
    %v1149 = vld [vmem:[#allocation5 + $0x58] sm:$0xff]
    %v1150 = vld [vmem:[#allocation5 + $0x60] sm:$0xff]
    %v1151 = vld [vmem:[#allocation5 + $0x68] sm:$0xff]
    %v1152 = vld [vmem:[#allocation5 + $0x70] sm:$0xff]
    %v1153 = vld [vmem:[#allocation5 + $0x78] sm:$0xff]
    %v1154 = vld [vmem:[#allocation7] sm:$0xff]
    %v1155 = vld [vmem:[#allocation7 + $0x8] sm:$0xff]
    %v1156 = vld [vmem:[#allocation7 + $0x10] sm:$0xff]
    %v1157 = vld [vmem:[#allocation7 + $0x18] sm:$0xff]
    %v1158 = vld [vmem:[#allocation7 + $0x20] sm:$0xff]
    %v1159 = vld [vmem:[#allocation7 + $0x28] sm:$0xff]
    %v1160 = vld [vmem:[#allocation7 + $0x30] sm:$0xff]
    %v1161 = vld [vmem:[#allocation7 + $0x38] sm:$0xff]
    %v1162 = vld [vmem:[#allocation7 + $0x40] sm:$0xff]
    %v1163 = vld [vmem:[#allocation7 + $0x48] sm:$0xff]
    %v1164 = vld [vmem:[#allocation7 + $0x50] sm:$0xff]
    %v1165 = vld [vmem:[#allocation7 + $0x58] sm:$0xff]
    %v1166 = vld [vmem:[#allocation7 + $0x60] sm:$0xff]
    %v1167 = vld [vmem:[#allocation7 + $0x68] sm:$0xff]
    %v1168 = vld [vmem:[#allocation7 + $0x70] sm:$0xff]
    %v1169 = vld [vmem:[#allocation7 + $0x78] sm:$0xff]
    %v1170 = vlaneseq
    %v1171 = vand.u32 %v1170, 127
    %vm1172 = vcmp.lt.s32.totalorder %v1171, 0
    %v1173 = vsub.s32 0, %v1171
    %v1174 = vsel %vm1172, %v1173, %v1171
    %v1175 = vshrl.u32 %v1174, 1
    %v1176 = vand.u32 %v1174, 1
    %v1177 = vsub.s32 0, %v1176
    %v1178 = vsel %vm1172, %v1177, %v1176
    %vm1179 = vcmp.ne.s32.totalorder %v1178, 0
    %vm1180 = vcmp.lt.s32.totalorder %v1178, 0
    %vm1181 = vmand %vm1180, %vm1179
    %v1182 = vadd.s32 %v1178, 2
    %v1183 = vsel %vm1181, %v1182, %v1178
    %vm1184 = vcmp.eq.s32.totalorder %v1183, 0
    %v1185 = vmul.f32 %v572, %v1138
    %v1186 = vmul.f32 %v575, %v1139
    %v1187 = vmul.f32 %v580, %v1140
    %v1188 = vmul.f32 %v583, %v1141
    %v1189 = vmul.f32 %v588, %v1142
    %v1190 = vmul.f32 %v591, %v1143
    %v1191 = vmul.f32 %v596, %v1144
    %v1192 = vmul.f32 %v599, %v1145
    %v1193 = vmul.f32 %v604, %v1146
    %v1194 = vmul.f32 %v607, %v1147
    %v1195 = vmul.f32 %v612, %v1148
    %v1196 = vmul.f32 %v615, %v1149
    %v1197 = vmul.f32 %v620, %v1150
    %v1198 = vmul.f32 %v623, %v1151
    %v1199 = vmul.f32 %v628, %v1152
    %v1200 = vmul.f32 %v631, %v1153
    %1201 = vrot.lane.b32.xlu0 %v572, 127
    %v1202 = vpop.permute.xlu0 %1201
    %1203 = vrot.lane.b32.xlu0 %v575, 127
    %v1204 = vpop.permute.xlu0 %1203
    %1205 = vrot.lane.b32.xlu0 %v580, 127
    %v1206 = vpop.permute.xlu0 %1205
    %1207 = vrot.lane.b32.xlu0 %v583, 127
    %v1208 = vpop.permute.xlu0 %1207
    %1209 = vrot.lane.b32.xlu0 %v588, 127
    %v1210 = vpop.permute.xlu0 %1209
    %1211 = vrot.lane.b32.xlu0 %v591, 127
    %v1212 = vpop.permute.xlu0 %1211
    %1213 = vrot.lane.b32.xlu0 %v596, 127
    %v1214 = vpop.permute.xlu0 %1213
    %1215 = vrot.lane.b32.xlu0 %v599, 127
    %v1216 = vpop.permute.xlu0 %1215
    %1217 = vrot.lane.b32.xlu0 %v604, 127
    %v1218 = vpop.permute.xlu0 %1217
    %1219 = vrot.lane.b32.xlu0 %v607, 127
    %v1220 = vpop.permute.xlu0 %1219
    %1221 = vrot.lane.b32.xlu0 %v612, 127
    %v1222 = vpop.permute.xlu0 %1221
    %1223 = vrot.lane.b32.xlu0 %v615, 127
    %v1224 = vpop.permute.xlu0 %1223
    %1225 = vrot.lane.b32.xlu0 %v620, 127
    %v1226 = vpop.permute.xlu0 %1225
    %1227 = vrot.lane.b32.xlu0 %v623, 127
    %v1228 = vpop.permute.xlu0 %1227
    %1229 = vrot.lane.b32.xlu0 %v628, 127
    %v1230 = vpop.permute.xlu0 %1229
    %1231 = vrot.lane.b32.xlu0 %v631, 127
    %v1232 = vpop.permute.xlu0 %1231
    %1233 = vrot.lane.b32.xlu0 %v572, 1
    %v1234 = vpop.permute.xlu0 %1233
    %1235 = vrot.lane.b32.xlu0 %v575, 1
    %v1236 = vpop.permute.xlu0 %1235
    %1237 = vrot.lane.b32.xlu0 %v580, 1
    %v1238 = vpop.permute.xlu0 %1237
    %1239 = vrot.lane.b32.xlu0 %v583, 1
    %v1240 = vpop.permute.xlu0 %1239
    %1241 = vrot.lane.b32.xlu0 %v588, 1
    %v1242 = vpop.permute.xlu0 %1241
    %1243 = vrot.lane.b32.xlu0 %v591, 1
    %v1244 = vpop.permute.xlu0 %1243
    %1245 = vrot.lane.b32.xlu0 %v596, 1
    %v1246 = vpop.permute.xlu0 %1245
    %1247 = vrot.lane.b32.xlu0 %v599, 1
    %v1248 = vpop.permute.xlu0 %1247
    %1249 = vrot.lane.b32.xlu0 %v604, 1
    %v1250 = vpop.permute.xlu0 %1249
    %1251 = vrot.lane.b32.xlu0 %v607, 1
    %v1252 = vpop.permute.xlu0 %1251
    %1253 = vrot.lane.b32.xlu0 %v612, 1
    %v1254 = vpop.permute.xlu0 %1253
    %1255 = vrot.lane.b32.xlu0 %v615, 1
    %v1256 = vpop.permute.xlu0 %1255
    %1257 = vrot.lane.b32.xlu0 %v620, 1
    %v1258 = vpop.permute.xlu0 %1257
    %1259 = vrot.lane.b32.xlu0 %v623, 1
    %v1260 = vpop.permute.xlu0 %1259
    %1261 = vrot.lane.b32.xlu0 %v628, 1
    %v1262 = vpop.permute.xlu0 %1261
    %1263 = vrot.lane.b32.xlu0 %v631, 1
    %v1264 = vpop.permute.xlu0 %1263
    %v1265 = vsel %vm1184, %v1202, %v1234
    %v1266 = vsel %vm1184, %v1204, %v1236
    %v1267 = vsel %vm1184, %v1206, %v1238
    %v1268 = vsel %vm1184, %v1208, %v1240
    %v1269 = vsel %vm1184, %v1210, %v1242
    %v1270 = vsel %vm1184, %v1212, %v1244
    %v1271 = vsel %vm1184, %v1214, %v1246
    %v1272 = vsel %vm1184, %v1216, %v1248
    %v1273 = vsel %vm1184, %v1218, %v1250
    %v1274 = vsel %vm1184, %v1220, %v1252
    %v1275 = vsel %vm1184, %v1222, %v1254
    %v1276 = vsel %vm1184, %v1224, %v1256
    %v1277 = vsel %vm1184, %v1226, %v1258
    %v1278 = vsel %vm1184, %v1228, %v1260
    %v1279 = vsel %vm1184, %v1230, %v1262
    %v1280 = vsel %vm1184, %v1232, %v1264
    %v1281 = vmul.f32 %v1265, %v1154
    %v1282 = vmul.f32 %v1266, %v1155
    %v1283 = vmul.f32 %v1267, %v1156
    %v1284 = vmul.f32 %v1268, %v1157
    %v1285 = vmul.f32 %v1269, %v1158
    %v1286 = vmul.f32 %v1270, %v1159
    %v1287 = vmul.f32 %v1271, %v1160
    %v1288 = vmul.f32 %v1272, %v1161
    %v1289 = vmul.f32 %v1273, %v1162
    %v1290 = vmul.f32 %v1274, %v1163
    %v1291 = vmul.f32 %v1275, %v1164
    %v1292 = vmul.f32 %v1276, %v1165
    %v1293 = vmul.f32 %v1277, %v1166
    %v1294 = vmul.f32 %v1278, %v1167
    %v1295 = vmul.f32 %v1279, %v1168
    %v1296 = vmul.f32 %v1280, %v1169
    %v1297 = vadd.f32 %v1185, %v1281
    %v1298 = vadd.f32 %v1186, %v1282
    %v1299 = vadd.f32 %v1187, %v1283
    %v1300 = vadd.f32 %v1188, %v1284
    %v1301 = vadd.f32 %v1189, %v1285
    %v1302 = vadd.f32 %v1190, %v1286
    %v1303 = vadd.f32 %v1191, %v1287
    %v1304 = vadd.f32 %v1192, %v1288
    %v1305 = vadd.f32 %v1193, %v1289
    %v1306 = vadd.f32 %v1194, %v1290
    %v1307 = vadd.f32 %v1195, %v1291
    %v1308 = vadd.f32 %v1196, %v1292
    %v1309 = vadd.f32 %v1197, %v1293
    %v1310 = vadd.f32 %v1198, %v1294
    %v1311 = vadd.f32 %v1199, %v1295
    %v1312 = vadd.f32 %v1200, %v1296
    %v1313 = vmul.f32 %v740, %v1138
    %v1314 = vmul.f32 %v743, %v1139
    %v1315 = vmul.f32 %v748, %v1140
    %v1316 = vmul.f32 %v751, %v1141
    %v1317 = vmul.f32 %v756, %v1142
    %v1318 = vmul.f32 %v759, %v1143
    %v1319 = vmul.f32 %v764, %v1144
    %v1320 = vmul.f32 %v767, %v1145
    %v1321 = vmul.f32 %v772, %v1146
    %v1322 = vmul.f32 %v775, %v1147
    %v1323 = vmul.f32 %v780, %v1148
    %v1324 = vmul.f32 %v783, %v1149
    %v1325 = vmul.f32 %v788, %v1150
    %v1326 = vmul.f32 %v791, %v1151
    %v1327 = vmul.f32 %v796, %v1152
    %v1328 = vmul.f32 %v799, %v1153
    %1329 = vrot.lane.b32.xlu0 %v740, 127
    %v1330 = vpop.permute.xlu0 %1329
    %1331 = vrot.lane.b32.xlu0 %v743, 127
    %v1332 = vpop.permute.xlu0 %1331
    %1333 = vrot.lane.b32.xlu0 %v748, 127
    %v1334 = vpop.permute.xlu0 %1333
    %1335 = vrot.lane.b32.xlu0 %v751, 127
    %v1336 = vpop.permute.xlu0 %1335
    %1337 = vrot.lane.b32.xlu0 %v756, 127
    %v1338 = vpop.permute.xlu0 %1337
    %1339 = vrot.lane.b32.xlu0 %v759, 127
    %v1340 = vpop.permute.xlu0 %1339
    %1341 = vrot.lane.b32.xlu0 %v764, 127
    %v1342 = vpop.permute.xlu0 %1341
    %1343 = vrot.lane.b32.xlu0 %v767, 127
    %v1344 = vpop.permute.xlu0 %1343
    %1345 = vrot.lane.b32.xlu0 %v772, 127
    %v1346 = vpop.permute.xlu0 %1345
    %1347 = vrot.lane.b32.xlu0 %v775, 127
    %v1348 = vpop.permute.xlu0 %1347
    %1349 = vrot.lane.b32.xlu0 %v780, 127
    %v1350 = vpop.permute.xlu0 %1349
    %1351 = vrot.lane.b32.xlu0 %v783, 127
    %v1352 = vpop.permute.xlu0 %1351
    %1353 = vrot.lane.b32.xlu0 %v788, 127
    %v1354 = vpop.permute.xlu0 %1353
    %1355 = vrot.lane.b32.xlu0 %v791, 127
    %v1356 = vpop.permute.xlu0 %1355
    %1357 = vrot.lane.b32.xlu0 %v796, 127
    %v1358 = vpop.permute.xlu0 %1357
    %1359 = vrot.lane.b32.xlu0 %v799, 127
    %v1360 = vpop.permute.xlu0 %1359
    %1361 = vrot.lane.b32.xlu0 %v740, 1
    %v1362 = vpop.permute.xlu0 %1361
    %1363 = vrot.lane.b32.xlu0 %v743, 1
    %v1364 = vpop.permute.xlu0 %1363
    %1365 = vrot.lane.b32.xlu0 %v748, 1
    %v1366 = vpop.permute.xlu0 %1365
    %1367 = vrot.lane.b32.xlu0 %v751, 1
    %v1368 = vpop.permute.xlu0 %1367
    %1369 = vrot.lane.b32.xlu0 %v756, 1
    %v1370 = vpop.permute.xlu0 %1369
    %1371 = vrot.lane.b32.xlu0 %v759, 1
    %v1372 = vpop.permute.xlu0 %1371
    %1373 = vrot.lane.b32.xlu0 %v764, 1
    %v1374 = vpop.permute.xlu0 %1373
    %1375 = vrot.lane.b32.xlu0 %v767, 1
    %v1376 = vpop.permute.xlu0 %1375
    %1377 = vrot.lane.b32.xlu0 %v772, 1
    %v1378 = vpop.permute.xlu0 %1377
    %1379 = vrot.lane.b32.xlu0 %v775, 1
    %v1380 = vpop.permute.xlu0 %1379
    %1381 = vrot.lane.b32.xlu0 %v780, 1
    %v1382 = vpop.permute.xlu0 %1381
    %1383 = vrot.lane.b32.xlu0 %v783, 1
    %v1384 = vpop.permute.xlu0 %1383
    %1385 = vrot.lane.b32.xlu0 %v788, 1
    %v1386 = vpop.permute.xlu0 %1385
    %1387 = vrot.lane.b32.xlu0 %v791, 1
    %v1388 = vpop.permute.xlu0 %1387
    %1389 = vrot.lane.b32.xlu0 %v796, 1
    %v1390 = vpop.permute.xlu0 %1389
    %1391 = vrot.lane.b32.xlu0 %v799, 1
    %v1392 = vpop.permute.xlu0 %1391
    %v1393 = vsel %vm1184, %v1330, %v1362
    %v1394 = vsel %vm1184, %v1332, %v1364
    %v1395 = vsel %vm1184, %v1334, %v1366
    %v1396 = vsel %vm1184, %v1336, %v1368
    %v1397 = vsel %vm1184, %v1338, %v1370
    %v1398 = vsel %vm1184, %v1340, %v1372
    %v1399 = vsel %vm1184, %v1342, %v1374
    %v1400 = vsel %vm1184, %v1344, %v1376
    %v1401 = vsel %vm1184, %v1346, %v1378
    %v1402 = vsel %vm1184, %v1348, %v1380
    %v1403 = vsel %vm1184, %v1350, %v1382
    %v1404 = vsel %vm1184, %v1352, %v1384
    %v1405 = vsel %vm1184, %v1354, %v1386
    %v1406 = vsel %vm1184, %v1356, %v1388
    %v1407 = vsel %vm1184, %v1358, %v1390
    %v1408 = vsel %vm1184, %v1360, %v1392
    %v1409 = vmul.f32 %v1393, %v1154
    %v1410 = vmul.f32 %v1394, %v1155
    %v1411 = vmul.f32 %v1395, %v1156
    %v1412 = vmul.f32 %v1396, %v1157
    %v1413 = vmul.f32 %v1397, %v1158
    %v1414 = vmul.f32 %v1398, %v1159
    %v1415 = vmul.f32 %v1399, %v1160
    %v1416 = vmul.f32 %v1400, %v1161
    %v1417 = vmul.f32 %v1401, %v1162
    %v1418 = vmul.f32 %v1402, %v1163
    %v1419 = vmul.f32 %v1403, %v1164
    %v1420 = vmul.f32 %v1404, %v1165
    %v1421 = vmul.f32 %v1405, %v1166
    %v1422 = vmul.f32 %v1406, %v1167
    %v1423 = vmul.f32 %v1407, %v1168
    %v1424 = vmul.f32 %v1408, %v1169
    %v1425 = vadd.f32 %v1313, %v1409
    %v1426 = vadd.f32 %v1314, %v1410
    %v1427 = vadd.f32 %v1315, %v1411
    %v1428 = vadd.f32 %v1316, %v1412
    %v1429 = vadd.f32 %v1317, %v1413
    %v1430 = vadd.f32 %v1318, %v1414
    %v1431 = vadd.f32 %v1319, %v1415
    %v1432 = vadd.f32 %v1320, %v1416
    %v1433 = vadd.f32 %v1321, %v1417
    %v1434 = vadd.f32 %v1322, %v1418
    %v1435 = vadd.f32 %v1323, %v1419
    %v1436 = vadd.f32 %v1324, %v1420
    %v1437 = vadd.f32 %v1325, %v1421
    %v1438 = vadd.f32 %v1326, %v1422
    %v1439 = vadd.f32 %v1327, %v1423
    %v1440 = vadd.f32 %v1328, %v1424
    %v1441 = vpack.c.bf16 %v1298, %v1297
    %v1442 = vpack.c.bf16 %v1300, %v1299
    %v1443 = vpack.c.bf16 %v1302, %v1301
    %v1444 = vpack.c.bf16 %v1304, %v1303
    %v1445 = vpack.c.bf16 %v1306, %v1305
    %v1446 = vpack.c.bf16 %v1308, %v1307
    %v1447 = vpack.c.bf16 %v1310, %v1309
    %v1448 = vpack.c.bf16 %v1312, %v1311
    %v1449 = vpack.c.bf16 %v1426, %v1425
    %v1450 = vpack.c.bf16 %v1428, %v1427
    %v1451 = vpack.c.bf16 %v1430, %v1429
    %v1452 = vpack.c.bf16 %v1432, %v1431
    %v1453 = vpack.c.bf16 %v1434, %v1433
    %v1454 = vpack.c.bf16 %v1436, %v1435
    %v1455 = vpack.c.bf16 %v1438, %v1437
    %v1456 = vpack.c.bf16 %v1440, %v1439
    %v1457 = vpack.c.bf16 %v911, %v908
    %v1458 = vpack.c.bf16 %v919, %v916
    %v1459 = vpack.c.bf16 %v927, %v924
    %v1460 = vpack.c.bf16 %v935, %v932
    %v1461 = vpack.c.bf16 %v943, %v940
    %v1462 = vpack.c.bf16 %v951, %v948
    %v1463 = vpack.c.bf16 %v959, %v956
    %v1464 = vpack.c.bf16 %v967, %v964
    %v1465 = vlaneseq
    %v1466 = vshrl.u32 %v1465, 7
    %v1467 = vadd.s32 %v1466, 8
    %v1468 = vadd.s32 %v1466, 16
    %v1469 = vadd.s32 %v1466, 24
    %v1470 = vadd.s32 %v1466, 32
    %v1471 = vadd.s32 %v1466, 40
    %v1472 = vadd.s32 %v1466, 48
    %v1473 = vadd.s32 %v1466, 56
    %v1474 = vsub.s32 %v1466, %v1171
    %v1475 = vsub.s32 %v1467, %v1171
    %v1476 = vsub.s32 %v1468, %v1171
    %v1477 = vsub.s32 %v1469, %v1171
    %v1478 = vsub.s32 %v1470, %v1171
    %v1479 = vsub.s32 %v1471, %v1171
    %v1480 = vsub.s32 %v1472, %v1171
    %v1481 = vsub.s32 %v1473, %v1171
    %v1482 = vcvt.s32.f32 %v1474
    %v1483 = vcvt.s32.f32 %v1475
    %v1484 = vcvt.s32.f32 %v1476
    %v1485 = vcvt.s32.f32 %v1477
    %v1486 = vcvt.s32.f32 %v1478
    %v1487 = vcvt.s32.f32 %v1479
    %v1488 = vcvt.s32.f32 %v1480
    %v1489 = vcvt.s32.f32 %v1481
    %vm1490 = vcmp.ge.s32.totalorder %v1466, %v1171
    %vm1491 = vcmp.ge.s32.totalorder %v1467, %v1171
    %vm1492 = vcmp.ge.s32.totalorder %v1468, %v1171
    %vm1493 = vcmp.ge.s32.totalorder %v1469, %v1171
    %vm1494 = vcmp.ge.s32.totalorder %v1470, %v1171
    %vm1495 = vcmp.ge.s32.totalorder %v1471, %v1171
    %vm1496 = vcmp.ge.s32.totalorder %v1472, %v1171
    %vm1497 = vcmp.ge.s32.totalorder %v1473, %v1171
    %v1498 = vld [vmem:[%s15] sm:$0x1]
    %vm1499 = vcmask 261120
    %v1501 = vsel %vm1499, %v1441, 0
    %v1504 = vsel %vm1499, %v1442, 0
    %v1507 = vsel %vm1499, %v1443, 0
    %v1510 = vsel %vm1499, %v1444, 0
    %v1513 = vsel %vm1499, %v1449, 0
    %v1516 = vsel %vm1499, %v1450, 0
    %v1519 = vsel %vm1499, %v1451, 0
    %v1522 = vsel %vm1499, %v1452, 0
    %1524 = vmatprep.subr.bf16.mxu0 0
    %1525 = vmatpush1.bf16.xpose.msra.mxu0 %v1513
    %1526 = vmatprep.subr.bf16.mxu0 0
    %1527 = vmatpush1.bf16.xpose.msra.mxu0 %v1516
    %1528 = vmatprep.subr.bf16.mxu0 0
    %1529 = vmatpush1.bf16.xpose.msra.mxu0 %v1519
    %1530 = vmatprep.subr.bf16.mxu0 0
    %1531 = vmatpush1.bf16.xpose.msra.mxu0 %v1522
    %1532 = vmatprep.subr.bf16.mxu0 0
    %1533 = vmatpush1.bf16.xpose.msra.mxu0 0
    %1534 = vmatprep.subr.bf16.mxu0 0
    %1535 = vmatpush1.bf16.xpose.msra.mxu0 0
    %1536 = vmatprep.subr.bf16.mxu0 0
    %1537 = vmatpush1.bf16.xpose.msra.mxu0 0
    %1538 = vmatprep.subr.bf16.mxu0 0
    %1539 = vmatpush1.bf16.xpose.msra.mxu0 0
    %1540 = vmatprep.subr.bf16.mxu0 0
    %1541 = vmatpush1.bf16.xpose.msra.mxu0 0
    %1542 = vmatprep.subr.bf16.mxu0 0
    %1543 = vmatpush1.bf16.xpose.msra.mxu0 0
    %1544 = vmatprep.subr.bf16.mxu0 0
    %1545 = vmatpush1.bf16.xpose.msra.mxu0 0
    %1546 = vmatprep.subr.bf16.mxu0 0
    %1547 = vmatpush1.bf16.xpose.msra.mxu0 0
    %1548 = vmatprep.subr.bf16.mxu0 0
    %1549 = vmatpush1.bf16.xpose.msra.mxu0 0
    %1550 = vmatprep.subr.bf16.mxu0 0
    %1551 = vmatpush1.bf16.xpose.msra.mxu0 0
    %1552 = vmatprep.subr.bf16.mxu0 0
    %1553 = vmatpush1.bf16.xpose.msra.mxu0 0
    %1554 = vmatprep.subr.bf16.mxu0 0
    %1555 = vmatpush1.bf16.xpose.msra.mxu0 0
    %1556 = vmatprep.mubr.bf16.mxu0 0
    %1557 = vmatmul.mubr.bf16.gmra.mrb[0].mxu0 %v1501
    %v1558 = vpop.f32.mrb[0].mxu0
    %v1559 = vadd.f32 0.0, %v1558
    %v1560 = vpop.f32.mrb[0].mxu0
    %v1561 = vpop.f32.mrb[0].mxu0
    %v1562 = vadd.f32 0.0, %v1561
    %v1563 = vpop.f32.mrb[0].mxu0
    %1564 = vmatprep.mubr.bf16.mxu0 0
    %1565 = vmatmul.mubr.bf16.gmra.mrb[0].mxu0 %v1504
    %v1566 = vpop.f32.mrb[0].mxu0
    %v1567 = vadd.f32 0.0, %v1566
    %v1568 = vpop.f32.mrb[0].mxu0
    %v1569 = vpop.f32.mrb[0].mxu0
    %v1570 = vadd.f32 0.0, %v1569
    %v1571 = vpop.f32.mrb[0].mxu0
    %1572 = vmatprep.mubr.bf16.mxu0 0
    %1573 = vmatmul.mubr.bf16.gmra.mrb[0].mxu0 %v1507
    %v1574 = vpop.f32.mrb[0].mxu0
    %v1575 = vadd.f32 0.0, %v1574
    %v1576 = vpop.f32.mrb[0].mxu0
    %v1577 = vpop.f32.mrb[0].mxu0
    %v1578 = vadd.f32 0.0, %v1577
    %v1579 = vpop.f32.mrb[0].mxu0
    %1580 = vmatprep.mubr.bf16.mxu0 0
    %1581 = vmatmul.mubr.bf16.gmra.mrb[0].mxu0 %v1510
    %v1582 = vpop.f32.mrb[0].mxu0
    %v1583 = vadd.f32 0.0, %v1582
    %v1584 = vpop.f32.mrb[0].mxu0
    %v1585 = vpop.f32.mrb[0].mxu0
    %v1586 = vadd.f32 0.0, %v1585
    %v1587 = vpop.f32.mrb[0].mxu0
    %1588 = vdwg.mxu0
    %v1590 = vsel %vm1499, %v1445, 0
    %v1593 = vsel %vm1499, %v1446, 0
    %v1596 = vsel %vm1499, %v1447, 0
    %v1599 = vsel %vm1499, %v1448, 0
    %v1602 = vsel %vm1499, %v1453, 0
    %v1605 = vsel %vm1499, %v1454, 0
    %v1608 = vsel %vm1499, %v1455, 0
    %v1611 = vsel %vm1499, %v1456, 0
    %1613 = vmatprep.subr.bf16.mxu0 0
    %1614 = vmatpush1.bf16.xpose.msra.mxu0 %v1602
    %1615 = vmatprep.subr.bf16.mxu0 0
    %1616 = vmatpush1.bf16.xpose.msra.mxu0 %v1605
    %1617 = vmatprep.subr.bf16.mxu0 0
    %1618 = vmatpush1.bf16.xpose.msra.mxu0 %v1608
    %1619 = vmatprep.subr.bf16.mxu0 0
    %1620 = vmatpush1.bf16.xpose.msra.mxu0 %v1611
    %1621 = vmatprep.subr.bf16.mxu0 0
    %1622 = vmatpush1.bf16.xpose.msra.mxu0 0
    %1623 = vmatprep.subr.bf16.mxu0 0
    %1624 = vmatpush1.bf16.xpose.msra.mxu0 0
    %1625 = vmatprep.subr.bf16.mxu0 0
    %1626 = vmatpush1.bf16.xpose.msra.mxu0 0
    %1627 = vmatprep.subr.bf16.mxu0 0
    %1628 = vmatpush1.bf16.xpose.msra.mxu0 0
    %1629 = vmatprep.subr.bf16.mxu0 0
    %1630 = vmatpush1.bf16.xpose.msra.mxu0 0
    %1631 = vmatprep.subr.bf16.mxu0 0
    %1632 = vmatpush1.bf16.xpose.msra.mxu0 0
    %1633 = vmatprep.subr.bf16.mxu0 0
    %1634 = vmatpush1.bf16.xpose.msra.mxu0 0
    %1635 = vmatprep.subr.bf16.mxu0 0
    %1636 = vmatpush1.bf16.xpose.msra.mxu0 0
    %1637 = vmatprep.subr.bf16.mxu0 0
    %1638 = vmatpush1.bf16.xpose.msra.mxu0 0
    %1639 = vmatprep.subr.bf16.mxu0 0
    %1640 = vmatpush1.bf16.xpose.msra.mxu0 0
    %1641 = vmatprep.subr.bf16.mxu0 0
    %1642 = vmatpush1.bf16.xpose.msra.mxu0 0
    %1643 = vmatprep.subr.bf16.mxu0 0
    %1644 = vmatpush1.bf16.xpose.msra.mxu0 0
    %1645 = vmatprep.mubr.bf16.mxu0 0
    %1646 = vmatmul.mubr.bf16.gmra.mrb[0].mxu0 %v1590
    %v1647 = vpop.f32.mrb[0].mxu0
    %v1648 = vadd.f32 0.0, %v1647
    %v1649 = vpop.f32.mrb[0].mxu0
    %v1650 = vpop.f32.mrb[0].mxu0
    %v1651 = vadd.f32 0.0, %v1650
    %v1652 = vpop.f32.mrb[0].mxu0
    %1653 = vmatprep.mubr.bf16.mxu0 0
    %1654 = vmatmul.mubr.bf16.gmra.mrb[0].mxu0 %v1593
    %v1655 = vpop.f32.mrb[0].mxu0
    %v1656 = vadd.f32 0.0, %v1655
    %v1657 = vpop.f32.mrb[0].mxu0
    %v1658 = vpop.f32.mrb[0].mxu0
    %v1659 = vadd.f32 0.0, %v1658
    %v1660 = vpop.f32.mrb[0].mxu0
    %1661 = vmatprep.mubr.bf16.mxu0 0
    %1662 = vmatmul.mubr.bf16.gmra.mrb[0].mxu0 %v1596
    %v1663 = vpop.f32.mrb[0].mxu0
    %v1664 = vadd.f32 0.0, %v1663
    %v1665 = vpop.f32.mrb[0].mxu0
    %v1666 = vpop.f32.mrb[0].mxu0
    %v1667 = vadd.f32 0.0, %v1666
    %v1668 = vpop.f32.mrb[0].mxu0
    %1669 = vmatprep.mubr.bf16.mxu0 0
    %1670 = vmatmul.mubr.bf16.gmra.mrb[0].mxu0 %v1599
    %v1671 = vpop.f32.mrb[0].mxu0
    %v1672 = vadd.f32 0.0, %v1671
    %v1673 = vpop.f32.mrb[0].mxu0
    %v1674 = vpop.f32.mrb[0].mxu0
    %v1675 = vadd.f32 0.0, %v1674
    %v1676 = vpop.f32.mrb[0].mxu0
    %1677 = vdwg.mxu0
    %v1678 = vand.u32 2147483647, %v1559
    %v1679 = vand.u32 2147483647, %v1562
    %v1680 = vand.u32 2147483647, %v1567
    %v1681 = vand.u32 2147483647, %v1570
    %v1682 = vand.u32 2147483647, %v1575
    %v1683 = vand.u32 2147483647, %v1578
    %v1684 = vand.u32 2147483647, %v1583
    %v1685 = vand.u32 2147483647, %v1586
    %v1686 = vand.u32 2147483647, %v1648
    %v1687 = vand.u32 2147483647, %v1651
    %v1688 = vand.u32 2147483647, %v1656
    %v1689 = vand.u32 2147483647, %v1659
    %v1690 = vand.u32 2147483647, %v1664
    %v1691 = vand.u32 2147483647, %v1667
    %v1692 = vand.u32 2147483647, %v1672
    %v1693 = vand.u32 2147483647, %v1675
    %vm1694 = vcmask 523264
    %v1695 = vsel %vm1694, %v1678, 0.0
    %1696 = vadd.xlane.f32.xlu0 %v1695
    %v1697 = vpop.xlane.xlu0 %1696
    %v1698 = vsel %vm1694, %v1679, 0.0
    %1699 = vadd.xlane.f32.xlu0 %v1698
    %v1700 = vpop.xlane.xlu0 %1699
    %v1701 = vsel %vm1694, %v1680, 0.0
    %1702 = vadd.xlane.f32.xlu0 %v1701
    %v1703 = vpop.xlane.xlu0 %1702
    %v1704 = vsel %vm1694, %v1681, 0.0
    %1705 = vadd.xlane.f32.xlu0 %v1704
    %v1706 = vpop.xlane.xlu0 %1705
    %v1707 = vsel %vm1694, %v1682, 0.0
    %1708 = vadd.xlane.f32.xlu0 %v1707
    %v1709 = vpop.xlane.xlu0 %1708
    %v1710 = vsel %vm1694, %v1683, 0.0
    %1711 = vadd.xlane.f32.xlu0 %v1710
    %v1712 = vpop.xlane.xlu0 %1711
    %v1713 = vsel %vm1694, %v1684, 0.0
    %1714 = vadd.xlane.f32.xlu0 %v1713
    %v1715 = vpop.xlane.xlu0 %1714
    %v1716 = vsel %vm1694, %v1685, 0.0
    %1717 = vadd.xlane.f32.xlu0 %v1716
    %v1718 = vpop.xlane.xlu0 %1717
    %v1719 = vsel %vm1694, %v1686, 0.0
    %1720 = vadd.xlane.f32.xlu0 %v1719
    %v1721 = vpop.xlane.xlu0 %1720
    %v1722 = vsel %vm1694, %v1687, 0.0
    %1723 = vadd.xlane.f32.xlu0 %v1722
    %v1724 = vpop.xlane.xlu0 %1723
    %v1725 = vsel %vm1694, %v1688, 0.0
    %1726 = vadd.xlane.f32.xlu0 %v1725
    %v1727 = vpop.xlane.xlu0 %1726
    %v1728 = vsel %vm1694, %v1689, 0.0
    %1729 = vadd.xlane.f32.xlu0 %v1728
    %v1730 = vpop.xlane.xlu0 %1729
    %v1731 = vsel %vm1694, %v1690, 0.0
    %1732 = vadd.xlane.f32.xlu0 %v1731
    %v1733 = vpop.xlane.xlu0 %1732
    %v1734 = vsel %vm1694, %v1691, 0.0
    %1735 = vadd.xlane.f32.xlu0 %v1734
    %v1736 = vpop.xlane.xlu0 %1735
    %v1737 = vsel %vm1694, %v1692, 0.0
    %1738 = vadd.xlane.f32.xlu0 %v1737
    %v1739 = vpop.xlane.xlu0 %1738
    %v1740 = vsel %vm1694, %v1693, 0.0
    %1741 = vadd.xlane.f32.xlu0 %v1740
    %v1742 = vpop.xlane.xlu0 %1741
    %v1743 = vmax.f32 %v1697, 1.0
    %v1744 = vmax.f32 %v1700, 1.0
    %v1745 = vmax.f32 %v1703, 1.0
    %v1746 = vmax.f32 %v1706, 1.0
    %v1747 = vmax.f32 %v1709, 1.0
    %v1748 = vmax.f32 %v1712, 1.0
    %v1749 = vmax.f32 %v1715, 1.0
    %v1750 = vmax.f32 %v1718, 1.0
    %v1751 = vmax.f32 %v1721, 1.0
    %v1752 = vmax.f32 %v1724, 1.0
    %v1753 = vmax.f32 %v1727, 1.0
    %v1754 = vmax.f32 %v1730, 1.0
    %v1755 = vmax.f32 %v1733, 1.0
    %v1756 = vmax.f32 %v1736, 1.0
    %v1757 = vmax.f32 %v1739, 1.0
    %v1758 = vmax.f32 %v1742, 1.0
    %v1759 = vmin.f32 %v1743, 50000.0
    %v1760 = vmin.f32 %v1744, 50000.0
    %v1761 = vmin.f32 %v1745, 50000.0
    %v1762 = vmin.f32 %v1746, 50000.0
    %v1763 = vmin.f32 %v1747, 50000.0
    %v1764 = vmin.f32 %v1748, 50000.0
    %v1765 = vmin.f32 %v1749, 50000.0
    %v1766 = vmin.f32 %v1750, 50000.0
    %v1767 = vmin.f32 %v1751, 50000.0
    %v1768 = vmin.f32 %v1752, 50000.0
    %v1769 = vmin.f32 %v1753, 50000.0
    %v1770 = vmin.f32 %v1754, 50000.0
    %v1771 = vmin.f32 %v1755, 50000.0
    %v1772 = vmin.f32 %v1756, 50000.0
    %v1773 = vmin.f32 %v1757, 50000.0
    %v1774 = vmin.f32 %v1758, 50000.0
    %v1775 = vmul.f32 %v1482, -0.031748697
    %v1776 = vmul.f32 %v1483, -0.031748697
    %v1777 = vmul.f32 %v1484, -0.031748697
    %v1778 = vmul.f32 %v1485, -0.031748697
    %v1779 = vmul.f32 %v1486, -0.031748697
    %v1780 = vmul.f32 %v1487, -0.031748697
    %v1781 = vmul.f32 %v1488, -0.031748697
    %v1782 = vmul.f32 %v1489, -0.031748697
    %v1783 = vmul.f32 %v1775, 1.442695
    %v1784 = vpow.pop %v1783
    %v1785 = vmul.f32 %v1776, 1.442695
    %v1786 = vpow.pop %v1785
    %v1787 = vmul.f32 %v1777, 1.442695
    %v1788 = vpow.pop %v1787
    %v1789 = vmul.f32 %v1778, 1.442695
    %v1790 = vpow.pop %v1789
    %v1791 = vmul.f32 %v1779, 1.442695
    %v1792 = vpow.pop %v1791
    %v1793 = vmul.f32 %v1780, 1.442695
    %v1794 = vpow.pop %v1793
    %v1795 = vmul.f32 %v1781, 1.442695
    %v1796 = vpow.pop %v1795
    %v1797 = vmul.f32 %v1782, 1.442695
    %v1798 = vpow.pop %v1797
    %v1799 = vsel %vm1490, %v1784, 0.0
    %v1800 = vsel %vm1491, %v1786, 0.0
    %v1801 = vsel %vm1492, %v1788, 0.0
    %v1802 = vsel %vm1493, %v1790, 0.0
    %v1803 = vsel %vm1494, %v1792, 0.0
    %v1804 = vsel %vm1495, %v1794, 0.0
    %v1805 = vsel %vm1496, %v1796, 0.0
    %v1806 = vsel %vm1497, %v1798, 0.0
    %v1807 = vrcp.pop %v1759
    %v1808 = vmul.f32 %v1559, %v1807
    %v1809 = vrcp.pop %v1760
    %v1810 = vmul.f32 %v1562, %v1809
    %v1811 = vrcp.pop %v1761
    %v1812 = vmul.f32 %v1567, %v1811
    %v1813 = vrcp.pop %v1762
    %v1814 = vmul.f32 %v1570, %v1813
    %v1815 = vrcp.pop %v1763
    %v1816 = vmul.f32 %v1575, %v1815
    %v1817 = vrcp.pop %v1764
    %v1818 = vmul.f32 %v1578, %v1817
    %v1819 = vrcp.pop %v1765
    %v1820 = vmul.f32 %v1583, %v1819
    %v1821 = vrcp.pop %v1766
    %v1822 = vmul.f32 %v1586, %v1821
    %v1823 = vrcp.pop %v1767
    %v1824 = vmul.f32 %v1648, %v1823
    %v1825 = vrcp.pop %v1768
    %v1826 = vmul.f32 %v1651, %v1825
    %v1827 = vrcp.pop %v1769
    %v1828 = vmul.f32 %v1656, %v1827
    %v1829 = vrcp.pop %v1770
    %v1830 = vmul.f32 %v1659, %v1829
    %v1831 = vrcp.pop %v1771
    %v1832 = vmul.f32 %v1664, %v1831
    %v1833 = vrcp.pop %v1772
    %v1834 = vmul.f32 %v1667, %v1833
    %v1835 = vrcp.pop %v1773
    %v1836 = vmul.f32 %v1672, %v1835
    %v1837 = vrcp.pop %v1774
    %v1838 = vmul.f32 %v1675, %v1837
    %v1839 = vadd.f32 %v1808, %v1799
    %v1840 = vadd.f32 %v1810, %v1800
    %v1841 = vadd.f32 %v1812, %v1801
    %v1842 = vadd.f32 %v1814, %v1802
    %v1843 = vadd.f32 %v1816, %v1803
    %v1844 = vadd.f32 %v1818, %v1804
    %v1845 = vadd.f32 %v1820, %v1805
    %v1846 = vadd.f32 %v1822, %v1806
    %v1847 = vadd.f32 %v1824, %v1799
    %v1848 = vadd.f32 %v1826, %v1800
    %v1849 = vadd.f32 %v1828, %v1801
    %v1850 = vadd.f32 %v1830, %v1802
    %v1851 = vadd.f32 %v1832, %v1803
    %v1852 = vadd.f32 %v1834, %v1804
    %v1853 = vadd.f32 %v1836, %v1805
    %v1854 = vadd.f32 %v1838, %v1806
    %v1855 = vpack.c.bf16 %v1840, %v1839
    %v1856 = vpack.c.bf16 %v1842, %v1841
    %v1857 = vpack.c.bf16 %v1844, %v1843
    %v1858 = vpack.c.bf16 %v1846, %v1845
    %v1859 = vpack.c.bf16 %v1848, %v1847
    %v1860 = vpack.c.bf16 %v1850, %v1849
    %v1861 = vpack.c.bf16 %v1852, %v1851
    %v1862 = vpack.c.bf16 %v1854, %v1853
    %v1864 = vsel %vm1694, %v1855, 0
    %v1867 = vsel %vm1694, %v1856, 0
    %v1870 = vsel %vm1694, %v1857, 0
    %v1873 = vsel %vm1694, %v1858, 0
    %1875 = vmatprep.subr.bf16.mxu0 0
    %1876 = vmatpush1.bf16.msra.mxu0 %v1457
    %1877 = vmatprep.subr.bf16.mxu0 0
    %1878 = vmatpush1.bf16.msra.mxu0 %v1458
    %1879 = vmatprep.subr.bf16.mxu0 0
    %1880 = vmatpush1.bf16.msra.mxu0 %v1459
    %1881 = vmatprep.subr.bf16.mxu0 0
    %1882 = vmatpush1.bf16.msra.mxu0 %v1460
    %1883 = vmatprep.subr.bf16.mxu0 0
    %1884 = vmatpush1.bf16.msra.mxu0 0
    %1885 = vmatprep.subr.bf16.mxu0 0
    %1886 = vmatpush1.bf16.msra.mxu0 0
    %1887 = vmatprep.subr.bf16.mxu0 0
    %1888 = vmatpush1.bf16.msra.mxu0 0
    %1889 = vmatprep.subr.bf16.mxu0 0
    %1890 = vmatpush1.bf16.msra.mxu0 0
    %1891 = vmatprep.subr.bf16.mxu0 0
    %1892 = vmatpush1.bf16.msra.mxu0 0
    %1893 = vmatprep.subr.bf16.mxu0 0
    %1894 = vmatpush1.bf16.msra.mxu0 0
    %1895 = vmatprep.subr.bf16.mxu0 0
    %1896 = vmatpush1.bf16.msra.mxu0 0
    %1897 = vmatprep.subr.bf16.mxu0 0
    %1898 = vmatpush1.bf16.msra.mxu0 0
    %1899 = vmatprep.subr.bf16.mxu0 0
    %1900 = vmatpush1.bf16.msra.mxu0 0
    %1901 = vmatprep.subr.bf16.mxu0 0
    %1902 = vmatpush1.bf16.msra.mxu0 0
    %1903 = vmatprep.subr.bf16.mxu0 0
    %1904 = vmatpush1.bf16.msra.mxu0 0
    %1905 = vmatprep.subr.bf16.mxu0 0
    %1906 = vmatpush1.bf16.msra.mxu0 0
    %1907 = vmatprep.mubr.bf16.mxu0 0
    %1908 = vmatmul.mubr.bf16.gmra.mrb[0].mxu0 %v1864
    %v1909 = vpop.f32.mrb[0].mxu0
    %v1910 = vadd.f32 0.0, %v1909
    %v1911 = vpop.f32.mrb[0].mxu0
    %v1912 = vpop.f32.mrb[0].mxu0
    %v1913 = vadd.f32 0.0, %v1912
    %v1914 = vpop.f32.mrb[0].mxu0
    %1915 = vmatprep.mubr.bf16.mxu0 0
    %1916 = vmatmul.mubr.bf16.gmra.mrb[0].mxu0 %v1867
    %v1917 = vpop.f32.mrb[0].mxu0
    %v1918 = vadd.f32 0.0, %v1917
    %v1919 = vpop.f32.mrb[0].mxu0
    %v1920 = vpop.f32.mrb[0].mxu0
    %v1921 = vadd.f32 0.0, %v1920
    %v1922 = vpop.f32.mrb[0].mxu0
    %1923 = vmatprep.mubr.bf16.mxu0 0
    %1924 = vmatmul.mubr.bf16.gmra.mrb[0].mxu0 %v1870
    %v1925 = vpop.f32.mrb[0].mxu0
    %v1926 = vadd.f32 0.0, %v1925
    %v1927 = vpop.f32.mrb[0].mxu0
    %v1928 = vpop.f32.mrb[0].mxu0
    %v1929 = vadd.f32 0.0, %v1928
    %v1930 = vpop.f32.mrb[0].mxu0
    %1931 = vmatprep.mubr.bf16.mxu0 0
    %1932 = vmatmul.mubr.bf16.gmra.mrb[0].mxu0 %v1873
    %v1933 = vpop.f32.mrb[0].mxu0
    %v1934 = vadd.f32 0.0, %v1933
    %v1935 = vpop.f32.mrb[0].mxu0
    %v1936 = vpop.f32.mrb[0].mxu0
    %v1937 = vadd.f32 0.0, %v1936
    %v1938 = vpop.f32.mrb[0].mxu0
    %1939 = vdwg.mxu0
    %v1941 = vsel %vm1694, %v1859, 0
    %v1944 = vsel %vm1694, %v1860, 0
    %v1947 = vsel %vm1694, %v1861, 0
    %v1950 = vsel %vm1694, %v1862, 0
    %1952 = vmatprep.subr.bf16.mxu0 0
    %1953 = vmatpush1.bf16.msra.mxu0 %v1461
    %1954 = vmatprep.subr.bf16.mxu0 0
    %1955 = vmatpush1.bf16.msra.mxu0 %v1462
    %1956 = vmatprep.subr.bf16.mxu0 0
    %1957 = vmatpush1.bf16.msra.mxu0 %v1463
    %1958 = vmatprep.subr.bf16.mxu0 0
    %1959 = vmatpush1.bf16.msra.mxu0 %v1464
    %1960 = vmatprep.subr.bf16.mxu0 0
    %1961 = vmatpush1.bf16.msra.mxu0 0
    %1962 = vmatprep.subr.bf16.mxu0 0
    %1963 = vmatpush1.bf16.msra.mxu0 0
    %1964 = vmatprep.subr.bf16.mxu0 0
    %1965 = vmatpush1.bf16.msra.mxu0 0
    %1966 = vmatprep.subr.bf16.mxu0 0
    %1967 = vmatpush1.bf16.msra.mxu0 0
    %1968 = vmatprep.subr.bf16.mxu0 0
    %1969 = vmatpush1.bf16.msra.mxu0 0
    %1970 = vmatprep.subr.bf16.mxu0 0
    %1971 = vmatpush1.bf16.msra.mxu0 0
    %1972 = vmatprep.subr.bf16.mxu0 0
    %1973 = vmatpush1.bf16.msra.mxu0 0
    %1974 = vmatprep.subr.bf16.mxu0 0
    %1975 = vmatpush1.bf16.msra.mxu0 0
    %1976 = vmatprep.subr.bf16.mxu0 0
    %1977 = vmatpush1.bf16.msra.mxu0 0
    %1978 = vmatprep.subr.bf16.mxu0 0
    %1979 = vmatpush1.bf16.msra.mxu0 0
    %1980 = vmatprep.subr.bf16.mxu0 0
    %1981 = vmatpush1.bf16.msra.mxu0 0
    %1982 = vmatprep.subr.bf16.mxu0 0
    %1983 = vmatpush1.bf16.msra.mxu0 0
    %1984 = vmatprep.mubr.bf16.mxu0 0
    %1985 = vmatmul.mubr.bf16.gmra.mrb[0].mxu0 %v1941
    %v1986 = vpop.f32.mrb[0].mxu0
    %v1987 = vadd.f32 0.0, %v1986
    %v1988 = vpop.f32.mrb[0].mxu0
    %v1989 = vpop.f32.mrb[0].mxu0
    %v1990 = vadd.f32 0.0, %v1989
    %v1991 = vpop.f32.mrb[0].mxu0
    %1992 = vmatprep.mubr.bf16.mxu0 0
    %1993 = vmatmul.mubr.bf16.gmra.mrb[0].mxu0 %v1944
    %v1994 = vpop.f32.mrb[0].mxu0
    %v1995 = vadd.f32 0.0, %v1994
    %v1996 = vpop.f32.mrb[0].mxu0
    %v1997 = vpop.f32.mrb[0].mxu0
    %v1998 = vadd.f32 0.0, %v1997
    %v1999 = vpop.f32.mrb[0].mxu0
    %2000 = vmatprep.mubr.bf16.mxu0 0
    %2001 = vmatmul.mubr.bf16.gmra.mrb[0].mxu0 %v1947
    %v2002 = vpop.f32.mrb[0].mxu0
    %v2003 = vadd.f32 0.0, %v2002
    %v2004 = vpop.f32.mrb[0].mxu0
    %v2005 = vpop.f32.mrb[0].mxu0
    %v2006 = vadd.f32 0.0, %v2005
    %v2007 = vpop.f32.mrb[0].mxu0
    %2008 = vmatprep.mubr.bf16.mxu0 0
    %2009 = vmatmul.mubr.bf16.gmra.mrb[0].mxu0 %v1950
    %v2010 = vpop.f32.mrb[0].mxu0
    %v2011 = vadd.f32 0.0, %v2010
    %v2012 = vpop.f32.mrb[0].mxu0
    %v2013 = vpop.f32.mrb[0].mxu0
    %v2014 = vadd.f32 0.0, %v2013
    %v2015 = vpop.f32.mrb[0].mxu0
    %2016 = vdwg.mxu0
    %v2017 = vmul.f32 %v1910, %v1910
    %v2018 = vmul.f32 %v1913, %v1913
    %v2019 = vmul.f32 %v1918, %v1918
    %v2020 = vmul.f32 %v1921, %v1921
    %v2021 = vmul.f32 %v1926, %v1926
    %v2022 = vmul.f32 %v1929, %v1929
    %v2023 = vmul.f32 %v1934, %v1934
    %v2024 = vmul.f32 %v1937, %v1937
    %v2025 = vmul.f32 %v1987, %v1987
    %v2026 = vmul.f32 %v1990, %v1990
    %v2027 = vmul.f32 %v1995, %v1995
    %v2028 = vmul.f32 %v1998, %v1998
    %v2029 = vmul.f32 %v2003, %v2003
    %v2030 = vmul.f32 %v2006, %v2006
    %v2031 = vmul.f32 %v2011, %v2011
    %v2032 = vmul.f32 %v2014, %v2014
    %v2033 = vsel %vm1499, %v2017, 0.0
    %2034 = vadd.xlane.f32.xlu0 %v2033
    %v2035 = vpop.xlane.xlu0 %2034
    %v2036 = vsel %vm1499, %v2018, 0.0
    %2037 = vadd.xlane.f32.xlu0 %v2036
    %v2038 = vpop.xlane.xlu0 %2037
    %v2039 = vsel %vm1499, %v2019, 0.0
    %2040 = vadd.xlane.f32.xlu0 %v2039
    %v2041 = vpop.xlane.xlu0 %2040
    %v2042 = vsel %vm1499, %v2020, 0.0
    %2043 = vadd.xlane.f32.xlu0 %v2042
    %v2044 = vpop.xlane.xlu0 %2043
    %v2045 = vsel %vm1499, %v2021, 0.0
    %2046 = vadd.xlane.f32.xlu0 %v2045
    %v2047 = vpop.xlane.xlu0 %2046
    %v2048 = vsel %vm1499, %v2022, 0.0
    %2049 = vadd.xlane.f32.xlu0 %v2048
    %v2050 = vpop.xlane.xlu0 %2049
    %v2051 = vsel %vm1499, %v2023, 0.0
    %2052 = vadd.xlane.f32.xlu0 %v2051
    %v2053 = vpop.xlane.xlu0 %2052
    %v2054 = vsel %vm1499, %v2024, 0.0
    %2055 = vadd.xlane.f32.xlu0 %v2054
    %v2056 = vpop.xlane.xlu0 %2055
    %v2057 = vsel %vm1499, %v2025, 0.0
    %2058 = vadd.xlane.f32.xlu0 %v2057
    %v2059 = vpop.xlane.xlu0 %2058
    %v2060 = vsel %vm1499, %v2026, 0.0
    %2061 = vadd.xlane.f32.xlu0 %v2060
    %v2062 = vpop.xlane.xlu0 %2061
    %v2063 = vsel %vm1499, %v2027, 0.0
    %2064 = vadd.xlane.f32.xlu0 %v2063
    %v2065 = vpop.xlane.xlu0 %2064
    %v2066 = vsel %vm1499, %v2028, 0.0
    %2067 = vadd.xlane.f32.xlu0 %v2066
    %v2068 = vpop.xlane.xlu0 %2067
    %v2069 = vsel %vm1499, %v2029, 0.0
    %2070 = vadd.xlane.f32.xlu0 %v2069
    %v2071 = vpop.xlane.xlu0 %2070
    %v2072 = vsel %vm1499, %v2030, 0.0
    %2073 = vadd.xlane.f32.xlu0 %v2072
    %v2074 = vpop.xlane.xlu0 %2073
    %v2075 = vsel %vm1499, %v2031, 0.0
    %2076 = vadd.xlane.f32.xlu0 %v2075
    %v2077 = vpop.xlane.xlu0 %2076
    %v2078 = vsel %vm1499, %v2032, 0.0
    %2079 = vadd.xlane.f32.xlu0 %v2078
    %v2080 = vpop.xlane.xlu0 %2079
    %v2081 = vrcp.pop 32.0
    %v2082 = vmul.f32 %v2035, %v2081
    %v2083 = vmul.f32 %v2038, %v2081
    %v2084 = vmul.f32 %v2041, %v2081
    %v2085 = vmul.f32 %v2044, %v2081
    %v2086 = vmul.f32 %v2047, %v2081
    %v2087 = vmul.f32 %v2050, %v2081
    %v2088 = vmul.f32 %v2053, %v2081
    %v2089 = vmul.f32 %v2056, %v2081
    %v2090 = vmul.f32 %v2059, %v2081
    %v2091 = vmul.f32 %v2062, %v2081
    %v2092 = vmul.f32 %v2065, %v2081
    %v2093 = vmul.f32 %v2068, %v2081
    %v2094 = vmul.f32 %v2071, %v2081
    %v2095 = vmul.f32 %v2074, %v2081
    %v2096 = vmul.f32 %v2077, %v2081
    %v2097 = vmul.f32 %v2080, %v2081
    %v2098 = vadd.f32 %v2082, 1e-05
    %v2099 = vadd.f32 %v2083, 1e-05
    %v2100 = vadd.f32 %v2084, 1e-05
    %v2101 = vadd.f32 %v2085, 1e-05
    %v2102 = vadd.f32 %v2086, 1e-05
    %v2103 = vadd.f32 %v2087, 1e-05
    %v2104 = vadd.f32 %v2088, 1e-05
    %v2105 = vadd.f32 %v2089, 1e-05
    %v2106 = vadd.f32 %v2090, 1e-05
    %v2107 = vadd.f32 %v2091, 1e-05
    %v2108 = vadd.f32 %v2092, 1e-05
    %v2109 = vadd.f32 %v2093, 1e-05
    %v2110 = vadd.f32 %v2094, 1e-05
    %v2111 = vadd.f32 %v2095, 1e-05
    %v2112 = vadd.f32 %v2096, 1e-05
    %v2113 = vadd.f32 %v2097, 1e-05
    %v2114 = vrsqrt.pop %v2098
    %v2115 = vrsqrt.pop %v2099
    %v2116 = vrsqrt.pop %v2100
    %v2117 = vrsqrt.pop %v2101
    %v2118 = vrsqrt.pop %v2102
    %v2119 = vrsqrt.pop %v2103
    %v2120 = vrsqrt.pop %v2104
    %v2121 = vrsqrt.pop %v2105
    %v2122 = vrsqrt.pop %v2106
    %v2123 = vrsqrt.pop %v2107
    %v2124 = vrsqrt.pop %v2108
    %v2125 = vrsqrt.pop %v2109
    %v2126 = vrsqrt.pop %v2110
    %v2127 = vrsqrt.pop %v2111
    %v2128 = vrsqrt.pop %v2112
    %v2129 = vrsqrt.pop %v2113
    %v2130 = vmul.f32 %v1910, %v2114
    %v2131 = vmul.f32 %v1913, %v2115
    %v2132 = vmul.f32 %v1918, %v2116
    %v2133 = vmul.f32 %v1921, %v2117
    %v2134 = vmul.f32 %v1926, %v2118
    %v2135 = vmul.f32 %v1929, %v2119
    %v2136 = vmul.f32 %v1934, %v2120
    %v2137 = vmul.f32 %v1937, %v2121
    %v2138 = vmul.f32 %v1987, %v2122
    %v2139 = vmul.f32 %v1990, %v2123
    %v2140 = vmul.f32 %v1995, %v2124
    %v2141 = vmul.f32 %v1998, %v2125
    %v2142 = vmul.f32 %v2003, %v2126
    %v2143 = vmul.f32 %v2006, %v2127
    %v2144 = vmul.f32 %v2011, %v2128
    %v2145 = vmul.f32 %v2014, %v2129
    %v2147 = vlaneseq
    %v2148 = vshrl.u32 %v2147, 7
    %v2149 = vsub.s32 0, %v2148
    %v2150 = vrot.slane %v1498, %v2149
    %v2152 = vmul.f32 %v2130, %v2150
    %v2153 = vmul.f32 %v2131, %v2150
    %v2154 = vmul.f32 %v2132, %v2150
    %v2155 = vmul.f32 %v2133, %v2150
    %v2156 = vmul.f32 %v2134, %v2150
    %v2157 = vmul.f32 %v2135, %v2150
    %v2158 = vmul.f32 %v2136, %v2150
    %v2159 = vmul.f32 %v2137, %v2150
    %v2160 = vmul.f32 %v2138, %v2150
    %v2161 = vmul.f32 %v2139, %v2150
    %v2162 = vmul.f32 %v2140, %v2150
    %v2163 = vmul.f32 %v2141, %v2150
    %v2164 = vmul.f32 %v2142, %v2150
    %v2165 = vmul.f32 %v2143, %v2150
    %v2166 = vmul.f32 %v2144, %v2150
    %v2167 = vmul.f32 %v2145, %v2150
    %2172 = vrot.lane.b32.xlu0 %v1441, 96
    %v2173 = vpop.permute.xlu0 %2172
    %2174 = vrot.lane.b32.xlu0 %v1442, 96
    %v2175 = vpop.permute.xlu0 %2174
    %2176 = vrot.lane.b32.xlu0 %v1443, 96
    %v2177 = vpop.permute.xlu0 %2176
    %2178 = vrot.lane.b32.xlu0 %v1444, 96
    %v2179 = vpop.permute.xlu0 %2178
    %2184 = vrot.lane.b32.xlu0 %v1449, 96
    %v2185 = vpop.permute.xlu0 %2184
    %2186 = vrot.lane.b32.xlu0 %v1450, 96
    %v2187 = vpop.permute.xlu0 %2186
    %2188 = vrot.lane.b32.xlu0 %v1451, 96
    %v2189 = vpop.permute.xlu0 %2188
    %2190 = vrot.lane.b32.xlu0 %v1452, 96
    %v2191 = vpop.permute.xlu0 %2190
    %v2193 = vsel %vm1499, %v2173, 0
    %v2196 = vsel %vm1499, %v2175, 0
    %v2199 = vsel %vm1499, %v2177, 0
    %v2202 = vsel %vm1499, %v2179, 0
    %v2205 = vsel %vm1499, %v2185, 0
    %v2208 = vsel %vm1499, %v2187, 0
    %v2211 = vsel %vm1499, %v2189, 0
    %v2214 = vsel %vm1499, %v2191, 0
    %2216 = vmatprep.subr.bf16.mxu0 0
    %2217 = vmatpush1.bf16.xpose.msra.mxu0 %v2205
    %2218 = vmatprep.subr.bf16.mxu0 0
    %2219 = vmatpush1.bf16.xpose.msra.mxu0 %v2208
    %2220 = vmatprep.subr.bf16.mxu0 0
    %2221 = vmatpush1.bf16.xpose.msra.mxu0 %v2211
    %2222 = vmatprep.subr.bf16.mxu0 0
    %2223 = vmatpush1.bf16.xpose.msra.mxu0 %v2214
    %2224 = vmatprep.subr.bf16.mxu0 0
    %2225 = vmatpush1.bf16.xpose.msra.mxu0 0
    %2226 = vmatprep.subr.bf16.mxu0 0
    %2227 = vmatpush1.bf16.xpose.msra.mxu0 0
    %2228 = vmatprep.subr.bf16.mxu0 0
    %2229 = vmatpush1.bf16.xpose.msra.mxu0 0
    %2230 = vmatprep.subr.bf16.mxu0 0
    %2231 = vmatpush1.bf16.xpose.msra.mxu0 0
    %2232 = vmatprep.subr.bf16.mxu0 0
    %2233 = vmatpush1.bf16.xpose.msra.mxu0 0
    %2234 = vmatprep.subr.bf16.mxu0 0
    %2235 = vmatpush1.bf16.xpose.msra.mxu0 0
    %2236 = vmatprep.subr.bf16.mxu0 0
    %2237 = vmatpush1.bf16.xpose.msra.mxu0 0
    %2238 = vmatprep.subr.bf16.mxu0 0
    %2239 = vmatpush1.bf16.xpose.msra.mxu0 0
    %2240 = vmatprep.subr.bf16.mxu0 0
    %2241 = vmatpush1.bf16.xpose.msra.mxu0 0
    %2242 = vmatprep.subr.bf16.mxu0 0
    %2243 = vmatpush1.bf16.xpose.msra.mxu0 0
    %2244 = vmatprep.subr.bf16.mxu0 0
    %2245 = vmatpush1.bf16.xpose.msra.mxu0 0
    %2246 = vmatprep.subr.bf16.mxu0 0
    %2247 = vmatpush1.bf16.xpose.msra.mxu0 0
    %2248 = vmatprep.mubr.bf16.mxu0 0
    %2249 = vmatmul.mubr.bf16.gmra.mrb[0].mxu0 %v2193
    %v2250 = vpop.f32.mrb[0].mxu0
    %v2251 = vadd.f32 0.0, %v2250
    %v2252 = vpop.f32.mrb[0].mxu0
    %v2253 = vpop.f32.mrb[0].mxu0
    %v2254 = vadd.f32 0.0, %v2253
    %v2255 = vpop.f32.mrb[0].mxu0
    %2256 = vmatprep.mubr.bf16.mxu0 0
    %2257 = vmatmul.mubr.bf16.gmra.mrb[0].mxu0 %v2196
    %v2258 = vpop.f32.mrb[0].mxu0
    %v2259 = vadd.f32 0.0, %v2258
    %v2260 = vpop.f32.mrb[0].mxu0
    %v2261 = vpop.f32.mrb[0].mxu0
    %v2262 = vadd.f32 0.0, %v2261
    %v2263 = vpop.f32.mrb[0].mxu0
    %2264 = vmatprep.mubr.bf16.mxu0 0
    %2265 = vmatmul.mubr.bf16.gmra.mrb[0].mxu0 %v2199
    %v2266 = vpop.f32.mrb[0].mxu0
    %v2267 = vadd.f32 0.0, %v2266
    %v2268 = vpop.f32.mrb[0].mxu0
    %v2269 = vpop.f32.mrb[0].mxu0
    %v2270 = vadd.f32 0.0, %v2269
    %v2271 = vpop.f32.mrb[0].mxu0
    %2272 = vmatprep.mubr.bf16.mxu0 0
    %2273 = vmatmul.mubr.bf16.gmra.mrb[0].mxu0 %v2202
    %v2274 = vpop.f32.mrb[0].mxu0
    %v2275 = vadd.f32 0.0, %v2274
    %v2276 = vpop.f32.mrb[0].mxu0
    %v2277 = vpop.f32.mrb[0].mxu0
    %v2278 = vadd.f32 0.0, %v2277
    %v2279 = vpop.f32.mrb[0].mxu0
    %2280 = vdwg.mxu0
    %2285 = vrot.lane.b32.xlu0 %v1445, 96
    %v2286 = vpop.permute.xlu0 %2285
    %2287 = vrot.lane.b32.xlu0 %v1446, 96
    %v2288 = vpop.permute.xlu0 %2287
    %2289 = vrot.lane.b32.xlu0 %v1447, 96
    %v2290 = vpop.permute.xlu0 %2289
    %2291 = vrot.lane.b32.xlu0 %v1448, 96
    %v2292 = vpop.permute.xlu0 %2291
    %2297 = vrot.lane.b32.xlu0 %v1453, 96
    %v2298 = vpop.permute.xlu0 %2297
    %2299 = vrot.lane.b32.xlu0 %v1454, 96
    %v2300 = vpop.permute.xlu0 %2299
    %2301 = vrot.lane.b32.xlu0 %v1455, 96
    %v2302 = vpop.permute.xlu0 %2301
    %2303 = vrot.lane.b32.xlu0 %v1456, 96
    %v2304 = vpop.permute.xlu0 %2303
    %v2306 = vsel %vm1499, %v2286, 0
    %v2309 = vsel %vm1499, %v2288, 0
    %v2312 = vsel %vm1499, %v2290, 0
    %v2315 = vsel %vm1499, %v2292, 0
    %v2318 = vsel %vm1499, %v2298, 0
    %v2321 = vsel %vm1499, %v2300, 0
    %v2324 = vsel %vm1499, %v2302, 0
    %v2327 = vsel %vm1499, %v2304, 0
    %2329 = vmatprep.subr.bf16.mxu0 0
    %2330 = vmatpush1.bf16.xpose.msra.mxu0 %v2318
    %2331 = vmatprep.subr.bf16.mxu0 0
    %2332 = vmatpush1.bf16.xpose.msra.mxu0 %v2321
    %2333 = vmatprep.subr.bf16.mxu0 0
    %2334 = vmatpush1.bf16.xpose.msra.mxu0 %v2324
    %2335 = vmatprep.subr.bf16.mxu0 0
    %2336 = vmatpush1.bf16.xpose.msra.mxu0 %v2327
    %2337 = vmatprep.subr.bf16.mxu0 0
    %2338 = vmatpush1.bf16.xpose.msra.mxu0 0
    %2339 = vmatprep.subr.bf16.mxu0 0
    %2340 = vmatpush1.bf16.xpose.msra.mxu0 0
    %2341 = vmatprep.subr.bf16.mxu0 0
    %2342 = vmatpush1.bf16.xpose.msra.mxu0 0
    %2343 = vmatprep.subr.bf16.mxu0 0
    %2344 = vmatpush1.bf16.xpose.msra.mxu0 0
    %2345 = vmatprep.subr.bf16.mxu0 0
    %2346 = vmatpush1.bf16.xpose.msra.mxu0 0
    %2347 = vmatprep.subr.bf16.mxu0 0
    %2348 = vmatpush1.bf16.xpose.msra.mxu0 0
    %2349 = vmatprep.subr.bf16.mxu0 0
    %2350 = vmatpush1.bf16.xpose.msra.mxu0 0
    %2351 = vmatprep.subr.bf16.mxu0 0
    %2352 = vmatpush1.bf16.xpose.msra.mxu0 0
    %2353 = vmatprep.subr.bf16.mxu0 0
    %2354 = vmatpush1.bf16.xpose.msra.mxu0 0
    %2355 = vmatprep.subr.bf16.mxu0 0
    %2356 = vmatpush1.bf16.xpose.msra.mxu0 0
    %2357 = vmatprep.subr.bf16.mxu0 0
    %2358 = vmatpush1.bf16.xpose.msra.mxu0 0
    %2359 = vmatprep.subr.bf16.mxu0 0
    %2360 = vmatpush1.bf16.xpose.msra.mxu0 0
    %2361 = vmatprep.mubr.bf16.mxu0 0
    %2362 = vmatmul.mubr.bf16.gmra.mrb[0].mxu0 %v2306
    %v2363 = vpop.f32.mrb[0].mxu0
    %v2364 = vadd.f32 0.0, %v2363
    %v2365 = vpop.f32.mrb[0].mxu0
    %v2366 = vpop.f32.mrb[0].mxu0
    %v2367 = vadd.f32 0.0, %v2366
    %v2368 = vpop.f32.mrb[0].mxu0
    %2369 = vmatprep.mubr.bf16.mxu0 0
    %2370 = vmatmul.mubr.bf16.gmra.mrb[0].mxu0 %v2309
    %v2371 = vpop.f32.mrb[0].mxu0
    %v2372 = vadd.f32 0.0, %v2371
    %v2373 = vpop.f32.mrb[0].mxu0
    %v2374 = vpop.f32.mrb[0].mxu0
    %v2375 = vadd.f32 0.0, %v2374
    %v2376 = vpop.f32.mrb[0].mxu0
    %2377 = vmatprep.mubr.bf16.mxu0 0
    %2378 = vmatmul.mubr.bf16.gmra.mrb[0].mxu0 %v2312
    %v2379 = vpop.f32.mrb[0].mxu0
    %v2380 = vadd.f32 0.0, %v2379
    %v2381 = vpop.f32.mrb[0].mxu0
    %v2382 = vpop.f32.mrb[0].mxu0
    %v2383 = vadd.f32 0.0, %v2382
    %v2384 = vpop.f32.mrb[0].mxu0
    %2385 = vmatprep.mubr.bf16.mxu0 0
    %2386 = vmatmul.mubr.bf16.gmra.mrb[0].mxu0 %v2315
    %v2387 = vpop.f32.mrb[0].mxu0
    %v2388 = vadd.f32 0.0, %v2387
    %v2389 = vpop.f32.mrb[0].mxu0
    %v2390 = vpop.f32.mrb[0].mxu0
    %v2391 = vadd.f32 0.0, %v2390
    %v2392 = vpop.f32.mrb[0].mxu0
    %2393 = vdwg.mxu0
    %v2394 = vand.u32 2147483647, %v2251
    %v2395 = vand.u32 2147483647, %v2254
    %v2396 = vand.u32 2147483647, %v2259
    %v2397 = vand.u32 2147483647, %v2262
    %v2398 = vand.u32 2147483647, %v2267
    %v2399 = vand.u32 2147483647, %v2270
    %v2400 = vand.u32 2147483647, %v2275
    %v2401 = vand.u32 2147483647, %v2278
    %v2402 = vand.u32 2147483647, %v2364
    %v2403 = vand.u32 2147483647, %v2367
    %v2404 = vand.u32 2147483647, %v2372
    %v2405 = vand.u32 2147483647, %v2375
    %v2406 = vand.u32 2147483647, %v2380
    %v2407 = vand.u32 2147483647, %v2383
    %v2408 = vand.u32 2147483647, %v2388
    %v2409 = vand.u32 2147483647, %v2391
    %v2410 = vsel %vm1694, %v2394, 0.0
    %2411 = vadd.xlane.f32.xlu0 %v2410
    %v2412 = vpop.xlane.xlu0 %2411
    %v2413 = vsel %vm1694, %v2395, 0.0
    %2414 = vadd.xlane.f32.xlu0 %v2413
    %v2415 = vpop.xlane.xlu0 %2414
    %v2416 = vsel %vm1694, %v2396, 0.0
    %2417 = vadd.xlane.f32.xlu0 %v2416
    %v2418 = vpop.xlane.xlu0 %2417
    %v2419 = vsel %vm1694, %v2397, 0.0
    %2420 = vadd.xlane.f32.xlu0 %v2419
    %v2421 = vpop.xlane.xlu0 %2420
    %v2422 = vsel %vm1694, %v2398, 0.0
    %2423 = vadd.xlane.f32.xlu0 %v2422
    %v2424 = vpop.xlane.xlu0 %2423
    %v2425 = vsel %vm1694, %v2399, 0.0
    %2426 = vadd.xlane.f32.xlu0 %v2425
    %v2427 = vpop.xlane.xlu0 %2426
    %v2428 = vsel %vm1694, %v2400, 0.0
    %2429 = vadd.xlane.f32.xlu0 %v2428
    %v2430 = vpop.xlane.xlu0 %2429
    %v2431 = vsel %vm1694, %v2401, 0.0
    %2432 = vadd.xlane.f32.xlu0 %v2431
    %v2433 = vpop.xlane.xlu0 %2432
    %v2434 = vsel %vm1694, %v2402, 0.0
    %2435 = vadd.xlane.f32.xlu0 %v2434
    %v2436 = vpop.xlane.xlu0 %2435
    %v2437 = vsel %vm1694, %v2403, 0.0
    %2438 = vadd.xlane.f32.xlu0 %v2437
    %v2439 = vpop.xlane.xlu0 %2438
    %v2440 = vsel %vm1694, %v2404, 0.0
    %2441 = vadd.xlane.f32.xlu0 %v2440
    %v2442 = vpop.xlane.xlu0 %2441
    %v2443 = vsel %vm1694, %v2405, 0.0
    %2444 = vadd.xlane.f32.xlu0 %v2443
    %v2445 = vpop.xlane.xlu0 %2444
    %v2446 = vsel %vm1694, %v2406, 0.0
    %2447 = vadd.xlane.f32.xlu0 %v2446
    %v2448 = vpop.xlane.xlu0 %2447
    %v2449 = vsel %vm1694, %v2407, 0.0
    %2450 = vadd.xlane.f32.xlu0 %v2449
    %v2451 = vpop.xlane.xlu0 %2450
    %v2452 = vsel %vm1694, %v2408, 0.0
    %2453 = vadd.xlane.f32.xlu0 %v2452
    %v2454 = vpop.xlane.xlu0 %2453
    %v2455 = vsel %vm1694, %v2409, 0.0
    %2456 = vadd.xlane.f32.xlu0 %v2455
    %v2457 = vpop.xlane.xlu0 %2456
    %v2458 = vmax.f32 %v2412, 1.0
    %v2459 = vmax.f32 %v2415, 1.0
    %v2460 = vmax.f32 %v2418, 1.0
    %v2461 = vmax.f32 %v2421, 1.0
    %v2462 = vmax.f32 %v2424, 1.0
    %v2463 = vmax.f32 %v2427, 1.0
    %v2464 = vmax.f32 %v2430, 1.0
    %v2465 = vmax.f32 %v2433, 1.0
    %v2466 = vmax.f32 %v2436, 1.0
    %v2467 = vmax.f32 %v2439, 1.0
    %v2468 = vmax.f32 %v2442, 1.0
    %v2469 = vmax.f32 %v2445, 1.0
    %v2470 = vmax.f32 %v2448, 1.0
    %v2471 = vmax.f32 %v2451, 1.0
    %v2472 = vmax.f32 %v2454, 1.0
    %v2473 = vmax.f32 %v2457, 1.0
    %v2474 = vmin.f32 %v2458, 50000.0
    %v2475 = vmin.f32 %v2459, 50000.0
    %v2476 = vmin.f32 %v2460, 50000.0
    %v2477 = vmin.f32 %v2461, 50000.0
    %v2478 = vmin.f32 %v2462, 50000.0
    %v2479 = vmin.f32 %v2463, 50000.0
    %v2480 = vmin.f32 %v2464, 50000.0
    %v2481 = vmin.f32 %v2465, 50000.0
    %v2482 = vmin.f32 %v2466, 50000.0
    %v2483 = vmin.f32 %v2467, 50000.0
    %v2484 = vmin.f32 %v2468, 50000.0
    %v2485 = vmin.f32 %v2469, 50000.0
    %v2486 = vmin.f32 %v2470, 50000.0
    %v2487 = vmin.f32 %v2471, 50000.0
    %v2488 = vmin.f32 %v2472, 50000.0
    %v2489 = vmin.f32 %v2473, 50000.0
    %v2490 = vmul.f32 %v1482, -0.015748357
    %v2491 = vmul.f32 %v1483, -0.015748357
    %v2492 = vmul.f32 %v1484, -0.015748357
    %v2493 = vmul.f32 %v1485, -0.015748357
    %v2494 = vmul.f32 %v1486, -0.015748357
    %v2495 = vmul.f32 %v1487, -0.015748357
    %v2496 = vmul.f32 %v1488, -0.015748357
    %v2497 = vmul.f32 %v1489, -0.015748357
    %v2498 = vmul.f32 %v2490, 1.442695
    %v2499 = vpow.pop %v2498
    %v2500 = vmul.f32 %v2491, 1.442695
    %v2501 = vpow.pop %v2500
    %v2502 = vmul.f32 %v2492, 1.442695
    %v2503 = vpow.pop %v2502
    %v2504 = vmul.f32 %v2493, 1.442695
    %v2505 = vpow.pop %v2504
    %v2506 = vmul.f32 %v2494, 1.442695
    %v2507 = vpow.pop %v2506
    %v2508 = vmul.f32 %v2495, 1.442695
    %v2509 = vpow.pop %v2508
    %v2510 = vmul.f32 %v2496, 1.442695
    %v2511 = vpow.pop %v2510
    %v2512 = vmul.f32 %v2497, 1.442695
    %v2513 = vpow.pop %v2512
    %v2514 = vsel %vm1490, %v2499, 0.0
    %v2515 = vsel %vm1491, %v2501, 0.0
    %v2516 = vsel %vm1492, %v2503, 0.0
    %v2517 = vsel %vm1493, %v2505, 0.0
    %v2518 = vsel %vm1494, %v2507, 0.0
    %v2519 = vsel %vm1495, %v2509, 0.0
    %v2520 = vsel %vm1496, %v2511, 0.0
    %v2521 = vsel %vm1497, %v2513, 0.0
    %v2522 = vrcp.pop %v2474
    %v2523 = vmul.f32 %v2251, %v2522
    %v2524 = vrcp.pop %v2475
    %v2525 = vmul.f32 %v2254, %v2524
    %v2526 = vrcp.pop %v2476
    %v2527 = vmul.f32 %v2259, %v2526
    %v2528 = vrcp.pop %v2477
    %v2529 = vmul.f32 %v2262, %v2528
    %v2530 = vrcp.pop %v2478
    %v2531 = vmul.f32 %v2267, %v2530
    %v2532 = vrcp.pop %v2479
    %v2533 = vmul.f32 %v2270, %v2532
    %v2534 = vrcp.pop %v2480
    %v2535 = vmul.f32 %v2275, %v2534
    %v2536 = vrcp.pop %v2481
    %v2537 = vmul.f32 %v2278, %v2536
    %v2538 = vrcp.pop %v2482
    %v2539 = vmul.f32 %v2364, %v2538
    %v2540 = vrcp.pop %v2483
    %v2541 = vmul.f32 %v2367, %v2540
    %v2542 = vrcp.pop %v2484
    %v2543 = vmul.f32 %v2372, %v2542
    %v2544 = vrcp.pop %v2485
    %v2545 = vmul.f32 %v2375, %v2544
    %v2546 = vrcp.pop %v2486
    %v2547 = vmul.f32 %v2380, %v2546
    %v2548 = vrcp.pop %v2487
    %v2549 = vmul.f32 %v2383, %v2548
    %v2550 = vrcp.pop %v2488
    %v2551 = vmul.f32 %v2388, %v2550
    %v2552 = vrcp.pop %v2489
    %v2553 = vmul.f32 %v2391, %v2552
    %v2554 = vadd.f32 %v2523, %v2514
    %v2555 = vadd.f32 %v2525, %v2515
    %v2556 = vadd.f32 %v2527, %v2516
    %v2557 = vadd.f32 %v2529, %v2517
    %v2558 = vadd.f32 %v2531, %v2518
    %v2559 = vadd.f32 %v2533, %v2519
    %v2560 = vadd.f32 %v2535, %v2520
    %v2561 = vadd.f32 %v2537, %v2521
    %v2562 = vadd.f32 %v2539, %v2514
    %v2563 = vadd.f32 %v2541, %v2515
    %v2564 = vadd.f32 %v2543, %v2516
    %v2565 = vadd.f32 %v2545, %v2517
    %v2566 = vadd.f32 %v2547, %v2518
    %v2567 = vadd.f32 %v2549, %v2519
    %v2568 = vadd.f32 %v2551, %v2520
    %v2569 = vadd.f32 %v2553, %v2521
    %v2570 = vpack.c.bf16 %v2555, %v2554
    %v2571 = vpack.c.bf16 %v2557, %v2556
    %v2572 = vpack.c.bf16 %v2559, %v2558
    %v2573 = vpack.c.bf16 %v2561, %v2560
    %v2574 = vpack.c.bf16 %v2563, %v2562
    %v2575 = vpack.c.bf16 %v2565, %v2564
    %v2576 = vpack.c.bf16 %v2567, %v2566
    %v2577 = vpack.c.bf16 %v2569, %v2568
    %2582 = vrot.lane.b32.xlu0 %v1457, 96
    %v2583 = vpop.permute.xlu0 %2582
    %2584 = vrot.lane.b32.xlu0 %v1458, 96
    %v2585 = vpop.permute.xlu0 %2584
    %2586 = vrot.lane.b32.xlu0 %v1459, 96
    %v2587 = vpop.permute.xlu0 %2586
    %2588 = vrot.lane.b32.xlu0 %v1460, 96
    %v2589 = vpop.permute.xlu0 %2588
    %v2595 = vsel %vm1694, %v2570, 0
    %v2598 = vsel %vm1694, %v2571, 0
    %v2601 = vsel %vm1694, %v2572, 0
    %v2604 = vsel %vm1694, %v2573, 0
    %2606 = vmatprep.subr.bf16.mxu0 0
    %2607 = vmatpush1.bf16.msra.mxu0 %v2583
    %2608 = vmatprep.subr.bf16.mxu0 0
    %2609 = vmatpush1.bf16.msra.mxu0 %v2585
    %2610 = vmatprep.subr.bf16.mxu0 0
    %2611 = vmatpush1.bf16.msra.mxu0 %v2587
    %2612 = vmatprep.subr.bf16.mxu0 0
    %2613 = vmatpush1.bf16.msra.mxu0 %v2589
    %2614 = vmatprep.subr.bf16.mxu0 0
    %2615 = vmatpush1.bf16.msra.mxu0 0
    %2616 = vmatprep.subr.bf16.mxu0 0
    %2617 = vmatpush1.bf16.msra.mxu0 0
    %2618 = vmatprep.subr.bf16.mxu0 0
    %2619 = vmatpush1.bf16.msra.mxu0 0
    %2620 = vmatprep.subr.bf16.mxu0 0
    %2621 = vmatpush1.bf16.msra.mxu0 0
    %2622 = vmatprep.subr.bf16.mxu0 0
    %2623 = vmatpush1.bf16.msra.mxu0 0
    %2624 = vmatprep.subr.bf16.mxu0 0
    %2625 = vmatpush1.bf16.msra.mxu0 0
    %2626 = vmatprep.subr.bf16.mxu0 0
    %2627 = vmatpush1.bf16.msra.mxu0 0
    %2628 = vmatprep.subr.bf16.mxu0 0
    %2629 = vmatpush1.bf16.msra.mxu0 0
    %2630 = vmatprep.subr.bf16.mxu0 0
    %2631 = vmatpush1.bf16.msra.mxu0 0
    %2632 = vmatprep.subr.bf16.mxu0 0
    %2633 = vmatpush1.bf16.msra.mxu0 0
    %2634 = vmatprep.subr.bf16.mxu0 0
    %2635 = vmatpush1.bf16.msra.mxu0 0
    %2636 = vmatprep.subr.bf16.mxu0 0
    %2637 = vmatpush1.bf16.msra.mxu0 0
    %2638 = vmatprep.mubr.bf16.mxu0 0
    %2639 = vmatmul.mubr.bf16.gmra.mrb[0].mxu0 %v2595
    %v2640 = vpop.f32.mrb[0].mxu0
    %v2641 = vadd.f32 0.0, %v2640
    %v2642 = vpop.f32.mrb[0].mxu0
    %v2643 = vpop.f32.mrb[0].mxu0
    %v2644 = vadd.f32 0.0, %v2643
    %v2645 = vpop.f32.mrb[0].mxu0
    %2646 = vmatprep.mubr.bf16.mxu0 0
    %2647 = vmatmul.mubr.bf16.gmra.mrb[0].mxu0 %v2598
    %v2648 = vpop.f32.mrb[0].mxu0
    %v2649 = vadd.f32 0.0, %v2648
    %v2650 = vpop.f32.mrb[0].mxu0
    %v2651 = vpop.f32.mrb[0].mxu0
    %v2652 = vadd.f32 0.0, %v2651
    %v2653 = vpop.f32.mrb[0].mxu0
    %2654 = vmatprep.mubr.bf16.mxu0 0
    %2655 = vmatmul.mubr.bf16.gmra.mrb[0].mxu0 %v2601
    %v2656 = vpop.f32.mrb[0].mxu0
    %v2657 = vadd.f32 0.0, %v2656
    %v2658 = vpop.f32.mrb[0].mxu0
    %v2659 = vpop.f32.mrb[0].mxu0
    %v2660 = vadd.f32 0.0, %v2659
    %v2661 = vpop.f32.mrb[0].mxu0
    %2662 = vmatprep.mubr.bf16.mxu0 0
    %2663 = vmatmul.mubr.bf16.gmra.mrb[0].mxu0 %v2604
    %v2664 = vpop.f32.mrb[0].mxu0
    %v2665 = vadd.f32 0.0, %v2664
    %v2666 = vpop.f32.mrb[0].mxu0
    %v2667 = vpop.f32.mrb[0].mxu0
    %v2668 = vadd.f32 0.0, %v2667
    %v2669 = vpop.f32.mrb[0].mxu0
    %2670 = vdwg.mxu0
    %2675 = vrot.lane.b32.xlu0 %v1461, 96
    %v2676 = vpop.permute.xlu0 %2675
    %2677 = vrot.lane.b32.xlu0 %v1462, 96
    %v2678 = vpop.permute.xlu0 %2677
    %2679 = vrot.lane.b32.xlu0 %v1463, 96
    %v2680 = vpop.permute.xlu0 %2679
    %2681 = vrot.lane.b32.xlu0 %v1464, 96
    %v2682 = vpop.permute.xlu0 %2681
    %v2688 = vsel %vm1694, %v2574, 0
    %v2691 = vsel %vm1694, %v2575, 0
    %v2694 = vsel %vm1694, %v2576, 0
    %v2697 = vsel %vm1694, %v2577, 0
    %2699 = vmatprep.subr.bf16.mxu0 0
    %2700 = vmatpush1.bf16.msra.mxu0 %v2676
    %2701 = vmatprep.subr.bf16.mxu0 0
    %2702 = vmatpush1.bf16.msra.mxu0 %v2678
    %2703 = vmatprep.subr.bf16.mxu0 0
    %2704 = vmatpush1.bf16.msra.mxu0 %v2680
    %2705 = vmatprep.subr.bf16.mxu0 0
    %2706 = vmatpush1.bf16.msra.mxu0 %v2682
    %2707 = vmatprep.subr.bf16.mxu0 0
    %2708 = vmatpush1.bf16.msra.mxu0 0
    %2709 = vmatprep.subr.bf16.mxu0 0
    %2710 = vmatpush1.bf16.msra.mxu0 0
    %2711 = vmatprep.subr.bf16.mxu0 0
    %2712 = vmatpush1.bf16.msra.mxu0 0
    %2713 = vmatprep.subr.bf16.mxu0 0
    %2714 = vmatpush1.bf16.msra.mxu0 0
    %2715 = vmatprep.subr.bf16.mxu0 0
    %2716 = vmatpush1.bf16.msra.mxu0 0
    %2717 = vmatprep.subr.bf16.mxu0 0
    %2718 = vmatpush1.bf16.msra.mxu0 0
    %2719 = vmatprep.subr.bf16.mxu0 0
    %2720 = vmatpush1.bf16.msra.mxu0 0
    %2721 = vmatprep.subr.bf16.mxu0 0
    %2722 = vmatpush1.bf16.msra.mxu0 0
    %2723 = vmatprep.subr.bf16.mxu0 0
    %2724 = vmatpush1.bf16.msra.mxu0 0
    %2725 = vmatprep.subr.bf16.mxu0 0
    %2726 = vmatpush1.bf16.msra.mxu0 0
    %2727 = vmatprep.subr.bf16.mxu0 0
    %2728 = vmatpush1.bf16.msra.mxu0 0
    %2729 = vmatprep.subr.bf16.mxu0 0
    %2730 = vmatpush1.bf16.msra.mxu0 0
    %2731 = vmatprep.mubr.bf16.mxu0 0
    %2732 = vmatmul.mubr.bf16.gmra.mrb[0].mxu0 %v2688
    %v2733 = vpop.f32.mrb[0].mxu0
    %v2734 = vadd.f32 0.0, %v2733
    %v2735 = vpop.f32.mrb[0].mxu0
    %v2736 = vpop.f32.mrb[0].mxu0
    %v2737 = vadd.f32 0.0, %v2736
    %v2738 = vpop.f32.mrb[0].mxu0
    %2739 = vmatprep.mubr.bf16.mxu0 0
    %2740 = vmatmul.mubr.bf16.gmra.mrb[0].mxu0 %v2691
    %v2741 = vpop.f32.mrb[0].mxu0
    %v2742 = vadd.f32 0.0, %v2741
    %v2743 = vpop.f32.mrb[0].mxu0
    %v2744 = vpop.f32.mrb[0].mxu0
    %v2745 = vadd.f32 0.0, %v2744
    %v2746 = vpop.f32.mrb[0].mxu0
    %2747 = vmatprep.mubr.bf16.mxu0 0
    %2748 = vmatmul.mubr.bf16.gmra.mrb[0].mxu0 %v2694
    %v2749 = vpop.f32.mrb[0].mxu0
    %v2750 = vadd.f32 0.0, %v2749
    %v2751 = vpop.f32.mrb[0].mxu0
    %v2752 = vpop.f32.mrb[0].mxu0
    %v2753 = vadd.f32 0.0, %v2752
    %v2754 = vpop.f32.mrb[0].mxu0
    %2755 = vmatprep.mubr.bf16.mxu0 0
    %2756 = vmatmul.mubr.bf16.gmra.mrb[0].mxu0 %v2697
    %v2757 = vpop.f32.mrb[0].mxu0
    %v2758 = vadd.f32 0.0, %v2757
    %v2759 = vpop.f32.mrb[0].mxu0
    %v2760 = vpop.f32.mrb[0].mxu0
    %v2761 = vadd.f32 0.0, %v2760
    %v2762 = vpop.f32.mrb[0].mxu0
    %2763 = vdwg.mxu0
    %v2764 = vmul.f32 %v2641, %v2641
    %v2765 = vmul.f32 %v2644, %v2644
    %v2766 = vmul.f32 %v2649, %v2649
    %v2767 = vmul.f32 %v2652, %v2652
    %v2768 = vmul.f32 %v2657, %v2657
    %v2769 = vmul.f32 %v2660, %v2660
    %v2770 = vmul.f32 %v2665, %v2665
    %v2771 = vmul.f32 %v2668, %v2668
    %v2772 = vmul.f32 %v2734, %v2734
    %v2773 = vmul.f32 %v2737, %v2737
    %v2774 = vmul.f32 %v2742, %v2742
    %v2775 = vmul.f32 %v2745, %v2745
    %v2776 = vmul.f32 %v2750, %v2750
    %v2777 = vmul.f32 %v2753, %v2753
    %v2778 = vmul.f32 %v2758, %v2758
    %v2779 = vmul.f32 %v2761, %v2761
    %v2780 = vsel %vm1499, %v2764, 0.0
    %2781 = vadd.xlane.f32.xlu0 %v2780
    %v2782 = vpop.xlane.xlu0 %2781
    %v2783 = vsel %vm1499, %v2765, 0.0
    %2784 = vadd.xlane.f32.xlu0 %v2783
    %v2785 = vpop.xlane.xlu0 %2784
    %v2786 = vsel %vm1499, %v2766, 0.0
    %2787 = vadd.xlane.f32.xlu0 %v2786
    %v2788 = vpop.xlane.xlu0 %2787
    %v2789 = vsel %vm1499, %v2767, 0.0
    %2790 = vadd.xlane.f32.xlu0 %v2789
    %v2791 = vpop.xlane.xlu0 %2790
    %v2792 = vsel %vm1499, %v2768, 0.0
    %2793 = vadd.xlane.f32.xlu0 %v2792
    %v2794 = vpop.xlane.xlu0 %2793
    %v2795 = vsel %vm1499, %v2769, 0.0
    %2796 = vadd.xlane.f32.xlu0 %v2795
    %v2797 = vpop.xlane.xlu0 %2796
    %v2798 = vsel %vm1499, %v2770, 0.0
    %2799 = vadd.xlane.f32.xlu0 %v2798
    %v2800 = vpop.xlane.xlu0 %2799
    %v2801 = vsel %vm1499, %v2771, 0.0
    %2802 = vadd.xlane.f32.xlu0 %v2801
    %v2803 = vpop.xlane.xlu0 %2802
    %v2804 = vsel %vm1499, %v2772, 0.0
    %2805 = vadd.xlane.f32.xlu0 %v2804
    %v2806 = vpop.xlane.xlu0 %2805
    %v2807 = vsel %vm1499, %v2773, 0.0
    %2808 = vadd.xlane.f32.xlu0 %v2807
    %v2809 = vpop.xlane.xlu0 %2808
    %v2810 = vsel %vm1499, %v2774, 0.0
    %2811 = vadd.xlane.f32.xlu0 %v2810
    %v2812 = vpop.xlane.xlu0 %2811
    %v2813 = vsel %vm1499, %v2775, 0.0
    %2814 = vadd.xlane.f32.xlu0 %v2813
    %v2815 = vpop.xlane.xlu0 %2814
    %v2816 = vsel %vm1499, %v2776, 0.0
    %2817 = vadd.xlane.f32.xlu0 %v2816
    %v2818 = vpop.xlane.xlu0 %2817
    %v2819 = vsel %vm1499, %v2777, 0.0
    %2820 = vadd.xlane.f32.xlu0 %v2819
    %v2821 = vpop.xlane.xlu0 %2820
    %v2822 = vsel %vm1499, %v2778, 0.0
    %2823 = vadd.xlane.f32.xlu0 %v2822
    %v2824 = vpop.xlane.xlu0 %2823
    %v2825 = vsel %vm1499, %v2779, 0.0
    %2826 = vadd.xlane.f32.xlu0 %v2825
    %v2827 = vpop.xlane.xlu0 %2826
    %v2828 = vmul.f32 %v2782, %v2081
    %v2829 = vmul.f32 %v2785, %v2081
    %v2830 = vmul.f32 %v2788, %v2081
    %v2831 = vmul.f32 %v2791, %v2081
    %v2832 = vmul.f32 %v2794, %v2081
    %v2833 = vmul.f32 %v2797, %v2081
    %v2834 = vmul.f32 %v2800, %v2081
    %v2835 = vmul.f32 %v2803, %v2081
    %v2836 = vmul.f32 %v2806, %v2081
    %v2837 = vmul.f32 %v2809, %v2081
    %v2838 = vmul.f32 %v2812, %v2081
    %v2839 = vmul.f32 %v2815, %v2081
    %v2840 = vmul.f32 %v2818, %v2081
    %v2841 = vmul.f32 %v2821, %v2081
    %v2842 = vmul.f32 %v2824, %v2081
    %v2843 = vmul.f32 %v2827, %v2081
    %v2844 = vadd.f32 %v2828, 1e-05
    %v2845 = vadd.f32 %v2829, 1e-05
    %v2846 = vadd.f32 %v2830, 1e-05
    %v2847 = vadd.f32 %v2831, 1e-05
    %v2848 = vadd.f32 %v2832, 1e-05
    %v2849 = vadd.f32 %v2833, 1e-05
    %v2850 = vadd.f32 %v2834, 1e-05
    %v2851 = vadd.f32 %v2835, 1e-05
    %v2852 = vadd.f32 %v2836, 1e-05
    %v2853 = vadd.f32 %v2837, 1e-05
    %v2854 = vadd.f32 %v2838, 1e-05
    %v2855 = vadd.f32 %v2839, 1e-05
    %v2856 = vadd.f32 %v2840, 1e-05
    %v2857 = vadd.f32 %v2841, 1e-05
    %v2858 = vadd.f32 %v2842, 1e-05
    %v2859 = vadd.f32 %v2843, 1e-05
    %v2860 = vrsqrt.pop %v2844
    %v2861 = vrsqrt.pop %v2845
    %v2862 = vrsqrt.pop %v2846
    %v2863 = vrsqrt.pop %v2847
    %v2864 = vrsqrt.pop %v2848
    %v2865 = vrsqrt.pop %v2849
    %v2866 = vrsqrt.pop %v2850
    %v2867 = vrsqrt.pop %v2851
    %v2868 = vrsqrt.pop %v2852
    %v2869 = vrsqrt.pop %v2853
    %v2870 = vrsqrt.pop %v2854
    %v2871 = vrsqrt.pop %v2855
    %v2872 = vrsqrt.pop %v2856
    %v2873 = vrsqrt.pop %v2857
    %v2874 = vrsqrt.pop %v2858
    %v2875 = vrsqrt.pop %v2859
    %v2876 = vmul.f32 %v2641, %v2860
    %v2877 = vmul.f32 %v2644, %v2861
    %v2878 = vmul.f32 %v2649, %v2862
    %v2879 = vmul.f32 %v2652, %v2863
    %v2880 = vmul.f32 %v2657, %v2864
    %v2881 = vmul.f32 %v2660, %v2865
    %v2882 = vmul.f32 %v2665, %v2866
    %v2883 = vmul.f32 %v2668, %v2867
    %v2884 = vmul.f32 %v2734, %v2868
    %v2885 = vmul.f32 %v2737, %v2869
    %v2886 = vmul.f32 %v2742, %v2870
    %v2887 = vmul.f32 %v2745, %v2871
    %v2888 = vmul.f32 %v2750, %v2872
    %v2889 = vmul.f32 %v2753, %v2873
    %v2890 = vmul.f32 %v2758, %v2874
    %v2891 = vmul.f32 %v2761, %v2875
    %v2892 = vmul.f32 %v2876, %v2150
    %v2893 = vmul.f32 %v2877, %v2150
    %v2894 = vmul.f32 %v2878, %v2150
    %v2895 = vmul.f32 %v2879, %v2150
    %v2896 = vmul.f32 %v2880, %v2150
    %v2897 = vmul.f32 %v2881, %v2150
    %v2898 = vmul.f32 %v2882, %v2150
    %v2899 = vmul.f32 %v2883, %v2150
    %v2900 = vmul.f32 %v2884, %v2150
    %v2901 = vmul.f32 %v2885, %v2150
    %v2902 = vmul.f32 %v2886, %v2150
    %v2903 = vmul.f32 %v2887, %v2150
    %v2904 = vmul.f32 %v2888, %v2150
    %v2905 = vmul.f32 %v2889, %v2150
    %v2906 = vmul.f32 %v2890, %v2150
    %v2907 = vmul.f32 %v2891, %v2150
    %2908 = vrot.lane.b32.xlu0 %v1441, 64
    %v2909 = vpop.permute.xlu0 %2908
    %2910 = vrot.lane.b32.xlu0 %v1442, 64
    %v2911 = vpop.permute.xlu0 %2910
    %2912 = vrot.lane.b32.xlu0 %v1443, 64
    %v2913 = vpop.permute.xlu0 %2912
    %2914 = vrot.lane.b32.xlu0 %v1444, 64
    %v2915 = vpop.permute.xlu0 %2914
    %2916 = vrot.lane.b32.xlu0 %v1449, 64
    %v2917 = vpop.permute.xlu0 %2916
    %2918 = vrot.lane.b32.xlu0 %v1450, 64
    %v2919 = vpop.permute.xlu0 %2918
    %2920 = vrot.lane.b32.xlu0 %v1451, 64
    %v2921 = vpop.permute.xlu0 %2920
    %2922 = vrot.lane.b32.xlu0 %v1452, 64
    %v2923 = vpop.permute.xlu0 %2922
    %v2925 = vsel %vm1499, %v2909, 0
    %v2928 = vsel %vm1499, %v2911, 0
    %v2931 = vsel %vm1499, %v2913, 0
    %v2934 = vsel %vm1499, %v2915, 0
    %v2937 = vsel %vm1499, %v2917, 0
    %v2940 = vsel %vm1499, %v2919, 0
    %v2943 = vsel %vm1499, %v2921, 0
    %v2946 = vsel %vm1499, %v2923, 0
    %2948 = vmatprep.subr.bf16.mxu0 0
    %2949 = vmatpush1.bf16.xpose.msra.mxu0 %v2937
    %2950 = vmatprep.subr.bf16.mxu0 0
    %2951 = vmatpush1.bf16.xpose.msra.mxu0 %v2940
    %2952 = vmatprep.subr.bf16.mxu0 0
    %2953 = vmatpush1.bf16.xpose.msra.mxu0 %v2943
    %2954 = vmatprep.subr.bf16.mxu0 0
    %2955 = vmatpush1.bf16.xpose.msra.mxu0 %v2946
    %2956 = vmatprep.subr.bf16.mxu0 0
    %2957 = vmatpush1.bf16.xpose.msra.mxu0 0
    %2958 = vmatprep.subr.bf16.mxu0 0
    %2959 = vmatpush1.bf16.xpose.msra.mxu0 0
    %2960 = vmatprep.subr.bf16.mxu0 0
    %2961 = vmatpush1.bf16.xpose.msra.mxu0 0
    %2962 = vmatprep.subr.bf16.mxu0 0
    %2963 = vmatpush1.bf16.xpose.msra.mxu0 0
    %2964 = vmatprep.subr.bf16.mxu0 0
    %2965 = vmatpush1.bf16.xpose.msra.mxu0 0
    %2966 = vmatprep.subr.bf16.mxu0 0
    %2967 = vmatpush1.bf16.xpose.msra.mxu0 0
    %2968 = vmatprep.subr.bf16.mxu0 0
    %2969 = vmatpush1.bf16.xpose.msra.mxu0 0
    %2970 = vmatprep.subr.bf16.mxu0 0
    %2971 = vmatpush1.bf16.xpose.msra.mxu0 0
    %2972 = vmatprep.subr.bf16.mxu0 0
    %2973 = vmatpush1.bf16.xpose.msra.mxu0 0
    %2974 = vmatprep.subr.bf16.mxu0 0
    %2975 = vmatpush1.bf16.xpose.msra.mxu0 0
    %2976 = vmatprep.subr.bf16.mxu0 0
    %2977 = vmatpush1.bf16.xpose.msra.mxu0 0
    %2978 = vmatprep.subr.bf16.mxu0 0
    %2979 = vmatpush1.bf16.xpose.msra.mxu0 0
    %2980 = vmatprep.mubr.bf16.mxu0 0
    %2981 = vmatmul.mubr.bf16.gmra.mrb[0].mxu0 %v2925
    %v2982 = vpop.f32.mrb[0].mxu0
    %v2983 = vadd.f32 0.0, %v2982
    %v2984 = vpop.f32.mrb[0].mxu0
    %v2985 = vpop.f32.mrb[0].mxu0
    %v2986 = vadd.f32 0.0, %v2985
    %v2987 = vpop.f32.mrb[0].mxu0
    %2988 = vmatprep.mubr.bf16.mxu0 0
    %2989 = vmatmul.mubr.bf16.gmra.mrb[0].mxu0 %v2928
    %v2990 = vpop.f32.mrb[0].mxu0
    %v2991 = vadd.f32 0.0, %v2990
    %v2992 = vpop.f32.mrb[0].mxu0
    %v2993 = vpop.f32.mrb[0].mxu0
    %v2994 = vadd.f32 0.0, %v2993
    %v2995 = vpop.f32.mrb[0].mxu0
    %2996 = vmatprep.mubr.bf16.mxu0 0
    %2997 = vmatmul.mubr.bf16.gmra.mrb[0].mxu0 %v2931
    %v2998 = vpop.f32.mrb[0].mxu0
    %v2999 = vadd.f32 0.0, %v2998
    %v3000 = vpop.f32.mrb[0].mxu0
    %v3001 = vpop.f32.mrb[0].mxu0
    %v3002 = vadd.f32 0.0, %v3001
    %v3003 = vpop.f32.mrb[0].mxu0
    %3004 = vmatprep.mubr.bf16.mxu0 0
    %3005 = vmatmul.mubr.bf16.gmra.mrb[0].mxu0 %v2934
    %v3006 = vpop.f32.mrb[0].mxu0
    %v3007 = vadd.f32 0.0, %v3006
    %v3008 = vpop.f32.mrb[0].mxu0
    %v3009 = vpop.f32.mrb[0].mxu0
    %v3010 = vadd.f32 0.0, %v3009
    %v3011 = vpop.f32.mrb[0].mxu0
    %3012 = vdwg.mxu0
    %3013 = vrot.lane.b32.xlu0 %v1445, 64
    %v3014 = vpop.permute.xlu0 %3013
    %3015 = vrot.lane.b32.xlu0 %v1446, 64
    %v3016 = vpop.permute.xlu0 %3015
    %3017 = vrot.lane.b32.xlu0 %v1447, 64
    %v3018 = vpop.permute.xlu0 %3017
    %3019 = vrot.lane.b32.xlu0 %v1448, 64
    %v3020 = vpop.permute.xlu0 %3019
    %3021 = vrot.lane.b32.xlu0 %v1453, 64
    %v3022 = vpop.permute.xlu0 %3021
    %3023 = vrot.lane.b32.xlu0 %v1454, 64
    %v3024 = vpop.permute.xlu0 %3023
    %3025 = vrot.lane.b32.xlu0 %v1455, 64
    %v3026 = vpop.permute.xlu0 %3025
    %3027 = vrot.lane.b32.xlu0 %v1456, 64
    %v3028 = vpop.permute.xlu0 %3027
    %v3030 = vsel %vm1499, %v3014, 0
    %v3033 = vsel %vm1499, %v3016, 0
    %v3036 = vsel %vm1499, %v3018, 0
    %v3039 = vsel %vm1499, %v3020, 0
    %v3042 = vsel %vm1499, %v3022, 0
    %v3045 = vsel %vm1499, %v3024, 0
    %v3048 = vsel %vm1499, %v3026, 0
    %v3051 = vsel %vm1499, %v3028, 0
    %3053 = vmatprep.subr.bf16.mxu0 0
    %3054 = vmatpush1.bf16.xpose.msra.mxu0 %v3042
    %3055 = vmatprep.subr.bf16.mxu0 0
    %3056 = vmatpush1.bf16.xpose.msra.mxu0 %v3045
    %3057 = vmatprep.subr.bf16.mxu0 0
    %3058 = vmatpush1.bf16.xpose.msra.mxu0 %v3048
    %3059 = vmatprep.subr.bf16.mxu0 0
    %3060 = vmatpush1.bf16.xpose.msra.mxu0 %v3051
    %3061 = vmatprep.subr.bf16.mxu0 0
    %3062 = vmatpush1.bf16.xpose.msra.mxu0 0
    %3063 = vmatprep.subr.bf16.mxu0 0
    %3064 = vmatpush1.bf16.xpose.msra.mxu0 0
    %3065 = vmatprep.subr.bf16.mxu0 0
    %3066 = vmatpush1.bf16.xpose.msra.mxu0 0
    %3067 = vmatprep.subr.bf16.mxu0 0
    %3068 = vmatpush1.bf16.xpose.msra.mxu0 0
    %3069 = vmatprep.subr.bf16.mxu0 0
    %3070 = vmatpush1.bf16.xpose.msra.mxu0 0
    %3071 = vmatprep.subr.bf16.mxu0 0
    %3072 = vmatpush1.bf16.xpose.msra.mxu0 0
    %3073 = vmatprep.subr.bf16.mxu0 0
    %3074 = vmatpush1.bf16.xpose.msra.mxu0 0
    %3075 = vmatprep.subr.bf16.mxu0 0
    %3076 = vmatpush1.bf16.xpose.msra.mxu0 0
    %3077 = vmatprep.subr.bf16.mxu0 0
    %3078 = vmatpush1.bf16.xpose.msra.mxu0 0
    %3079 = vmatprep.subr.bf16.mxu0 0
    %3080 = vmatpush1.bf16.xpose.msra.mxu0 0
    %3081 = vmatprep.subr.bf16.mxu0 0
    %3082 = vmatpush1.bf16.xpose.msra.mxu0 0
    %3083 = vmatprep.subr.bf16.mxu0 0
    %3084 = vmatpush1.bf16.xpose.msra.mxu0 0
    %3085 = vmatprep.mubr.bf16.mxu0 0
    %3086 = vmatmul.mubr.bf16.gmra.mrb[0].mxu0 %v3030
    %v3087 = vpop.f32.mrb[0].mxu0
    %v3088 = vadd.f32 0.0, %v3087
    %v3089 = vpop.f32.mrb[0].mxu0
    %v3090 = vpop.f32.mrb[0].mxu0
    %v3091 = vadd.f32 0.0, %v3090
    %v3092 = vpop.f32.mrb[0].mxu0
    %3093 = vmatprep.mubr.bf16.mxu0 0
    %3094 = vmatmul.mubr.bf16.gmra.mrb[0].mxu0 %v3033
    %v3095 = vpop.f32.mrb[0].mxu0
    %v3096 = vadd.f32 0.0, %v3095
    %v3097 = vpop.f32.mrb[0].mxu0
    %v3098 = vpop.f32.mrb[0].mxu0
    %v3099 = vadd.f32 0.0, %v3098
    %v3100 = vpop.f32.mrb[0].mxu0
    %3101 = vmatprep.mubr.bf16.mxu0 0
    %3102 = vmatmul.mubr.bf16.gmra.mrb[0].mxu0 %v3036
    %v3103 = vpop.f32.mrb[0].mxu0
    %v3104 = vadd.f32 0.0, %v3103
    %v3105 = vpop.f32.mrb[0].mxu0
    %v3106 = vpop.f32.mrb[0].mxu0
    %v3107 = vadd.f32 0.0, %v3106
    %v3108 = vpop.f32.mrb[0].mxu0
    %3109 = vmatprep.mubr.bf16.mxu0 0
    %3110 = vmatmul.mubr.bf16.gmra.mrb[0].mxu0 %v3039
    %v3111 = vpop.f32.mrb[0].mxu0
    %v3112 = vadd.f32 0.0, %v3111
    %v3113 = vpop.f32.mrb[0].mxu0
    %v3114 = vpop.f32.mrb[0].mxu0
    %v3115 = vadd.f32 0.0, %v3114
    %v3116 = vpop.f32.mrb[0].mxu0
    %3117 = vdwg.mxu0
    %v3118 = vand.u32 2147483647, %v2983
    %v3119 = vand.u32 2147483647, %v2986
    %v3120 = vand.u32 2147483647, %v2991
    %v3121 = vand.u32 2147483647, %v2994
    %v3122 = vand.u32 2147483647, %v2999
    %v3123 = vand.u32 2147483647, %v3002
    %v3124 = vand.u32 2147483647, %v3007
    %v3125 = vand.u32 2147483647, %v3010
    %v3126 = vand.u32 2147483647, %v3088
    %v3127 = vand.u32 2147483647, %v3091
    %v3128 = vand.u32 2147483647, %v3096
    %v3129 = vand.u32 2147483647, %v3099
    %v3130 = vand.u32 2147483647, %v3104
    %v3131 = vand.u32 2147483647, %v3107
    %v3132 = vand.u32 2147483647, %v3112
    %v3133 = vand.u32 2147483647, %v3115
    %v3134 = vsel %vm1694, %v3118, 0.0
    %3135 = vadd.xlane.f32.xlu0 %v3134
    %v3136 = vpop.xlane.xlu0 %3135
    %v3137 = vsel %vm1694, %v3119, 0.0
    %3138 = vadd.xlane.f32.xlu0 %v3137
    %v3139 = vpop.xlane.xlu0 %3138
    %v3140 = vsel %vm1694, %v3120, 0.0
    %3141 = vadd.xlane.f32.xlu0 %v3140
    %v3142 = vpop.xlane.xlu0 %3141
    %v3143 = vsel %vm1694, %v3121, 0.0
    %3144 = vadd.xlane.f32.xlu0 %v3143
    %v3145 = vpop.xlane.xlu0 %3144
    %v3146 = vsel %vm1694, %v3122, 0.0
    %3147 = vadd.xlane.f32.xlu0 %v3146
    %v3148 = vpop.xlane.xlu0 %3147
    %v3149 = vsel %vm1694, %v3123, 0.0
    %3150 = vadd.xlane.f32.xlu0 %v3149
    %v3151 = vpop.xlane.xlu0 %3150
    %v3152 = vsel %vm1694, %v3124, 0.0
    %3153 = vadd.xlane.f32.xlu0 %v3152
    %v3154 = vpop.xlane.xlu0 %3153
    %v3155 = vsel %vm1694, %v3125, 0.0
    %3156 = vadd.xlane.f32.xlu0 %v3155
    %v3157 = vpop.xlane.xlu0 %3156
    %v3158 = vsel %vm1694, %v3126, 0.0
    %3159 = vadd.xlane.f32.xlu0 %v3158
    %v3160 = vpop.xlane.xlu0 %3159
    %v3161 = vsel %vm1694, %v3127, 0.0
    %3162 = vadd.xlane.f32.xlu0 %v3161
    %v3163 = vpop.xlane.xlu0 %3162
    %v3164 = vsel %vm1694, %v3128, 0.0
    %3165 = vadd.xlane.f32.xlu0 %v3164
    %v3166 = vpop.xlane.xlu0 %3165
    %v3167 = vsel %vm1694, %v3129, 0.0
    %3168 = vadd.xlane.f32.xlu0 %v3167
    %v3169 = vpop.xlane.xlu0 %3168
    %v3170 = vsel %vm1694, %v3130, 0.0
    %3171 = vadd.xlane.f32.xlu0 %v3170
    %v3172 = vpop.xlane.xlu0 %3171
    %v3173 = vsel %vm1694, %v3131, 0.0
    %3174 = vadd.xlane.f32.xlu0 %v3173
    %v3175 = vpop.xlane.xlu0 %3174
    %v3176 = vsel %vm1694, %v3132, 0.0
    %3177 = vadd.xlane.f32.xlu0 %v3176
    %v3178 = vpop.xlane.xlu0 %3177
    %v3179 = vsel %vm1694, %v3133, 0.0
    %3180 = vadd.xlane.f32.xlu0 %v3179
    %v3181 = vpop.xlane.xlu0 %3180
    %v3182 = vmax.f32 %v3136, 1.0
    %v3183 = vmax.f32 %v3139, 1.0
    %v3184 = vmax.f32 %v3142, 1.0
    %v3185 = vmax.f32 %v3145, 1.0
    %v3186 = vmax.f32 %v3148, 1.0
    %v3187 = vmax.f32 %v3151, 1.0
    %v3188 = vmax.f32 %v3154, 1.0
    %v3189 = vmax.f32 %v3157, 1.0
    %v3190 = vmax.f32 %v3160, 1.0
    %v3191 = vmax.f32 %v3163, 1.0
    %v3192 = vmax.f32 %v3166, 1.0
    %v3193 = vmax.f32 %v3169, 1.0
    %v3194 = vmax.f32 %v3172, 1.0
    %v3195 = vmax.f32 %v3175, 1.0
    %v3196 = vmax.f32 %v3178, 1.0
    %v3197 = vmax.f32 %v3181, 1.0
    %v3198 = vmin.f32 %v3182, 50000.0
    %v3199 = vmin.f32 %v3183, 50000.0
    %v3200 = vmin.f32 %v3184, 50000.0
    %v3201 = vmin.f32 %v3185, 50000.0
    %v3202 = vmin.f32 %v3186, 50000.0
    %v3203 = vmin.f32 %v3187, 50000.0
    %v3204 = vmin.f32 %v3188, 50000.0
    %v3205 = vmin.f32 %v3189, 50000.0
    %v3206 = vmin.f32 %v3190, 50000.0
    %v3207 = vmin.f32 %v3191, 50000.0
    %v3208 = vmin.f32 %v3192, 50000.0
    %v3209 = vmin.f32 %v3193, 50000.0
    %v3210 = vmin.f32 %v3194, 50000.0
    %v3211 = vmin.f32 %v3195, 50000.0
    %v3212 = vmin.f32 %v3196, 50000.0
    %v3213 = vmin.f32 %v3197, 50000.0
    %v3214 = vmul.f32 %v1482, -0.007843178
    %v3215 = vmul.f32 %v1483, -0.007843178
    %v3216 = vmul.f32 %v1484, -0.007843178
    %v3217 = vmul.f32 %v1485, -0.007843178
    %v3218 = vmul.f32 %v1486, -0.007843178
    %v3219 = vmul.f32 %v1487, -0.007843178
    %v3220 = vmul.f32 %v1488, -0.007843178
    %v3221 = vmul.f32 %v1489, -0.007843178
    %v3222 = vmul.f32 %v3214, 1.442695
    %v3223 = vpow.pop %v3222
    %v3224 = vmul.f32 %v3215, 1.442695
    %v3225 = vpow.pop %v3224
    %v3226 = vmul.f32 %v3216, 1.442695
    %v3227 = vpow.pop %v3226
    %v3228 = vmul.f32 %v3217, 1.442695
    %v3229 = vpow.pop %v3228
    %v3230 = vmul.f32 %v3218, 1.442695
    %v3231 = vpow.pop %v3230
    %v3232 = vmul.f32 %v3219, 1.442695
    %v3233 = vpow.pop %v3232
    %v3234 = vmul.f32 %v3220, 1.442695
    %v3235 = vpow.pop %v3234
    %v3236 = vmul.f32 %v3221, 1.442695
    %v3237 = vpow.pop %v3236
    %v3238 = vsel %vm1490, %v3223, 0.0
    %v3239 = vsel %vm1491, %v3225, 0.0
    %v3240 = vsel %vm1492, %v3227, 0.0
    %v3241 = vsel %vm1493, %v3229, 0.0
    %v3242 = vsel %vm1494, %v3231, 0.0
    %v3243 = vsel %vm1495, %v3233, 0.0
    %v3244 = vsel %vm1496, %v3235, 0.0
    %v3245 = vsel %vm1497, %v3237, 0.0
    %v3246 = vrcp.pop %v3198
    %v3247 = vmul.f32 %v2983, %v3246
    %v3248 = vrcp.pop %v3199
    %v3249 = vmul.f32 %v2986, %v3248
    %v3250 = vrcp.pop %v3200
    %v3251 = vmul.f32 %v2991, %v3250
    %v3252 = vrcp.pop %v3201
    %v3253 = vmul.f32 %v2994, %v3252
    %v3254 = vrcp.pop %v3202
    %v3255 = vmul.f32 %v2999, %v3254
    %v3256 = vrcp.pop %v3203
    %v3257 = vmul.f32 %v3002, %v3256
    %v3258 = vrcp.pop %v3204
    %v3259 = vmul.f32 %v3007, %v3258
    %v3260 = vrcp.pop %v3205
    %v3261 = vmul.f32 %v3010, %v3260
    %v3262 = vrcp.pop %v3206
    %v3263 = vmul.f32 %v3088, %v3262
    %v3264 = vrcp.pop %v3207
    %v3265 = vmul.f32 %v3091, %v3264
    %v3266 = vrcp.pop %v3208
    %v3267 = vmul.f32 %v3096, %v3266
    %v3268 = vrcp.pop %v3209
    %v3269 = vmul.f32 %v3099, %v3268
    %v3270 = vrcp.pop %v3210
    %v3271 = vmul.f32 %v3104, %v3270
    %v3272 = vrcp.pop %v3211
    %v3273 = vmul.f32 %v3107, %v3272
    %v3274 = vrcp.pop %v3212
    %v3275 = vmul.f32 %v3112, %v3274
    %v3276 = vrcp.pop %v3213
    %v3277 = vmul.f32 %v3115, %v3276
    %v3278 = vadd.f32 %v3247, %v3238
    %v3279 = vadd.f32 %v3249, %v3239
    %v3280 = vadd.f32 %v3251, %v3240
    %v3281 = vadd.f32 %v3253, %v3241
    %v3282 = vadd.f32 %v3255, %v3242
    %v3283 = vadd.f32 %v3257, %v3243
    %v3284 = vadd.f32 %v3259, %v3244
    %v3285 = vadd.f32 %v3261, %v3245
    %v3286 = vadd.f32 %v3263, %v3238
    %v3287 = vadd.f32 %v3265, %v3239
    %v3288 = vadd.f32 %v3267, %v3240
    %v3289 = vadd.f32 %v3269, %v3241
    %v3290 = vadd.f32 %v3271, %v3242
    %v3291 = vadd.f32 %v3273, %v3243
    %v3292 = vadd.f32 %v3275, %v3244
    %v3293 = vadd.f32 %v3277, %v3245
    %v3294 = vpack.c.bf16 %v3279, %v3278
    %v3295 = vpack.c.bf16 %v3281, %v3280
    %v3296 = vpack.c.bf16 %v3283, %v3282
    %v3297 = vpack.c.bf16 %v3285, %v3284
    %v3298 = vpack.c.bf16 %v3287, %v3286
    %v3299 = vpack.c.bf16 %v3289, %v3288
    %v3300 = vpack.c.bf16 %v3291, %v3290
    %v3301 = vpack.c.bf16 %v3293, %v3292
    %3302 = vrot.lane.b32.xlu0 %v1457, 64
    %v3303 = vpop.permute.xlu0 %3302
    %3304 = vrot.lane.b32.xlu0 %v1458, 64
    %v3305 = vpop.permute.xlu0 %3304
    %3306 = vrot.lane.b32.xlu0 %v1459, 64
    %v3307 = vpop.permute.xlu0 %3306
    %3308 = vrot.lane.b32.xlu0 %v1460, 64
    %v3309 = vpop.permute.xlu0 %3308
    %v3315 = vsel %vm1694, %v3294, 0
    %v3318 = vsel %vm1694, %v3295, 0
    %v3321 = vsel %vm1694, %v3296, 0
    %v3324 = vsel %vm1694, %v3297, 0
    %3326 = vmatprep.subr.bf16.mxu0 0
    %3327 = vmatpush1.bf16.msra.mxu0 %v3303
    %3328 = vmatprep.subr.bf16.mxu0 0
    %3329 = vmatpush1.bf16.msra.mxu0 %v3305
    %3330 = vmatprep.subr.bf16.mxu0 0
    %3331 = vmatpush1.bf16.msra.mxu0 %v3307
    %3332 = vmatprep.subr.bf16.mxu0 0
    %3333 = vmatpush1.bf16.msra.mxu0 %v3309
    %3334 = vmatprep.subr.bf16.mxu0 0
    %3335 = vmatpush1.bf16.msra.mxu0 0
    %3336 = vmatprep.subr.bf16.mxu0 0
    %3337 = vmatpush1.bf16.msra.mxu0 0
    %3338 = vmatprep.subr.bf16.mxu0 0
    %3339 = vmatpush1.bf16.msra.mxu0 0
    %3340 = vmatprep.subr.bf16.mxu0 0
    %3341 = vmatpush1.bf16.msra.mxu0 0
    %3342 = vmatprep.subr.bf16.mxu0 0
    %3343 = vmatpush1.bf16.msra.mxu0 0
    %3344 = vmatprep.subr.bf16.mxu0 0
    %3345 = vmatpush1.bf16.msra.mxu0 0
    %3346 = vmatprep.subr.bf16.mxu0 0
    %3347 = vmatpush1.bf16.msra.mxu0 0
    %3348 = vmatprep.subr.bf16.mxu0 0
    %3349 = vmatpush1.bf16.msra.mxu0 0
    %3350 = vmatprep.subr.bf16.mxu0 0
    %3351 = vmatpush1.bf16.msra.mxu0 0
    %3352 = vmatprep.subr.bf16.mxu0 0
    %3353 = vmatpush1.bf16.msra.mxu0 0
    %3354 = vmatprep.subr.bf16.mxu0 0
    %3355 = vmatpush1.bf16.msra.mxu0 0
    %3356 = vmatprep.subr.bf16.mxu0 0
    %3357 = vmatpush1.bf16.msra.mxu0 0
    %3358 = vmatprep.mubr.bf16.mxu0 0
    %3359 = vmatmul.mubr.bf16.gmra.mrb[0].mxu0 %v3315
    %v3360 = vpop.f32.mrb[0].mxu0
    %v3361 = vadd.f32 0.0, %v3360
    %v3362 = vpop.f32.mrb[0].mxu0
    %v3363 = vpop.f32.mrb[0].mxu0
    %v3364 = vadd.f32 0.0, %v3363
    %v3365 = vpop.f32.mrb[0].mxu0
    %3366 = vmatprep.mubr.bf16.mxu0 0
    %3367 = vmatmul.mubr.bf16.gmra.mrb[0].mxu0 %v3318
    %v3368 = vpop.f32.mrb[0].mxu0
    %v3369 = vadd.f32 0.0, %v3368
    %v3370 = vpop.f32.mrb[0].mxu0
    %v3371 = vpop.f32.mrb[0].mxu0
    %v3372 = vadd.f32 0.0, %v3371
    %v3373 = vpop.f32.mrb[0].mxu0
    %3374 = vmatprep.mubr.bf16.mxu0 0
    %3375 = vmatmul.mubr.bf16.gmra.mrb[0].mxu0 %v3321
    %v3376 = vpop.f32.mrb[0].mxu0
    %v3377 = vadd.f32 0.0, %v3376
    %v3378 = vpop.f32.mrb[0].mxu0
    %v3379 = vpop.f32.mrb[0].mxu0
    %v3380 = vadd.f32 0.0, %v3379
    %v3381 = vpop.f32.mrb[0].mxu0
    %3382 = vmatprep.mubr.bf16.mxu0 0
    %3383 = vmatmul.mubr.bf16.gmra.mrb[0].mxu0 %v3324
    %v3384 = vpop.f32.mrb[0].mxu0
    %v3385 = vadd.f32 0.0, %v3384
    %v3386 = vpop.f32.mrb[0].mxu0
    %v3387 = vpop.f32.mrb[0].mxu0
    %v3388 = vadd.f32 0.0, %v3387
    %v3389 = vpop.f32.mrb[0].mxu0
    %3390 = vdwg.mxu0
    %3391 = vrot.lane.b32.xlu0 %v1461, 64
    %v3392 = vpop.permute.xlu0 %3391
    %3393 = vrot.lane.b32.xlu0 %v1462, 64
    %v3394 = vpop.permute.xlu0 %3393
    %3395 = vrot.lane.b32.xlu0 %v1463, 64
    %v3396 = vpop.permute.xlu0 %3395
    %3397 = vrot.lane.b32.xlu0 %v1464, 64
    %v3398 = vpop.permute.xlu0 %3397
    %v3404 = vsel %vm1694, %v3298, 0
    %v3407 = vsel %vm1694, %v3299, 0
    %v3410 = vsel %vm1694, %v3300, 0
    %v3413 = vsel %vm1694, %v3301, 0
    %3415 = vmatprep.subr.bf16.mxu0 0
    %3416 = vmatpush1.bf16.msra.mxu0 %v3392
    %3417 = vmatprep.subr.bf16.mxu0 0
    %3418 = vmatpush1.bf16.msra.mxu0 %v3394
    %3419 = vmatprep.subr.bf16.mxu0 0
    %3420 = vmatpush1.bf16.msra.mxu0 %v3396
    %3421 = vmatprep.subr.bf16.mxu0 0
    %3422 = vmatpush1.bf16.msra.mxu0 %v3398
    %3423 = vmatprep.subr.bf16.mxu0 0
    %3424 = vmatpush1.bf16.msra.mxu0 0
    %3425 = vmatprep.subr.bf16.mxu0 0
    %3426 = vmatpush1.bf16.msra.mxu0 0
    %3427 = vmatprep.subr.bf16.mxu0 0
    %3428 = vmatpush1.bf16.msra.mxu0 0
    %3429 = vmatprep.subr.bf16.mxu0 0
    %3430 = vmatpush1.bf16.msra.mxu0 0
    %3431 = vmatprep.subr.bf16.mxu0 0
    %3432 = vmatpush1.bf16.msra.mxu0 0
    %3433 = vmatprep.subr.bf16.mxu0 0
    %3434 = vmatpush1.bf16.msra.mxu0 0
    %3435 = vmatprep.subr.bf16.mxu0 0
    %3436 = vmatpush1.bf16.msra.mxu0 0
    %3437 = vmatprep.subr.bf16.mxu0 0
    %3438 = vmatpush1.bf16.msra.mxu0 0
    %3439 = vmatprep.subr.bf16.mxu0 0
    %3440 = vmatpush1.bf16.msra.mxu0 0
    %3441 = vmatprep.subr.bf16.mxu0 0
    %3442 = vmatpush1.bf16.msra.mxu0 0
    %3443 = vmatprep.subr.bf16.mxu0 0
    %3444 = vmatpush1.bf16.msra.mxu0 0
    %3445 = vmatprep.subr.bf16.mxu0 0
    %3446 = vmatpush1.bf16.msra.mxu0 0
    %3447 = vmatprep.mubr.bf16.mxu0 0
    %3448 = vmatmul.mubr.bf16.gmra.mrb[0].mxu0 %v3404
    %v3449 = vpop.f32.mrb[0].mxu0
    %v3450 = vadd.f32 0.0, %v3449
    %v3451 = vpop.f32.mrb[0].mxu0
    %v3452 = vpop.f32.mrb[0].mxu0
    %v3453 = vadd.f32 0.0, %v3452
    %v3454 = vpop.f32.mrb[0].mxu0
    %3455 = vmatprep.mubr.bf16.mxu0 0
    %3456 = vmatmul.mubr.bf16.gmra.mrb[0].mxu0 %v3407
    %v3457 = vpop.f32.mrb[0].mxu0
    %v3458 = vadd.f32 0.0, %v3457
    %v3459 = vpop.f32.mrb[0].mxu0
    %v3460 = vpop.f32.mrb[0].mxu0
    %v3461 = vadd.f32 0.0, %v3460
    %v3462 = vpop.f32.mrb[0].mxu0
    %3463 = vmatprep.mubr.bf16.mxu0 0
    %3464 = vmatmul.mubr.bf16.gmra.mrb[0].mxu0 %v3410
    %v3465 = vpop.f32.mrb[0].mxu0
    %v3466 = vadd.f32 0.0, %v3465
    %v3467 = vpop.f32.mrb[0].mxu0
    %v3468 = vpop.f32.mrb[0].mxu0
    %v3469 = vadd.f32 0.0, %v3468
    %v3470 = vpop.f32.mrb[0].mxu0
    %3471 = vmatprep.mubr.bf16.mxu0 0
    %3472 = vmatmul.mubr.bf16.gmra.mrb[0].mxu0 %v3413
    %v3473 = vpop.f32.mrb[0].mxu0
    %v3474 = vadd.f32 0.0, %v3473
    %v3475 = vpop.f32.mrb[0].mxu0
    %v3476 = vpop.f32.mrb[0].mxu0
    %v3477 = vadd.f32 0.0, %v3476
    %v3478 = vpop.f32.mrb[0].mxu0
    %3479 = vdwg.mxu0
    %v3480 = vmul.f32 %v3361, %v3361
    %v3481 = vmul.f32 %v3364, %v3364
    %v3482 = vmul.f32 %v3369, %v3369
    %v3483 = vmul.f32 %v3372, %v3372
    %v3484 = vmul.f32 %v3377, %v3377
    %v3485 = vmul.f32 %v3380, %v3380
    %v3486 = vmul.f32 %v3385, %v3385
    %v3487 = vmul.f32 %v3388, %v3388
    %v3488 = vmul.f32 %v3450, %v3450
    %v3489 = vmul.f32 %v3453, %v3453
    %v3490 = vmul.f32 %v3458, %v3458
    %v3491 = vmul.f32 %v3461, %v3461
    %v3492 = vmul.f32 %v3466, %v3466
    %v3493 = vmul.f32 %v3469, %v3469
    %v3494 = vmul.f32 %v3474, %v3474
    %v3495 = vmul.f32 %v3477, %v3477
    %v3496 = vsel %vm1499, %v3480, 0.0
    %3497 = vadd.xlane.f32.xlu0 %v3496
    %v3498 = vpop.xlane.xlu0 %3497
    %v3499 = vsel %vm1499, %v3481, 0.0
    %3500 = vadd.xlane.f32.xlu0 %v3499
    %v3501 = vpop.xlane.xlu0 %3500
    %v3502 = vsel %vm1499, %v3482, 0.0
    %3503 = vadd.xlane.f32.xlu0 %v3502
    %v3504 = vpop.xlane.xlu0 %3503
    %v3505 = vsel %vm1499, %v3483, 0.0
    %3506 = vadd.xlane.f32.xlu0 %v3505
    %v3507 = vpop.xlane.xlu0 %3506
    %v3508 = vsel %vm1499, %v3484, 0.0
    %3509 = vadd.xlane.f32.xlu0 %v3508
    %v3510 = vpop.xlane.xlu0 %3509
    %v3511 = vsel %vm1499, %v3485, 0.0
    %3512 = vadd.xlane.f32.xlu0 %v3511
    %v3513 = vpop.xlane.xlu0 %3512
    %v3514 = vsel %vm1499, %v3486, 0.0
    %3515 = vadd.xlane.f32.xlu0 %v3514
    %v3516 = vpop.xlane.xlu0 %3515
    %v3517 = vsel %vm1499, %v3487, 0.0
    %3518 = vadd.xlane.f32.xlu0 %v3517
    %v3519 = vpop.xlane.xlu0 %3518
    %v3520 = vsel %vm1499, %v3488, 0.0
    %3521 = vadd.xlane.f32.xlu0 %v3520
    %v3522 = vpop.xlane.xlu0 %3521
    %v3523 = vsel %vm1499, %v3489, 0.0
    %3524 = vadd.xlane.f32.xlu0 %v3523
    %v3525 = vpop.xlane.xlu0 %3524
    %v3526 = vsel %vm1499, %v3490, 0.0
    %3527 = vadd.xlane.f32.xlu0 %v3526
    %v3528 = vpop.xlane.xlu0 %3527
    %v3529 = vsel %vm1499, %v3491, 0.0
    %3530 = vadd.xlane.f32.xlu0 %v3529
    %v3531 = vpop.xlane.xlu0 %3530
    %v3532 = vsel %vm1499, %v3492, 0.0
    %3533 = vadd.xlane.f32.xlu0 %v3532
    %v3534 = vpop.xlane.xlu0 %3533
    %v3535 = vsel %vm1499, %v3493, 0.0
    %3536 = vadd.xlane.f32.xlu0 %v3535
    %v3537 = vpop.xlane.xlu0 %3536
    %v3538 = vsel %vm1499, %v3494, 0.0
    %3539 = vadd.xlane.f32.xlu0 %v3538
    %v3540 = vpop.xlane.xlu0 %3539
    %v3541 = vsel %vm1499, %v3495, 0.0
    %3542 = vadd.xlane.f32.xlu0 %v3541
    %v3543 = vpop.xlane.xlu0 %3542
    %v3544 = vmul.f32 %v3498, %v2081
    %v3545 = vmul.f32 %v3501, %v2081
    %v3546 = vmul.f32 %v3504, %v2081
    %v3547 = vmul.f32 %v3507, %v2081
    %v3548 = vmul.f32 %v3510, %v2081
    %v3549 = vmul.f32 %v3513, %v2081
    %v3550 = vmul.f32 %v3516, %v2081
    %v3551 = vmul.f32 %v3519, %v2081
    %v3552 = vmul.f32 %v3522, %v2081
    %v3553 = vmul.f32 %v3525, %v2081
    %v3554 = vmul.f32 %v3528, %v2081
    %v3555 = vmul.f32 %v3531, %v2081
    %v3556 = vmul.f32 %v3534, %v2081
    %v3557 = vmul.f32 %v3537, %v2081
    %v3558 = vmul.f32 %v3540, %v2081
    %v3559 = vmul.f32 %v3543, %v2081
    %v3560 = vadd.f32 %v3544, 1e-05
    %v3561 = vadd.f32 %v3545, 1e-05
    %v3562 = vadd.f32 %v3546, 1e-05
    %v3563 = vadd.f32 %v3547, 1e-05
    %v3564 = vadd.f32 %v3548, 1e-05
    %v3565 = vadd.f32 %v3549, 1e-05
    %v3566 = vadd.f32 %v3550, 1e-05
    %v3567 = vadd.f32 %v3551, 1e-05
    %v3568 = vadd.f32 %v3552, 1e-05
    %v3569 = vadd.f32 %v3553, 1e-05
    %v3570 = vadd.f32 %v3554, 1e-05
    %v3571 = vadd.f32 %v3555, 1e-05
    %v3572 = vadd.f32 %v3556, 1e-05
    %v3573 = vadd.f32 %v3557, 1e-05
    %v3574 = vadd.f32 %v3558, 1e-05
    %v3575 = vadd.f32 %v3559, 1e-05
    %v3576 = vrsqrt.pop %v3560
    %v3577 = vrsqrt.pop %v3561
    %v3578 = vrsqrt.pop %v3562
    %v3579 = vrsqrt.pop %v3563
    %v3580 = vrsqrt.pop %v3564
    %v3581 = vrsqrt.pop %v3565
    %v3582 = vrsqrt.pop %v3566
    %v3583 = vrsqrt.pop %v3567
    %v3584 = vrsqrt.pop %v3568
    %v3585 = vrsqrt.pop %v3569
    %v3586 = vrsqrt.pop %v3570
    %v3587 = vrsqrt.pop %v3571
    %v3588 = vrsqrt.pop %v3572
    %v3589 = vrsqrt.pop %v3573
    %v3590 = vrsqrt.pop %v3574
    %v3591 = vrsqrt.pop %v3575
    %v3592 = vmul.f32 %v3361, %v3576
    %v3593 = vmul.f32 %v3364, %v3577
    %v3594 = vmul.f32 %v3369, %v3578
    %v3595 = vmul.f32 %v3372, %v3579
    %v3596 = vmul.f32 %v3377, %v3580
    %v3597 = vmul.f32 %v3380, %v3581
    %v3598 = vmul.f32 %v3385, %v3582
    %v3599 = vmul.f32 %v3388, %v3583
    %v3600 = vmul.f32 %v3450, %v3584
    %v3601 = vmul.f32 %v3453, %v3585
    %v3602 = vmul.f32 %v3458, %v3586
    %v3603 = vmul.f32 %v3461, %v3587
    %v3604 = vmul.f32 %v3466, %v3588
    %v3605 = vmul.f32 %v3469, %v3589
    %v3606 = vmul.f32 %v3474, %v3590
    %v3607 = vmul.f32 %v3477, %v3591
    %v3608 = vmul.f32 %v3592, %v2150
    %v3609 = vmul.f32 %v3593, %v2150
    %v3610 = vmul.f32 %v3594, %v2150
    %v3611 = vmul.f32 %v3595, %v2150
    %v3612 = vmul.f32 %v3596, %v2150
    %v3613 = vmul.f32 %v3597, %v2150
    %v3614 = vmul.f32 %v3598, %v2150
    %v3615 = vmul.f32 %v3599, %v2150
    %v3616 = vmul.f32 %v3600, %v2150
    %v3617 = vmul.f32 %v3601, %v2150
    %v3618 = vmul.f32 %v3602, %v2150
    %v3619 = vmul.f32 %v3603, %v2150
    %v3620 = vmul.f32 %v3604, %v2150
    %v3621 = vmul.f32 %v3605, %v2150
    %v3622 = vmul.f32 %v3606, %v2150
    %v3623 = vmul.f32 %v3607, %v2150
    %3624 = vrot.lane.b32.xlu0 %v1441, 32
    %v3625 = vpop.permute.xlu0 %3624
    %3626 = vrot.lane.b32.xlu0 %v1442, 32
    %v3627 = vpop.permute.xlu0 %3626
    %3628 = vrot.lane.b32.xlu0 %v1443, 32
    %v3629 = vpop.permute.xlu0 %3628
    %3630 = vrot.lane.b32.xlu0 %v1444, 32
    %v3631 = vpop.permute.xlu0 %3630
    %3632 = vrot.lane.b32.xlu0 %v1449, 32
    %v3633 = vpop.permute.xlu0 %3632
    %3634 = vrot.lane.b32.xlu0 %v1450, 32
    %v3635 = vpop.permute.xlu0 %3634
    %3636 = vrot.lane.b32.xlu0 %v1451, 32
    %v3637 = vpop.permute.xlu0 %3636
    %3638 = vrot.lane.b32.xlu0 %v1452, 32
    %v3639 = vpop.permute.xlu0 %3638
    %v3641 = vsel %vm1499, %v3625, 0
    %v3644 = vsel %vm1499, %v3627, 0
    %v3647 = vsel %vm1499, %v3629, 0
    %v3650 = vsel %vm1499, %v3631, 0
    %v3653 = vsel %vm1499, %v3633, 0
    %v3656 = vsel %vm1499, %v3635, 0
    %v3659 = vsel %vm1499, %v3637, 0
    %v3662 = vsel %vm1499, %v3639, 0
    %3664 = vmatprep.subr.bf16.mxu0 0
    %3665 = vmatpush1.bf16.xpose.msra.mxu0 %v3653
    %3666 = vmatprep.subr.bf16.mxu0 0
    %3667 = vmatpush1.bf16.xpose.msra.mxu0 %v3656
    %3668 = vmatprep.subr.bf16.mxu0 0
    %3669 = vmatpush1.bf16.xpose.msra.mxu0 %v3659
    %3670 = vmatprep.subr.bf16.mxu0 0
    %3671 = vmatpush1.bf16.xpose.msra.mxu0 %v3662
    %3672 = vmatprep.subr.bf16.mxu0 0
    %3673 = vmatpush1.bf16.xpose.msra.mxu0 0
    %3674 = vmatprep.subr.bf16.mxu0 0
    %3675 = vmatpush1.bf16.xpose.msra.mxu0 0
    %3676 = vmatprep.subr.bf16.mxu0 0
    %3677 = vmatpush1.bf16.xpose.msra.mxu0 0
    %3678 = vmatprep.subr.bf16.mxu0 0
    %3679 = vmatpush1.bf16.xpose.msra.mxu0 0
    %3680 = vmatprep.subr.bf16.mxu0 0
    %3681 = vmatpush1.bf16.xpose.msra.mxu0 0
    %3682 = vmatprep.subr.bf16.mxu0 0
    %3683 = vmatpush1.bf16.xpose.msra.mxu0 0
    %3684 = vmatprep.subr.bf16.mxu0 0
    %3685 = vmatpush1.bf16.xpose.msra.mxu0 0
    %3686 = vmatprep.subr.bf16.mxu0 0
    %3687 = vmatpush1.bf16.xpose.msra.mxu0 0
    %3688 = vmatprep.subr.bf16.mxu0 0
    %3689 = vmatpush1.bf16.xpose.msra.mxu0 0
    %3690 = vmatprep.subr.bf16.mxu0 0
    %3691 = vmatpush1.bf16.xpose.msra.mxu0 0
    %3692 = vmatprep.subr.bf16.mxu0 0
    %3693 = vmatpush1.bf16.xpose.msra.mxu0 0
    %3694 = vmatprep.subr.bf16.mxu0 0
    %3695 = vmatpush1.bf16.xpose.msra.mxu0 0
    %3696 = vmatprep.mubr.bf16.mxu0 0
    %3697 = vmatmul.mubr.bf16.gmra.mrb[0].mxu0 %v3641
    %v3698 = vpop.f32.mrb[0].mxu0
    %v3699 = vadd.f32 0.0, %v3698
    %v3700 = vpop.f32.mrb[0].mxu0
    %v3701 = vpop.f32.mrb[0].mxu0
    %v3702 = vadd.f32 0.0, %v3701
    %v3703 = vpop.f32.mrb[0].mxu0
    %3704 = vmatprep.mubr.bf16.mxu0 0
    %3705 = vmatmul.mubr.bf16.gmra.mrb[0].mxu0 %v3644
    %v3706 = vpop.f32.mrb[0].mxu0
    %v3707 = vadd.f32 0.0, %v3706
    %v3708 = vpop.f32.mrb[0].mxu0
    %v3709 = vpop.f32.mrb[0].mxu0
    %v3710 = vadd.f32 0.0, %v3709
    %v3711 = vpop.f32.mrb[0].mxu0
    %3712 = vmatprep.mubr.bf16.mxu0 0
    %3713 = vmatmul.mubr.bf16.gmra.mrb[0].mxu0 %v3647
    %v3714 = vpop.f32.mrb[0].mxu0
    %v3715 = vadd.f32 0.0, %v3714
    %v3716 = vpop.f32.mrb[0].mxu0
    %v3717 = vpop.f32.mrb[0].mxu0
    %v3718 = vadd.f32 0.0, %v3717
    %v3719 = vpop.f32.mrb[0].mxu0
    %3720 = vmatprep.mubr.bf16.mxu0 0
    %3721 = vmatmul.mubr.bf16.gmra.mrb[0].mxu0 %v3650
    %v3722 = vpop.f32.mrb[0].mxu0
    %v3723 = vadd.f32 0.0, %v3722
    %v3724 = vpop.f32.mrb[0].mxu0
    %v3725 = vpop.f32.mrb[0].mxu0
    %v3726 = vadd.f32 0.0, %v3725
    %v3727 = vpop.f32.mrb[0].mxu0
    %3728 = vdwg.mxu0
    %3729 = vrot.lane.b32.xlu0 %v1445, 32
    %v3730 = vpop.permute.xlu0 %3729
    %3731 = vrot.lane.b32.xlu0 %v1446, 32
    %v3732 = vpop.permute.xlu0 %3731
    %3733 = vrot.lane.b32.xlu0 %v1447, 32
    %v3734 = vpop.permute.xlu0 %3733
    %3735 = vrot.lane.b32.xlu0 %v1448, 32
    %v3736 = vpop.permute.xlu0 %3735
    %3737 = vrot.lane.b32.xlu0 %v1453, 32
    %v3738 = vpop.permute.xlu0 %3737
    %3739 = vrot.lane.b32.xlu0 %v1454, 32
    %v3740 = vpop.permute.xlu0 %3739
    %3741 = vrot.lane.b32.xlu0 %v1455, 32
    %v3742 = vpop.permute.xlu0 %3741
    %3743 = vrot.lane.b32.xlu0 %v1456, 32
    %v3744 = vpop.permute.xlu0 %3743
    %v3746 = vsel %vm1499, %v3730, 0
    %v3749 = vsel %vm1499, %v3732, 0
    %v3752 = vsel %vm1499, %v3734, 0
    %v3755 = vsel %vm1499, %v3736, 0
    %v3758 = vsel %vm1499, %v3738, 0
    %v3761 = vsel %vm1499, %v3740, 0
    %v3764 = vsel %vm1499, %v3742, 0
    %v3767 = vsel %vm1499, %v3744, 0
    %3769 = vmatprep.subr.bf16.mxu0 0
    %3770 = vmatpush1.bf16.xpose.msra.mxu0 %v3758
    %3771 = vmatprep.subr.bf16.mxu0 0
    %3772 = vmatpush1.bf16.xpose.msra.mxu0 %v3761
    %3773 = vmatprep.subr.bf16.mxu0 0
    %3774 = vmatpush1.bf16.xpose.msra.mxu0 %v3764
    %3775 = vmatprep.subr.bf16.mxu0 0
    %3776 = vmatpush1.bf16.xpose.msra.mxu0 %v3767
    %3777 = vmatprep.subr.bf16.mxu0 0
    %3778 = vmatpush1.bf16.xpose.msra.mxu0 0
    %3779 = vmatprep.subr.bf16.mxu0 0
    %3780 = vmatpush1.bf16.xpose.msra.mxu0 0
    %3781 = vmatprep.subr.bf16.mxu0 0
    %3782 = vmatpush1.bf16.xpose.msra.mxu0 0
    %3783 = vmatprep.subr.bf16.mxu0 0
    %3784 = vmatpush1.bf16.xpose.msra.mxu0 0
    %3785 = vmatprep.subr.bf16.mxu0 0
    %3786 = vmatpush1.bf16.xpose.msra.mxu0 0
    %3787 = vmatprep.subr.bf16.mxu0 0
    %3788 = vmatpush1.bf16.xpose.msra.mxu0 0
    %3789 = vmatprep.subr.bf16.mxu0 0
    %3790 = vmatpush1.bf16.xpose.msra.mxu0 0
    %3791 = vmatprep.subr.bf16.mxu0 0
    %3792 = vmatpush1.bf16.xpose.msra.mxu0 0
    %3793 = vmatprep.subr.bf16.mxu0 0
    %3794 = vmatpush1.bf16.xpose.msra.mxu0 0
    %3795 = vmatprep.subr.bf16.mxu0 0
    %3796 = vmatpush1.bf16.xpose.msra.mxu0 0
    %3797 = vmatprep.subr.bf16.mxu0 0
    %3798 = vmatpush1.bf16.xpose.msra.mxu0 0
    %3799 = vmatprep.subr.bf16.mxu0 0
    %3800 = vmatpush1.bf16.xpose.msra.mxu0 0
    %3801 = vmatprep.mubr.bf16.mxu0 0
    %3802 = vmatmul.mubr.bf16.gmra.mrb[0].mxu0 %v3746
    %v3803 = vpop.f32.mrb[0].mxu0
    %v3804 = vadd.f32 0.0, %v3803
    %v3805 = vpop.f32.mrb[0].mxu0
    %v3806 = vpop.f32.mrb[0].mxu0
    %v3807 = vadd.f32 0.0, %v3806
    %v3808 = vpop.f32.mrb[0].mxu0
    %3809 = vmatprep.mubr.bf16.mxu0 0
    %3810 = vmatmul.mubr.bf16.gmra.mrb[0].mxu0 %v3749
    %v3811 = vpop.f32.mrb[0].mxu0
    %v3812 = vadd.f32 0.0, %v3811
    %v3813 = vpop.f32.mrb[0].mxu0
    %v3814 = vpop.f32.mrb[0].mxu0
    %v3815 = vadd.f32 0.0, %v3814
    %v3816 = vpop.f32.mrb[0].mxu0
    %3817 = vmatprep.mubr.bf16.mxu0 0
    %3818 = vmatmul.mubr.bf16.gmra.mrb[0].mxu0 %v3752
    %v3819 = vpop.f32.mrb[0].mxu0
    %v3820 = vadd.f32 0.0, %v3819
    %v3821 = vpop.f32.mrb[0].mxu0
    %v3822 = vpop.f32.mrb[0].mxu0
    %v3823 = vadd.f32 0.0, %v3822
    %v3824 = vpop.f32.mrb[0].mxu0
    %3825 = vmatprep.mubr.bf16.mxu0 0
    %3826 = vmatmul.mubr.bf16.gmra.mrb[0].mxu0 %v3755
    %v3827 = vpop.f32.mrb[0].mxu0
    %v3828 = vadd.f32 0.0, %v3827
    %v3829 = vpop.f32.mrb[0].mxu0
    %v3830 = vpop.f32.mrb[0].mxu0
    %v3831 = vadd.f32 0.0, %v3830
    %v3832 = vpop.f32.mrb[0].mxu0
    %3833 = vdwg.mxu0
    %v3834 = vand.u32 2147483647, %v3699
    %v3835 = vand.u32 2147483647, %v3702
    %v3836 = vand.u32 2147483647, %v3707
    %v3837 = vand.u32 2147483647, %v3710
    %v3838 = vand.u32 2147483647, %v3715
    %v3839 = vand.u32 2147483647, %v3718
    %v3840 = vand.u32 2147483647, %v3723
    %v3841 = vand.u32 2147483647, %v3726
    %v3842 = vand.u32 2147483647, %v3804
    %v3843 = vand.u32 2147483647, %v3807
    %v3844 = vand.u32 2147483647, %v3812
    %v3845 = vand.u32 2147483647, %v3815
    %v3846 = vand.u32 2147483647, %v3820
    %v3847 = vand.u32 2147483647, %v3823
    %v3848 = vand.u32 2147483647, %v3828
    %v3849 = vand.u32 2147483647, %v3831
    %v3850 = vsel %vm1694, %v3834, 0.0
    %3851 = vadd.xlane.f32.xlu0 %v3850
    %v3852 = vpop.xlane.xlu0 %3851
    %v3853 = vsel %vm1694, %v3835, 0.0
    %3854 = vadd.xlane.f32.xlu0 %v3853
    %v3855 = vpop.xlane.xlu0 %3854
    %v3856 = vsel %vm1694, %v3836, 0.0
    %3857 = vadd.xlane.f32.xlu0 %v3856
    %v3858 = vpop.xlane.xlu0 %3857
    %v3859 = vsel %vm1694, %v3837, 0.0
    %3860 = vadd.xlane.f32.xlu0 %v3859
    %v3861 = vpop.xlane.xlu0 %3860
    %v3862 = vsel %vm1694, %v3838, 0.0
    %3863 = vadd.xlane.f32.xlu0 %v3862
    %v3864 = vpop.xlane.xlu0 %3863
    %v3865 = vsel %vm1694, %v3839, 0.0
    %3866 = vadd.xlane.f32.xlu0 %v3865
    %v3867 = vpop.xlane.xlu0 %3866
    %v3868 = vsel %vm1694, %v3840, 0.0
    %3869 = vadd.xlane.f32.xlu0 %v3868
    %v3870 = vpop.xlane.xlu0 %3869
    %v3871 = vsel %vm1694, %v3841, 0.0
    %3872 = vadd.xlane.f32.xlu0 %v3871
    %v3873 = vpop.xlane.xlu0 %3872
    %v3874 = vsel %vm1694, %v3842, 0.0
    %3875 = vadd.xlane.f32.xlu0 %v3874
    %v3876 = vpop.xlane.xlu0 %3875
    %v3877 = vsel %vm1694, %v3843, 0.0
    %3878 = vadd.xlane.f32.xlu0 %v3877
    %v3879 = vpop.xlane.xlu0 %3878
    %v3880 = vsel %vm1694, %v3844, 0.0
    %3881 = vadd.xlane.f32.xlu0 %v3880
    %v3882 = vpop.xlane.xlu0 %3881
    %v3883 = vsel %vm1694, %v3845, 0.0
    %3884 = vadd.xlane.f32.xlu0 %v3883
    %v3885 = vpop.xlane.xlu0 %3884
    %v3886 = vsel %vm1694, %v3846, 0.0
    %3887 = vadd.xlane.f32.xlu0 %v3886
    %v3888 = vpop.xlane.xlu0 %3887
    %v3889 = vsel %vm1694, %v3847, 0.0
    %3890 = vadd.xlane.f32.xlu0 %v3889
    %v3891 = vpop.xlane.xlu0 %3890
    %v3892 = vsel %vm1694, %v3848, 0.0
    %3893 = vadd.xlane.f32.xlu0 %v3892
    %v3894 = vpop.xlane.xlu0 %3893
    %v3895 = vsel %vm1694, %v3849, 0.0
    %3896 = vadd.xlane.f32.xlu0 %v3895
    %v3897 = vpop.xlane.xlu0 %3896
    %v3898 = vmax.f32 %v3852, 1.0
    %v3899 = vmax.f32 %v3855, 1.0
    %v3900 = vmax.f32 %v3858, 1.0
    %v3901 = vmax.f32 %v3861, 1.0
    %v3902 = vmax.f32 %v3864, 1.0
    %v3903 = vmax.f32 %v3867, 1.0
    %v3904 = vmax.f32 %v3870, 1.0
    %v3905 = vmax.f32 %v3873, 1.0
    %v3906 = vmax.f32 %v3876, 1.0
    %v3907 = vmax.f32 %v3879, 1.0
    %v3908 = vmax.f32 %v3882, 1.0
    %v3909 = vmax.f32 %v3885, 1.0
    %v3910 = vmax.f32 %v3888, 1.0
    %v3911 = vmax.f32 %v3891, 1.0
    %v3912 = vmax.f32 %v3894, 1.0
    %v3913 = vmax.f32 %v3897, 1.0
    %v3914 = vmin.f32 %v3898, 50000.0
    %v3915 = vmin.f32 %v3899, 50000.0
    %v3916 = vmin.f32 %v3900, 50000.0
    %v3917 = vmin.f32 %v3901, 50000.0
    %v3918 = vmin.f32 %v3902, 50000.0
    %v3919 = vmin.f32 %v3903, 50000.0
    %v3920 = vmin.f32 %v3904, 50000.0
    %v3921 = vmin.f32 %v3905, 50000.0
    %v3922 = vmin.f32 %v3906, 50000.0
    %v3923 = vmin.f32 %v3907, 50000.0
    %v3924 = vmin.f32 %v3908, 50000.0
    %v3925 = vmin.f32 %v3909, 50000.0
    %v3926 = vmin.f32 %v3910, 50000.0
    %v3927 = vmin.f32 %v3911, 50000.0
    %v3928 = vmin.f32 %v3912, 50000.0
    %v3929 = vmin.f32 %v3913, 50000.0
    %v3930 = vmul.f32 %v1482, -0.0039138994
    %v3931 = vmul.f32 %v1483, -0.0039138994
    %v3932 = vmul.f32 %v1484, -0.0039138994
    %v3933 = vmul.f32 %v1485, -0.0039138994
    %v3934 = vmul.f32 %v1486, -0.0039138994
    %v3935 = vmul.f32 %v1487, -0.0039138994
    %v3936 = vmul.f32 %v1488, -0.0039138994
    %v3937 = vmul.f32 %v1489, -0.0039138994
    %v3938 = vmul.f32 %v3930, 1.442695
    %v3939 = vpow.pop %v3938
    %v3940 = vmul.f32 %v3931, 1.442695
    %v3941 = vpow.pop %v3940
    %v3942 = vmul.f32 %v3932, 1.442695
    %v3943 = vpow.pop %v3942
    %v3944 = vmul.f32 %v3933, 1.442695
    %v3945 = vpow.pop %v3944
    %v3946 = vmul.f32 %v3934, 1.442695
    %v3947 = vpow.pop %v3946
    %v3948 = vmul.f32 %v3935, 1.442695
    %v3949 = vpow.pop %v3948
    %v3950 = vmul.f32 %v3936, 1.442695
    %v3951 = vpow.pop %v3950
    %v3952 = vmul.f32 %v3937, 1.442695
    %v3953 = vpow.pop %v3952
    %v3954 = vsel %vm1490, %v3939, 0.0
    %v3955 = vsel %vm1491, %v3941, 0.0
    %v3956 = vsel %vm1492, %v3943, 0.0
    %v3957 = vsel %vm1493, %v3945, 0.0
    %v3958 = vsel %vm1494, %v3947, 0.0
    %v3959 = vsel %vm1495, %v3949, 0.0
    %v3960 = vsel %vm1496, %v3951, 0.0
    %v3961 = vsel %vm1497, %v3953, 0.0
    %v3962 = vrcp.pop %v3914
    %v3963 = vmul.f32 %v3699, %v3962
    %v3964 = vrcp.pop %v3915
    %v3965 = vmul.f32 %v3702, %v3964
    %v3966 = vrcp.pop %v3916
    %v3967 = vmul.f32 %v3707, %v3966
    %v3968 = vrcp.pop %v3917
    %v3969 = vmul.f32 %v3710, %v3968
    %v3970 = vrcp.pop %v3918
    %v3971 = vmul.f32 %v3715, %v3970
    %v3972 = vrcp.pop %v3919
    %v3973 = vmul.f32 %v3718, %v3972
    %v3974 = vrcp.pop %v3920
    %v3975 = vmul.f32 %v3723, %v3974
    %v3976 = vrcp.pop %v3921
    %v3977 = vmul.f32 %v3726, %v3976
    %v3978 = vrcp.pop %v3922
    %v3979 = vmul.f32 %v3804, %v3978
    %v3980 = vrcp.pop %v3923
    %v3981 = vmul.f32 %v3807, %v3980
    %v3982 = vrcp.pop %v3924
    %v3983 = vmul.f32 %v3812, %v3982
    %v3984 = vrcp.pop %v3925
    %v3985 = vmul.f32 %v3815, %v3984
    %v3986 = vrcp.pop %v3926
    %v3987 = vmul.f32 %v3820, %v3986
    %v3988 = vrcp.pop %v3927
    %v3989 = vmul.f32 %v3823, %v3988
    %v3990 = vrcp.pop %v3928
    %v3991 = vmul.f32 %v3828, %v3990
    %v3992 = vrcp.pop %v3929
    %v3993 = vmul.f32 %v3831, %v3992
    %v3994 = vadd.f32 %v3963, %v3954
    %v3995 = vadd.f32 %v3965, %v3955
    %v3996 = vadd.f32 %v3967, %v3956
    %v3997 = vadd.f32 %v3969, %v3957
    %v3998 = vadd.f32 %v3971, %v3958
    %v3999 = vadd.f32 %v3973, %v3959
    %v4000 = vadd.f32 %v3975, %v3960
    %v4001 = vadd.f32 %v3977, %v3961
    %v4002 = vadd.f32 %v3979, %v3954
    %v4003 = vadd.f32 %v3981, %v3955
    %v4004 = vadd.f32 %v3983, %v3956
    %v4005 = vadd.f32 %v3985, %v3957
    %v4006 = vadd.f32 %v3987, %v3958
    %v4007 = vadd.f32 %v3989, %v3959
    %v4008 = vadd.f32 %v3991, %v3960
    %v4009 = vadd.f32 %v3993, %v3961
    %v4010 = vpack.c.bf16 %v3995, %v3994
    %v4011 = vpack.c.bf16 %v3997, %v3996
    %v4012 = vpack.c.bf16 %v3999, %v3998
    %v4013 = vpack.c.bf16 %v4001, %v4000
    %v4014 = vpack.c.bf16 %v4003, %v4002
    %v4015 = vpack.c.bf16 %v4005, %v4004
    %v4016 = vpack.c.bf16 %v4007, %v4006
    %v4017 = vpack.c.bf16 %v4009, %v4008
    %4018 = vrot.lane.b32.xlu0 %v1457, 32
    %v4019 = vpop.permute.xlu0 %4018
    %4020 = vrot.lane.b32.xlu0 %v1458, 32
    %v4021 = vpop.permute.xlu0 %4020
    %4022 = vrot.lane.b32.xlu0 %v1459, 32
    %v4023 = vpop.permute.xlu0 %4022
    %4024 = vrot.lane.b32.xlu0 %v1460, 32
    %v4025 = vpop.permute.xlu0 %4024
    %v4031 = vsel %vm1694, %v4010, 0
    %v4034 = vsel %vm1694, %v4011, 0
    %v4037 = vsel %vm1694, %v4012, 0
    %v4040 = vsel %vm1694, %v4013, 0
    %4042 = vmatprep.subr.bf16.mxu0 0
    %4043 = vmatpush1.bf16.msra.mxu0 %v4019
    %4044 = vmatprep.subr.bf16.mxu0 0
    %4045 = vmatpush1.bf16.msra.mxu0 %v4021
    %4046 = vmatprep.subr.bf16.mxu0 0
    %4047 = vmatpush1.bf16.msra.mxu0 %v4023
    %4048 = vmatprep.subr.bf16.mxu0 0
    %4049 = vmatpush1.bf16.msra.mxu0 %v4025
    %4050 = vmatprep.subr.bf16.mxu0 0
    %4051 = vmatpush1.bf16.msra.mxu0 0
    %4052 = vmatprep.subr.bf16.mxu0 0
    %4053 = vmatpush1.bf16.msra.mxu0 0
    %4054 = vmatprep.subr.bf16.mxu0 0
    %4055 = vmatpush1.bf16.msra.mxu0 0
    %4056 = vmatprep.subr.bf16.mxu0 0
    %4057 = vmatpush1.bf16.msra.mxu0 0
    %4058 = vmatprep.subr.bf16.mxu0 0
    %4059 = vmatpush1.bf16.msra.mxu0 0
    %4060 = vmatprep.subr.bf16.mxu0 0
    %4061 = vmatpush1.bf16.msra.mxu0 0
    %4062 = vmatprep.subr.bf16.mxu0 0
    %4063 = vmatpush1.bf16.msra.mxu0 0
    %4064 = vmatprep.subr.bf16.mxu0 0
    %4065 = vmatpush1.bf16.msra.mxu0 0
    %4066 = vmatprep.subr.bf16.mxu0 0
    %4067 = vmatpush1.bf16.msra.mxu0 0
    %4068 = vmatprep.subr.bf16.mxu0 0
    %4069 = vmatpush1.bf16.msra.mxu0 0
    %4070 = vmatprep.subr.bf16.mxu0 0
    %4071 = vmatpush1.bf16.msra.mxu0 0
    %4072 = vmatprep.subr.bf16.mxu0 0
    %4073 = vmatpush1.bf16.msra.mxu0 0
    %4074 = vmatprep.mubr.bf16.mxu0 0
    %4075 = vmatmul.mubr.bf16.gmra.mrb[0].mxu0 %v4031
    %v4076 = vpop.f32.mrb[0].mxu0
    %v4077 = vadd.f32 0.0, %v4076
    %v4078 = vpop.f32.mrb[0].mxu0
    %v4079 = vpop.f32.mrb[0].mxu0
    %v4080 = vadd.f32 0.0, %v4079
    %v4081 = vpop.f32.mrb[0].mxu0
    %4082 = vmatprep.mubr.bf16.mxu0 0
    %4083 = vmatmul.mubr.bf16.gmra.mrb[0].mxu0 %v4034
    %v4084 = vpop.f32.mrb[0].mxu0
    %v4085 = vadd.f32 0.0, %v4084
    %v4086 = vpop.f32.mrb[0].mxu0
    %v4087 = vpop.f32.mrb[0].mxu0
    %v4088 = vadd.f32 0.0, %v4087
    %v4089 = vpop.f32.mrb[0].mxu0
    %4090 = vmatprep.mubr.bf16.mxu0 0
    %4091 = vmatmul.mubr.bf16.gmra.mrb[0].mxu0 %v4037
    %v4092 = vpop.f32.mrb[0].mxu0
    %v4093 = vadd.f32 0.0, %v4092
    %v4094 = vpop.f32.mrb[0].mxu0
    %v4095 = vpop.f32.mrb[0].mxu0
    %v4096 = vadd.f32 0.0, %v4095
    %v4097 = vpop.f32.mrb[0].mxu0
    %4098 = vmatprep.mubr.bf16.mxu0 0
    %4099 = vmatmul.mubr.bf16.gmra.mrb[0].mxu0 %v4040
    %v4100 = vpop.f32.mrb[0].mxu0
    %v4101 = vadd.f32 0.0, %v4100
    %v4102 = vpop.f32.mrb[0].mxu0
    %v4103 = vpop.f32.mrb[0].mxu0
    %v4104 = vadd.f32 0.0, %v4103
    %v4105 = vpop.f32.mrb[0].mxu0
    %4106 = vdwg.mxu0
    %4107 = vrot.lane.b32.xlu0 %v1461, 32
    %v4108 = vpop.permute.xlu0 %4107
    %4109 = vrot.lane.b32.xlu0 %v1462, 32
    %v4110 = vpop.permute.xlu0 %4109
    %4111 = vrot.lane.b32.xlu0 %v1463, 32
    %v4112 = vpop.permute.xlu0 %4111
    %4113 = vrot.lane.b32.xlu0 %v1464, 32
    %v4114 = vpop.permute.xlu0 %4113
    %v4120 = vsel %vm1694, %v4014, 0
    %v4123 = vsel %vm1694, %v4015, 0
    %v4126 = vsel %vm1694, %v4016, 0
    %v4129 = vsel %vm1694, %v4017, 0
    %4131 = vmatprep.subr.bf16.mxu0 0
    %4132 = vmatpush1.bf16.msra.mxu0 %v4108
    %4133 = vmatprep.subr.bf16.mxu0 0
    %4134 = vmatpush1.bf16.msra.mxu0 %v4110
    %4135 = vmatprep.subr.bf16.mxu0 0
    %4136 = vmatpush1.bf16.msra.mxu0 %v4112
    %4137 = vmatprep.subr.bf16.mxu0 0
    %4138 = vmatpush1.bf16.msra.mxu0 %v4114
    %4139 = vmatprep.subr.bf16.mxu0 0
    %4140 = vmatpush1.bf16.msra.mxu0 0
    %4141 = vmatprep.subr.bf16.mxu0 0
    %4142 = vmatpush1.bf16.msra.mxu0 0
    %4143 = vmatprep.subr.bf16.mxu0 0
    %4144 = vmatpush1.bf16.msra.mxu0 0
    %4145 = vmatprep.subr.bf16.mxu0 0
    %4146 = vmatpush1.bf16.msra.mxu0 0
    %4147 = vmatprep.subr.bf16.mxu0 0
    %4148 = vmatpush1.bf16.msra.mxu0 0
    %4149 = vmatprep.subr.bf16.mxu0 0
    %4150 = vmatpush1.bf16.msra.mxu0 0
    %4151 = vmatprep.subr.bf16.mxu0 0
    %4152 = vmatpush1.bf16.msra.mxu0 0
    %4153 = vmatprep.subr.bf16.mxu0 0
    %4154 = vmatpush1.bf16.msra.mxu0 0
    %4155 = vmatprep.subr.bf16.mxu0 0
    %4156 = vmatpush1.bf16.msra.mxu0 0
    %4157 = vmatprep.subr.bf16.mxu0 0
    %4158 = vmatpush1.bf16.msra.mxu0 0
    %4159 = vmatprep.subr.bf16.mxu0 0
    %4160 = vmatpush1.bf16.msra.mxu0 0
    %4161 = vmatprep.subr.bf16.mxu0 0
    %4162 = vmatpush1.bf16.msra.mxu0 0
    %4163 = vmatprep.mubr.bf16.mxu0 0
    %4164 = vmatmul.mubr.bf16.gmra.mrb[0].mxu0 %v4120
    %v4165 = vpop.f32.mrb[0].mxu0
    %v4166 = vadd.f32 0.0, %v4165
    %v4167 = vpop.f32.mrb[0].mxu0
    %v4168 = vpop.f32.mrb[0].mxu0
    %v4169 = vadd.f32 0.0, %v4168
    %v4170 = vpop.f32.mrb[0].mxu0
    %4171 = vmatprep.mubr.bf16.mxu0 0
    %4172 = vmatmul.mubr.bf16.gmra.mrb[0].mxu0 %v4123
    %v4173 = vpop.f32.mrb[0].mxu0
    %v4174 = vadd.f32 0.0, %v4173
    %v4175 = vpop.f32.mrb[0].mxu0
    %v4176 = vpop.f32.mrb[0].mxu0
    %v4177 = vadd.f32 0.0, %v4176
    %v4178 = vpop.f32.mrb[0].mxu0
    %4179 = vmatprep.mubr.bf16.mxu0 0
    %4180 = vmatmul.mubr.bf16.gmra.mrb[0].mxu0 %v4126
    %v4181 = vpop.f32.mrb[0].mxu0
    %v4182 = vadd.f32 0.0, %v4181
    %v4183 = vpop.f32.mrb[0].mxu0
    %v4184 = vpop.f32.mrb[0].mxu0
    %v4185 = vadd.f32 0.0, %v4184
    %v4186 = vpop.f32.mrb[0].mxu0
    %4187 = vmatprep.mubr.bf16.mxu0 0
    %4188 = vmatmul.mubr.bf16.gmra.mrb[0].mxu0 %v4129
    %v4189 = vpop.f32.mrb[0].mxu0
    %v4190 = vadd.f32 0.0, %v4189
    %v4191 = vpop.f32.mrb[0].mxu0
    %v4192 = vpop.f32.mrb[0].mxu0
    %v4193 = vadd.f32 0.0, %v4192
    %v4194 = vpop.f32.mrb[0].mxu0
    %4195 = vdwg.mxu0
    %v4196 = vmul.f32 %v4077, %v4077
    %v4197 = vmul.f32 %v4080, %v4080
    %v4198 = vmul.f32 %v4085, %v4085
    %v4199 = vmul.f32 %v4088, %v4088
    %v4200 = vmul.f32 %v4093, %v4093
    %v4201 = vmul.f32 %v4096, %v4096
    %v4202 = vmul.f32 %v4101, %v4101
    %v4203 = vmul.f32 %v4104, %v4104
    %v4204 = vmul.f32 %v4166, %v4166
    %v4205 = vmul.f32 %v4169, %v4169
    %v4206 = vmul.f32 %v4174, %v4174
    %v4207 = vmul.f32 %v4177, %v4177
    %v4208 = vmul.f32 %v4182, %v4182
    %v4209 = vmul.f32 %v4185, %v4185
    %v4210 = vmul.f32 %v4190, %v4190
    %v4211 = vmul.f32 %v4193, %v4193
    %v4212 = vsel %vm1499, %v4196, 0.0
    %4213 = vadd.xlane.f32.xlu0 %v4212
    %v4214 = vpop.xlane.xlu0 %4213
    %v4215 = vsel %vm1499, %v4197, 0.0
    %4216 = vadd.xlane.f32.xlu0 %v4215
    %v4217 = vpop.xlane.xlu0 %4216
    %v4218 = vsel %vm1499, %v4198, 0.0
    %4219 = vadd.xlane.f32.xlu0 %v4218
    %v4220 = vpop.xlane.xlu0 %4219
    %v4221 = vsel %vm1499, %v4199, 0.0
    %4222 = vadd.xlane.f32.xlu0 %v4221
    %v4223 = vpop.xlane.xlu0 %4222
    %v4224 = vsel %vm1499, %v4200, 0.0
    %4225 = vadd.xlane.f32.xlu0 %v4224
    %v4226 = vpop.xlane.xlu0 %4225
    %v4227 = vsel %vm1499, %v4201, 0.0
    %4228 = vadd.xlane.f32.xlu0 %v4227
    %v4229 = vpop.xlane.xlu0 %4228
    %v4230 = vsel %vm1499, %v4202, 0.0
    %4231 = vadd.xlane.f32.xlu0 %v4230
    %v4232 = vpop.xlane.xlu0 %4231
    %v4233 = vsel %vm1499, %v4203, 0.0
    %4234 = vadd.xlane.f32.xlu0 %v4233
    %v4235 = vpop.xlane.xlu0 %4234
    %v4236 = vsel %vm1499, %v4204, 0.0
    %4237 = vadd.xlane.f32.xlu0 %v4236
    %v4238 = vpop.xlane.xlu0 %4237
    %v4239 = vsel %vm1499, %v4205, 0.0
    %4240 = vadd.xlane.f32.xlu0 %v4239
    %v4241 = vpop.xlane.xlu0 %4240
    %v4242 = vsel %vm1499, %v4206, 0.0
    %4243 = vadd.xlane.f32.xlu0 %v4242
    %v4244 = vpop.xlane.xlu0 %4243
    %v4245 = vsel %vm1499, %v4207, 0.0
    %4246 = vadd.xlane.f32.xlu0 %v4245
    %v4247 = vpop.xlane.xlu0 %4246
    %v4248 = vsel %vm1499, %v4208, 0.0
    %4249 = vadd.xlane.f32.xlu0 %v4248
    %v4250 = vpop.xlane.xlu0 %4249
    %v4251 = vsel %vm1499, %v4209, 0.0
    %4252 = vadd.xlane.f32.xlu0 %v4251
    %v4253 = vpop.xlane.xlu0 %4252
    %v4254 = vsel %vm1499, %v4210, 0.0
    %4255 = vadd.xlane.f32.xlu0 %v4254
    %v4256 = vpop.xlane.xlu0 %4255
    %v4257 = vsel %vm1499, %v4211, 0.0
    %4258 = vadd.xlane.f32.xlu0 %v4257
    %v4259 = vpop.xlane.xlu0 %4258
    %v4260 = vmul.f32 %v4214, %v2081
    %v4261 = vmul.f32 %v4217, %v2081
    %v4262 = vmul.f32 %v4220, %v2081
    %v4263 = vmul.f32 %v4223, %v2081
    %v4264 = vmul.f32 %v4226, %v2081
    %v4265 = vmul.f32 %v4229, %v2081
    %v4266 = vmul.f32 %v4232, %v2081
    %v4267 = vmul.f32 %v4235, %v2081
    %v4268 = vmul.f32 %v4238, %v2081
    %v4269 = vmul.f32 %v4241, %v2081
    %v4270 = vmul.f32 %v4244, %v2081
    %v4271 = vmul.f32 %v4247, %v2081
    %v4272 = vmul.f32 %v4250, %v2081
    %v4273 = vmul.f32 %v4253, %v2081
    %v4274 = vmul.f32 %v4256, %v2081
    %v4275 = vmul.f32 %v4259, %v2081
    %v4276 = vadd.f32 %v4260, 1e-05
    %v4277 = vadd.f32 %v4261, 1e-05
    %v4278 = vadd.f32 %v4262, 1e-05
    %v4279 = vadd.f32 %v4263, 1e-05
    %v4280 = vadd.f32 %v4264, 1e-05
    %v4281 = vadd.f32 %v4265, 1e-05
    %v4282 = vadd.f32 %v4266, 1e-05
    %v4283 = vadd.f32 %v4267, 1e-05
    %v4284 = vadd.f32 %v4268, 1e-05
    %v4285 = vadd.f32 %v4269, 1e-05
    %v4286 = vadd.f32 %v4270, 1e-05
    %v4287 = vadd.f32 %v4271, 1e-05
    %v4288 = vadd.f32 %v4272, 1e-05
    %v4289 = vadd.f32 %v4273, 1e-05
    %v4290 = vadd.f32 %v4274, 1e-05
    %v4291 = vadd.f32 %v4275, 1e-05
    %v4292 = vrsqrt.pop %v4276
    %v4293 = vrsqrt.pop %v4277
    %v4294 = vrsqrt.pop %v4278
    %v4295 = vrsqrt.pop %v4279
    %v4296 = vrsqrt.pop %v4280
    %v4297 = vrsqrt.pop %v4281
    %v4298 = vrsqrt.pop %v4282
    %v4299 = vrsqrt.pop %v4283
    %v4300 = vrsqrt.pop %v4284
    %v4301 = vrsqrt.pop %v4285
    %v4302 = vrsqrt.pop %v4286
    %v4303 = vrsqrt.pop %v4287
    %v4304 = vrsqrt.pop %v4288
    %v4305 = vrsqrt.pop %v4289
    %v4306 = vrsqrt.pop %v4290
    %v4307 = vrsqrt.pop %v4291
    %v4308 = vmul.f32 %v4077, %v4292
    %v4309 = vmul.f32 %v4080, %v4293
    %v4310 = vmul.f32 %v4085, %v4294
    %v4311 = vmul.f32 %v4088, %v4295
    %v4312 = vmul.f32 %v4093, %v4296
    %v4313 = vmul.f32 %v4096, %v4297
    %v4314 = vmul.f32 %v4101, %v4298
    %v4315 = vmul.f32 %v4104, %v4299
    %v4316 = vmul.f32 %v4166, %v4300
    %v4317 = vmul.f32 %v4169, %v4301
    %v4318 = vmul.f32 %v4174, %v4302
    %v4319 = vmul.f32 %v4177, %v4303
    %v4320 = vmul.f32 %v4182, %v4304
    %v4321 = vmul.f32 %v4185, %v4305
    %v4322 = vmul.f32 %v4190, %v4306
    %v4323 = vmul.f32 %v4193, %v4307
    %v4324 = vmul.f32 %v4308, %v2150
    %v4325 = vmul.f32 %v4309, %v2150
    %v4326 = vmul.f32 %v4310, %v2150
    %v4327 = vmul.f32 %v4311, %v2150
    %v4328 = vmul.f32 %v4312, %v2150
    %v4329 = vmul.f32 %v4313, %v2150
    %v4330 = vmul.f32 %v4314, %v2150
    %v4331 = vmul.f32 %v4315, %v2150
    %v4332 = vmul.f32 %v4316, %v2150
    %v4333 = vmul.f32 %v4317, %v2150
    %v4334 = vmul.f32 %v4318, %v2150
    %v4335 = vmul.f32 %v4319, %v2150
    %v4336 = vmul.f32 %v4320, %v2150
    %v4337 = vmul.f32 %v4321, %v2150
    %v4338 = vmul.f32 %v4322, %v2150
    %v4339 = vmul.f32 %v4323, %v2150
    %4356 = vrot.lane.b32.xlu0 %v2892, 32
    %v4357 = vpop.permute.xlu0 %4356
    %4358 = vrot.lane.b32.xlu0 %v2893, 32
    %v4359 = vpop.permute.xlu0 %4358
    %4360 = vrot.lane.b32.xlu0 %v2894, 32
    %v4361 = vpop.permute.xlu0 %4360
    %4362 = vrot.lane.b32.xlu0 %v2895, 32
    %v4363 = vpop.permute.xlu0 %4362
    %4364 = vrot.lane.b32.xlu0 %v2896, 32
    %v4365 = vpop.permute.xlu0 %4364
    %4366 = vrot.lane.b32.xlu0 %v2897, 32
    %v4367 = vpop.permute.xlu0 %4366
    %4368 = vrot.lane.b32.xlu0 %v2898, 32
    %v4369 = vpop.permute.xlu0 %4368
    %4370 = vrot.lane.b32.xlu0 %v2899, 32
    %v4371 = vpop.permute.xlu0 %4370
    %4372 = vrot.lane.b32.xlu0 %v2900, 32
    %v4373 = vpop.permute.xlu0 %4372
    %4374 = vrot.lane.b32.xlu0 %v2901, 32
    %v4375 = vpop.permute.xlu0 %4374
    %4376 = vrot.lane.b32.xlu0 %v2902, 32
    %v4377 = vpop.permute.xlu0 %4376
    %4378 = vrot.lane.b32.xlu0 %v2903, 32
    %v4379 = vpop.permute.xlu0 %4378
    %4380 = vrot.lane.b32.xlu0 %v2904, 32
    %v4381 = vpop.permute.xlu0 %4380
    %4382 = vrot.lane.b32.xlu0 %v2905, 32
    %v4383 = vpop.permute.xlu0 %4382
    %4384 = vrot.lane.b32.xlu0 %v2906, 32
    %v4385 = vpop.permute.xlu0 %4384
    %4386 = vrot.lane.b32.xlu0 %v2907, 32
    %v4387 = vpop.permute.xlu0 %4386
    %4420 = vrot.lane.b32.xlu0 %v3608, 64
    %v4421 = vpop.permute.xlu0 %4420
    %4422 = vrot.lane.b32.xlu0 %v3609, 64
    %v4423 = vpop.permute.xlu0 %4422
    %4424 = vrot.lane.b32.xlu0 %v3610, 64
    %v4425 = vpop.permute.xlu0 %4424
    %4426 = vrot.lane.b32.xlu0 %v3611, 64
    %v4427 = vpop.permute.xlu0 %4426
    %4428 = vrot.lane.b32.xlu0 %v3612, 64
    %v4429 = vpop.permute.xlu0 %4428
    %4430 = vrot.lane.b32.xlu0 %v3613, 64
    %v4431 = vpop.permute.xlu0 %4430
    %4432 = vrot.lane.b32.xlu0 %v3614, 64
    %v4433 = vpop.permute.xlu0 %4432
    %4434 = vrot.lane.b32.xlu0 %v3615, 64
    %v4435 = vpop.permute.xlu0 %4434
    %4436 = vrot.lane.b32.xlu0 %v3616, 64
    %v4437 = vpop.permute.xlu0 %4436
    %4438 = vrot.lane.b32.xlu0 %v3617, 64
    %v4439 = vpop.permute.xlu0 %4438
    %4440 = vrot.lane.b32.xlu0 %v3618, 64
    %v4441 = vpop.permute.xlu0 %4440
    %4442 = vrot.lane.b32.xlu0 %v3619, 64
    %v4443 = vpop.permute.xlu0 %4442
    %4444 = vrot.lane.b32.xlu0 %v3620, 64
    %v4445 = vpop.permute.xlu0 %4444
    %4446 = vrot.lane.b32.xlu0 %v3621, 64
    %v4447 = vpop.permute.xlu0 %4446
    %4448 = vrot.lane.b32.xlu0 %v3622, 64
    %v4449 = vpop.permute.xlu0 %4448
    %4450 = vrot.lane.b32.xlu0 %v3623, 64
    %v4451 = vpop.permute.xlu0 %4450
    %4484 = vrot.lane.b32.xlu0 %v4324, 96
    %v4485 = vpop.permute.xlu0 %4484
    %4486 = vrot.lane.b32.xlu0 %v4325, 96
    %v4487 = vpop.permute.xlu0 %4486
    %4488 = vrot.lane.b32.xlu0 %v4326, 96
    %v4489 = vpop.permute.xlu0 %4488
    %4490 = vrot.lane.b32.xlu0 %v4327, 96
    %v4491 = vpop.permute.xlu0 %4490
    %4492 = vrot.lane.b32.xlu0 %v4328, 96
    %v4493 = vpop.permute.xlu0 %4492
    %4494 = vrot.lane.b32.xlu0 %v4329, 96
    %v4495 = vpop.permute.xlu0 %4494
    %4496 = vrot.lane.b32.xlu0 %v4330, 96
    %v4497 = vpop.permute.xlu0 %4496
    %4498 = vrot.lane.b32.xlu0 %v4331, 96
    %v4499 = vpop.permute.xlu0 %4498
    %4500 = vrot.lane.b32.xlu0 %v4332, 96
    %v4501 = vpop.permute.xlu0 %4500
    %4502 = vrot.lane.b32.xlu0 %v4333, 96
    %v4503 = vpop.permute.xlu0 %4502
    %4504 = vrot.lane.b32.xlu0 %v4334, 96
    %v4505 = vpop.permute.xlu0 %4504
    %4506 = vrot.lane.b32.xlu0 %v4335, 96
    %v4507 = vpop.permute.xlu0 %4506
    %4508 = vrot.lane.b32.xlu0 %v4336, 96
    %v4509 = vpop.permute.xlu0 %4508
    %4510 = vrot.lane.b32.xlu0 %v4337, 96
    %v4511 = vpop.permute.xlu0 %4510
    %4512 = vrot.lane.b32.xlu0 %v4338, 96
    %v4513 = vpop.permute.xlu0 %4512
    %4514 = vrot.lane.b32.xlu0 %v4339, 96
    %v4515 = vpop.permute.xlu0 %4514
    %v4532 = vsel %vm1499, %v2152, %v4357
    %v4533 = vsel %vm1499, %v2153, %v4359
    %v4534 = vsel %vm1499, %v2154, %v4361
    %v4535 = vsel %vm1499, %v2155, %v4363
    %v4536 = vsel %vm1499, %v2156, %v4365
    %v4537 = vsel %vm1499, %v2157, %v4367
    %v4538 = vsel %vm1499, %v2158, %v4369
    %v4539 = vsel %vm1499, %v2159, %v4371
    %v4540 = vsel %vm1499, %v2160, %v4373
    %v4541 = vsel %vm1499, %v2161, %v4375
    %v4542 = vsel %vm1499, %v2162, %v4377
    %v4543 = vsel %vm1499, %v2163, %v4379
    %v4544 = vsel %vm1499, %v2164, %v4381
    %v4545 = vsel %vm1499, %v2165, %v4383
    %v4546 = vsel %vm1499, %v2166, %v4385
    %v4547 = vsel %vm1499, %v2167, %v4387
    %v4548 = vsel %vm1694, %v4532, %v4421
    %v4549 = vsel %vm1694, %v4533, %v4423
    %v4550 = vsel %vm1694, %v4534, %v4425
    %v4551 = vsel %vm1694, %v4535, %v4427
    %v4552 = vsel %vm1694, %v4536, %v4429
    %v4553 = vsel %vm1694, %v4537, %v4431
    %v4554 = vsel %vm1694, %v4538, %v4433
    %v4555 = vsel %vm1694, %v4539, %v4435
    %v4556 = vsel %vm1694, %v4540, %v4437
    %v4557 = vsel %vm1694, %v4541, %v4439
    %v4558 = vsel %vm1694, %v4542, %v4441
    %v4559 = vsel %vm1694, %v4543, %v4443
    %v4560 = vsel %vm1694, %v4544, %v4445
    %v4561 = vsel %vm1694, %v4545, %v4447
    %v4562 = vsel %vm1694, %v4546, %v4449
    %v4563 = vsel %vm1694, %v4547, %v4451
    %vm4564 = vcmask 785408
    %v4565 = vsel %vm4564, %v4548, %v4485
    %v4566 = vsel %vm4564, %v4549, %v4487
    %v4567 = vsel %vm4564, %v4550, %v4489
    %v4568 = vsel %vm4564, %v4551, %v4491
    %v4569 = vsel %vm4564, %v4552, %v4493
    %v4570 = vsel %vm4564, %v4553, %v4495
    %v4571 = vsel %vm4564, %v4554, %v4497
    %v4572 = vsel %vm4564, %v4555, %v4499
    %v4573 = vsel %vm4564, %v4556, %v4501
    %v4574 = vsel %vm4564, %v4557, %v4503
    %v4575 = vsel %vm4564, %v4558, %v4505
    %v4576 = vsel %vm4564, %v4559, %v4507
    %v4577 = vsel %vm4564, %v4560, %v4509
    %v4578 = vsel %vm4564, %v4561, %v4511
    %v4579 = vsel %vm4564, %v4562, %v4513
    %v4580 = vsel %vm4564, %v4563, %v4515
    %v4581 = vmul.f32 %v4565, %v1076
    %v4582 = vmul.f32 %v4566, %v1079
    %v4583 = vmul.f32 %v4567, %v1084
    %v4584 = vmul.f32 %v4568, %v1087
    %v4585 = vmul.f32 %v4569, %v1092
    %v4586 = vmul.f32 %v4570, %v1095
    %v4587 = vmul.f32 %v4571, %v1100
    %v4588 = vmul.f32 %v4572, %v1103
    %v4589 = vmul.f32 %v4573, %v1108
    %v4590 = vmul.f32 %v4574, %v1111
    %v4591 = vmul.f32 %v4575, %v1116
    %v4592 = vmul.f32 %v4576, %v1119
    %v4593 = vmul.f32 %v4577, %v1124
    %v4594 = vmul.f32 %v4578, %v1127
    %v4595 = vmul.f32 %v4579, %v1132
    %v4596 = vmul.f32 %v4580, %v1135
    %v4597 = vpack.c.bf16 %v4582, %v4581
    %v4598 = vpack.c.bf16 %v4584, %v4583
    %v4599 = vpack.c.bf16 %v4586, %v4585
    %v4600 = vpack.c.bf16 %v4588, %v4587
    %v4601 = vpack.c.bf16 %v4590, %v4589
    %v4602 = vpack.c.bf16 %v4592, %v4591
    %v4603 = vpack.c.bf16 %v4594, %v4593
    %v4604 = vpack.c.bf16 %v4596, %v4595
    %v4605 = vld [vmem:[#allocation14] sm:$0xf]
    %v4606 = vld [vmem:[#allocation14 + $0x4] sm:$0xf]
    %v4607 = vld [vmem:[#allocation14 + $0x8] sm:$0xf]
    %v4608 = vld [vmem:[#allocation14 + $0xc] sm:$0xf]
    %v4609 = vld [vmem:[#allocation14 + $0x10] sm:$0xf]
    %v4610 = vld [vmem:[#allocation14 + $0x14] sm:$0xf]
    %v4611 = vld [vmem:[#allocation14 + $0x18] sm:$0xf]
    %v4612 = vld [vmem:[#allocation14 + $0x1c] sm:$0xf]
    %v4613 = vld [vmem:[#allocation14 + $0x20] sm:$0xf]
    %v4614 = vld [vmem:[#allocation14 + $0x24] sm:$0xf]
    %v4615 = vld [vmem:[#allocation14 + $0x28] sm:$0xf]
    %v4616 = vld [vmem:[#allocation14 + $0x2c] sm:$0xf]
    %v4617 = vld [vmem:[#allocation14 + $0x30] sm:$0xf]
    %v4618 = vld [vmem:[#allocation14 + $0x34] sm:$0xf]
    %v4619 = vld [vmem:[#allocation14 + $0x38] sm:$0xf]
    %v4620 = vld [vmem:[#allocation14 + $0x3c] sm:$0xf]
    %v4621 = vld [vmem:[%s14] sm:$0x1]
    %v4623 = vlaneseq
    %v4624 = vshrl.u32 %v4623, 7
    %v4625 = vsub.s32 0, %v4624
    %v4626 = vrot.slane %v4621, %v4625
    %v4644 = vunpack.c.l.b16 %v4605
    %v4645 = vunpack.c.l.b16 %v4606
    %v4646 = vunpack.c.l.b16 %v4607
    %v4647 = vunpack.c.l.b16 %v4608
    %v4648 = vunpack.c.l.b16 %v4609
    %v4649 = vunpack.c.l.b16 %v4610
    %v4650 = vunpack.c.l.b16 %v4611
    %v4651 = vunpack.c.l.b16 %v4612
    %v4652 = vunpack.c.l.b16 %v4613
    %v4653 = vunpack.c.l.b16 %v4614
    %v4654 = vunpack.c.l.b16 %v4615
    %v4655 = vunpack.c.l.b16 %v4616
    %v4656 = vunpack.c.l.b16 %v4617
    %v4657 = vunpack.c.l.b16 %v4618
    %v4658 = vunpack.c.l.b16 %v4619
    %v4659 = vunpack.c.l.b16 %v4620
    %v4660 = vpack.c.b16 %v4645, %v4644
    %v4661 = vpack.c.b16 %v4647, %v4646
    %v4662 = vpack.c.b16 %v4649, %v4648
    %v4663 = vpack.c.b16 %v4651, %v4650
    %v4664 = vpack.c.b16 %v4653, %v4652
    %v4665 = vpack.c.b16 %v4655, %v4654
    %v4666 = vpack.c.b16 %v4657, %v4656
    %v4667 = vpack.c.b16 %v4659, %v4658
    %4676 = vmatprep.subr.bf16.mxu0 0
    %4677 = vmatpush1.bf16.msra.mxu0 %v4660
    %4678 = vmatprep.subr.bf16.mxu0 0
    %4679 = vmatpush1.bf16.msra.mxu0 %v4661
    %4680 = vmatprep.subr.bf16.mxu0 0
    %4681 = vmatpush1.bf16.msra.mxu0 %v4662
    %4682 = vmatprep.subr.bf16.mxu0 0
    %4683 = vmatpush1.bf16.msra.mxu0 %v4663
    %4684 = vmatprep.subr.bf16.mxu0 0
    %4685 = vmatpush1.bf16.msra.mxu0 %v4664
    %4686 = vmatprep.subr.bf16.mxu0 0
    %4687 = vmatpush1.bf16.msra.mxu0 %v4665
    %4688 = vmatprep.subr.bf16.mxu0 0
    %4689 = vmatpush1.bf16.msra.mxu0 %v4666
    %4690 = vmatprep.subr.bf16.mxu0 0
    %4691 = vmatpush1.bf16.msra.mxu0 %v4667
    %4692 = vmatprep.subr.bf16.mxu0 0
    %4693 = vmatpush1.bf16.msra.mxu0 0
    %4694 = vmatprep.subr.bf16.mxu0 0
    %4695 = vmatpush1.bf16.msra.mxu0 0
    %4696 = vmatprep.subr.bf16.mxu0 0
    %4697 = vmatpush1.bf16.msra.mxu0 0
    %4698 = vmatprep.subr.bf16.mxu0 0
    %4699 = vmatpush1.bf16.msra.mxu0 0
    %4700 = vmatprep.subr.bf16.mxu0 0
    %4701 = vmatpush1.bf16.msra.mxu0 0
    %4702 = vmatprep.subr.bf16.mxu0 0
    %4703 = vmatpush1.bf16.msra.mxu0 0
    %4704 = vmatprep.subr.bf16.mxu0 0
    %4705 = vmatpush1.bf16.msra.mxu0 0
    %4706 = vmatprep.subr.bf16.mxu0 0
    %4707 = vmatpush1.bf16.msra.mxu0 0
    %4708 = vmatprep.mubr.bf16.mxu0 0
    %4709 = vmatmul.mubr.bf16.gmra.mrb[0].mxu0 %v4597
    %v4710 = vpop.f32.mrb[0].mxu0
    %v4711 = vadd.f32 %v4626, %v4710
    %v4712 = vpop.f32.mrb[0].mxu0
    %v4713 = vpop.f32.mrb[0].mxu0
    %v4714 = vadd.f32 %v4626, %v4713
    %v4715 = vpop.f32.mrb[0].mxu0
    %4716 = vmatprep.mubr.bf16.mxu0 0
    %4717 = vmatmul.mubr.bf16.gmra.mrb[0].mxu0 %v4598
    %v4718 = vpop.f32.mrb[0].mxu0
    %v4719 = vadd.f32 %v4626, %v4718
    %v4720 = vpop.f32.mrb[0].mxu0
    %v4721 = vpop.f32.mrb[0].mxu0
    %v4722 = vadd.f32 %v4626, %v4721
    %v4723 = vpop.f32.mrb[0].mxu0
    %4724 = vmatprep.mubr.bf16.mxu0 0
    %4725 = vmatmul.mubr.bf16.gmra.mrb[0].mxu0 %v4599
    %v4726 = vpop.f32.mrb[0].mxu0
    %v4727 = vadd.f32 %v4626, %v4726
    %v4728 = vpop.f32.mrb[0].mxu0
    %v4729 = vpop.f32.mrb[0].mxu0
    %v4730 = vadd.f32 %v4626, %v4729
    %v4731 = vpop.f32.mrb[0].mxu0
    %4732 = vmatprep.mubr.bf16.mxu0 0
    %4733 = vmatmul.mubr.bf16.gmra.mrb[0].mxu0 %v4600
    %v4734 = vpop.f32.mrb[0].mxu0
    %v4735 = vadd.f32 %v4626, %v4734
    %v4736 = vpop.f32.mrb[0].mxu0
    %v4737 = vpop.f32.mrb[0].mxu0
    %v4738 = vadd.f32 %v4626, %v4737
    %v4739 = vpop.f32.mrb[0].mxu0
    %4740 = vmatprep.mubr.bf16.mxu0 0
    %4741 = vmatmul.mubr.bf16.gmra.mrb[0].mxu0 %v4601
    %v4742 = vpop.f32.mrb[0].mxu0
    %v4743 = vadd.f32 %v4626, %v4742
    %v4744 = vpop.f32.mrb[0].mxu0
    %v4745 = vpop.f32.mrb[0].mxu0
    %v4746 = vadd.f32 %v4626, %v4745
    %v4747 = vpop.f32.mrb[0].mxu0
    %4748 = vmatprep.mubr.bf16.mxu0 0
    %4749 = vmatmul.mubr.bf16.gmra.mrb[0].mxu0 %v4602
    %v4750 = vpop.f32.mrb[0].mxu0
    %v4751 = vadd.f32 %v4626, %v4750
    %v4752 = vpop.f32.mrb[0].mxu0
    %v4753 = vpop.f32.mrb[0].mxu0
    %v4754 = vadd.f32 %v4626, %v4753
    %v4755 = vpop.f32.mrb[0].mxu0
    %4756 = vmatprep.mubr.bf16.mxu0 0
    %4757 = vmatmul.mubr.bf16.gmra.mrb[0].mxu0 %v4603
    %v4758 = vpop.f32.mrb[0].mxu0
    %v4759 = vadd.f32 %v4626, %v4758
    %v4760 = vpop.f32.mrb[0].mxu0
    %v4761 = vpop.f32.mrb[0].mxu0
    %v4762 = vadd.f32 %v4626, %v4761
    %v4763 = vpop.f32.mrb[0].mxu0
    %4764 = vmatprep.mubr.bf16.mxu0 0
    %4765 = vmatmul.mubr.bf16.gmra.mrb[0].mxu0 %v4604
    %v4766 = vpop.f32.mrb[0].mxu0
    %v4767 = vadd.f32 %v4626, %v4766
    %v4768 = vpop.f32.mrb[0].mxu0
    %v4769 = vpop.f32.mrb[0].mxu0
    %v4770 = vadd.f32 %v4626, %v4769
    %v4771 = vpop.f32.mrb[0].mxu0
    %4772 = vdwg.mxu0
    %v4773 = vadd.f32 %v219, %v4711
    %v4774 = vadd.f32 %v220, %v4714
    %v4775 = vadd.f32 %v221, %v4719
    %v4776 = vadd.f32 %v222, %v4722
    %v4777 = vadd.f32 %v223, %v4727
    %v4778 = vadd.f32 %v224, %v4730
    %v4779 = vadd.f32 %v225, %v4735
    %v4780 = vadd.f32 %v226, %v4738
    %v4781 = vadd.f32 %v227, %v4743
    %v4782 = vadd.f32 %v228, %v4746
    %v4783 = vadd.f32 %v229, %v4751
    %v4784 = vadd.f32 %v230, %v4754
    %v4785 = vadd.f32 %v231, %v4759
    %v4786 = vadd.f32 %v232, %v4762
    %v4787 = vadd.f32 %v233, %v4767
    %v4788 = vadd.f32 %v234, %v4770
    %v4789 = vld [vmem:[%s16] sm:$0x1]
    %v4790 = vld [vmem:[%s17] sm:$0x1]
    %4791 = vadd.xlane.f32.xlu0 %v4773
    %v4792 = vpop.xlane.xlu0 %4791
    %4793 = vadd.xlane.f32.xlu0 %v4774
    %v4794 = vpop.xlane.xlu0 %4793
    %4795 = vadd.xlane.f32.xlu0 %v4775
    %v4796 = vpop.xlane.xlu0 %4795
    %4797 = vadd.xlane.f32.xlu0 %v4776
    %v4798 = vpop.xlane.xlu0 %4797
    %4799 = vadd.xlane.f32.xlu0 %v4777
    %v4800 = vpop.xlane.xlu0 %4799
    %4801 = vadd.xlane.f32.xlu0 %v4778
    %v4802 = vpop.xlane.xlu0 %4801
    %4803 = vadd.xlane.f32.xlu0 %v4779
    %v4804 = vpop.xlane.xlu0 %4803
    %4805 = vadd.xlane.f32.xlu0 %v4780
    %v4806 = vpop.xlane.xlu0 %4805
    %4807 = vadd.xlane.f32.xlu0 %v4781
    %v4808 = vpop.xlane.xlu0 %4807
    %4809 = vadd.xlane.f32.xlu0 %v4782
    %v4810 = vpop.xlane.xlu0 %4809
    %4811 = vadd.xlane.f32.xlu0 %v4783
    %v4812 = vpop.xlane.xlu0 %4811
    %4813 = vadd.xlane.f32.xlu0 %v4784
    %v4814 = vpop.xlane.xlu0 %4813
    %4815 = vadd.xlane.f32.xlu0 %v4785
    %v4816 = vpop.xlane.xlu0 %4815
    %4817 = vadd.xlane.f32.xlu0 %v4786
    %v4818 = vpop.xlane.xlu0 %4817
    %4819 = vadd.xlane.f32.xlu0 %v4787
    %v4820 = vpop.xlane.xlu0 %4819
    %4821 = vadd.xlane.f32.xlu0 %v4788
    %v4822 = vpop.xlane.xlu0 %4821
    %v4823 = vmul.f32 %v4792, %v269
    %v4824 = vmul.f32 %v4794, %v269
    %v4825 = vmul.f32 %v4796, %v269
    %v4826 = vmul.f32 %v4798, %v269
    %v4827 = vmul.f32 %v4800, %v269
    %v4828 = vmul.f32 %v4802, %v269
    %v4829 = vmul.f32 %v4804, %v269
    %v4830 = vmul.f32 %v4806, %v269
    %v4831 = vmul.f32 %v4808, %v269
    %v4832 = vmul.f32 %v4810, %v269
    %v4833 = vmul.f32 %v4812, %v269
    %v4834 = vmul.f32 %v4814, %v269
    %v4835 = vmul.f32 %v4816, %v269
    %v4836 = vmul.f32 %v4818, %v269
    %v4837 = vmul.f32 %v4820, %v269
    %v4838 = vmul.f32 %v4822, %v269
    %v4839 = vsub.f32 %v4773, %v4823
    %v4840 = vsub.f32 %v4774, %v4824
    %v4841 = vsub.f32 %v4775, %v4825
    %v4842 = vsub.f32 %v4776, %v4826
    %v4843 = vsub.f32 %v4777, %v4827
    %v4844 = vsub.f32 %v4778, %v4828
    %v4845 = vsub.f32 %v4779, %v4829
    %v4846 = vsub.f32 %v4780, %v4830
    %v4847 = vsub.f32 %v4781, %v4831
    %v4848 = vsub.f32 %v4782, %v4832
    %v4849 = vsub.f32 %v4783, %v4833
    %v4850 = vsub.f32 %v4784, %v4834
    %v4851 = vsub.f32 %v4785, %v4835
    %v4852 = vsub.f32 %v4786, %v4836
    %v4853 = vsub.f32 %v4787, %v4837
    %v4854 = vsub.f32 %v4788, %v4838
    %v4855 = vmul.f32 %v4839, %v4839
    %v4856 = vmul.f32 %v4840, %v4840
    %v4857 = vmul.f32 %v4841, %v4841
    %v4858 = vmul.f32 %v4842, %v4842
    %v4859 = vmul.f32 %v4843, %v4843
    %v4860 = vmul.f32 %v4844, %v4844
    %v4861 = vmul.f32 %v4845, %v4845
    %v4862 = vmul.f32 %v4846, %v4846
    %v4863 = vmul.f32 %v4847, %v4847
    %v4864 = vmul.f32 %v4848, %v4848
    %v4865 = vmul.f32 %v4849, %v4849
    %v4866 = vmul.f32 %v4850, %v4850
    %v4867 = vmul.f32 %v4851, %v4851
    %v4868 = vmul.f32 %v4852, %v4852
    %v4869 = vmul.f32 %v4853, %v4853
    %v4870 = vmul.f32 %v4854, %v4854
    %4871 = vadd.xlane.f32.xlu0 %v4855
    %v4872 = vpop.xlane.xlu0 %4871
    %4873 = vadd.xlane.f32.xlu0 %v4856
    %v4874 = vpop.xlane.xlu0 %4873
    %4875 = vadd.xlane.f32.xlu0 %v4857
    %v4876 = vpop.xlane.xlu0 %4875
    %4877 = vadd.xlane.f32.xlu0 %v4858
    %v4878 = vpop.xlane.xlu0 %4877
    %4879 = vadd.xlane.f32.xlu0 %v4859
    %v4880 = vpop.xlane.xlu0 %4879
    %4881 = vadd.xlane.f32.xlu0 %v4860
    %v4882 = vpop.xlane.xlu0 %4881
    %4883 = vadd.xlane.f32.xlu0 %v4861
    %v4884 = vpop.xlane.xlu0 %4883
    %4885 = vadd.xlane.f32.xlu0 %v4862
    %v4886 = vpop.xlane.xlu0 %4885
    %4887 = vadd.xlane.f32.xlu0 %v4863
    %v4888 = vpop.xlane.xlu0 %4887
    %4889 = vadd.xlane.f32.xlu0 %v4864
    %v4890 = vpop.xlane.xlu0 %4889
    %4891 = vadd.xlane.f32.xlu0 %v4865
    %v4892 = vpop.xlane.xlu0 %4891
    %4893 = vadd.xlane.f32.xlu0 %v4866
    %v4894 = vpop.xlane.xlu0 %4893
    %4895 = vadd.xlane.f32.xlu0 %v4867
    %v4896 = vpop.xlane.xlu0 %4895
    %4897 = vadd.xlane.f32.xlu0 %v4868
    %v4898 = vpop.xlane.xlu0 %4897
    %4899 = vadd.xlane.f32.xlu0 %v4869
    %v4900 = vpop.xlane.xlu0 %4899
    %4901 = vadd.xlane.f32.xlu0 %v4870
    %v4902 = vpop.xlane.xlu0 %4901
    %v4903 = vmul.f32 %v4872, %v269
    %v4904 = vmul.f32 %v4874, %v269
    %v4905 = vmul.f32 %v4876, %v269
    %v4906 = vmul.f32 %v4878, %v269
    %v4907 = vmul.f32 %v4880, %v269
    %v4908 = vmul.f32 %v4882, %v269
    %v4909 = vmul.f32 %v4884, %v269
    %v4910 = vmul.f32 %v4886, %v269
    %v4911 = vmul.f32 %v4888, %v269
    %v4912 = vmul.f32 %v4890, %v269
    %v4913 = vmul.f32 %v4892, %v269
    %v4914 = vmul.f32 %v4894, %v269
    %v4915 = vmul.f32 %v4896, %v269
    %v4916 = vmul.f32 %v4898, %v269
    %v4917 = vmul.f32 %v4900, %v269
    %v4918 = vmul.f32 %v4902, %v269
    %v4919 = vadd.f32 %v4903, 1e-05
    %v4920 = vadd.f32 %v4904, 1e-05
    %v4921 = vadd.f32 %v4905, 1e-05
    %v4922 = vadd.f32 %v4906, 1e-05
    %v4923 = vadd.f32 %v4907, 1e-05
    %v4924 = vadd.f32 %v4908, 1e-05
    %v4925 = vadd.f32 %v4909, 1e-05
    %v4926 = vadd.f32 %v4910, 1e-05
    %v4927 = vadd.f32 %v4911, 1e-05
    %v4928 = vadd.f32 %v4912, 1e-05
    %v4929 = vadd.f32 %v4913, 1e-05
    %v4930 = vadd.f32 %v4914, 1e-05
    %v4931 = vadd.f32 %v4915, 1e-05
    %v4932 = vadd.f32 %v4916, 1e-05
    %v4933 = vadd.f32 %v4917, 1e-05
    %v4934 = vadd.f32 %v4918, 1e-05
    %v4935 = vrsqrt.pop %v4919
    %v4936 = vrsqrt.pop %v4920
    %v4937 = vrsqrt.pop %v4921
    %v4938 = vrsqrt.pop %v4922
    %v4939 = vrsqrt.pop %v4923
    %v4940 = vrsqrt.pop %v4924
    %v4941 = vrsqrt.pop %v4925
    %v4942 = vrsqrt.pop %v4926
    %v4943 = vrsqrt.pop %v4927
    %v4944 = vrsqrt.pop %v4928
    %v4945 = vrsqrt.pop %v4929
    %v4946 = vrsqrt.pop %v4930
    %v4947 = vrsqrt.pop %v4931
    %v4948 = vrsqrt.pop %v4932
    %v4949 = vrsqrt.pop %v4933
    %v4950 = vrsqrt.pop %v4934
    %v4951 = vmul.f32 %v4839, %v4935
    %v4952 = vmul.f32 %v4840, %v4936
    %v4953 = vmul.f32 %v4841, %v4937
    %v4954 = vmul.f32 %v4842, %v4938
    %v4955 = vmul.f32 %v4843, %v4939
    %v4956 = vmul.f32 %v4844, %v4940
    %v4957 = vmul.f32 %v4845, %v4941
    %v4958 = vmul.f32 %v4846, %v4942
    %v4959 = vmul.f32 %v4847, %v4943
    %v4960 = vmul.f32 %v4848, %v4944
    %v4961 = vmul.f32 %v4849, %v4945
    %v4962 = vmul.f32 %v4850, %v4946
    %v4963 = vmul.f32 %v4851, %v4947
    %v4964 = vmul.f32 %v4852, %v4948
    %v4965 = vmul.f32 %v4853, %v4949
    %v4966 = vmul.f32 %v4854, %v4950
    %v4968 = vlaneseq
    %v4969 = vshrl.u32 %v4968, 7
    %v4970 = vsub.s32 0, %v4969
    %v4971 = vrot.slane %v4789, %v4970
    %v4973 = vmul.f32 %v4951, %v4971
    %v4974 = vmul.f32 %v4952, %v4971
    %v4975 = vmul.f32 %v4953, %v4971
    %v4976 = vmul.f32 %v4954, %v4971
    %v4977 = vmul.f32 %v4955, %v4971
    %v4978 = vmul.f32 %v4956, %v4971
    %v4979 = vmul.f32 %v4957, %v4971
    %v4980 = vmul.f32 %v4958, %v4971
    %v4981 = vmul.f32 %v4959, %v4971
    %v4982 = vmul.f32 %v4960, %v4971
    %v4983 = vmul.f32 %v4961, %v4971
    %v4984 = vmul.f32 %v4962, %v4971
    %v4985 = vmul.f32 %v4963, %v4971
    %v4986 = vmul.f32 %v4964, %v4971
    %v4987 = vmul.f32 %v4965, %v4971
    %v4988 = vmul.f32 %v4966, %v4971
    %v4990 = vlaneseq
    %v4991 = vshrl.u32 %v4990, 7
    %v4992 = vsub.s32 0, %v4991
    %v4993 = vrot.slane %v4790, %v4992
    %v4995 = vadd.f32 %v4973, %v4993
    %v4996 = vadd.f32 %v4974, %v4993
    %v4997 = vadd.f32 %v4975, %v4993
    %v4998 = vadd.f32 %v4976, %v4993
    %v4999 = vadd.f32 %v4977, %v4993
    %v5000 = vadd.f32 %v4978, %v4993
    %v5001 = vadd.f32 %v4979, %v4993
    %v5002 = vadd.f32 %v4980, %v4993
    %v5003 = vadd.f32 %v4981, %v4993
    %v5004 = vadd.f32 %v4982, %v4993
    %v5005 = vadd.f32 %v4983, %v4993
    %v5006 = vadd.f32 %v4984, %v4993
    %v5007 = vadd.f32 %v4985, %v4993
    %v5008 = vadd.f32 %v4986, %v4993
    %v5009 = vadd.f32 %v4987, %v4993
    %v5010 = vadd.f32 %v4988, %v4993
    %v5011 = vpack.c.bf16 %v4996, %v4995
    %v5012 = vpack.c.bf16 %v4998, %v4997
    %v5013 = vpack.c.bf16 %v5000, %v4999
    %v5014 = vpack.c.bf16 %v5002, %v5001
    %v5015 = vpack.c.bf16 %v5004, %v5003
    %v5016 = vpack.c.bf16 %v5006, %v5005
    %v5017 = vpack.c.bf16 %v5008, %v5007
    %v5018 = vpack.c.bf16 %v5010, %v5009
    %v5019 = vld [vmem:[#allocation16] sm:$0xff]
    %v5020 = vld [vmem:[#allocation16 + $0x8] sm:$0xf]
    %v5021 = vld [vmem:[#allocation16 + $0xc] sm:$0xff]
    %v5022 = vld [vmem:[#allocation16 + $0x14] sm:$0xf]
    %v5023 = vld [vmem:[#allocation16 + $0x18] sm:$0xff]
    %v5024 = vld [vmem:[#allocation16 + $0x20] sm:$0xf]
    %v5025 = vld [vmem:[#allocation16 + $0x24] sm:$0xff]
    %v5026 = vld [vmem:[#allocation16 + $0x2c] sm:$0xf]
    %v5027 = vld [vmem:[#allocation16 + $0x30] sm:$0xff]
    %v5028 = vld [vmem:[#allocation16 + $0x38] sm:$0xf]
    %v5029 = vld [vmem:[#allocation16 + $0x3c] sm:$0xff]
    %v5030 = vld [vmem:[#allocation16 + $0x44] sm:$0xf]
    %v5031 = vld [vmem:[#allocation16 + $0x48] sm:$0xff]
    %v5032 = vld [vmem:[#allocation16 + $0x50] sm:$0xf]
    %v5033 = vld [vmem:[#allocation16 + $0x54] sm:$0xff]
    %v5034 = vld [vmem:[#allocation16 + $0x5c] sm:$0xf]
    %v5035 = vld [vmem:[#allocation16 + $0x60] sm:$0xff]
    %v5036 = vld [vmem:[#allocation16 + $0x68] sm:$0xf]
    %v5037 = vld [vmem:[#allocation16 + $0x6c] sm:$0xff]
    %v5038 = vld [vmem:[#allocation16 + $0x74] sm:$0xf]
    %v5039 = vld [vmem:[#allocation16 + $0x78] sm:$0xff]
    %v5040 = vld [vmem:[#allocation16 + $0x80] sm:$0xf]
    %v5041 = vld [vmem:[#allocation16 + $0x84] sm:$0xff]
    %v5042 = vld [vmem:[#allocation16 + $0x8c] sm:$0xf]
    %v5043 = vld [vmem:[#allocation16 + $0x90] sm:$0xff]
    %v5044 = vld [vmem:[#allocation16 + $0x98] sm:$0xf]
    %v5045 = vld [vmem:[#allocation16 + $0x9c] sm:$0xff]
    %v5046 = vld [vmem:[#allocation16 + $0xa4] sm:$0xf]
    %v5047 = vld [vmem:[#allocation16 + $0xa8] sm:$0xff]
    %v5048 = vld [vmem:[#allocation16 + $0xb0] sm:$0xf]
    %v5049 = vld [vmem:[#allocation16 + $0xb4] sm:$0xff]
    %v5050 = vld [vmem:[#allocation16 + $0xbc] sm:$0xf]
    %v5083 = vunpack.c.l.b16 %v5019
    %v5084 = vunpack.c.h.b16 %v5019
    %v5085 = vunpack.c.l.b16 %v5020
    %v5086 = vunpack.c.l.b16 %v5021
    %v5087 = vunpack.c.h.b16 %v5021
    %v5088 = vunpack.c.l.b16 %v5022
    %v5089 = vunpack.c.l.b16 %v5023
    %v5090 = vunpack.c.h.b16 %v5023
    %v5091 = vunpack.c.l.b16 %v5024
    %v5092 = vunpack.c.l.b16 %v5025
    %v5093 = vunpack.c.h.b16 %v5025
    %v5094 = vunpack.c.l.b16 %v5026
    %v5095 = vunpack.c.l.b16 %v5027
    %v5096 = vunpack.c.h.b16 %v5027
    %v5097 = vunpack.c.l.b16 %v5028
    %v5098 = vunpack.c.l.b16 %v5029
    %v5099 = vunpack.c.h.b16 %v5029
    %v5100 = vunpack.c.l.b16 %v5030
    %v5101 = vunpack.c.l.b16 %v5031
    %v5102 = vunpack.c.h.b16 %v5031
    %v5103 = vunpack.c.l.b16 %v5032
    %v5104 = vunpack.c.l.b16 %v5033
    %v5105 = vunpack.c.h.b16 %v5033
    %v5106 = vunpack.c.l.b16 %v5034
    %v5107 = vunpack.c.l.b16 %v5035
    %v5108 = vunpack.c.h.b16 %v5035
    %v5109 = vunpack.c.l.b16 %v5036
    %v5110 = vunpack.c.l.b16 %v5037
    %v5111 = vunpack.c.h.b16 %v5037
    %v5112 = vunpack.c.l.b16 %v5038
    %v5113 = vunpack.c.l.b16 %v5039
    %v5114 = vunpack.c.h.b16 %v5039
    %v5115 = vunpack.c.l.b16 %v5040
    %v5116 = vunpack.c.l.b16 %v5041
    %v5117 = vunpack.c.h.b16 %v5041
    %v5118 = vunpack.c.l.b16 %v5042
    %v5119 = vunpack.c.l.b16 %v5043
    %v5120 = vunpack.c.h.b16 %v5043
    %v5121 = vunpack.c.l.b16 %v5044
    %v5122 = vunpack.c.l.b16 %v5045
    %v5123 = vunpack.c.h.b16 %v5045
    %v5124 = vunpack.c.l.b16 %v5046
    %v5125 = vunpack.c.l.b16 %v5047
    %v5126 = vunpack.c.h.b16 %v5047
    %v5127 = vunpack.c.l.b16 %v5048
    %v5128 = vunpack.c.l.b16 %v5049
    %v5129 = vunpack.c.h.b16 %v5049
    %v5130 = vunpack.c.l.b16 %v5050
    %v5131 = vpack.c.b16 %v5086, %v5083
    %v5132 = vpack.c.b16 %v5087, %v5084
    %v5133 = vpack.c.b16 %v5088, %v5085
    %v5134 = vpack.c.b16 %v5092, %v5089
    %v5135 = vpack.c.b16 %v5093, %v5090
    %v5136 = vpack.c.b16 %v5094, %v5091
    %v5137 = vpack.c.b16 %v5098, %v5095
    %v5138 = vpack.c.b16 %v5099, %v5096
    %v5139 = vpack.c.b16 %v5100, %v5097
    %v5140 = vpack.c.b16 %v5104, %v5101
    %v5141 = vpack.c.b16 %v5105, %v5102
    %v5142 = vpack.c.b16 %v5106, %v5103
    %v5143 = vpack.c.b16 %v5110, %v5107
    %v5144 = vpack.c.b16 %v5111, %v5108
    %v5145 = vpack.c.b16 %v5112, %v5109
    %v5146 = vpack.c.b16 %v5116, %v5113
    %v5147 = vpack.c.b16 %v5117, %v5114
    %v5148 = vpack.c.b16 %v5118, %v5115
    %v5149 = vpack.c.b16 %v5122, %v5119
    %v5150 = vpack.c.b16 %v5123, %v5120
    %v5151 = vpack.c.b16 %v5124, %v5121
    %v5152 = vpack.c.b16 %v5128, %v5125
    %v5153 = vpack.c.b16 %v5129, %v5126
    %v5154 = vpack.c.b16 %v5130, %v5127
    %5179 = vmatprep.subr.bf16.mxu0 %v5132
    %5180 = vmatpush1.bf16.msra.mxu0 %v5131
    %5181 = vmatprep.subr.bf16.mxu0 %v5135
    %5182 = vmatpush1.bf16.msra.mxu0 %v5134
    %5183 = vmatprep.subr.bf16.mxu0 %v5138
    %5184 = vmatpush1.bf16.msra.mxu0 %v5137
    %5185 = vmatprep.subr.bf16.mxu0 %v5141
    %5186 = vmatpush1.bf16.msra.mxu0 %v5140
    %5187 = vmatprep.subr.bf16.mxu0 %v5144
    %5188 = vmatpush1.bf16.msra.mxu0 %v5143
    %5189 = vmatprep.subr.bf16.mxu0 %v5147
    %5190 = vmatpush1.bf16.msra.mxu0 %v5146
    %5191 = vmatprep.subr.bf16.mxu0 %v5150
    %5192 = vmatpush1.bf16.msra.mxu0 %v5149
    %5193 = vmatprep.subr.bf16.mxu0 %v5153
    %5194 = vmatpush1.bf16.msra.mxu0 %v5152
    %5195 = vmatprep.subr.bf16.mxu0 0
    %5196 = vmatpush1.bf16.msra.mxu0 0
    %5197 = vmatprep.subr.bf16.mxu0 0
    %5198 = vmatpush1.bf16.msra.mxu0 0
    %5199 = vmatprep.subr.bf16.mxu0 0
    %5200 = vmatpush1.bf16.msra.mxu0 0
    %5201 = vmatprep.subr.bf16.mxu0 0
    %5202 = vmatpush1.bf16.msra.mxu0 0
    %5203 = vmatprep.subr.bf16.mxu0 0
    %5204 = vmatpush1.bf16.msra.mxu0 0
    %5205 = vmatprep.subr.bf16.mxu0 0
    %5206 = vmatpush1.bf16.msra.mxu0 0
    %5207 = vmatprep.subr.bf16.mxu0 0
    %5208 = vmatpush1.bf16.msra.mxu0 0
    %5209 = vmatprep.subr.bf16.mxu0 0
    %5210 = vmatpush1.bf16.msra.mxu0 0
    %5211 = vmatprep.mubr.bf16.mxu0 0
    %5212 = vmatmul.mubr.bf16.gmra.mrb[0].mxu0 %v5011
    %v5213 = vpop.f32.mrb[0].mxu0
    %v5214 = vadd.f32 0.0, %v5213
    %v5215 = vpop.f32.mrb[0].mxu0
    %v5216 = vadd.f32 0.0, %v5215
    %v5217 = vpop.f32.mrb[0].mxu0
    %v5218 = vadd.f32 0.0, %v5217
    %v5219 = vpop.f32.mrb[0].mxu0
    %v5220 = vadd.f32 0.0, %v5219
    %5221 = vmatprep.mubr.bf16.mxu0 0
    %5222 = vmatmul.mubr.bf16.gmra.mrb[0].mxu0 %v5012
    %v5223 = vpop.f32.mrb[0].mxu0
    %v5224 = vadd.f32 0.0, %v5223
    %v5225 = vpop.f32.mrb[0].mxu0
    %v5226 = vadd.f32 0.0, %v5225
    %v5227 = vpop.f32.mrb[0].mxu0
    %v5228 = vadd.f32 0.0, %v5227
    %v5229 = vpop.f32.mrb[0].mxu0
    %v5230 = vadd.f32 0.0, %v5229
    %5231 = vmatprep.mubr.bf16.mxu0 0
    %5232 = vmatmul.mubr.bf16.gmra.mrb[0].mxu0 %v5013
    %v5233 = vpop.f32.mrb[0].mxu0
    %v5234 = vadd.f32 0.0, %v5233
    %v5235 = vpop.f32.mrb[0].mxu0
    %v5236 = vadd.f32 0.0, %v5235
    %v5237 = vpop.f32.mrb[0].mxu0
    %v5238 = vadd.f32 0.0, %v5237
    %v5239 = vpop.f32.mrb[0].mxu0
    %v5240 = vadd.f32 0.0, %v5239
    %5241 = vmatprep.mubr.bf16.mxu0 0
    %5242 = vmatmul.mubr.bf16.gmra.mrb[0].mxu0 %v5014
    %v5243 = vpop.f32.mrb[0].mxu0
    %v5244 = vadd.f32 0.0, %v5243
    %v5245 = vpop.f32.mrb[0].mxu0
    %v5246 = vadd.f32 0.0, %v5245
    %v5247 = vpop.f32.mrb[0].mxu0
    %v5248 = vadd.f32 0.0, %v5247
    %v5249 = vpop.f32.mrb[0].mxu0
    %v5250 = vadd.f32 0.0, %v5249
    %5251 = vmatprep.mubr.bf16.mxu0 0
    %5252 = vmatmul.mubr.bf16.gmra.mrb[0].mxu0 %v5015
    %v5253 = vpop.f32.mrb[0].mxu0
    %v5254 = vadd.f32 0.0, %v5253
    %v5255 = vpop.f32.mrb[0].mxu0
    %v5256 = vadd.f32 0.0, %v5255
    %v5257 = vpop.f32.mrb[0].mxu0
    %v5258 = vadd.f32 0.0, %v5257
    %v5259 = vpop.f32.mrb[0].mxu0
    %v5260 = vadd.f32 0.0, %v5259
    %5261 = vmatprep.mubr.bf16.mxu0 0
    %5262 = vmatmul.mubr.bf16.gmra.mrb[0].mxu0 %v5016
    %v5263 = vpop.f32.mrb[0].mxu0
    %v5264 = vadd.f32 0.0, %v5263
    %v5265 = vpop.f32.mrb[0].mxu0
    %v5266 = vadd.f32 0.0, %v5265
    %v5267 = vpop.f32.mrb[0].mxu0
    %v5268 = vadd.f32 0.0, %v5267
    %v5269 = vpop.f32.mrb[0].mxu0
    %v5270 = vadd.f32 0.0, %v5269
    %5271 = vmatprep.mubr.bf16.mxu0 0
    %5272 = vmatmul.mubr.bf16.gmra.mrb[0].mxu0 %v5017
    %v5273 = vpop.f32.mrb[0].mxu0
    %v5274 = vadd.f32 0.0, %v5273
    %v5275 = vpop.f32.mrb[0].mxu0
    %v5276 = vadd.f32 0.0, %v5275
    %v5277 = vpop.f32.mrb[0].mxu0
    %v5278 = vadd.f32 0.0, %v5277
    %v5279 = vpop.f32.mrb[0].mxu0
    %v5280 = vadd.f32 0.0, %v5279
    %5281 = vmatprep.mubr.bf16.mxu0 0
    %5282 = vmatmul.mubr.bf16.gmra.mrb[0].mxu0 %v5018
    %v5283 = vpop.f32.mrb[0].mxu0
    %v5284 = vadd.f32 0.0, %v5283
    %v5285 = vpop.f32.mrb[0].mxu0
    %v5286 = vadd.f32 0.0, %v5285
    %v5287 = vpop.f32.mrb[0].mxu0
    %v5288 = vadd.f32 0.0, %v5287
    %v5289 = vpop.f32.mrb[0].mxu0
    %v5290 = vadd.f32 0.0, %v5289
    %5291 = vdwg.mxu0
    %5292 = vmatprep.subr.bf16.mxu0 0
    %5293 = vmatpush1.bf16.msra.mxu0 %v5133
    %5294 = vmatprep.subr.bf16.mxu0 0
    %5295 = vmatpush1.bf16.msra.mxu0 %v5136
    %5296 = vmatprep.subr.bf16.mxu0 0
    %5297 = vmatpush1.bf16.msra.mxu0 %v5139
    %5298 = vmatprep.subr.bf16.mxu0 0
    %5299 = vmatpush1.bf16.msra.mxu0 %v5142
    %5300 = vmatprep.subr.bf16.mxu0 0
    %5301 = vmatpush1.bf16.msra.mxu0 %v5145
    %5302 = vmatprep.subr.bf16.mxu0 0
    %5303 = vmatpush1.bf16.msra.mxu0 %v5148
    %5304 = vmatprep.subr.bf16.mxu0 0
    %5305 = vmatpush1.bf16.msra.mxu0 %v5151
    %5306 = vmatprep.subr.bf16.mxu0 0
    %5307 = vmatpush1.bf16.msra.mxu0 %v5154
    %5308 = vmatprep.subr.bf16.mxu0 0
    %5309 = vmatpush1.bf16.msra.mxu0 0
    %5310 = vmatprep.subr.bf16.mxu0 0
    %5311 = vmatpush1.bf16.msra.mxu0 0
    %5312 = vmatprep.subr.bf16.mxu0 0
    %5313 = vmatpush1.bf16.msra.mxu0 0
    %5314 = vmatprep.subr.bf16.mxu0 0
    %5315 = vmatpush1.bf16.msra.mxu0 0
    %5316 = vmatprep.subr.bf16.mxu0 0
    %5317 = vmatpush1.bf16.msra.mxu0 0
    %5318 = vmatprep.subr.bf16.mxu0 0
    %5319 = vmatpush1.bf16.msra.mxu0 0
    %5320 = vmatprep.subr.bf16.mxu0 0
    %5321 = vmatpush1.bf16.msra.mxu0 0
    %5322 = vmatprep.subr.bf16.mxu0 0
    %5323 = vmatpush1.bf16.msra.mxu0 0
    %5324 = vmatprep.mubr.bf16.mxu0 0
    %5325 = vmatmul.mubr.bf16.gmra.mrb[0].mxu0 %v5011
    %v5326 = vpop.f32.mrb[0].mxu0
    %v5327 = vadd.f32 0.0, %v5326
    %v5328 = vpop.f32.mrb[0].mxu0
    %v5329 = vpop.f32.mrb[0].mxu0
    %v5330 = vadd.f32 0.0, %v5329
    %v5331 = vpop.f32.mrb[0].mxu0
    %5332 = vmatprep.mubr.bf16.mxu0 0
    %5333 = vmatmul.mubr.bf16.gmra.mrb[0].mxu0 %v5012
    %v5334 = vpop.f32.mrb[0].mxu0
    %v5335 = vadd.f32 0.0, %v5334
    %v5336 = vpop.f32.mrb[0].mxu0
    %v5337 = vpop.f32.mrb[0].mxu0
    %v5338 = vadd.f32 0.0, %v5337
    %v5339 = vpop.f32.mrb[0].mxu0
    %5340 = vmatprep.mubr.bf16.mxu0 0
    %5341 = vmatmul.mubr.bf16.gmra.mrb[0].mxu0 %v5013
    %v5342 = vpop.f32.mrb[0].mxu0
    %v5343 = vadd.f32 0.0, %v5342
    %v5344 = vpop.f32.mrb[0].mxu0
    %v5345 = vpop.f32.mrb[0].mxu0
    %v5346 = vadd.f32 0.0, %v5345
    %v5347 = vpop.f32.mrb[0].mxu0
    %5348 = vmatprep.mubr.bf16.mxu0 0
    %5349 = vmatmul.mubr.bf16.gmra.mrb[0].mxu0 %v5014
    %v5350 = vpop.f32.mrb[0].mxu0
    %v5351 = vadd.f32 0.0, %v5350
    %v5352 = vpop.f32.mrb[0].mxu0
    %v5353 = vpop.f32.mrb[0].mxu0
    %v5354 = vadd.f32 0.0, %v5353
    %v5355 = vpop.f32.mrb[0].mxu0
    %5356 = vmatprep.mubr.bf16.mxu0 0
    %5357 = vmatmul.mubr.bf16.gmra.mrb[0].mxu0 %v5015
    %v5358 = vpop.f32.mrb[0].mxu0
    %v5359 = vadd.f32 0.0, %v5358
    %v5360 = vpop.f32.mrb[0].mxu0
    %v5361 = vpop.f32.mrb[0].mxu0
    %v5362 = vadd.f32 0.0, %v5361
    %v5363 = vpop.f32.mrb[0].mxu0
    %5364 = vmatprep.mubr.bf16.mxu0 0
    %5365 = vmatmul.mubr.bf16.gmra.mrb[0].mxu0 %v5016
    %v5366 = vpop.f32.mrb[0].mxu0
    %v5367 = vadd.f32 0.0, %v5366
    %v5368 = vpop.f32.mrb[0].mxu0
    %v5369 = vpop.f32.mrb[0].mxu0
    %v5370 = vadd.f32 0.0, %v5369
    %v5371 = vpop.f32.mrb[0].mxu0
    %5372 = vmatprep.mubr.bf16.mxu0 0
    %5373 = vmatmul.mubr.bf16.gmra.mrb[0].mxu0 %v5017
    %v5374 = vpop.f32.mrb[0].mxu0
    %v5375 = vadd.f32 0.0, %v5374
    %v5376 = vpop.f32.mrb[0].mxu0
    %v5377 = vpop.f32.mrb[0].mxu0
    %v5378 = vadd.f32 0.0, %v5377
    %v5379 = vpop.f32.mrb[0].mxu0
    %5380 = vmatprep.mubr.bf16.mxu0 0
    %5381 = vmatmul.mubr.bf16.gmra.mrb[0].mxu0 %v5018
    %v5382 = vpop.f32.mrb[0].mxu0
    %v5383 = vadd.f32 0.0, %v5382
    %v5384 = vpop.f32.mrb[0].mxu0
    %v5385 = vpop.f32.mrb[0].mxu0
    %v5386 = vadd.f32 0.0, %v5385
    %v5387 = vpop.f32.mrb[0].mxu0
    %5388 = vdwg.mxu0
    %v5389 = vld [vmem:[#allocation17] sm:$0xff]
    %v5390 = vld [vmem:[#allocation17 + $0x8] sm:$0xf]
    %v5391 = vld [vmem:[#allocation17 + $0xc] sm:$0xff]
    %v5392 = vld [vmem:[#allocation17 + $0x14] sm:$0xf]
    %v5393 = vld [vmem:[#allocation17 + $0x18] sm:$0xff]
    %v5394 = vld [vmem:[#allocation17 + $0x20] sm:$0xf]
    %v5395 = vld [vmem:[#allocation17 + $0x24] sm:$0xff]
    %v5396 = vld [vmem:[#allocation17 + $0x2c] sm:$0xf]
    %v5397 = vld [vmem:[#allocation17 + $0x30] sm:$0xff]
    %v5398 = vld [vmem:[#allocation17 + $0x38] sm:$0xf]
    %v5399 = vld [vmem:[#allocation17 + $0x3c] sm:$0xff]
    %v5400 = vld [vmem:[#allocation17 + $0x44] sm:$0xf]
    %v5401 = vld [vmem:[#allocation17 + $0x48] sm:$0xff]
    %v5402 = vld [vmem:[#allocation17 + $0x50] sm:$0xf]
    %v5403 = vld [vmem:[#allocation17 + $0x54] sm:$0xff]
    %v5404 = vld [vmem:[#allocation17 + $0x5c] sm:$0xf]
    %v5405 = vld [vmem:[#allocation17 + $0x60] sm:$0xff]
    %v5406 = vld [vmem:[#allocation17 + $0x68] sm:$0xf]
    %v5407 = vld [vmem:[#allocation17 + $0x6c] sm:$0xff]
    %v5408 = vld [vmem:[#allocation17 + $0x74] sm:$0xf]
    %v5409 = vld [vmem:[#allocation17 + $0x78] sm:$0xff]
    %v5410 = vld [vmem:[#allocation17 + $0x80] sm:$0xf]
    %v5411 = vld [vmem:[#allocation17 + $0x84] sm:$0xff]
    %v5412 = vld [vmem:[#allocation17 + $0x8c] sm:$0xf]
    %v5413 = vld [vmem:[#allocation17 + $0x90] sm:$0xff]
    %v5414 = vld [vmem:[#allocation17 + $0x98] sm:$0xf]
    %v5415 = vld [vmem:[#allocation17 + $0x9c] sm:$0xff]
    %v5416 = vld [vmem:[#allocation17 + $0xa4] sm:$0xf]
    %v5417 = vld [vmem:[#allocation17 + $0xa8] sm:$0xff]
    %v5418 = vld [vmem:[#allocation17 + $0xb0] sm:$0xf]
    %v5419 = vld [vmem:[#allocation17 + $0xb4] sm:$0xff]
    %v5420 = vld [vmem:[#allocation17 + $0xbc] sm:$0xf]
    %v5453 = vunpack.c.l.b16 %v5389
    %v5454 = vunpack.c.h.b16 %v5389
    %v5455 = vunpack.c.l.b16 %v5390
    %v5456 = vunpack.c.l.b16 %v5391
    %v5457 = vunpack.c.h.b16 %v5391
    %v5458 = vunpack.c.l.b16 %v5392
    %v5459 = vunpack.c.l.b16 %v5393
    %v5460 = vunpack.c.h.b16 %v5393
    %v5461 = vunpack.c.l.b16 %v5394
    %v5462 = vunpack.c.l.b16 %v5395
    %v5463 = vunpack.c.h.b16 %v5395
    %v5464 = vunpack.c.l.b16 %v5396
    %v5465 = vunpack.c.l.b16 %v5397
    %v5466 = vunpack.c.h.b16 %v5397
    %v5467 = vunpack.c.l.b16 %v5398
    %v5468 = vunpack.c.l.b16 %v5399
    %v5469 = vunpack.c.h.b16 %v5399
    %v5470 = vunpack.c.l.b16 %v5400
    %v5471 = vunpack.c.l.b16 %v5401
    %v5472 = vunpack.c.h.b16 %v5401
    %v5473 = vunpack.c.l.b16 %v5402
    %v5474 = vunpack.c.l.b16 %v5403
    %v5475 = vunpack.c.h.b16 %v5403
    %v5476 = vunpack.c.l.b16 %v5404
    %v5477 = vunpack.c.l.b16 %v5405
    %v5478 = vunpack.c.h.b16 %v5405
    %v5479 = vunpack.c.l.b16 %v5406
    %v5480 = vunpack.c.l.b16 %v5407
    %v5481 = vunpack.c.h.b16 %v5407
    %v5482 = vunpack.c.l.b16 %v5408
    %v5483 = vunpack.c.l.b16 %v5409
    %v5484 = vunpack.c.h.b16 %v5409
    %v5485 = vunpack.c.l.b16 %v5410
    %v5486 = vunpack.c.l.b16 %v5411
    %v5487 = vunpack.c.h.b16 %v5411
    %v5488 = vunpack.c.l.b16 %v5412
    %v5489 = vunpack.c.l.b16 %v5413
    %v5490 = vunpack.c.h.b16 %v5413
    %v5491 = vunpack.c.l.b16 %v5414
    %v5492 = vunpack.c.l.b16 %v5415
    %v5493 = vunpack.c.h.b16 %v5415
    %v5494 = vunpack.c.l.b16 %v5416
    %v5495 = vunpack.c.l.b16 %v5417
    %v5496 = vunpack.c.h.b16 %v5417
    %v5497 = vunpack.c.l.b16 %v5418
    %v5498 = vunpack.c.l.b16 %v5419
    %v5499 = vunpack.c.h.b16 %v5419
    %v5500 = vunpack.c.l.b16 %v5420
    %v5501 = vpack.c.b16 %v5456, %v5453
    %v5502 = vpack.c.b16 %v5457, %v5454
    %v5503 = vpack.c.b16 %v5458, %v5455
    %v5504 = vpack.c.b16 %v5462, %v5459
    %v5505 = vpack.c.b16 %v5463, %v5460
    %v5506 = vpack.c.b16 %v5464, %v5461
    %v5507 = vpack.c.b16 %v5468, %v5465
    %v5508 = vpack.c.b16 %v5469, %v5466
    %v5509 = vpack.c.b16 %v5470, %v5467
    %v5510 = vpack.c.b16 %v5474, %v5471
    %v5511 = vpack.c.b16 %v5475, %v5472
    %v5512 = vpack.c.b16 %v5476, %v5473
    %v5513 = vpack.c.b16 %v5480, %v5477
    %v5514 = vpack.c.b16 %v5481, %v5478
    %v5515 = vpack.c.b16 %v5482, %v5479
    %v5516 = vpack.c.b16 %v5486, %v5483
    %v5517 = vpack.c.b16 %v5487, %v5484
    %v5518 = vpack.c.b16 %v5488, %v5485
    %v5519 = vpack.c.b16 %v5492, %v5489
    %v5520 = vpack.c.b16 %v5493, %v5490
    %v5521 = vpack.c.b16 %v5494, %v5491
    %v5522 = vpack.c.b16 %v5498, %v5495
    %v5523 = vpack.c.b16 %v5499, %v5496
    %v5524 = vpack.c.b16 %v5500, %v5497
    %5549 = vmatprep.subr.bf16.mxu0 %v5502
    %5550 = vmatpush1.bf16.msra.mxu0 %v5501
    %5551 = vmatprep.subr.bf16.mxu0 %v5505
    %5552 = vmatpush1.bf16.msra.mxu0 %v5504
    %5553 = vmatprep.subr.bf16.mxu0 %v5508
    %5554 = vmatpush1.bf16.msra.mxu0 %v5507
    %5555 = vmatprep.subr.bf16.mxu0 %v5511
    %5556 = vmatpush1.bf16.msra.mxu0 %v5510
    %5557 = vmatprep.subr.bf16.mxu0 %v5514
    %5558 = vmatpush1.bf16.msra.mxu0 %v5513
    %5559 = vmatprep.subr.bf16.mxu0 %v5517
    %5560 = vmatpush1.bf16.msra.mxu0 %v5516
    %5561 = vmatprep.subr.bf16.mxu0 %v5520
    %5562 = vmatpush1.bf16.msra.mxu0 %v5519
    %5563 = vmatprep.subr.bf16.mxu0 %v5523
    %5564 = vmatpush1.bf16.msra.mxu0 %v5522
    %5565 = vmatprep.subr.bf16.mxu0 0
    %5566 = vmatpush1.bf16.msra.mxu0 0
    %5567 = vmatprep.subr.bf16.mxu0 0
    %5568 = vmatpush1.bf16.msra.mxu0 0
    %5569 = vmatprep.subr.bf16.mxu0 0
    %5570 = vmatpush1.bf16.msra.mxu0 0
    %5571 = vmatprep.subr.bf16.mxu0 0
    %5572 = vmatpush1.bf16.msra.mxu0 0
    %5573 = vmatprep.subr.bf16.mxu0 0
    %5574 = vmatpush1.bf16.msra.mxu0 0
    %5575 = vmatprep.subr.bf16.mxu0 0
    %5576 = vmatpush1.bf16.msra.mxu0 0
    %5577 = vmatprep.subr.bf16.mxu0 0
    %5578 = vmatpush1.bf16.msra.mxu0 0
    %5579 = vmatprep.subr.bf16.mxu0 0
    %5580 = vmatpush1.bf16.msra.mxu0 0
    %5581 = vmatprep.mubr.bf16.mxu0 0
    %5582 = vmatmul.mubr.bf16.gmra.mrb[0].mxu0 %v5011
    %v5583 = vpop.f32.mrb[0].mxu0
    %v5584 = vadd.f32 0.0, %v5583
    %v5585 = vpop.f32.mrb[0].mxu0
    %v5586 = vadd.f32 0.0, %v5585
    %v5587 = vpop.f32.mrb[0].mxu0
    %v5588 = vadd.f32 0.0, %v5587
    %v5589 = vpop.f32.mrb[0].mxu0
    %v5590 = vadd.f32 0.0, %v5589
    %5591 = vmatprep.mubr.bf16.mxu0 0
    %5592 = vmatmul.mubr.bf16.gmra.mrb[0].mxu0 %v5012
    %v5593 = vpop.f32.mrb[0].mxu0
    %v5594 = vadd.f32 0.0, %v5593
    %v5595 = vpop.f32.mrb[0].mxu0
    %v5596 = vadd.f32 0.0, %v5595
    %v5597 = vpop.f32.mrb[0].mxu0
    %v5598 = vadd.f32 0.0, %v5597
    %v5599 = vpop.f32.mrb[0].mxu0
    %v5600 = vadd.f32 0.0, %v5599
    %5601 = vmatprep.mubr.bf16.mxu0 0
    %5602 = vmatmul.mubr.bf16.gmra.mrb[0].mxu0 %v5013
    %v5603 = vpop.f32.mrb[0].mxu0
    %v5604 = vadd.f32 0.0, %v5603
    %v5605 = vpop.f32.mrb[0].mxu0
    %v5606 = vadd.f32 0.0, %v5605
    %v5607 = vpop.f32.mrb[0].mxu0
    %v5608 = vadd.f32 0.0, %v5607
    %v5609 = vpop.f32.mrb[0].mxu0
    %v5610 = vadd.f32 0.0, %v5609
    %5611 = vmatprep.mubr.bf16.mxu0 0
    %5612 = vmatmul.mubr.bf16.gmra.mrb[0].mxu0 %v5014
    %v5613 = vpop.f32.mrb[0].mxu0
    %v5614 = vadd.f32 0.0, %v5613
    %v5615 = vpop.f32.mrb[0].mxu0
    %v5616 = vadd.f32 0.0, %v5615
    %v5617 = vpop.f32.mrb[0].mxu0
    %v5618 = vadd.f32 0.0, %v5617
    %v5619 = vpop.f32.mrb[0].mxu0
    %v5620 = vadd.f32 0.0, %v5619
    %5621 = vmatprep.mubr.bf16.mxu0 0
    %5622 = vmatmul.mubr.bf16.gmra.mrb[0].mxu0 %v5015
    %v5623 = vpop.f32.mrb[0].mxu0
    %v5624 = vadd.f32 0.0, %v5623
    %v5625 = vpop.f32.mrb[0].mxu0
    %v5626 = vadd.f32 0.0, %v5625
    %v5627 = vpop.f32.mrb[0].mxu0
    %v5628 = vadd.f32 0.0, %v5627
    %v5629 = vpop.f32.mrb[0].mxu0
    %v5630 = vadd.f32 0.0, %v5629
    %5631 = vmatprep.mubr.bf16.mxu0 0
    %5632 = vmatmul.mubr.bf16.gmra.mrb[0].mxu0 %v5016
    %v5633 = vpop.f32.mrb[0].mxu0
    %v5634 = vadd.f32 0.0, %v5633
    %v5635 = vpop.f32.mrb[0].mxu0
    %v5636 = vadd.f32 0.0, %v5635
    %v5637 = vpop.f32.mrb[0].mxu0
    %v5638 = vadd.f32 0.0, %v5637
    %v5639 = vpop.f32.mrb[0].mxu0
    %v5640 = vadd.f32 0.0, %v5639
    %5641 = vmatprep.mubr.bf16.mxu0 0
    %5642 = vmatmul.mubr.bf16.gmra.mrb[0].mxu0 %v5017
    %v5643 = vpop.f32.mrb[0].mxu0
    %v5644 = vadd.f32 0.0, %v5643
    %v5645 = vpop.f32.mrb[0].mxu0
    %v5646 = vadd.f32 0.0, %v5645
    %v5647 = vpop.f32.mrb[0].mxu0
    %v5648 = vadd.f32 0.0, %v5647
    %v5649 = vpop.f32.mrb[0].mxu0
    %v5650 = vadd.f32 0.0, %v5649
    %5651 = vmatprep.mubr.bf16.mxu0 0
    %5652 = vmatmul.mubr.bf16.gmra.mrb[0].mxu0 %v5018
    %v5653 = vpop.f32.mrb[0].mxu0
    %v5654 = vadd.f32 0.0, %v5653
    %v5655 = vpop.f32.mrb[0].mxu0
    %v5656 = vadd.f32 0.0, %v5655
    %v5657 = vpop.f32.mrb[0].mxu0
    %v5658 = vadd.f32 0.0, %v5657
    %v5659 = vpop.f32.mrb[0].mxu0
    %v5660 = vadd.f32 0.0, %v5659
    %5661 = vdwg.mxu0
    %5662 = vmatprep.subr.bf16.mxu0 0
    %5663 = vmatpush1.bf16.msra.mxu0 %v5503
    %5664 = vmatprep.subr.bf16.mxu0 0
    %5665 = vmatpush1.bf16.msra.mxu0 %v5506
    %5666 = vmatprep.subr.bf16.mxu0 0
    %5667 = vmatpush1.bf16.msra.mxu0 %v5509
    %5668 = vmatprep.subr.bf16.mxu0 0
    %5669 = vmatpush1.bf16.msra.mxu0 %v5512
    %5670 = vmatprep.subr.bf16.mxu0 0
    %5671 = vmatpush1.bf16.msra.mxu0 %v5515
    %5672 = vmatprep.subr.bf16.mxu0 0
    %5673 = vmatpush1.bf16.msra.mxu0 %v5518
    %5674 = vmatprep.subr.bf16.mxu0 0
    %5675 = vmatpush1.bf16.msra.mxu0 %v5521
    %5676 = vmatprep.subr.bf16.mxu0 0
    %5677 = vmatpush1.bf16.msra.mxu0 %v5524
    %5678 = vmatprep.subr.bf16.mxu0 0
    %5679 = vmatpush1.bf16.msra.mxu0 0
    %5680 = vmatprep.subr.bf16.mxu0 0
    %5681 = vmatpush1.bf16.msra.mxu0 0
    %5682 = vmatprep.subr.bf16.mxu0 0
    %5683 = vmatpush1.bf16.msra.mxu0 0
    %5684 = vmatprep.subr.bf16.mxu0 0
    %5685 = vmatpush1.bf16.msra.mxu0 0
    %5686 = vmatprep.subr.bf16.mxu0 0
    %5687 = vmatpush1.bf16.msra.mxu0 0
    %5688 = vmatprep.subr.bf16.mxu0 0
    %5689 = vmatpush1.bf16.msra.mxu0 0
    %5690 = vmatprep.subr.bf16.mxu0 0
    %5691 = vmatpush1.bf16.msra.mxu0 0
    %5692 = vmatprep.subr.bf16.mxu0 0
    %5693 = vmatpush1.bf16.msra.mxu0 0
    %5694 = vmatprep.mubr.bf16.mxu0 0
    %5695 = vmatmul.mubr.bf16.gmra.mrb[0].mxu0 %v5011
    %v5696 = vpop.f32.mrb[0].mxu0
    %v5697 = vadd.f32 0.0, %v5696
    %v5698 = vpop.f32.mrb[0].mxu0
    %v5699 = vpop.f32.mrb[0].mxu0
    %v5700 = vadd.f32 0.0, %v5699
    %v5701 = vpop.f32.mrb[0].mxu0
    %5702 = vmatprep.mubr.bf16.mxu0 0
    %5703 = vmatmul.mubr.bf16.gmra.mrb[0].mxu0 %v5012
    %v5704 = vpop.f32.mrb[0].mxu0
    %v5705 = vadd.f32 0.0, %v5704
    %v5706 = vpop.f32.mrb[0].mxu0
    %v5707 = vpop.f32.mrb[0].mxu0
    %v5708 = vadd.f32 0.0, %v5707
    %v5709 = vpop.f32.mrb[0].mxu0
    %5710 = vmatprep.mubr.bf16.mxu0 0
    %5711 = vmatmul.mubr.bf16.gmra.mrb[0].mxu0 %v5013
    %v5712 = vpop.f32.mrb[0].mxu0
    %v5713 = vadd.f32 0.0, %v5712
    %v5714 = vpop.f32.mrb[0].mxu0
    %v5715 = vpop.f32.mrb[0].mxu0
    %v5716 = vadd.f32 0.0, %v5715
    %v5717 = vpop.f32.mrb[0].mxu0
    %5718 = vmatprep.mubr.bf16.mxu0 0
    %5719 = vmatmul.mubr.bf16.gmra.mrb[0].mxu0 %v5014
    %v5720 = vpop.f32.mrb[0].mxu0
    %v5721 = vadd.f32 0.0, %v5720
    %v5722 = vpop.f32.mrb[0].mxu0
    %v5723 = vpop.f32.mrb[0].mxu0
    %v5724 = vadd.f32 0.0, %v5723
    %v5725 = vpop.f32.mrb[0].mxu0
    %5726 = vmatprep.mubr.bf16.mxu0 0
    %5727 = vmatmul.mubr.bf16.gmra.mrb[0].mxu0 %v5015
    %v5728 = vpop.f32.mrb[0].mxu0
    %v5729 = vadd.f32 0.0, %v5728
    %v5730 = vpop.f32.mrb[0].mxu0
    %v5731 = vpop.f32.mrb[0].mxu0
    %v5732 = vadd.f32 0.0, %v5731
    %v5733 = vpop.f32.mrb[0].mxu0
    %5734 = vmatprep.mubr.bf16.mxu0 0
    %5735 = vmatmul.mubr.bf16.gmra.mrb[0].mxu0 %v5016
    %v5736 = vpop.f32.mrb[0].mxu0
    %v5737 = vadd.f32 0.0, %v5736
    %v5738 = vpop.f32.mrb[0].mxu0
    %v5739 = vpop.f32.mrb[0].mxu0
    %v5740 = vadd.f32 0.0, %v5739
    %v5741 = vpop.f32.mrb[0].mxu0
    %5742 = vmatprep.mubr.bf16.mxu0 0
    %5743 = vmatmul.mubr.bf16.gmra.mrb[0].mxu0 %v5017
    %v5744 = vpop.f32.mrb[0].mxu0
    %v5745 = vadd.f32 0.0, %v5744
    %v5746 = vpop.f32.mrb[0].mxu0
    %v5747 = vpop.f32.mrb[0].mxu0
    %v5748 = vadd.f32 0.0, %v5747
    %v5749 = vpop.f32.mrb[0].mxu0
    %5750 = vmatprep.mubr.bf16.mxu0 0
    %5751 = vmatmul.mubr.bf16.gmra.mrb[0].mxu0 %v5018
    %v5752 = vpop.f32.mrb[0].mxu0
    %v5753 = vadd.f32 0.0, %v5752
    %v5754 = vpop.f32.mrb[0].mxu0
    %v5755 = vpop.f32.mrb[0].mxu0
    %v5756 = vadd.f32 0.0, %v5755
    %v5757 = vpop.f32.mrb[0].mxu0
    %5758 = vdwg.mxu0
    %v5759 = vxor.u32 %v5214, 2147483648
    %v5760 = vxor.u32 %v5216, 2147483648
    %v5761 = vxor.u32 %v5327, 2147483648
    %v5762 = vxor.u32 %v5218, 2147483648
    %v5763 = vxor.u32 %v5220, 2147483648
    %v5764 = vxor.u32 %v5330, 2147483648
    %v5765 = vxor.u32 %v5224, 2147483648
    %v5766 = vxor.u32 %v5226, 2147483648
    %v5767 = vxor.u32 %v5335, 2147483648
    %v5768 = vxor.u32 %v5228, 2147483648
    %v5769 = vxor.u32 %v5230, 2147483648
    %v5770 = vxor.u32 %v5338, 2147483648
    %v5771 = vxor.u32 %v5234, 2147483648
    %v5772 = vxor.u32 %v5236, 2147483648
    %v5773 = vxor.u32 %v5343, 2147483648
    %v5774 = vxor.u32 %v5238, 2147483648
    %v5775 = vxor.u32 %v5240, 2147483648
    %v5776 = vxor.u32 %v5346, 2147483648
    %v5777 = vxor.u32 %v5244, 2147483648
    %v5778 = vxor.u32 %v5246, 2147483648
    %v5779 = vxor.u32 %v5351, 2147483648
    %v5780 = vxor.u32 %v5248, 2147483648
    %v5781 = vxor.u32 %v5250, 2147483648
    %v5782 = vxor.u32 %v5354, 2147483648
    %v5783 = vxor.u32 %v5254, 2147483648
    %v5784 = vxor.u32 %v5256, 2147483648
    %v5785 = vxor.u32 %v5359, 2147483648
    %v5786 = vxor.u32 %v5258, 2147483648
    %v5787 = vxor.u32 %v5260, 2147483648
    %v5788 = vxor.u32 %v5362, 2147483648
    %v5789 = vxor.u32 %v5264, 2147483648
    %v5790 = vxor.u32 %v5266, 2147483648
    %v5791 = vxor.u32 %v5367, 2147483648
    %v5792 = vxor.u32 %v5268, 2147483648
    %v5793 = vxor.u32 %v5270, 2147483648
    %v5794 = vxor.u32 %v5370, 2147483648
    %v5795 = vxor.u32 %v5274, 2147483648
    %v5796 = vxor.u32 %v5276, 2147483648
    %v5797 = vxor.u32 %v5375, 2147483648
    %v5798 = vxor.u32 %v5278, 2147483648
    %v5799 = vxor.u32 %v5280, 2147483648
    %v5800 = vxor.u32 %v5378, 2147483648
    %v5801 = vxor.u32 %v5284, 2147483648
    %v5802 = vxor.u32 %v5286, 2147483648
    %v5803 = vxor.u32 %v5383, 2147483648
    %v5804 = vxor.u32 %v5288, 2147483648
    %v5805 = vxor.u32 %v5290, 2147483648
    %v5806 = vxor.u32 %v5386, 2147483648
    %v5807 = vmul.f32 %v5759, 1.442695
    %v5808 = vpow.pop %v5807
    %v5809 = vmul.f32 %v5760, 1.442695
    %v5810 = vpow.pop %v5809
    %v5811 = vmul.f32 %v5761, 1.442695
    %v5812 = vpow.pop %v5811
    %v5813 = vmul.f32 %v5762, 1.442695
    %v5814 = vpow.pop %v5813
    %v5815 = vmul.f32 %v5763, 1.442695
    %v5816 = vpow.pop %v5815
    %v5817 = vmul.f32 %v5764, 1.442695
    %v5818 = vpow.pop %v5817
    %v5819 = vmul.f32 %v5765, 1.442695
    %v5820 = vpow.pop %v5819
    %v5821 = vmul.f32 %v5766, 1.442695
    %v5822 = vpow.pop %v5821
    %v5823 = vmul.f32 %v5767, 1.442695
    %v5824 = vpow.pop %v5823
    %v5825 = vmul.f32 %v5768, 1.442695
    %v5826 = vpow.pop %v5825
    %v5827 = vmul.f32 %v5769, 1.442695
    %v5828 = vpow.pop %v5827
    %v5829 = vmul.f32 %v5770, 1.442695
    %v5830 = vpow.pop %v5829
    %v5831 = vmul.f32 %v5771, 1.442695
    %v5832 = vpow.pop %v5831
    %v5833 = vmul.f32 %v5772, 1.442695
    %v5834 = vpow.pop %v5833
    %v5835 = vmul.f32 %v5773, 1.442695
    %v5836 = vpow.pop %v5835
    %v5837 = vmul.f32 %v5774, 1.442695
    %v5838 = vpow.pop %v5837
    %v5839 = vmul.f32 %v5775, 1.442695
    %v5840 = vpow.pop %v5839
    %v5841 = vmul.f32 %v5776, 1.442695
    %v5842 = vpow.pop %v5841
    %v5843 = vmul.f32 %v5777, 1.442695
    %v5844 = vpow.pop %v5843
    %v5845 = vmul.f32 %v5778, 1.442695
    %v5846 = vpow.pop %v5845
    %v5847 = vmul.f32 %v5779, 1.442695
    %v5848 = vpow.pop %v5847
    %v5849 = vmul.f32 %v5780, 1.442695
    %v5850 = vpow.pop %v5849
    %v5851 = vmul.f32 %v5781, 1.442695
    %v5852 = vpow.pop %v5851
    %v5853 = vmul.f32 %v5782, 1.442695
    %v5854 = vpow.pop %v5853
    %v5855 = vmul.f32 %v5783, 1.442695
    %v5856 = vpow.pop %v5855
    %v5857 = vmul.f32 %v5784, 1.442695
    %v5858 = vpow.pop %v5857
    %v5859 = vmul.f32 %v5785, 1.442695
    %v5860 = vpow.pop %v5859
    %v5861 = vmul.f32 %v5786, 1.442695
    %v5862 = vpow.pop %v5861
    %v5863 = vmul.f32 %v5787, 1.442695
    %v5864 = vpow.pop %v5863
    %v5865 = vmul.f32 %v5788, 1.442695
    %v5866 = vpow.pop %v5865
    %v5867 = vmul.f32 %v5789, 1.442695
    %v5868 = vpow.pop %v5867
    %v5869 = vmul.f32 %v5790, 1.442695
    %v5870 = vpow.pop %v5869
    %v5871 = vmul.f32 %v5791, 1.442695
    %v5872 = vpow.pop %v5871
    %v5873 = vmul.f32 %v5792, 1.442695
    %v5874 = vpow.pop %v5873
    %v5875 = vmul.f32 %v5793, 1.442695
    %v5876 = vpow.pop %v5875
    %v5877 = vmul.f32 %v5794, 1.442695
    %v5878 = vpow.pop %v5877
    %v5879 = vmul.f32 %v5795, 1.442695
    %v5880 = vpow.pop %v5879
    %v5881 = vmul.f32 %v5796, 1.442695
    %v5882 = vpow.pop %v5881
    %v5883 = vmul.f32 %v5797, 1.442695
    %v5884 = vpow.pop %v5883
    %v5885 = vmul.f32 %v5798, 1.442695
    %v5886 = vpow.pop %v5885
    %v5887 = vmul.f32 %v5799, 1.442695
    %v5888 = vpow.pop %v5887
    %v5889 = vmul.f32 %v5800, 1.442695
    %v5890 = vpow.pop %v5889
    %v5891 = vmul.f32 %v5801, 1.442695
    %v5892 = vpow.pop %v5891
    %v5893 = vmul.f32 %v5802, 1.442695
    %v5894 = vpow.pop %v5893
    %v5895 = vmul.f32 %v5803, 1.442695
    %v5896 = vpow.pop %v5895
    %v5897 = vmul.f32 %v5804, 1.442695
    %v5898 = vpow.pop %v5897
    %v5899 = vmul.f32 %v5805, 1.442695
    %v5900 = vpow.pop %v5899
    %v5901 = vmul.f32 %v5806, 1.442695
    %v5902 = vpow.pop %v5901
    %v5903 = vadd.f32 %v5808, 1.0
    %v5904 = vadd.f32 %v5810, 1.0
    %v5905 = vadd.f32 %v5812, 1.0
    %v5906 = vadd.f32 %v5814, 1.0
    %v5907 = vadd.f32 %v5816, 1.0
    %v5908 = vadd.f32 %v5818, 1.0
    %v5909 = vadd.f32 %v5820, 1.0
    %v5910 = vadd.f32 %v5822, 1.0
    %v5911 = vadd.f32 %v5824, 1.0
    %v5912 = vadd.f32 %v5826, 1.0
    %v5913 = vadd.f32 %v5828, 1.0
    %v5914 = vadd.f32 %v5830, 1.0
    %v5915 = vadd.f32 %v5832, 1.0
    %v5916 = vadd.f32 %v5834, 1.0
    %v5917 = vadd.f32 %v5836, 1.0
    %v5918 = vadd.f32 %v5838, 1.0
    %v5919 = vadd.f32 %v5840, 1.0
    %v5920 = vadd.f32 %v5842, 1.0
    %v5921 = vadd.f32 %v5844, 1.0
    %v5922 = vadd.f32 %v5846, 1.0
    %v5923 = vadd.f32 %v5848, 1.0
    %v5924 = vadd.f32 %v5850, 1.0
    %v5925 = vadd.f32 %v5852, 1.0
    %v5926 = vadd.f32 %v5854, 1.0
    %v5927 = vadd.f32 %v5856, 1.0
    %v5928 = vadd.f32 %v5858, 1.0
    %v5929 = vadd.f32 %v5860, 1.0
    %v5930 = vadd.f32 %v5862, 1.0
    %v5931 = vadd.f32 %v5864, 1.0
    %v5932 = vadd.f32 %v5866, 1.0
    %v5933 = vadd.f32 %v5868, 1.0
    %v5934 = vadd.f32 %v5870, 1.0
    %v5935 = vadd.f32 %v5872, 1.0
    %v5936 = vadd.f32 %v5874, 1.0
    %v5937 = vadd.f32 %v5876, 1.0
    %v5938 = vadd.f32 %v5878, 1.0
    %v5939 = vadd.f32 %v5880, 1.0
    %v5940 = vadd.f32 %v5882, 1.0
    %v5941 = vadd.f32 %v5884, 1.0
    %v5942 = vadd.f32 %v5886, 1.0
    %v5943 = vadd.f32 %v5888, 1.0
    %v5944 = vadd.f32 %v5890, 1.0
    %v5945 = vadd.f32 %v5892, 1.0
    %v5946 = vadd.f32 %v5894, 1.0
    %v5947 = vadd.f32 %v5896, 1.0
    %v5948 = vadd.f32 %v5898, 1.0
    %v5949 = vadd.f32 %v5900, 1.0
    %v5950 = vadd.f32 %v5902, 1.0
    %v5951 = vrcp.pop %v5903
    %v5952 = vmul.f32 1.0, %v5951
    %v5953 = vrcp.pop %v5904
    %v5954 = vmul.f32 1.0, %v5953
    %v5955 = vrcp.pop %v5905
    %v5956 = vmul.f32 1.0, %v5955
    %v5957 = vrcp.pop %v5906
    %v5958 = vmul.f32 1.0, %v5957
    %v5959 = vrcp.pop %v5907
    %v5960 = vmul.f32 1.0, %v5959
    %v5961 = vrcp.pop %v5908
    %v5962 = vmul.f32 1.0, %v5961
    %v5963 = vrcp.pop %v5909
    %v5964 = vmul.f32 1.0, %v5963
    %v5965 = vrcp.pop %v5910
    %v5966 = vmul.f32 1.0, %v5965
    %v5967 = vrcp.pop %v5911
    %v5968 = vmul.f32 1.0, %v5967
    %v5969 = vrcp.pop %v5912
    %v5970 = vmul.f32 1.0, %v5969
    %v5971 = vrcp.pop %v5913
    %v5972 = vmul.f32 1.0, %v5971
    %v5973 = vrcp.pop %v5914
    %v5974 = vmul.f32 1.0, %v5973
    %v5975 = vrcp.pop %v5915
    %v5976 = vmul.f32 1.0, %v5975
    %v5977 = vrcp.pop %v5916
    %v5978 = vmul.f32 1.0, %v5977
    %v5979 = vrcp.pop %v5917
    %v5980 = vmul.f32 1.0, %v5979
    %v5981 = vrcp.pop %v5918
    %v5982 = vmul.f32 1.0, %v5981
    %v5983 = vrcp.pop %v5919
    %v5984 = vmul.f32 1.0, %v5983
    %v5985 = vrcp.pop %v5920
    %v5986 = vmul.f32 1.0, %v5985
    %v5987 = vrcp.pop %v5921
    %v5988 = vmul.f32 1.0, %v5987
    %v5989 = vrcp.pop %v5922
    %v5990 = vmul.f32 1.0, %v5989
    %v5991 = vrcp.pop %v5923
    %v5992 = vmul.f32 1.0, %v5991
    %v5993 = vrcp.pop %v5924
    %v5994 = vmul.f32 1.0, %v5993
    %v5995 = vrcp.pop %v5925
    %v5996 = vmul.f32 1.0, %v5995
    %v5997 = vrcp.pop %v5926
    %v5998 = vmul.f32 1.0, %v5997
    %v5999 = vrcp.pop %v5927
    %v6000 = vmul.f32 1.0, %v5999
    %v6001 = vrcp.pop %v5928
    %v6002 = vmul.f32 1.0, %v6001
    %v6003 = vrcp.pop %v5929
    %v6004 = vmul.f32 1.0, %v6003
    %v6005 = vrcp.pop %v5930
    %v6006 = vmul.f32 1.0, %v6005
    %v6007 = vrcp.pop %v5931
    %v6008 = vmul.f32 1.0, %v6007
    %v6009 = vrcp.pop %v5932
    %v6010 = vmul.f32 1.0, %v6009
    %v6011 = vrcp.pop %v5933
    %v6012 = vmul.f32 1.0, %v6011
    %v6013 = vrcp.pop %v5934
    %v6014 = vmul.f32 1.0, %v6013
    %v6015 = vrcp.pop %v5935
    %v6016 = vmul.f32 1.0, %v6015
    %v6017 = vrcp.pop %v5936
    %v6018 = vmul.f32 1.0, %v6017
    %v6019 = vrcp.pop %v5937
    %v6020 = vmul.f32 1.0, %v6019
    %v6021 = vrcp.pop %v5938
    %v6022 = vmul.f32 1.0, %v6021
    %v6023 = vrcp.pop %v5939
    %v6024 = vmul.f32 1.0, %v6023
    %v6025 = vrcp.pop %v5940
    %v6026 = vmul.f32 1.0, %v6025
    %v6027 = vrcp.pop %v5941
    %v6028 = vmul.f32 1.0, %v6027
    %v6029 = vrcp.pop %v5942
    %v6030 = vmul.f32 1.0, %v6029
    %v6031 = vrcp.pop %v5943
    %v6032 = vmul.f32 1.0, %v6031
    %v6033 = vrcp.pop %v5944
    %v6034 = vmul.f32 1.0, %v6033
    %v6035 = vrcp.pop %v5945
    %v6036 = vmul.f32 1.0, %v6035
    %v6037 = vrcp.pop %v5946
    %v6038 = vmul.f32 1.0, %v6037
    %v6039 = vrcp.pop %v5947
    %v6040 = vmul.f32 1.0, %v6039
    %v6041 = vrcp.pop %v5948
    %v6042 = vmul.f32 1.0, %v6041
    %v6043 = vrcp.pop %v5949
    %v6044 = vmul.f32 1.0, %v6043
    %v6045 = vrcp.pop %v5950
    %v6046 = vmul.f32 1.0, %v6045
    %v6047 = vmul.f32 %v5214, %v5952
    %v6048 = vmul.f32 %v5216, %v5954
    %v6049 = vmul.f32 %v5327, %v5956
    %v6050 = vmul.f32 %v5218, %v5958
    %v6051 = vmul.f32 %v5220, %v5960
    %v6052 = vmul.f32 %v5330, %v5962
    %v6053 = vmul.f32 %v5224, %v5964
    %v6054 = vmul.f32 %v5226, %v5966
    %v6055 = vmul.f32 %v5335, %v5968
    %v6056 = vmul.f32 %v5228, %v5970
    %v6057 = vmul.f32 %v5230, %v5972
    %v6058 = vmul.f32 %v5338, %v5974
    %v6059 = vmul.f32 %v5234, %v5976
    %v6060 = vmul.f32 %v5236, %v5978
    %v6061 = vmul.f32 %v5343, %v5980
    %v6062 = vmul.f32 %v5238, %v5982
    %v6063 = vmul.f32 %v5240, %v5984
    %v6064 = vmul.f32 %v5346, %v5986
    %v6065 = vmul.f32 %v5244, %v5988
    %v6066 = vmul.f32 %v5246, %v5990
    %v6067 = vmul.f32 %v5351, %v5992
    %v6068 = vmul.f32 %v5248, %v5994
    %v6069 = vmul.f32 %v5250, %v5996
    %v6070 = vmul.f32 %v5354, %v5998
    %v6071 = vmul.f32 %v5254, %v6000
    %v6072 = vmul.f32 %v5256, %v6002
    %v6073 = vmul.f32 %v5359, %v6004
    %v6074 = vmul.f32 %v5258, %v6006
    %v6075 = vmul.f32 %v5260, %v6008
    %v6076 = vmul.f32 %v5362, %v6010
    %v6077 = vmul.f32 %v5264, %v6012
    %v6078 = vmul.f32 %v5266, %v6014
    %v6079 = vmul.f32 %v5367, %v6016
    %v6080 = vmul.f32 %v5268, %v6018
    %v6081 = vmul.f32 %v5270, %v6020
    %v6082 = vmul.f32 %v5370, %v6022
    %v6083 = vmul.f32 %v5274, %v6024
    %v6084 = vmul.f32 %v5276, %v6026
    %v6085 = vmul.f32 %v5375, %v6028
    %v6086 = vmul.f32 %v5278, %v6030
    %v6087 = vmul.f32 %v5280, %v6032
    %v6088 = vmul.f32 %v5378, %v6034
    %v6089 = vmul.f32 %v5284, %v6036
    %v6090 = vmul.f32 %v5286, %v6038
    %v6091 = vmul.f32 %v5383, %v6040
    %v6092 = vmul.f32 %v5288, %v6042
    %v6093 = vmul.f32 %v5290, %v6044
    %v6094 = vmul.f32 %v5386, %v6046
    %v6095 = vmul.f32 %v6047, %v5584
    %v6096 = vmul.f32 %v6048, %v5586
    %v6097 = vmul.f32 %v6049, %v5697
    %v6098 = vmul.f32 %v6050, %v5588
    %v6099 = vmul.f32 %v6051, %v5590
    %v6100 = vmul.f32 %v6052, %v5700
    %v6101 = vmul.f32 %v6053, %v5594
    %v6102 = vmul.f32 %v6054, %v5596
    %v6103 = vmul.f32 %v6055, %v5705
    %v6104 = vmul.f32 %v6056, %v5598
    %v6105 = vmul.f32 %v6057, %v5600
    %v6106 = vmul.f32 %v6058, %v5708
    %v6107 = vmul.f32 %v6059, %v5604
    %v6108 = vmul.f32 %v6060, %v5606
    %v6109 = vmul.f32 %v6061, %v5713
    %v6110 = vmul.f32 %v6062, %v5608
    %v6111 = vmul.f32 %v6063, %v5610
    %v6112 = vmul.f32 %v6064, %v5716
    %v6113 = vmul.f32 %v6065, %v5614
    %v6114 = vmul.f32 %v6066, %v5616
    %v6115 = vmul.f32 %v6067, %v5721
    %v6116 = vmul.f32 %v6068, %v5618
    %v6117 = vmul.f32 %v6069, %v5620
    %v6118 = vmul.f32 %v6070, %v5724
    %v6119 = vmul.f32 %v6071, %v5624
    %v6120 = vmul.f32 %v6072, %v5626
    %v6121 = vmul.f32 %v6073, %v5729
    %v6122 = vmul.f32 %v6074, %v5628
    %v6123 = vmul.f32 %v6075, %v5630
    %v6124 = vmul.f32 %v6076, %v5732
    %v6125 = vmul.f32 %v6077, %v5634
    %v6126 = vmul.f32 %v6078, %v5636
    %v6127 = vmul.f32 %v6079, %v5737
    %v6128 = vmul.f32 %v6080, %v5638
    %v6129 = vmul.f32 %v6081, %v5640
    %v6130 = vmul.f32 %v6082, %v5740
    %v6131 = vmul.f32 %v6083, %v5644
    %v6132 = vmul.f32 %v6084, %v5646
    %v6133 = vmul.f32 %v6085, %v5745
    %v6134 = vmul.f32 %v6086, %v5648
    %v6135 = vmul.f32 %v6087, %v5650
    %v6136 = vmul.f32 %v6088, %v5748
    %v6137 = vmul.f32 %v6089, %v5654
    %v6138 = vmul.f32 %v6090, %v5656
    %v6139 = vmul.f32 %v6091, %v5753
    %v6140 = vmul.f32 %v6092, %v5658
    %v6141 = vmul.f32 %v6093, %v5660
    %v6142 = vmul.f32 %v6094, %v5756
    %v6143 = vpack.c.bf16 %v6098, %v6095
    %v6144 = vpack.c.bf16 %v6099, %v6096
    %v6145 = vpack.c.bf16 %v6100, %v6097
    %v6146 = vpack.c.bf16 %v6104, %v6101
    %v6147 = vpack.c.bf16 %v6105, %v6102
    %v6148 = vpack.c.bf16 %v6106, %v6103
    %v6149 = vpack.c.bf16 %v6110, %v6107
    %v6150 = vpack.c.bf16 %v6111, %v6108
    %v6151 = vpack.c.bf16 %v6112, %v6109
    %v6152 = vpack.c.bf16 %v6116, %v6113
    %v6153 = vpack.c.bf16 %v6117, %v6114
    %v6154 = vpack.c.bf16 %v6118, %v6115
    %v6155 = vpack.c.bf16 %v6122, %v6119
    %v6156 = vpack.c.bf16 %v6123, %v6120
    %v6157 = vpack.c.bf16 %v6124, %v6121
    %v6158 = vpack.c.bf16 %v6128, %v6125
    %v6159 = vpack.c.bf16 %v6129, %v6126
    %v6160 = vpack.c.bf16 %v6130, %v6127
    %v6161 = vpack.c.bf16 %v6134, %v6131
    %v6162 = vpack.c.bf16 %v6135, %v6132
    %v6163 = vpack.c.bf16 %v6136, %v6133
    %v6164 = vpack.c.bf16 %v6140, %v6137
    %v6165 = vpack.c.bf16 %v6141, %v6138
    %v6166 = vpack.c.bf16 %v6142, %v6139
    %v6167 = vld [vmem:[#allocation19] sm:$0xf]
    %v6168 = vld [vmem:[#allocation19 + $0x4] sm:$0xf]
    %v6169 = vld [vmem:[#allocation19 + $0x8] sm:$0xf]
    %v6170 = vld [vmem:[#allocation19 + $0xc] sm:$0xf]
    %v6171 = vld [vmem:[#allocation19 + $0x10] sm:$0xf]
    %v6172 = vld [vmem:[#allocation19 + $0x14] sm:$0xf]
    %v6173 = vld [vmem:[#allocation19 + $0x18] sm:$0xf]
    %v6174 = vld [vmem:[#allocation19 + $0x1c] sm:$0xf]
    %v6175 = vld [vmem:[#allocation19 + $0x20] sm:$0xf]
    %v6176 = vld [vmem:[#allocation19 + $0x24] sm:$0xf]
    %v6177 = vld [vmem:[#allocation19 + $0x28] sm:$0xf]
    %v6178 = vld [vmem:[#allocation19 + $0x2c] sm:$0xf]
    %v6179 = vld [vmem:[#allocation19 + $0x30] sm:$0xf]
    %v6180 = vld [vmem:[#allocation19 + $0x34] sm:$0xf]
    %v6181 = vld [vmem:[#allocation19 + $0x38] sm:$0xf]
    %v6182 = vld [vmem:[#allocation19 + $0x3c] sm:$0xf]
    %v6183 = vld [vmem:[#allocation19 + $0x40] sm:$0xf]
    %v6184 = vld [vmem:[#allocation19 + $0x44] sm:$0xf]
    %v6185 = vld [vmem:[#allocation19 + $0x48] sm:$0xf]
    %v6186 = vld [vmem:[#allocation19 + $0x4c] sm:$0xf]
    %v6187 = vld [vmem:[#allocation19 + $0x50] sm:$0xf]
    %v6188 = vld [vmem:[#allocation19 + $0x54] sm:$0xf]
    %v6189 = vld [vmem:[#allocation19 + $0x58] sm:$0xf]
    %v6190 = vld [vmem:[#allocation19 + $0x5c] sm:$0xf]
    %v6191 = vld [vmem:[#allocation19 + $0x60] sm:$0xf]
    %v6192 = vld [vmem:[#allocation19 + $0x64] sm:$0xf]
    %v6193 = vld [vmem:[#allocation19 + $0x68] sm:$0xf]
    %v6194 = vld [vmem:[#allocation19 + $0x6c] sm:$0xf]
    %v6195 = vld [vmem:[#allocation19 + $0x70] sm:$0xf]
    %v6196 = vld [vmem:[#allocation19 + $0x74] sm:$0xf]
    %v6197 = vld [vmem:[#allocation19 + $0x78] sm:$0xf]
    %v6198 = vld [vmem:[#allocation19 + $0x7c] sm:$0xf]
    %v6199 = vld [vmem:[#allocation19 + $0x80] sm:$0xf]
    %v6200 = vld [vmem:[#allocation19 + $0x84] sm:$0xf]
    %v6201 = vld [vmem:[#allocation19 + $0x88] sm:$0xf]
    %v6202 = vld [vmem:[#allocation19 + $0x8c] sm:$0xf]
    %v6203 = vld [vmem:[#allocation19 + $0x90] sm:$0xf]
    %v6204 = vld [vmem:[#allocation19 + $0x94] sm:$0xf]
    %v6205 = vld [vmem:[#allocation19 + $0x98] sm:$0xf]
    %v6206 = vld [vmem:[#allocation19 + $0x9c] sm:$0xf]
    %v6207 = vld [vmem:[#allocation19 + $0xa0] sm:$0xf]
    %v6208 = vld [vmem:[#allocation19 + $0xa4] sm:$0xf]
    %v6209 = vld [vmem:[#allocation19 + $0xa8] sm:$0xf]
    %v6210 = vld [vmem:[#allocation19 + $0xac] sm:$0xf]
    %v6211 = vld [vmem:[#allocation19 + $0xb0] sm:$0xf]
    %v6212 = vld [vmem:[#allocation19 + $0xb4] sm:$0xf]
    %v6213 = vld [vmem:[#allocation19 + $0xb8] sm:$0xf]
    %v6214 = vld [vmem:[#allocation19 + $0xbc] sm:$0xf]
    %v6263 = vunpack.c.l.b16 %v6167
    %v6264 = vunpack.c.l.b16 %v6168
    %v6265 = vunpack.c.l.b16 %v6169
    %v6266 = vunpack.c.l.b16 %v6170
    %v6267 = vunpack.c.l.b16 %v6171
    %v6268 = vunpack.c.l.b16 %v6172
    %v6269 = vunpack.c.l.b16 %v6173
    %v6270 = vunpack.c.l.b16 %v6174
    %v6271 = vunpack.c.l.b16 %v6175
    %v6272 = vunpack.c.l.b16 %v6176
    %v6273 = vunpack.c.l.b16 %v6177
    %v6274 = vunpack.c.l.b16 %v6178
    %v6275 = vunpack.c.l.b16 %v6179
    %v6276 = vunpack.c.l.b16 %v6180
    %v6277 = vunpack.c.l.b16 %v6181
    %v6278 = vunpack.c.l.b16 %v6182
    %v6279 = vunpack.c.l.b16 %v6183
    %v6280 = vunpack.c.l.b16 %v6184
    %v6281 = vunpack.c.l.b16 %v6185
    %v6282 = vunpack.c.l.b16 %v6186
    %v6283 = vunpack.c.l.b16 %v6187
    %v6284 = vunpack.c.l.b16 %v6188
    %v6285 = vunpack.c.l.b16 %v6189
    %v6286 = vunpack.c.l.b16 %v6190
    %v6287 = vunpack.c.l.b16 %v6191
    %v6288 = vunpack.c.l.b16 %v6192
    %v6289 = vunpack.c.l.b16 %v6193
    %v6290 = vunpack.c.l.b16 %v6194
    %v6291 = vunpack.c.l.b16 %v6195
    %v6292 = vunpack.c.l.b16 %v6196
    %v6293 = vunpack.c.l.b16 %v6197
    %v6294 = vunpack.c.l.b16 %v6198
    %v6295 = vunpack.c.l.b16 %v6199
    %v6296 = vunpack.c.l.b16 %v6200
    %v6297 = vunpack.c.l.b16 %v6201
    %v6298 = vunpack.c.l.b16 %v6202
    %v6299 = vunpack.c.l.b16 %v6203
    %v6300 = vunpack.c.l.b16 %v6204
    %v6301 = vunpack.c.l.b16 %v6205
    %v6302 = vunpack.c.l.b16 %v6206
    %v6303 = vunpack.c.l.b16 %v6207
    %v6304 = vunpack.c.l.b16 %v6208
    %v6305 = vunpack.c.l.b16 %v6209
    %v6306 = vunpack.c.l.b16 %v6210
    %v6307 = vunpack.c.l.b16 %v6211
    %v6308 = vunpack.c.l.b16 %v6212
    %v6309 = vunpack.c.l.b16 %v6213
    %v6310 = vunpack.c.l.b16 %v6214
    %v6311 = vpack.c.b16 %v6264, %v6263
    %v6312 = vpack.c.b16 %v6266, %v6265
    %v6313 = vpack.c.b16 %v6268, %v6267
    %v6314 = vpack.c.b16 %v6270, %v6269
    %v6315 = vpack.c.b16 %v6272, %v6271
    %v6316 = vpack.c.b16 %v6274, %v6273
    %v6317 = vpack.c.b16 %v6276, %v6275
    %v6318 = vpack.c.b16 %v6278, %v6277
    %v6319 = vpack.c.b16 %v6280, %v6279
    %v6320 = vpack.c.b16 %v6282, %v6281
    %v6321 = vpack.c.b16 %v6284, %v6283
    %v6322 = vpack.c.b16 %v6286, %v6285
    %v6323 = vpack.c.b16 %v6288, %v6287
    %v6324 = vpack.c.b16 %v6290, %v6289
    %v6325 = vpack.c.b16 %v6292, %v6291
    %v6326 = vpack.c.b16 %v6294, %v6293
    %v6327 = vpack.c.b16 %v6296, %v6295
    %v6328 = vpack.c.b16 %v6298, %v6297
    %v6329 = vpack.c.b16 %v6300, %v6299
    %v6330 = vpack.c.b16 %v6302, %v6301
    %v6331 = vpack.c.b16 %v6304, %v6303
    %v6332 = vpack.c.b16 %v6306, %v6305
    %v6333 = vpack.c.b16 %v6308, %v6307
    %v6334 = vpack.c.b16 %v6310, %v6309
    %6359 = vmatprep.subr.bf16.mxu0 0
    %6360 = vmatpush1.bf16.msra.mxu0 %v6311
    %6361 = vmatprep.subr.bf16.mxu0 0
    %6362 = vmatpush1.bf16.msra.mxu0 %v6312
    %6363 = vmatprep.subr.bf16.mxu0 0
    %6364 = vmatpush1.bf16.msra.mxu0 %v6313
    %6365 = vmatprep.subr.bf16.mxu0 0
    %6366 = vmatpush1.bf16.msra.mxu0 %v6314
    %6367 = vmatprep.subr.bf16.mxu0 0
    %6368 = vmatpush1.bf16.msra.mxu0 %v6315
    %6369 = vmatprep.subr.bf16.mxu0 0
    %6370 = vmatpush1.bf16.msra.mxu0 %v6316
    %6371 = vmatprep.subr.bf16.mxu0 0
    %6372 = vmatpush1.bf16.msra.mxu0 %v6317
    %6373 = vmatprep.subr.bf16.mxu0 0
    %6374 = vmatpush1.bf16.msra.mxu0 %v6318
    %6375 = vmatprep.subr.bf16.mxu0 0
    %6376 = vmatpush1.bf16.msra.mxu0 %v6319
    %6377 = vmatprep.subr.bf16.mxu0 0
    %6378 = vmatpush1.bf16.msra.mxu0 %v6320
    %6379 = vmatprep.subr.bf16.mxu0 0
    %6380 = vmatpush1.bf16.msra.mxu0 %v6321
    %6381 = vmatprep.subr.bf16.mxu0 0
    %6382 = vmatpush1.bf16.msra.mxu0 %v6322
    %6383 = vmatprep.subr.bf16.mxu0 0
    %6384 = vmatpush1.bf16.msra.mxu0 %v6323
    %6385 = vmatprep.subr.bf16.mxu0 0
    %6386 = vmatpush1.bf16.msra.mxu0 %v6324
    %6387 = vmatprep.subr.bf16.mxu0 0
    %6388 = vmatpush1.bf16.msra.mxu0 %v6325
    %6389 = vmatprep.subr.bf16.mxu0 0
    %6390 = vmatpush1.bf16.msra.mxu0 %v6326
    %6391 = vmatprep.mubr.bf16.mxu0 %v6144
    %6392 = vmatmul.mubr.bf16.gmra.mrb[0].mxu0 %v6143
    %v6393 = vpop.f32.mrb[0].mxu0
    %v6394 = vadd.f32 0.0, %v6393
    %v6395 = vpop.f32.mrb[0].mxu0
    %v6396 = vpop.f32.mrb[0].mxu0
    %v6397 = vadd.f32 0.0, %v6396
    %v6398 = vpop.f32.mrb[0].mxu0
    %6399 = vmatprep.mubr.bf16.mxu0 %v6147
    %6400 = vmatmul.mubr.bf16.gmra.mrb[0].mxu0 %v6146
    %v6401 = vpop.f32.mrb[0].mxu0
    %v6402 = vadd.f32 0.0, %v6401
    %v6403 = vpop.f32.mrb[0].mxu0
    %v6404 = vpop.f32.mrb[0].mxu0
    %v6405 = vadd.f32 0.0, %v6404
    %v6406 = vpop.f32.mrb[0].mxu0
    %6407 = vmatprep.mubr.bf16.mxu0 %v6150
    %6408 = vmatmul.mubr.bf16.gmra.mrb[0].mxu0 %v6149
    %v6409 = vpop.f32.mrb[0].mxu0
    %v6410 = vadd.f32 0.0, %v6409
    %v6411 = vpop.f32.mrb[0].mxu0
    %v6412 = vpop.f32.mrb[0].mxu0
    %v6413 = vadd.f32 0.0, %v6412
    %v6414 = vpop.f32.mrb[0].mxu0
    %6415 = vmatprep.mubr.bf16.mxu0 %v6153
    %6416 = vmatmul.mubr.bf16.gmra.mrb[0].mxu0 %v6152
    %v6417 = vpop.f32.mrb[0].mxu0
    %v6418 = vadd.f32 0.0, %v6417
    %v6419 = vpop.f32.mrb[0].mxu0
    %v6420 = vpop.f32.mrb[0].mxu0
    %v6421 = vadd.f32 0.0, %v6420
    %v6422 = vpop.f32.mrb[0].mxu0
    %6423 = vmatprep.mubr.bf16.mxu0 %v6156
    %6424 = vmatmul.mubr.bf16.gmra.mrb[0].mxu0 %v6155
    %v6425 = vpop.f32.mrb[0].mxu0
    %v6426 = vadd.f32 0.0, %v6425
    %v6427 = vpop.f32.mrb[0].mxu0
    %v6428 = vpop.f32.mrb[0].mxu0
    %v6429 = vadd.f32 0.0, %v6428
    %v6430 = vpop.f32.mrb[0].mxu0
    %6431 = vmatprep.mubr.bf16.mxu0 %v6159
    %6432 = vmatmul.mubr.bf16.gmra.mrb[0].mxu0 %v6158
    %v6433 = vpop.f32.mrb[0].mxu0
    %v6434 = vadd.f32 0.0, %v6433
    %v6435 = vpop.f32.mrb[0].mxu0
    %v6436 = vpop.f32.mrb[0].mxu0
    %v6437 = vadd.f32 0.0, %v6436
    %v6438 = vpop.f32.mrb[0].mxu0
    %6439 = vmatprep.mubr.bf16.mxu0 %v6162
    %6440 = vmatmul.mubr.bf16.gmra.mrb[0].mxu0 %v6161
    %v6441 = vpop.f32.mrb[0].mxu0
    %v6442 = vadd.f32 0.0, %v6441
    %v6443 = vpop.f32.mrb[0].mxu0
    %v6444 = vpop.f32.mrb[0].mxu0
    %v6445 = vadd.f32 0.0, %v6444
    %v6446 = vpop.f32.mrb[0].mxu0
    %6447 = vmatprep.mubr.bf16.mxu0 %v6165
    %6448 = vmatmul.mubr.bf16.gmra.mrb[0].mxu0 %v6164
    %v6449 = vpop.f32.mrb[0].mxu0
    %v6450 = vadd.f32 0.0, %v6449
    %v6451 = vpop.f32.mrb[0].mxu0
    %v6452 = vpop.f32.mrb[0].mxu0
    %v6453 = vadd.f32 0.0, %v6452
    %v6454 = vpop.f32.mrb[0].mxu0
    %6455 = vdwg.mxu0
    %6456 = vmatprep.subr.bf16.mxu0 0
    %6457 = vmatpush1.bf16.msra.mxu0 %v6327
    %6458 = vmatprep.subr.bf16.mxu0 0
    %6459 = vmatpush1.bf16.msra.mxu0 %v6328
    %6460 = vmatprep.subr.bf16.mxu0 0
    %6461 = vmatpush1.bf16.msra.mxu0 %v6329
    %6462 = vmatprep.subr.bf16.mxu0 0
    %6463 = vmatpush1.bf16.msra.mxu0 %v6330
    %6464 = vmatprep.subr.bf16.mxu0 0
    %6465 = vmatpush1.bf16.msra.mxu0 %v6331
    %6466 = vmatprep.subr.bf16.mxu0 0
    %6467 = vmatpush1.bf16.msra.mxu0 %v6332
    %6468 = vmatprep.subr.bf16.mxu0 0
    %6469 = vmatpush1.bf16.msra.mxu0 %v6333
    %6470 = vmatprep.subr.bf16.mxu0 0
    %6471 = vmatpush1.bf16.msra.mxu0 %v6334
    %6472 = vmatprep.subr.bf16.mxu0 0
    %6473 = vmatpush1.bf16.msra.mxu0 0
    %6474 = vmatprep.subr.bf16.mxu0 0
    %6475 = vmatpush1.bf16.msra.mxu0 0
    %6476 = vmatprep.subr.bf16.mxu0 0
    %6477 = vmatpush1.bf16.msra.mxu0 0
    %6478 = vmatprep.subr.bf16.mxu0 0
    %6479 = vmatpush1.bf16.msra.mxu0 0
    %6480 = vmatprep.subr.bf16.mxu0 0
    %6481 = vmatpush1.bf16.msra.mxu0 0
    %6482 = vmatprep.subr.bf16.mxu0 0
    %6483 = vmatpush1.bf16.msra.mxu0 0
    %6484 = vmatprep.subr.bf16.mxu0 0
    %6485 = vmatpush1.bf16.msra.mxu0 0
    %6486 = vmatprep.subr.bf16.mxu0 0
    %6487 = vmatpush1.bf16.msra.mxu0 0
    %6488 = vmatprep.mubr.bf16.mxu0 0
    %6489 = vmatmul.mubr.bf16.gmra.mrb[0].mxu0 %v6145
    %v6490 = vpop.f32.mrb[0].mxu0
    %v6491 = vadd.f32 %v6394, %v6490
    %v6492 = vpop.f32.mrb[0].mxu0
    %v6493 = vpop.f32.mrb[0].mxu0
    %v6494 = vadd.f32 %v6397, %v6493
    %v6495 = vpop.f32.mrb[0].mxu0
    %6496 = vmatprep.mubr.bf16.mxu0 0
    %6497 = vmatmul.mubr.bf16.gmra.mrb[0].mxu0 %v6148
    %v6498 = vpop.f32.mrb[0].mxu0
    %v6499 = vadd.f32 %v6402, %v6498
    %v6500 = vpop.f32.mrb[0].mxu0
    %v6501 = vpop.f32.mrb[0].mxu0
    %v6502 = vadd.f32 %v6405, %v6501
    %v6503 = vpop.f32.mrb[0].mxu0
    %6504 = vmatprep.mubr.bf16.mxu0 0
    %6505 = vmatmul.mubr.bf16.gmra.mrb[0].mxu0 %v6151
    %v6506 = vpop.f32.mrb[0].mxu0
    %v6507 = vadd.f32 %v6410, %v6506
    %v6508 = vpop.f32.mrb[0].mxu0
    %v6509 = vpop.f32.mrb[0].mxu0
    %v6510 = vadd.f32 %v6413, %v6509
    %v6511 = vpop.f32.mrb[0].mxu0
    %6512 = vmatprep.mubr.bf16.mxu0 0
    %6513 = vmatmul.mubr.bf16.gmra.mrb[0].mxu0 %v6154
    %v6514 = vpop.f32.mrb[0].mxu0
    %v6515 = vadd.f32 %v6418, %v6514
    %v6516 = vpop.f32.mrb[0].mxu0
    %v6517 = vpop.f32.mrb[0].mxu0
    %v6518 = vadd.f32 %v6421, %v6517
    %v6519 = vpop.f32.mrb[0].mxu0
    %6520 = vmatprep.mubr.bf16.mxu0 0
    %6521 = vmatmul.mubr.bf16.gmra.mrb[0].mxu0 %v6157
    %v6522 = vpop.f32.mrb[0].mxu0
    %v6523 = vadd.f32 %v6426, %v6522
    %v6524 = vpop.f32.mrb[0].mxu0
    %v6525 = vpop.f32.mrb[0].mxu0
    %v6526 = vadd.f32 %v6429, %v6525
    %v6527 = vpop.f32.mrb[0].mxu0
    %6528 = vmatprep.mubr.bf16.mxu0 0
    %6529 = vmatmul.mubr.bf16.gmra.mrb[0].mxu0 %v6160
    %v6530 = vpop.f32.mrb[0].mxu0
    %v6531 = vadd.f32 %v6434, %v6530
    %v6532 = vpop.f32.mrb[0].mxu0
    %v6533 = vpop.f32.mrb[0].mxu0
    %v6534 = vadd.f32 %v6437, %v6533
    %v6535 = vpop.f32.mrb[0].mxu0
    %6536 = vmatprep.mubr.bf16.mxu0 0
    %6537 = vmatmul.mubr.bf16.gmra.mrb[0].mxu0 %v6163
    %v6538 = vpop.f32.mrb[0].mxu0
    %v6539 = vadd.f32 %v6442, %v6538
    %v6540 = vpop.f32.mrb[0].mxu0
    %v6541 = vpop.f32.mrb[0].mxu0
    %v6542 = vadd.f32 %v6445, %v6541
    %v6543 = vpop.f32.mrb[0].mxu0
    %6544 = vmatprep.mubr.bf16.mxu0 0
    %6545 = vmatmul.mubr.bf16.gmra.mrb[0].mxu0 %v6166
    %v6546 = vpop.f32.mrb[0].mxu0
    %v6547 = vadd.f32 %v6450, %v6546
    %v6548 = vpop.f32.mrb[0].mxu0
    %v6549 = vpop.f32.mrb[0].mxu0
    %v6550 = vadd.f32 %v6453, %v6549
    %v6551 = vpop.f32.mrb[0].mxu0
    %6552 = vdwg.mxu0
    %v6553 = vadd.f32 %v4773, %v6491
    %v6554 = vadd.f32 %v4774, %v6494
    %v6555 = vadd.f32 %v4775, %v6499
    %v6556 = vadd.f32 %v4776, %v6502
    %v6557 = vadd.f32 %v4777, %v6507
    %v6558 = vadd.f32 %v4778, %v6510
    %v6559 = vadd.f32 %v4779, %v6515
    %v6560 = vadd.f32 %v4780, %v6518
    %v6561 = vadd.f32 %v4781, %v6523
    %v6562 = vadd.f32 %v4782, %v6526
    %v6563 = vadd.f32 %v4783, %v6531
    %v6564 = vadd.f32 %v4784, %v6534
    %v6565 = vadd.f32 %v4785, %v6539
    %v6566 = vadd.f32 %v4786, %v6542
    %v6567 = vadd.f32 %v4787, %v6547
    %v6568 = vadd.f32 %v4788, %v6550
    %6569 = vst [vmem:[#allocation20] sm:$0xff] %v6553
    %6570 = vst [vmem:[#allocation20 + $0x8] sm:$0xff] %v6554
    %6571 = vst [vmem:[#allocation20 + $0x10] sm:$0xff] %v6555
    %6572 = vst [vmem:[#allocation20 + $0x18] sm:$0xff] %v6556
    %6573 = vst [vmem:[#allocation20 + $0x20] sm:$0xff] %v6557
    %6574 = vst [vmem:[#allocation20 + $0x28] sm:$0xff] %v6558
    %6575 = vst [vmem:[#allocation20 + $0x30] sm:$0xff] %v6559
    %6576 = vst [vmem:[#allocation20 + $0x38] sm:$0xff] %v6560
    %6577 = vst [vmem:[#allocation20 + $0x40] sm:$0xff] %v6561
    %6578 = vst [vmem:[#allocation20 + $0x48] sm:$0xff] %v6562
    %6579 = vst [vmem:[#allocation20 + $0x50] sm:$0xff] %v6563
    %6580 = vst [vmem:[#allocation20 + $0x58] sm:$0xff] %v6564
    %6581 = vst [vmem:[#allocation20 + $0x60] sm:$0xff] %v6565
    %6582 = vst [vmem:[#allocation20 + $0x68] sm:$0xff] %v6566
    %6583 = vst [vmem:[#allocation20 + $0x70] sm:$0xff] %v6567
    %6584 = vst [vmem:[#allocation20 + $0x78] sm:$0xff] %v6568
    // Predicated region
    $region130: #{tpu_custom_call.1} parent=1 // pred_check
      _
    $region131: #{tpu_custom_call.1} parent=1 // pred_check_branch
      %6586 = sbr.rel (0) target = $region133
    $region132: #{tpu_custom_call.1} parent=1 // pred_region
      %s6588 = ssub.s32 2048, 2048
      %6589 = vsyncadd [#allocation4], %s6588
      %s6590 = sshll.u32 [#allocation20], 4
      %s6591 = int_to_ptr.vmem [resolvable:$true] %s6590
      %6596 = dma.vmem_to_hbm [thread:$0]  %s6591, 2048, %s21, [#allocation4], 128, 128, 8
    $region133: #{tpu_custom_call.1} parent=1 // pred_fallthru
      _
    // Predicated region
    $region134: #{tpu_custom_call.1} parent=1 // pred_check
      _
    $region135: #{tpu_custom_call.1} parent=1 // pred_check_branch
      %6598 = sbr.rel (0) target = $region137
    $region136: #{tpu_custom_call.1} parent=1 // pred_region
      %6599 = dma.done [#allocation4], 2048
    $region137: #{tpu_custom_call.1} parent=1 // pred_fallthru
      _
    %6600 = vsyncpa [#allocation3], 1
    %6601 = vsyncpa [#allocation6], 1
    %6602 = vsyncpa [#allocation9], 1
    %6603 = vsyncpa [#allocation12], 1
    %6604 = vsyncpa [#allocation15], 1
    %6605 = vsyncpa [#allocation18], 1
    %6606 = vsyncpa [#allocation4], 1

</llo_original>
